<compile_context>
chip_gen: v6e
topology: v6e:2x2x1
jax: 0.10.0
libtpu: 0.0.40
codegen_flags: <defaults>
</compile_context>

<pallas_src>
import functools

import jax
import jax.numpy as jnp
from jax.experimental import pallas as pl
from jax.experimental.pallas import tpu as pltpu


_SQRT_2_OVER_PI = 0.7978845608028654


def _gelu_tanh(h):
    # TODO(synk): PyTorch F.gelu default is the exact erf form; erf has no
    # guaranteed Mosaic lowering, so the tanh approximation is used here.
    return 0.5 * h * (1.0 + jnp.tanh(_SQRT_2_OVER_PI * (h + 0.044715 * h * h * h)))


def _ffn_kernel(x_ref, w_up_ref, b_up_ref, w_dn_ref, b_dn_ref, o_ref, acc_ref, *, th):
    """One (tm, D) token tile: o = gelu(x @ Wup + bup) @ Wdn + bdn.

    The hidden dim H is swept in static `th`-wide chunks so the live f32
    intermediates stay small; partial products accumulate into a (tm, D)
    f32 VMEM scratch. Matmul operands stay in storage dtype (bf16-friendly),
    accumulation/elementwise math in f32.
    """
    x = x_ref[...]
    H = w_up_ref.shape[-1]
    acc_ref[...] = jnp.zeros_like(acc_ref)
    for off in range(0, H, th):  # static offsets -> static slices, fully unrolled
        h = jnp.dot(x, w_up_ref[:, off:off + th],
                    preferred_element_type=jnp.float32)
        h = h + b_up_ref[:, off:off + th]             # biases already f32
        g = _gelu_tanh(h).astype(w_dn_ref.dtype)      # back to MXU operand dtype
        acc_ref[...] += jnp.dot(g, w_dn_ref[off:off + th, :],
                                preferred_element_type=jnp.float32)
    o_ref[...] = (acc_ref[...] + b_dn_ref[...]).astype(o_ref.dtype)


def _round_up(x, m):
    return (x + m - 1) // m * m


def _vmem_cap_bytes():
    # Generation-aware physical VMEM (v5e/v6e: 128 MiB; v7x: 64 MiB per core).
    try:
        return int(pltpu.get_tpu_info().vmem_capacity_bytes)
    except Exception:
        return 64 << 20  # conservative fallback (v7x per-core)


def feed_forward(x, w_up, b_up, w_dn, b_dn, *, token_tile=512, hidden_chunk=512,
                 interpret=False):
    """proj_down(gelu(proj_up(x))) for x of shape (..., D).

    Weights are stored (in_features, out_features) (i.e. nn.Linear.weight.T),
    biases are 1-D.
    """
    orig_shape = x.shape
    D = orig_shape[-1]
    H = w_up.shape[1]
    assert w_up.shape == (D, H) and w_dn.shape == (H, D)
    assert b_up.shape == (H,) and b_dn.shape == (D,)

    # Flatten leading axes into one token axis -> fat MXU tiles, parallel grid.
    x2 = x.reshape(-1, D)
    T = x2.shape[0]

    # Hidden-dim chunk: largest multiple of 128 that divides H (<= hidden_chunk).
    th = H
    for cand in (hidden_chunk, 1024, 512, 256, 128):
        if 0 < cand <= H and H % cand == 0 and cand % 128 == 0:
            th = cand
            break

    x_item = jnp.dtype(x.dtype).itemsize
    w_item = jnp.dtype(w_up.dtype).itemsize

    cap = _vmem_cap_bytes()
    budget = int(cap * 0.85)  # leave headroom for compiler scratch

    def vmem_est(tm_, th_, weight_bufs):
        return (2 * tm_ * D * x_item                      # x tile (double-buffered)
                + 2 * tm_ * D * x_item                    # out tile (double-buffered)
                + weight_bufs * (D * H + H * D) * w_item  # resident weights
                + weight_bufs * (H + D) * 4               # f32 biases
                + tm_ * D * 4                             # f32 accumulator scratch
                + 2 * tm_ * th_ * 4                       # f32 h/g chunk intermediates
                + (4 << 20))                              # margin

    # Token tile: start large, guarantee >=4 grid steps (pipeline depth for the
    # 2 TCs under megacore sharding), then shrink until the estimate fits.
    tm = _round_up(min(token_tile, _round_up(max(T, 8), 8)), 8)
    while tm > 128 and T // tm < 4:
        tm //= 2
    while tm > 128 and vmem_est(tm, th, 1) > budget:
        tm //= 2
    while th > 128 and H % (th // 2) == 0 and vmem_est(tm, th, 1) > budget:
        th //= 2
    # TODO(synk): for widths where even tm=128/th=128 with single-buffered
    # resident weights exceeds the v7x budget, stream W_up/W_dn over a second
    # "arbitrary" H grid axis instead of keeping them resident.

    T_pad = _round_up(T, tm)
    if T_pad != T:
        x2 = jnp.pad(x2, ((0, T_pad - T), (0, 0)))
    grid = (T_pad // tm,)

    # Pre-cast biases to f32 once (not per grid step inside the kernel).
    b_up2 = b_up.reshape(1, H).astype(jnp.float32)
    b_dn2 = b_dn.reshape(1, D).astype(jnp.float32)

    kernel = functools.partial(_ffn_kernel, th=th)

    cost = pl.CostEstimate(
        flops=4 * T_pad * D * H,            # two (T,D)x(D,H)-sized matmuls
        transcendentals=T_pad * H,          # one tanh per hidden activation
        bytes_accessed=(2 * T_pad * D * x_item      # x in + out
                        + (D * H + H * D) * w_item  # weights
                        + (H + D) * 4),             # biases
    )

    def build_call(single_buffer_weights):
        if single_buffer_weights:
            def res(shape):
                return pl.BlockSpec(shape, lambda i: (0, 0),
                                    pipeline_mode=pl.Buffered(1))
        else:
            def res(shape):
                return pl.BlockSpec(shape, lambda i: (0, 0))
        wbufs = 1 if single_buffer_weights else 2
        vmem_bytes = int(min(max(vmem_est(tm, th, wbufs), 16 << 20), budget))
        return pl.pallas_call(
            kernel,
            out_shape=jax.ShapeDtypeStruct((T_pad, D), x.dtype),
            grid=grid,
            in_specs=[
                pl.BlockSpec((tm, D), lambda i: (i, 0)),  # x: streamed token tile
                res((D, H)),                              # W_up (resident)
                res((1, H)),                              # b_up (resident, f32)
                res((H, D)),                              # W_dn (resident)
                res((1, D)),                              # b_dn (resident, f32)
            ],
            out_specs=pl.BlockSpec((tm, D), lambda i: (i, 0)),
            scratch_shapes=[pltpu.VMEM((tm, D), jnp.float32)],
            compiler_params=pltpu.CompilerParams(
                dimension_semantics=("parallel",),
                vmem_limit_bytes=vmem_bytes),
            cost_estimate=cost,
            interpret=interpret,
        )

    try:
        out = build_call(True)(x2, w_up, b_up2, w_dn, b_dn2)
    except Exception:
        # TODO(synk): this Pallas build rejected single-buffered (pl.Buffered(1))
        # resident operands; fall back to default double-buffering.
        out = build_call(False)(x2, w_up, b_up2, w_dn, b_dn2)

    return out[:T].reshape(orig_shape)


def feed_forward_ref(x, w_up, b_up, w_dn, b_dn):
    """Pure-JAX reference mirroring the PyTorch forward (tanh-approx GELU)."""
    h = x @ w_up + b_up
    g = 0.5 * h * (1.0 + jnp.tanh(_SQRT_2_OVER_PI * (h + 0.044715 * h ** 3)))
    return g @ w_dn + b_dn


if __name__ == "__main__":
    # Small shapes consistent with FeedForward (expansion_factor = 4):
    # dim=256 -> hidden=1024, batch=2, seq=256. Exercises >=2 hidden chunks
    # and >=4 token-tile grid steps.
    B, N, D = 2, 256, 256
    H = 4 * D

    key = jax.random.PRNGKey(0)
    kx, kw1, kb1, kw2, kb2 = jax.random.split(key, 5)

    x = jax.random.normal(kx, (B, N, D), dtype=jnp.float32)
    # Weights stored (in_features, out_features) == nn.Linear.weight.T.
    w_up = jax.random.normal(kw1, (D, H), dtype=jnp.float32) * 0.02
    b_up = jax.random.normal(kb1, (H,), dtype=jnp.float32) * 0.02
    w_dn = jax.random.normal(kw2, (H, D), dtype=jnp.float32) * 0.02
    b_dn = jax.random.normal(kb2, (D,), dtype=jnp.float32) * 0.02

    # f32 path: tight check against the pure-JAX reference.
    out = jax.block_until_ready(feed_forward(x, w_up, b_up, w_dn, b_dn))
    ref = feed_forward_ref(x, w_up, b_up, w_dn, b_dn)
    assert out.shape == (B, N, D), out.shape
    max_err = float(jnp.max(jnp.abs(out - ref)))
    assert jnp.allclose(out, ref, atol=5e-3, rtol=5e-3), max_err

    # bf16 path: MXU-native operands (what real callers should pass on v6e/v7x);
    # accumulation stays f32 inside the kernel.
    xb, wub, bub, wdb, bdb = (a.astype(jnp.bfloat16)
                              for a in (x, w_up, b_up, w_dn, b_dn))
    out_bf = jax.block_until_ready(feed_forward(xb, wub, bub, wdb, bdb))
    ref_bf = feed_forward_ref(*(a.astype(jnp.float32)
                                for a in (xb, wub, bub, wdb, bdb)))
    assert out_bf.dtype == jnp.bfloat16
    max_err_bf = float(jnp.max(jnp.abs(out_bf.astype(jnp.float32) - ref_bf)))
    assert max_err_bf < 2e-2, max_err_bf

    print("KERNEL_OK")
</pallas_src>

<mosaic_0001>
module attributes {stable_mosaic.version = 11 : i64} {
  func.func @_ffn_kernel(%arg0: i32, %arg1: memref<128x256xf32, #tpu.memory_space<vmem>>, %arg2: memref<256x1024xf32, #tpu.memory_space<vmem>>, %arg3: memref<1x1024xf32, #tpu.memory_space<vmem>>, %arg4: memref<1024x256xf32, #tpu.memory_space<vmem>>, %arg5: memref<1x256xf32, #tpu.memory_space<vmem>>, %arg6: memref<128x256xf32, #tpu.memory_space<vmem>>, %arg7: memref<128x256xf32, #tpu.memory_space<vmem>>) attributes {dimension_semantics = [#tpu.dimension_semantics<parallel>], iteration_bounds = array<i64: 4>, scalar_prefetch = 0 : i64, scratch_operands = 1 : i64, tpu.core_type = #tpu.core_type<tc>, window_params = [{transform_indices = @transform_0, window_bounds = array<i64: 128, 256>}, {pipeline_mode = #tpu.pipeline_mode<synchronous>, transform_indices = @transform_1, window_bounds = array<i64: 256, 1024>}, {pipeline_mode = #tpu.pipeline_mode<synchronous>, transform_indices = @transform_2, window_bounds = array<i64: 1, 1024>}, {pipeline_mode = #tpu.pipeline_mode<synchronous>, transform_indices = @transform_3, window_bounds = array<i64: 1024, 256>}, {pipeline_mode = #tpu.pipeline_mode<synchronous>, transform_indices = @transform_4, window_bounds = array<i64: 1, 256>}, {transform_indices = @transform_5, window_bounds = array<i64: 128, 256>}]} {
    %c0 = arith.constant 0 : index
    %c0_0 = arith.constant 0 : index
    %0 = vector.load %arg1[%c0, %c0_0] : memref<128x256xf32, #tpu.memory_space<vmem>>, vector<128x256xf32>
    %cst = arith.constant 0.000000e+00 : f32
    %1 = vector.broadcast %cst : f32 to vector<128x256xf32>
    %c0_1 = arith.constant 0 : index
    %c0_2 = arith.constant 0 : index
    %2 = vector.load %arg7[%c0_1, %c0_2] : memref<128x256xf32, #tpu.memory_space<vmem>>, vector<128x256xf32>
    tpu.vector_store %arg7[%c0_1, %c0_2], %1 {strides = array<i32>} : memref<128x256xf32, #tpu.memory_space<vmem>>, vector<128x256xf32>,
    %c0_3 = arith.constant 0 : index
    %c0_4 = arith.constant 0 : index
    %3 = vector.load %arg2[%c0_3, %c0_4] : memref<256x1024xf32, #tpu.memory_space<vmem>>, vector<256x512xf32>
    %cst_5 = arith.constant dense<0.000000e+00> : vector<128x512xf32>
    %4 = tpu.matmul %0, %3, %cst_5 {dimension_numbers = #tpu.dot_dimension_numbers<[1], [0], [0], [1], [0, 0, 1, 1], [], []>} : vector<128x256xf32>, vector<256x512xf32>, vector<128x512xf32> -> vector<128x512xf32>
    %c0_6 = arith.constant 0 : index
    %c0_7 = arith.constant 0 : index
    %5 = vector.load %arg3[%c0_6, %c0_7] : memref<1x1024xf32, #tpu.memory_space<vmem>>, vector<1x512xf32>
    %6 = vector.broadcast %5 : vector<1x512xf32> to vector<128x512xf32>
    %7 = arith.addf %4, %6 : vector<128x512xf32>
    %cst_8 = arith.constant 5.000000e-01 : f32
    %8 = vector.broadcast %cst_8 : f32 to vector<128x512xf32>
    %9 = arith.mulf %8, %7 : vector<128x512xf32>
    %cst_9 = arith.constant 4.471500e-02 : f32
    %10 = vector.broadcast %cst_9 : f32 to vector<128x512xf32>
    %11 = arith.mulf %10, %7 : vector<128x512xf32>
    %12 = arith.mulf %11, %7 : vector<128x512xf32>
    %13 = arith.mulf %12, %7 : vector<128x512xf32>
    %14 = arith.addf %7, %13 : vector<128x512xf32>
    %cst_10 = arith.constant 0.797884583 : f32
    %15 = vector.broadcast %cst_10 : f32 to vector<128x512xf32>
    %16 = arith.mulf %15, %14 : vector<128x512xf32>
    %17 = math.tanh %16 : vector<128x512xf32>
    %cst_11 = arith.constant 1.000000e+00 : f32
    %18 = vector.broadcast %cst_11 : f32 to vector<128x512xf32>
    %19 = arith.addf %18, %17 : vector<128x512xf32>
    %20 = arith.mulf %9, %19 : vector<128x512xf32>
    %c0_12 = arith.constant 0 : index
    %c0_13 = arith.constant 0 : index
    %21 = vector.load %arg7[%c0_12, %c0_13] : memref<128x256xf32, #tpu.memory_space<vmem>>, vector<128x256xf32>
    %c0_14 = arith.constant 0 : index
    %c0_15 = arith.constant 0 : index
    %22 = vector.load %arg4[%c0_14, %c0_15] : memref<1024x256xf32, #tpu.memory_space<vmem>>, vector<512x256xf32>
    %cst_16 = arith.constant dense<0.000000e+00> : vector<128x256xf32>
    %23 = tpu.matmul %20, %22, %cst_16 {dimension_numbers = #tpu.dot_dimension_numbers<[1], [0], [0], [1], [0, 0, 1, 1], [], []>} : vector<128x512xf32>, vector<512x256xf32>, vector<128x256xf32> -> vector<128x256xf32>
    %24 = arith.addf %21, %23 : vector<128x256xf32>
    %c0_17 = arith.constant 0 : index
    %c0_18 = arith.constant 0 : index
    %25 = vector.load %arg7[%c0_17, %c0_18] : memref<128x256xf32, #tpu.memory_space<vmem>>, vector<128x256xf32>
    tpu.vector_store %arg7[%c0_17, %c0_18], %24 {strides = array<i32>} : memref<128x256xf32, #tpu.memory_space<vmem>>, vector<128x256xf32>,
    %c0_19 = arith.constant 0 : index
    %c512 = arith.constant 512 : index
    %26 = vector.load %arg2[%c0_19, %c512] : memref<256x1024xf32, #tpu.memory_space<vmem>>, vector<256x512xf32>
    %cst_20 = arith.constant dense<0.000000e+00> : vector<128x512xf32>
    %27 = tpu.matmul %0, %26, %cst_20 {dimension_numbers = #tpu.dot_dimension_numbers<[1], [0], [0], [1], [0, 0, 1, 1], [], []>} : vector<128x256xf32>, vector<256x512xf32>, vector<128x512xf32> -> vector<128x512xf32>
    %c0_21 = arith.constant 0 : index
    %c512_22 = arith.constant 512 : index
    %28 = vector.load %arg3[%c0_21, %c512_22] : memref<1x1024xf32, #tpu.memory_space<vmem>>, vector<1x512xf32>
    %29 = vector.broadcast %28 : vector<1x512xf32> to vector<128x512xf32>
    %30 = arith.addf %27, %29 : vector<128x512xf32>
    %cst_23 = arith.constant 5.000000e-01 : f32
    %31 = vector.broadcast %cst_23 : f32 to vector<128x512xf32>
    %32 = arith.mulf %31, %30 : vector<128x512xf32>
    %cst_24 = arith.constant 4.471500e-02 : f32
    %33 = vector.broadcast %cst_24 : f32 to vector<128x512xf32>
    %34 = arith.mulf %33, %30 : vector<128x512xf32>
    %35 = arith.mulf %34, %30 : vector<128x512xf32>
    %36 = arith.mulf %35, %30 : vector<128x512xf32>
    %37 = arith.addf %30, %36 : vector<128x512xf32>
    %cst_25 = arith.constant 0.797884583 : f32
    %38 = vector.broadcast %cst_25 : f32 to vector<128x512xf32>
    %39 = arith.mulf %38, %37 : vector<128x512xf32>
    %40 = math.tanh %39 : vector<128x512xf32>
    %cst_26 = arith.constant 1.000000e+00 : f32
    %41 = vector.broadcast %cst_26 : f32 to vector<128x512xf32>
    %42 = arith.addf %41, %40 : vector<128x512xf32>
    %43 = arith.mulf %32, %42 : vector<128x512xf32>
    %c0_27 = arith.constant 0 : index
    %c0_28 = arith.constant 0 : index
    %44 = vector.load %arg7[%c0_27, %c0_28] : memref<128x256xf32, #tpu.memory_space<vmem>>, vector<128x256xf32>
    %c512_29 = arith.constant 512 : index
    %c0_30 = arith.constant 0 : index
    %45 = vector.load %arg4[%c512_29, %c0_30] : memref<1024x256xf32, #tpu.memory_space<vmem>>, vector<512x256xf32>
    %cst_31 = arith.constant dense<0.000000e+00> : vector<128x256xf32>
    %46 = tpu.matmul %43, %45, %cst_31 {dimension_numbers = #tpu.dot_dimension_numbers<[1], [0], [0], [1], [0, 0, 1, 1], [], []>} : vector<128x512xf32>, vector<512x256xf32>, vector<128x256xf32> -> vector<128x256xf32>
    %47 = arith.addf %44, %46 : vector<128x256xf32>
    %c0_32 = arith.constant 0 : index
    %c0_33 = arith.constant 0 : index
    %48 = vector.load %arg7[%c0_32, %c0_33] : memref<128x256xf32, #tpu.memory_space<vmem>>, vector<128x256xf32>
    tpu.vector_store %arg7[%c0_32, %c0_33], %47 {strides = array<i32>} : memref<128x256xf32, #tpu.memory_space<vmem>>, vector<128x256xf32>,
    %c0_34 = arith.constant 0 : index
    %c0_35 = arith.constant 0 : index
    %49 = vector.load %arg7[%c0_34, %c0_35] : memref<128x256xf32, #tpu.memory_space<vmem>>, vector<128x256xf32>
    %c0_36 = arith.constant 0 : index
    %c0_37 = arith.constant 0 : index
    %50 = vector.load %arg5[%c0_36, %c0_37] : memref<1x256xf32, #tpu.memory_space<vmem>>, vector<1x256xf32>
    %51 = vector.broadcast %50 : vector<1x256xf32> to vector<128x256xf32>
    %52 = arith.addf %49, %51 : vector<128x256xf32>
    %c0_38 = arith.constant 0 : index
    %c0_39 = arith.constant 0 : index
    %53 = vector.load %arg6[%c0_38, %c0_39] : memref<128x256xf32, #tpu.memory_space<vmem>>, vector<128x256xf32>
    tpu.vector_store %arg6[%c0_38, %c0_39], %52 {strides = array<i32>} : memref<128x256xf32, #tpu.memory_space<vmem>>, vector<128x256xf32>,
    return
  }
  func.func @transform_0(%arg0: i32) -> (i32, i32) {
    %c0_i32 = arith.constant 0 : i32
    %c0_i32_0 = arith.constant 0 : i32
    return %arg0, %c0_i32 : i32, i32
  }
  func.func @transform_1(%arg0: i32) -> (i32, i32) {
    %c0_i32 = arith.constant 0 : i32
    %c0_i32_0 = arith.constant 0 : i32
    %c0_i32_1 = arith.constant 0 : i32
    return %c0_i32, %c0_i32_0 : i32, i32
  }
  func.func @transform_2(%arg0: i32) -> (i32, i32) {
    %c0_i32 = arith.constant 0 : i32
    %c0_i32_0 = arith.constant 0 : i32
    %c0_i32_1 = arith.constant 0 : i32
    return %c0_i32, %c0_i32_0 : i32, i32
  }
  func.func @transform_3(%arg0: i32) -> (i32, i32) {
    %c0_i32 = arith.constant 0 : i32
    %c0_i32_0 = arith.constant 0 : i32
    %c0_i32_1 = arith.constant 0 : i32
    return %c0_i32, %c0_i32_0 : i32, i32
  }
  func.func @transform_4(%arg0: i32) -> (i32, i32) {
    %c0_i32 = arith.constant 0 : i32
    %c0_i32_0 = arith.constant 0 : i32
    %c0_i32_1 = arith.constant 0 : i32
    return %c0_i32, %c0_i32_0 : i32, i32
  }
  func.func @transform_5(%arg0: i32) -> (i32, i32) {
    %c0_i32 = arith.constant 0 : i32
    %c0_i32_0 = arith.constant 0 : i32
    return %arg0, %c0_i32 : i32, i32
  }
}

module attributes {stable_mosaic.version = 11 : i64} {
  func.func @_ffn_kernel(%arg0: i32, %arg1: memref<128x256xf32, #tpu.memory_space<vmem>>, %arg2: memref<256x1024xf32, #tpu.memory_space<vmem>>, %arg3: memref<1x1024xf32, #tpu.memory_space<vmem>>, %arg4: memref<1024x256xf32, #tpu.memory_space<vmem>>, %arg5: memref<1x256xf32, #tpu.memory_space<vmem>>, %arg6: memref<128x256xf32, #tpu.memory_space<vmem>>, %arg7: memref<128x256xf32, #tpu.memory_space<vmem>>) attributes {dimension_semantics = [#tpu.dimension_semantics<parallel>], iteration_bounds = array<i64: 4>, scalar_prefetch = 0 : i64, scratch_operands = 1 : i64, tpu.core_type = #tpu.core_type<tc>, window_params = [{transform_indices = @transform_0, window_bounds = array<i64: 128, 256>}, {pipeline_mode = #tpu.pipeline_mode<synchronous>, transform_indices = @transform_1, window_bounds = array<i64: 256, 1024>}, {pipeline_mode = #tpu.pipeline_mode<synchronous>, transform_indices = @transform_2, window_bounds = array<i64: 1, 1024>}, {pipeline_mode = #tpu.pipeline_mode<synchronous>, transform_indices = @transform_3, window_bounds = array<i64: 1024, 256>}, {pipeline_mode = #tpu.pipeline_mode<synchronous>, transform_indices = @transform_4, window_bounds = array<i64: 1, 256>}, {transform_indices = @transform_5, window_bounds = array<i64: 128, 256>}]} {
    %c0 = arith.constant 0 : index
    %c0_0 = arith.constant 0 : index
    %0 = vector.load %arg1[%c0, %c0_0] : memref<128x256xf32, #tpu.memory_space<vmem>>, vector<128x256xf32>
    %cst = arith.constant 0.000000e+00 : f32
    %1 = vector.broadcast %cst : f32 to vector<128x256xf32>
    %c0_1 = arith.constant 0 : index
    %c0_2 = arith.constant 0 : index
    %2 = vector.load %arg7[%c0_1, %c0_2] : memref<128x256xf32, #tpu.memory_space<vmem>>, vector<128x256xf32>
    tpu.vector_store %arg7[%c0_1, %c0_2], %1 {strides = array<i32>} : memref<128x256xf32, #tpu.memory_space<vmem>>, vector<128x256xf32>,
    %c0_3 = arith.constant 0 : index
    %c0_4 = arith.constant 0 : index
    %3 = vector.load %arg2[%c0_3, %c0_4] : memref<256x1024xf32, #tpu.memory_space<vmem>>, vector<256x512xf32>
    %cst_5 = arith.constant dense<0.000000e+00> : vector<128x512xf32>
    %4 = tpu.matmul %0, %3, %cst_5 {dimension_numbers = #tpu.dot_dimension_numbers<[1], [0], [0], [1], [0, 0, 1, 1], [], []>} : vector<128x256xf32>, vector<256x512xf32>, vector<128x512xf32> -> vector<128x512xf32>
    %c0_6 = arith.constant 0 : index
    %c0_7 = arith.constant 0 : index
    %5 = vector.load %arg3[%c0_6, %c0_7] : memref<1x1024xf32, #tpu.memory_space<vmem>>, vector<1x512xf32>
    %6 = vector.broadcast %5 : vector<1x512xf32> to vector<128x512xf32>
    %7 = arith.addf %4, %6 : vector<128x512xf32>
    %cst_8 = arith.constant 5.000000e-01 : f32
    %8 = vector.broadcast %cst_8 : f32 to vector<128x512xf32>
    %9 = arith.mulf %8, %7 : vector<128x512xf32>
    %cst_9 = arith.constant 4.471500e-02 : f32
    %10 = vector.broadcast %cst_9 : f32 to vector<128x512xf32>
    %11 = arith.mulf %10, %7 : vector<128x512xf32>
    %12 = arith.mulf %11, %7 : vector<128x512xf32>
    %13 = arith.mulf %12, %7 : vector<128x512xf32>
    %14 = arith.addf %7, %13 : vector<128x512xf32>
    %cst_10 = arith.constant 0.797884583 : f32
    %15 = vector.broadcast %cst_10 : f32 to vector<128x512xf32>
    %16 = arith.mulf %15, %14 : vector<128x512xf32>
    %17 = math.tanh %16 : vector<128x512xf32>
    %cst_11 = arith.constant 1.000000e+00 : f32
    %18 = vector.broadcast %cst_11 : f32 to vector<128x512xf32>
    %19 = arith.addf %18, %17 : vector<128x512xf32>
    %20 = arith.mulf %9, %19 : vector<128x512xf32>
    %c0_12 = arith.constant 0 : index
    %c0_13 = arith.constant 0 : index
    %21 = vector.load %arg7[%c0_12, %c0_13] : memref<128x256xf32, #tpu.memory_space<vmem>>, vector<128x256xf32>
    %c0_14 = arith.constant 0 : index
    %c0_15 = arith.constant 0 : index
    %22 = vector.load %arg4[%c0_14, %c0_15] : memref<1024x256xf32, #tpu.memory_space<vmem>>, vector<512x256xf32>
    %cst_16 = arith.constant dense<0.000000e+00> : vector<128x256xf32>
    %23 = tpu.matmul %20, %22, %cst_16 {dimension_numbers = #tpu.dot_dimension_numbers<[1], [0], [0], [1], [0, 0, 1, 1], [], []>} : vector<128x512xf32>, vector<512x256xf32>, vector<128x256xf32> -> vector<128x256xf32>
    %24 = arith.addf %21, %23 : vector<128x256xf32>
    %c0_17 = arith.constant 0 : index
    %c0_18 = arith.constant 0 : index
    %25 = vector.load %arg7[%c0_17, %c0_18] : memref<128x256xf32, #tpu.memory_space<vmem>>, vector<128x256xf32>
    tpu.vector_store %arg7[%c0_17, %c0_18], %24 {strides = array<i32>} : memref<128x256xf32, #tpu.memory_space<vmem>>, vector<128x256xf32>,
    %c0_19 = arith.constant 0 : index
    %c512 = arith.constant 512 : index
    %26 = vector.load %arg2[%c0_19, %c512] : memref<256x1024xf32, #tpu.memory_space<vmem>>, vector<256x512xf32>
    %cst_20 = arith.constant dense<0.000000e+00> : vector<128x512xf32>
    %27 = tpu.matmul %0, %26, %cst_20 {dimension_numbers = #tpu.dot_dimension_numbers<[1], [0], [0], [1], [0, 0, 1, 1], [], []>} : vector<128x256xf32>, vector<256x512xf32>, vector<128x512xf32> -> vector<128x512xf32>
    %c0_21 = arith.constant 0 : index
    %c512_22 = arith.constant 512 : index
    %28 = vector.load %arg3[%c0_21, %c512_22] : memref<1x1024xf32, #tpu.memory_space<vmem>>, vector<1x512xf32>
    %29 = vector.broadcast %28 : vector<1x512xf32> to vector<128x512xf32>
    %30 = arith.addf %27, %29 : vector<128x512xf32>
    %cst_23 = arith.constant 5.000000e-01 : f32
    %31 = vector.broadcast %cst_23 : f32 to vector<128x512xf32>
    %32 = arith.mulf %31, %30 : vector<128x512xf32>
    %cst_24 = arith.constant 4.471500e-02 : f32
    %33 = vector.broadcast %cst_24 : f32 to vector<128x512xf32>
    %34 = arith.mulf %33, %30 : vector<128x512xf32>
    %35 = arith.mulf %34, %30 : vector<128x512xf32>
    %36 = arith.mulf %35, %30 : vector<128x512xf32>
    %37 = arith.addf %30, %36 : vector<128x512xf32>
    %cst_25 = arith.constant 0.797884583 : f32
    %38 = vector.broadcast %cst_25 : f32 to vector<128x512xf32>
    %39 = arith.mulf %38, %37 : vector<128x512xf32>
    %40 = math.tanh %39 : vector<128x512xf32>
    %cst_26 = arith.constant 1.000000e+00 : f32
    %41 = vector.broadcast %cst_26 : f32 to vector<128x512xf32>
    %42 = arith.addf %41, %40 : vector<128x512xf32>
    %43 = arith.mulf %32, %42 : vector<128x512xf32>
    %c0_27 = arith.constant 0 : index
    %c0_28 = arith.constant 0 : index
    %44 = vector.load %arg7[%c0_27, %c0_28] : memref<128x256xf32, #tpu.memory_space<vmem>>, vector<128x256xf32>
    %c512_29 = arith.constant 512 : index
    %c0_30 = arith.constant 0 : index
    %45 = vector.load %arg4[%c512_29, %c0_30] : memref<1024x256xf32, #tpu.memory_space<vmem>>, vector<512x256xf32>
    %cst_31 = arith.constant dense<0.000000e+00> : vector<128x256xf32>
    %46 = tpu.matmul %43, %45, %cst_31 {dimension_numbers = #tpu.dot_dimension_numbers<[1], [0], [0], [1], [0, 0, 1, 1], [], []>} : vector<128x512xf32>, vector<512x256xf32>, vector<128x256xf32> -> vector<128x256xf32>
    %47 = arith.addf %44, %46 : vector<128x256xf32>
    %c0_32 = arith.constant 0 : index
    %c0_33 = arith.constant 0 : index
    %48 = vector.load %arg7[%c0_32, %c0_33] : memref<128x256xf32, #tpu.memory_space<vmem>>, vector<128x256xf32>
    tpu.vector_store %arg7[%c0_32, %c0_33], %47 {strides = array<i32>} : memref<128x256xf32, #tpu.memory_space<vmem>>, vector<128x256xf32>,
    %c0_34 = arith.constant 0 : index
    %c0_35 = arith.constant 0 : index
    %49 = vector.load %arg7[%c0_34, %c0_35] : memref<128x256xf32, #tpu.memory_space<vmem>>, vector<128x256xf32>
    %c0_36 = arith.constant 0 : index
    %c0_37 = arith.constant 0 : index
    %50 = vector.load %arg5[%c0_36, %c0_37] : memref<1x256xf32, #tpu.memory_space<vmem>>, vector<1x256xf32>
    %51 = vector.broadcast %50 : vector<1x256xf32> to vector<128x256xf32>
    %52 = arith.addf %49, %51 : vector<128x256xf32>
    %c0_38 = arith.constant 0 : index
    %c0_39 = arith.constant 0 : index
    %53 = vector.load %arg6[%c0_38, %c0_39] : memref<128x256xf32, #tpu.memory_space<vmem>>, vector<128x256xf32>
    tpu.vector_store %arg6[%c0_38, %c0_39], %52 {strides = array<i32>} : memref<128x256xf32, #tpu.memory_space<vmem>>, vector<128x256xf32>,
    return
  }
  func.func @transform_0(%arg0: i32) -> (i32, i32) {
    %c0_i32 = arith.constant 0 : i32
    %c0_i32_0 = arith.constant 0 : i32
    return %arg0, %c0_i32 : i32, i32
  }
  func.func @transform_1(%arg0: i32) -> (i32, i32) {
    %c0_i32 = arith.constant 0 : i32
    %c0_i32_0 = arith.constant 0 : i32
    %c0_i32_1 = arith.constant 0 : i32
    return %c0_i32, %c0_i32_0 : i32, i32
  }
  func.func @transform_2(%arg0: i32) -> (i32, i32) {
    %c0_i32 = arith.constant 0 : i32
    %c0_i32_0 = arith.constant 0 : i32
    %c0_i32_1 = arith.constant 0 : i32
    return %c0_i32, %c0_i32_0 : i32, i32
  }
  func.func @transform_3(%arg0: i32) -> (i32, i32) {
    %c0_i32 = arith.constant 0 : i32
    %c0_i32_0 = arith.constant 0 : i32
    %c0_i32_1 = arith.constant 0 : i32
    return %c0_i32, %c0_i32_0 : i32, i32
  }
  func.func @transform_4(%arg0: i32) -> (i32, i32) {
    %c0_i32 = arith.constant 0 : i32
    %c0_i32_0 = arith.constant 0 : i32
    %c0_i32_1 = arith.constant 0 : i32
    return %c0_i32, %c0_i32_0 : i32, i32
  }
  func.func @transform_5(%arg0: i32) -> (i32, i32) {
    %c0_i32 = arith.constant 0 : i32
    %c0_i32_0 = arith.constant 0 : i32
    return %arg0, %c0_i32 : i32, i32
  }
}

</mosaic_0001>

<llo_original>
// kernel: tpu_custom_call.1
$region0: #{tpu_custom_call.1}
  #allocation0 [shape = 'u32[]', space=smem, size = 0x4, offset = 0x4, fixed_abs, tag = 'smem constant byte address 0x4 - core index']
  #allocation1 [shape = 'u32[144,128]{1,0:T(1,128)}', space=vmem, size = 0x12000, scoped, tag = 'internal scratch']
  #allocation2 [shape = 'f32[128,256]{1,0:T(8,128)}', space=vmem, size = 0x20000, scoped, tag = 'scratch operand']
  %s0 = inlined_call_operand.hbm [shape: f32[512,256], index: 0, kind: input, shape index: {}]
  %s1 = inlined_call_operand.hbm [shape: f32[256,1024], index: 1, kind: input, shape index: {}]
  %s2 = inlined_call_operand.hbm [shape: f32[1,1024], index: 2, kind: input, shape index: {}]
  %s3 = inlined_call_operand.hbm [shape: f32[1024,256], index: 3, kind: input, shape index: {}]
  %s4 = inlined_call_operand.vmem [shape: f32[1,256], index: 4, kind: input, shape index: {}]
  %s5 = inlined_call_operand.hbm [shape: f32[512,256], index: 5, kind: output, shape index: {}]
  %s6 = sld [smem:[#allocation0]]
  $region69: #{tpu_custom_call.1} parent=0
    _
  %s8 = ssub.s32 1, %s6
  %s9 = scalar_select 0, %s8, %s6
  $region1: #{tpu_custom_call.1} parent=0
    #allocation3 [shape = 'u8[262144]{0}', space=vmem, size = 0x40000, scoped, tag = 'input window, operand 0']
    #allocation4 [shape = 's32[2]{0}', space=sflag, size = 0x8, scoped, tag = 'scoped memory for tpu_custom_call.1']
    #allocation5 [shape = 's32[2]{0}', space=sflag, size = 0x8, scoped, tag = 'scoped memory for tpu_custom_call.1']
    #allocation6 [shape = 'u8[1048576]{0}', space=vmem, size = 0x100000, scoped, tag = 'input window, operand 1, single buffered']
    #allocation7 [shape = 's32[1]{0}', space=sflag, size = 0x4, scoped, tag = 'scoped memory for tpu_custom_call.1']
    #allocation8 [shape = 'u8[4096]{0}', space=vmem, size = 0x1000, scoped, tag = 'input window, operand 2, single buffered']
    #allocation9 [shape = 'u8[1048576]{0}', space=vmem, size = 0x100000, scoped, tag = 'input window, operand 3, single buffered']
    #allocation10 [shape = 's32[1]{0}', space=sflag, size = 0x4, scoped, tag = 'scoped memory for tpu_custom_call.1']
    #allocation11 [shape = 'u8[262144]{0}', space=vmem, size = 0x40000, scoped, tag = 'output window, operand 0']
    %10 = vsyncpa [#allocation4], 0
    %s11 = scalar_lea.sflag [#allocation4], 1
    %12 = vsyncpa %s11, 0
    %13 = vsyncpa [#allocation7], 0
    %14 = vsyncpa [#allocation10], 0
    %15 = vsyncpa [#allocation5], 0
    %s16 = scalar_lea.sflag [#allocation5], 1
    %17 = vsyncpa %s16, 0
    loop: start=0, step=1, limit=6
    $region2: #{tpu_custom_call.1} parent=1 // loop_pre_header
      _
    $region3: #{tpu_custom_call.1} parent=1 // loop_header
      %s19 = sphi 0, %s23
      %p20 = scmp.ge.s32.totalorder %s19, 6
      %s29 = sphi 0, %s31
      %s32 = sphi 0, %s29
      %s33 = sphi 0, %s32
      %s49 = sphi 0, %s33
      %s53 = sphi 0, %s53
      %s55 = sphi 0, %s53
      %s56 = sphi 0, %s55
      %s70 = sphi 0, %s56
      %s74 = sphi 0, %s74
      %s76 = sphi 0, %s74
      %s77 = sphi 0, %s76
      %s91 = sphi 0, %s77
      %s95 = sphi 0, %s95
      %s97 = sphi 0, %s95
      %s98 = sphi 0, %s97
      %s112 = sphi 0, %s98
      %s116 = sphi 0, %s116
      %s118 = sphi 0, %s116
      %s119 = sphi 0, %s118
      %s133 = sphi 0, %s119
      %s139 = sphi 0, %s141
      %s142 = sphi 0, %s139
      %s143 = sphi 0, %s142
      %s159 = sphi 0, %s143
    $region4: #{tpu_custom_call.1} parent=1 // loop_header_branch
      %22 = sbr.rel (%p20) target = $region8
    $region5: #{tpu_custom_call.1} parent=1 // loop_body
      %s24 = ssub.s32 %s19, 1
      %s25 = ssub.s32 %s19, 2
      %s26 = sadd.s32 %s19, 1
      %s27 = ssub.s32 %s19, %s26
      %p28 = scmp.eq.s32.totalorder %s27, 0
      %s30 = sadd.s32 %s29, 1
      %s31 = scalar_select %p28, %s29, %s30
      %p34 = pneg %p28
      %p35 = scmp.eq.s32.totalorder %s19, 3
      %p36 = por %p34, %p35
      %p37 = scmp.ne.s32.totalorder %s29, %s32
      %p38 = scmp.eq.s32.totalorder %s19, 0
      %p39 = por %p37, %p38
      %p40 = scmp.ne.s32.totalorder %s29, %s32
      %p41 = scmp.eq.s32.totalorder %s24, 3
      %p42 = por %p40, %p41
      %p43 = scmp.ne.s32.totalorder %s32, %s33
      %p44 = scmp.eq.s32.totalorder %s24, 0
      %p45 = por %p43, %p44
      %p46 = scmp.ne.s32.totalorder %s32, %s33
      %p47 = scmp.eq.s32.totalorder %s25, 3
      %p48 = por %p46, %p47
      %p50 = scmp.ne.s32.totalorder %s33, %s49
      %p51 = scmp.eq.s32.totalorder %s25, 0
      %p52 = por %p50, %p51
      %s54 = sadd.s32 %s53, 1
      %p57 = scmp.eq.s32.totalorder %s19, 3
      %p58 = scmp.ne.s32.totalorder %s53, %s55
      %p59 = scmp.eq.s32.totalorder %s19, 0
      %p60 = por %p58, %p59
      %p61 = scmp.ne.s32.totalorder %s53, %s55
      %p62 = scmp.eq.s32.totalorder %s24, 3
      %p63 = por %p61, %p62
      %p64 = scmp.ne.s32.totalorder %s55, %s56
      %p65 = scmp.eq.s32.totalorder %s24, 0
      %p66 = por %p64, %p65
      %p67 = scmp.ne.s32.totalorder %s55, %s56
      %p68 = scmp.eq.s32.totalorder %s25, 3
      %p69 = por %p67, %p68
      %p71 = scmp.ne.s32.totalorder %s56, %s70
      %p72 = scmp.eq.s32.totalorder %s25, 0
      %p73 = por %p71, %p72
      %s75 = sadd.s32 %s74, 1
      %p78 = scmp.eq.s32.totalorder %s19, 3
      %p79 = scmp.ne.s32.totalorder %s74, %s76
      %p80 = scmp.eq.s32.totalorder %s19, 0
      %p81 = por %p79, %p80
      %p82 = scmp.ne.s32.totalorder %s74, %s76
      %p83 = scmp.eq.s32.totalorder %s24, 3
      %p84 = por %p82, %p83
      %p85 = scmp.ne.s32.totalorder %s76, %s77
      %p86 = scmp.eq.s32.totalorder %s24, 0
      %p87 = por %p85, %p86
      %p88 = scmp.ne.s32.totalorder %s76, %s77
      %p89 = scmp.eq.s32.totalorder %s25, 3
      %p90 = por %p88, %p89
      %p92 = scmp.ne.s32.totalorder %s77, %s91
      %p93 = scmp.eq.s32.totalorder %s25, 0
      %p94 = por %p92, %p93
      %s96 = sadd.s32 %s95, 1
      %p99 = scmp.eq.s32.totalorder %s19, 3
      %p100 = scmp.ne.s32.totalorder %s95, %s97
      %p101 = scmp.eq.s32.totalorder %s19, 0
      %p102 = por %p100, %p101
      %p103 = scmp.ne.s32.totalorder %s95, %s97
      %p104 = scmp.eq.s32.totalorder %s24, 3
      %p105 = por %p103, %p104
      %p106 = scmp.ne.s32.totalorder %s97, %s98
      %p107 = scmp.eq.s32.totalorder %s24, 0
      %p108 = por %p106, %p107
      %p109 = scmp.ne.s32.totalorder %s97, %s98
      %p110 = scmp.eq.s32.totalorder %s25, 3
      %p111 = por %p109, %p110
      %p113 = scmp.ne.s32.totalorder %s98, %s112
      %p114 = scmp.eq.s32.totalorder %s25, 0
      %p115 = por %p113, %p114
      %s117 = sadd.s32 %s116, 1
      %p120 = scmp.eq.s32.totalorder %s19, 3
      %p121 = scmp.ne.s32.totalorder %s116, %s118
      %p122 = scmp.eq.s32.totalorder %s19, 0
      %p123 = por %p121, %p122
      %p124 = scmp.ne.s32.totalorder %s116, %s118
      %p125 = scmp.eq.s32.totalorder %s24, 3
      %p126 = por %p124, %p125
      %p127 = scmp.ne.s32.totalorder %s118, %s119
      %p128 = scmp.eq.s32.totalorder %s24, 0
      %p129 = por %p127, %p128
      %p130 = scmp.ne.s32.totalorder %s118, %s119
      %p131 = scmp.eq.s32.totalorder %s25, 3
      %p132 = por %p130, %p131
      %p134 = scmp.ne.s32.totalorder %s119, %s133
      %p135 = scmp.eq.s32.totalorder %s25, 0
      %p136 = por %p134, %p135
      %s137 = ssub.s32 %s19, %s26
      %p138 = scmp.eq.s32.totalorder %s137, 0
      %s140 = sadd.s32 %s139, 1
      %s141 = scalar_select %p138, %s139, %s140
      %p144 = pneg %p138
      %p145 = scmp.eq.s32.totalorder %s19, 3
      %p146 = por %p144, %p145
      %p147 = scmp.ne.s32.totalorder %s139, %s142
      %p148 = scmp.eq.s32.totalorder %s19, 0
      %p149 = por %p147, %p148
      %p150 = scmp.ne.s32.totalorder %s139, %s142
      %p151 = scmp.eq.s32.totalorder %s24, 3
      %p152 = por %p150, %p151
      %p153 = scmp.ne.s32.totalorder %s142, %s143
      %p154 = scmp.eq.s32.totalorder %s24, 0
      %p155 = por %p153, %p154
      %p156 = scmp.ne.s32.totalorder %s142, %s143
      %p157 = scmp.eq.s32.totalorder %s25, 3
      %p158 = por %p156, %p157
      %p160 = scmp.ne.s32.totalorder %s143, %s159
      %p161 = scmp.eq.s32.totalorder %s25, 0
      %p162 = por %p160, %p161
      %p163 = scmp.le.s32.totalorder 1, %s19
      %p164 = scmp.lt.s32.totalorder %s19, 5
      %p165 = pnand %p163, %p164
      %p166 = pneg %p165
      // Predicated region
      $region9: #{tpu_custom_call.1} parent=5 // pred_check
        _
      $region10: #{tpu_custom_call.1} parent=5 // pred_check_branch
        %168 = sbr.rel (%p165) target = $region12
      $region11: #{tpu_custom_call.1} parent=5 // pred_region
        %s169 = ssub.s32 %s19, 1
        // Predicated region
        $region13: #{tpu_custom_call.1} parent=11 // pred_check
          %p170 = pneg %p66
        $region14: #{tpu_custom_call.1} parent=11 // pred_check_branch
          %172 = sbr.rel (%p170) target = $region16
        $region15: #{tpu_custom_call.1} parent=11 // pred_region
          %s174 = ssub.s32 32768, 32768
          %175 = vsyncadd [#allocation7], %s174
          %s176 = sshll.u32 [#allocation6], 4
          %s177 = int_to_ptr.vmem [resolvable:$true] %s176
          %182 = dma.hbm_to_vmem [thread:$0]  %s1, 32768, %s177, [#allocation7], 1024, 1024, 64
        $region16: #{tpu_custom_call.1} parent=11 // pred_fallthru
          _
        // Predicated region
        $region17: #{tpu_custom_call.1} parent=11 // pred_check
          %p183 = pneg %p87
        $region18: #{tpu_custom_call.1} parent=11 // pred_check_branch
          %185 = sbr.rel (%p183) target = $region20
        $region19: #{tpu_custom_call.1} parent=11 // pred_region
          %s187 = ssub.s32 128, 128
          %188 = vsyncadd [#allocation7], %s187
          %s190 = sshll.u32 [#allocation8], 4
          %s191 = int_to_ptr.vmem [resolvable:$true] %s190
          %193 = dma.hbm_to_vmem [thread:$0]  %s2, 128, %s191, [#allocation7]
        $region20: #{tpu_custom_call.1} parent=11 // pred_fallthru
          _
        // Predicated region
        $region21: #{tpu_custom_call.1} parent=11 // pred_check
          %p194 = pneg %p108
        $region22: #{tpu_custom_call.1} parent=11 // pred_check_branch
          %196 = sbr.rel (%p194) target = $region24
        $region23: #{tpu_custom_call.1} parent=11 // pred_region
          %s198 = ssub.s32 32768, 32768
          %199 = vsyncadd [#allocation10], %s198
          %s200 = sshll.u32 [#allocation9], 4
          %s201 = int_to_ptr.vmem [resolvable:$true] %s200
          %206 = dma.hbm_to_vmem [thread:$0]  %s3, 32768, %s201, [#allocation10], 256, 256, 16
        $region24: #{tpu_custom_call.1} parent=11 // pred_fallthru
          _
        // Predicated region
        $region25: #{tpu_custom_call.1} parent=11 // pred_check
          %p207 = pneg %p129
        $region26: #{tpu_custom_call.1} parent=11 // pred_check_branch
          %209 = sbr.rel (%p207) target = $region28
        $region27: #{tpu_custom_call.1} parent=11 // pred_region
          _
        $region28: #{tpu_custom_call.1} parent=11 // pred_fallthru
          _
      $region12: #{tpu_custom_call.1} parent=5 // pred_fallthru
        _
      %p210 = scmp.lt.s32.totalorder %s19, 4
      // Predicated region
      $region29: #{tpu_custom_call.1} parent=5 // pred_check
        %p211 = pneg %p210
      $region30: #{tpu_custom_call.1} parent=5 // pred_check_branch
        %213 = sbr.rel (%p211) target = $region32
      $region31: #{tpu_custom_call.1} parent=5 // pred_region
        // Predicated region
        $region33: #{tpu_custom_call.1} parent=31 // pred_check
          %p214 = pneg %p39
        $region34: #{tpu_custom_call.1} parent=31 // pred_check_branch
          %216 = sbr.rel (%p214) target = $region36
        $region35: #{tpu_custom_call.1} parent=31 // pred_region
          %s217 = sand.u32 %s29, 1
          %s218 = scalar_lea.sflag [#allocation4], %s217
          %s219 = sand.u32 %s29, 1
          %s220 = smul.addr %s219, 256
          %s221 = scalar_lea.vmem [#allocation3], %s220
          %s222 = smul.u32 16, %s19
          %s224 = ssub.s32 4096, 4096
          %225 = vsyncadd %s218, %s224
          %s226 = smul.addr %s222, 2
          %s227 = smul.addr %s226, 128
          %s228 = scalar_lea.hbm %s0, %s227
          %s229 = sshll.u32 %s221, 4
          %s230 = int_to_ptr.vmem [resolvable:$true] %s229
          %235 = dma.hbm_to_vmem [thread:$0]  %s228, 4096, %s230, %s218, 256, 256, 16
        $region36: #{tpu_custom_call.1} parent=31 // pred_fallthru
          _
      $region32: #{tpu_custom_call.1} parent=5 // pred_fallthru
        _
      %p236 = scmp.le.s32.totalorder 1, %s19
      %p237 = scmp.lt.s32.totalorder %s19, 5
      %p238 = pnand %p236, %p237
      %p239 = pneg %p238
      // Predicated region
      $region37: #{tpu_custom_call.1} parent=5 // pred_check
        _
      $region38: #{tpu_custom_call.1} parent=5 // pred_check_branch
        %241 = sbr.rel (%p238) target = $region40
      $region39: #{tpu_custom_call.1} parent=5 // pred_region
        %s242 = ssub.s32 %s19, 1
        %s243 = sand.u32 %s32, 1
        %s244 = scalar_lea.sflag [#allocation4], %s243
        %s245 = sand.u32 %s32, 1
        %s246 = smul.addr %s245, 256
        %s247 = scalar_lea.vmem [#allocation3], %s246
        // Predicated region
        $region41: #{tpu_custom_call.1} parent=39 // pred_check
          %p248 = pneg %p45
        $region42: #{tpu_custom_call.1} parent=39 // pred_check_branch
          %250 = sbr.rel (%p248) target = $region44
        $region43: #{tpu_custom_call.1} parent=39 // pred_region
          %251 = dma.done %s244, 4096
        $region44: #{tpu_custom_call.1} parent=39 // pred_fallthru
          _
        // Predicated region
        $region45: #{tpu_custom_call.1} parent=39 // pred_check
          %p252 = pneg %p66
        $region46: #{tpu_custom_call.1} parent=39 // pred_check_branch
          %254 = sbr.rel (%p252) target = $region48
        $region47: #{tpu_custom_call.1} parent=39 // pred_region
          %255 = dma.done [#allocation7], 32768
        $region48: #{tpu_custom_call.1} parent=39 // pred_fallthru
          _
        // Predicated region
        $region49: #{tpu_custom_call.1} parent=39 // pred_check
          %p256 = pneg %p87
        $region50: #{tpu_custom_call.1} parent=39 // pred_check_branch
          %258 = sbr.rel (%p256) target = $region52
        $region51: #{tpu_custom_call.1} parent=39 // pred_region
          %259 = dma.done [#allocation7], 128
        $region52: #{tpu_custom_call.1} parent=39 // pred_fallthru
          _
        // Predicated region
        $region53: #{tpu_custom_call.1} parent=39 // pred_check
          %p260 = pneg %p108
        $region54: #{tpu_custom_call.1} parent=39 // pred_check_branch
          %262 = sbr.rel (%p260) target = $region56
        $region55: #{tpu_custom_call.1} parent=39 // pred_region
          %263 = dma.done [#allocation10], 32768
        $region56: #{tpu_custom_call.1} parent=39 // pred_fallthru
          _
        %s264 = sand.u32 %s32, 1
        %s265 = scalar_lea.sflag [#allocation4], %s264
        %s266 = sand.u32 %s32, 1
        %s267 = smul.addr %s266, 256
        %s268 = scalar_lea.vmem [#allocation3], %s267
        %p269 = pneg %p45
        %p270 = pneg %p42
        %p271 = pneg %p66
        %p272 = pneg %p63
        %p273 = pneg %p87
        %p274 = pneg %p84
        %p275 = pneg %p108
        %p276 = pneg %p105
        %p277 = pneg %p129
        %p278 = pneg %p126
        %p279 = pneg %p155
        %p280 = pneg %p152
        %s281 = sand.u32 %s142, 1
        %s282 = scalar_lea.sflag [#allocation5], %s281
        %s283 = sand.u32 %s142, 1
        %s284 = smul.addr %s283, 256
        %s285 = scalar_lea.vmem [#allocation11], %s284
        %s286 = smul.u32 16, %s24
        %s287 = smul.u32 16, %s24
        %v288 = vld [vmem:[%s247] sm:$0xff]
        %v289 = vld [vmem:[%s247 + $0x8] sm:$0xff]
        %v290 = vld [vmem:[%s247 + $0x10] sm:$0xff]
        %v291 = vld [vmem:[%s247 + $0x18] sm:$0xff]
        %v292 = vld [vmem:[%s247 + $0x20] sm:$0xff]
        %v293 = vld [vmem:[%s247 + $0x28] sm:$0xff]
        %v294 = vld [vmem:[%s247 + $0x30] sm:$0xff]
        %v295 = vld [vmem:[%s247 + $0x38] sm:$0xff]
        %v296 = vld [vmem:[%s247 + $0x40] sm:$0xff]
        %v297 = vld [vmem:[%s247 + $0x48] sm:$0xff]
        %v298 = vld [vmem:[%s247 + $0x50] sm:$0xff]
        %v299 = vld [vmem:[%s247 + $0x58] sm:$0xff]
        %v300 = vld [vmem:[%s247 + $0x60] sm:$0xff]
        %v301 = vld [vmem:[%s247 + $0x68] sm:$0xff]
        %v302 = vld [vmem:[%s247 + $0x70] sm:$0xff]
        %v303 = vld [vmem:[%s247 + $0x78] sm:$0xff]
        %v304 = vld [vmem:[%s247 + $0x80] sm:$0xff]
        %v305 = vld [vmem:[%s247 + $0x88] sm:$0xff]
        %v306 = vld [vmem:[%s247 + $0x90] sm:$0xff]
        %v307 = vld [vmem:[%s247 + $0x98] sm:$0xff]
        %v308 = vld [vmem:[%s247 + $0xa0] sm:$0xff]
        %v309 = vld [vmem:[%s247 + $0xa8] sm:$0xff]
        %v310 = vld [vmem:[%s247 + $0xb0] sm:$0xff]
        %v311 = vld [vmem:[%s247 + $0xb8] sm:$0xff]
        %v312 = vld [vmem:[%s247 + $0xc0] sm:$0xff]
        %v313 = vld [vmem:[%s247 + $0xc8] sm:$0xff]
        %v314 = vld [vmem:[%s247 + $0xd0] sm:$0xff]
        %v315 = vld [vmem:[%s247 + $0xd8] sm:$0xff]
        %v316 = vld [vmem:[%s247 + $0xe0] sm:$0xff]
        %v317 = vld [vmem:[%s247 + $0xe8] sm:$0xff]
        %v318 = vld [vmem:[%s247 + $0xf0] sm:$0xff]
        %v319 = vld [vmem:[%s247 + $0xf8] sm:$0xff]
        %320 = vst [vmem:[#allocation2] sm:$0xff] 0.0
        %321 = vst [vmem:[#allocation2 + $0x8] sm:$0xff] 0.0
        %322 = vst [vmem:[#allocation2 + $0x10] sm:$0xff] 0.0
        %323 = vst [vmem:[#allocation2 + $0x18] sm:$0xff] 0.0
        %324 = vst [vmem:[#allocation2 + $0x20] sm:$0xff] 0.0
        %325 = vst [vmem:[#allocation2 + $0x28] sm:$0xff] 0.0
        %326 = vst [vmem:[#allocation2 + $0x30] sm:$0xff] 0.0
        %327 = vst [vmem:[#allocation2 + $0x38] sm:$0xff] 0.0
        %328 = vst [vmem:[#allocation2 + $0x40] sm:$0xff] 0.0
        %329 = vst [vmem:[#allocation2 + $0x48] sm:$0xff] 0.0
        %330 = vst [vmem:[#allocation2 + $0x50] sm:$0xff] 0.0
        %331 = vst [vmem:[#allocation2 + $0x58] sm:$0xff] 0.0
        %332 = vst [vmem:[#allocation2 + $0x60] sm:$0xff] 0.0
        %333 = vst [vmem:[#allocation2 + $0x68] sm:$0xff] 0.0
        %334 = vst [vmem:[#allocation2 + $0x70] sm:$0xff] 0.0
        %335 = vst [vmem:[#allocation2 + $0x78] sm:$0xff] 0.0
        %336 = vst [vmem:[#allocation2 + $0x80] sm:$0xff] 0.0
        %337 = vst [vmem:[#allocation2 + $0x88] sm:$0xff] 0.0
        %338 = vst [vmem:[#allocation2 + $0x90] sm:$0xff] 0.0
        %339 = vst [vmem:[#allocation2 + $0x98] sm:$0xff] 0.0
        %340 = vst [vmem:[#allocation2 + $0xa0] sm:$0xff] 0.0
        %341 = vst [vmem:[#allocation2 + $0xa8] sm:$0xff] 0.0
        %342 = vst [vmem:[#allocation2 + $0xb0] sm:$0xff] 0.0
        %343 = vst [vmem:[#allocation2 + $0xb8] sm:$0xff] 0.0
        %344 = vst [vmem:[#allocation2 + $0xc0] sm:$0xff] 0.0
        %345 = vst [vmem:[#allocation2 + $0xc8] sm:$0xff] 0.0
        %346 = vst [vmem:[#allocation2 + $0xd0] sm:$0xff] 0.0
        %347 = vst [vmem:[#allocation2 + $0xd8] sm:$0xff] 0.0
        %348 = vst [vmem:[#allocation2 + $0xe0] sm:$0xff] 0.0
        %349 = vst [vmem:[#allocation2 + $0xe8] sm:$0xff] 0.0
        %350 = vst [vmem:[#allocation2 + $0xf0] sm:$0xff] 0.0
        %351 = vst [vmem:[#allocation2 + $0xf8] sm:$0xff] 0.0
        %v352 = vld [vmem:[#allocation6] sm:$0xff]
        %v353 = vld [vmem:[#allocation6 + $0x8] sm:$0xff]
        %v354 = vld [vmem:[#allocation6 + $0x10] sm:$0xff]
        %v355 = vld [vmem:[#allocation6 + $0x18] sm:$0xff]
        %v356 = vld [vmem:[#allocation6 + $0x40] sm:$0xff]
        %v357 = vld [vmem:[#allocation6 + $0x48] sm:$0xff]
        %v358 = vld [vmem:[#allocation6 + $0x50] sm:$0xff]
        %v359 = vld [vmem:[#allocation6 + $0x58] sm:$0xff]
        %v360 = vld [vmem:[#allocation6 + $0x80] sm:$0xff]
        %v361 = vld [vmem:[#allocation6 + $0x88] sm:$0xff]
        %v362 = vld [vmem:[#allocation6 + $0x90] sm:$0xff]
        %v363 = vld [vmem:[#allocation6 + $0x98] sm:$0xff]
        %v364 = vld [vmem:[#allocation6 + $0xc0] sm:$0xff]
        %v365 = vld [vmem:[#allocation6 + $0xc8] sm:$0xff]
        %v366 = vld [vmem:[#allocation6 + $0xd0] sm:$0xff]
        %v367 = vld [vmem:[#allocation6 + $0xd8] sm:$0xff]
        %v368 = vld [vmem:[#allocation6 + $0x100] sm:$0xff]
        %v369 = vld [vmem:[#allocation6 + $0x108] sm:$0xff]
        %v370 = vld [vmem:[#allocation6 + $0x110] sm:$0xff]
        %v371 = vld [vmem:[#allocation6 + $0x118] sm:$0xff]
        %v372 = vld [vmem:[#allocation6 + $0x140] sm:$0xff]
        %v373 = vld [vmem:[#allocation6 + $0x148] sm:$0xff]
        %v374 = vld [vmem:[#allocation6 + $0x150] sm:$0xff]
        %v375 = vld [vmem:[#allocation6 + $0x158] sm:$0xff]
        %v376 = vld [vmem:[#allocation6 + $0x180] sm:$0xff]
        %v377 = vld [vmem:[#allocation6 + $0x188] sm:$0xff]
        %v378 = vld [vmem:[#allocation6 + $0x190] sm:$0xff]
        %v379 = vld [vmem:[#allocation6 + $0x198] sm:$0xff]
        %v380 = vld [vmem:[#allocation6 + $0x1c0] sm:$0xff]
        %v381 = vld [vmem:[#allocation6 + $0x1c8] sm:$0xff]
        %v382 = vld [vmem:[#allocation6 + $0x1d0] sm:$0xff]
        %v383 = vld [vmem:[#allocation6 + $0x1d8] sm:$0xff]
        %v384 = vld [vmem:[#allocation6 + $0x200] sm:$0xff]
        %v385 = vld [vmem:[#allocation6 + $0x208] sm:$0xff]
        %v386 = vld [vmem:[#allocation6 + $0x210] sm:$0xff]
        %v387 = vld [vmem:[#allocation6 + $0x218] sm:$0xff]
        %v388 = vld [vmem:[#allocation6 + $0x240] sm:$0xff]
        %v389 = vld [vmem:[#allocation6 + $0x248] sm:$0xff]
        %v390 = vld [vmem:[#allocation6 + $0x250] sm:$0xff]
        %v391 = vld [vmem:[#allocation6 + $0x258] sm:$0xff]
        %v392 = vld [vmem:[#allocation6 + $0x280] sm:$0xff]
        %v393 = vld [vmem:[#allocation6 + $0x288] sm:$0xff]
        %v394 = vld [vmem:[#allocation6 + $0x290] sm:$0xff]
        %v395 = vld [vmem:[#allocation6 + $0x298] sm:$0xff]
        %v396 = vld [vmem:[#allocation6 + $0x2c0] sm:$0xff]
        %v397 = vld [vmem:[#allocation6 + $0x2c8] sm:$0xff]
        %v398 = vld [vmem:[#allocation6 + $0x2d0] sm:$0xff]
        %v399 = vld [vmem:[#allocation6 + $0x2d8] sm:$0xff]
        %v400 = vld [vmem:[#allocation6 + $0x300] sm:$0xff]
        %v401 = vld [vmem:[#allocation6 + $0x308] sm:$0xff]
        %v402 = vld [vmem:[#allocation6 + $0x310] sm:$0xff]
        %v403 = vld [vmem:[#allocation6 + $0x318] sm:$0xff]
        %v404 = vld [vmem:[#allocation6 + $0x340] sm:$0xff]
        %v405 = vld [vmem:[#allocation6 + $0x348] sm:$0xff]
        %v406 = vld [vmem:[#allocation6 + $0x350] sm:$0xff]
        %v407 = vld [vmem:[#allocation6 + $0x358] sm:$0xff]
        %v408 = vld [vmem:[#allocation6 + $0x380] sm:$0xff]
        %v409 = vld [vmem:[#allocation6 + $0x388] sm:$0xff]
        %v410 = vld [vmem:[#allocation6 + $0x390] sm:$0xff]
        %v411 = vld [vmem:[#allocation6 + $0x398] sm:$0xff]
        %v412 = vld [vmem:[#allocation6 + $0x3c0] sm:$0xff]
        %v413 = vld [vmem:[#allocation6 + $0x3c8] sm:$0xff]
        %v414 = vld [vmem:[#allocation6 + $0x3d0] sm:$0xff]
        %v415 = vld [vmem:[#allocation6 + $0x3d8] sm:$0xff]
        %v416 = vld [vmem:[#allocation6 + $0x400] sm:$0xff]
        %v417 = vld [vmem:[#allocation6 + $0x408] sm:$0xff]
        %v418 = vld [vmem:[#allocation6 + $0x410] sm:$0xff]
        %v419 = vld [vmem:[#allocation6 + $0x418] sm:$0xff]
        %v420 = vld [vmem:[#allocation6 + $0x440] sm:$0xff]
        %v421 = vld [vmem:[#allocation6 + $0x448] sm:$0xff]
        %v422 = vld [vmem:[#allocation6 + $0x450] sm:$0xff]
        %v423 = vld [vmem:[#allocation6 + $0x458] sm:$0xff]
        %v424 = vld [vmem:[#allocation6 + $0x480] sm:$0xff]
        %v425 = vld [vmem:[#allocation6 + $0x488] sm:$0xff]
        %v426 = vld [vmem:[#allocation6 + $0x490] sm:$0xff]
        %v427 = vld [vmem:[#allocation6 + $0x498] sm:$0xff]
        %v428 = vld [vmem:[#allocation6 + $0x4c0] sm:$0xff]
        %v429 = vld [vmem:[#allocation6 + $0x4c8] sm:$0xff]
        %v430 = vld [vmem:[#allocation6 + $0x4d0] sm:$0xff]
        %v431 = vld [vmem:[#allocation6 + $0x4d8] sm:$0xff]
        %v432 = vld [vmem:[#allocation6 + $0x500] sm:$0xff]
        %v433 = vld [vmem:[#allocation6 + $0x508] sm:$0xff]
        %v434 = vld [vmem:[#allocation6 + $0x510] sm:$0xff]
        %v435 = vld [vmem:[#allocation6 + $0x518] sm:$0xff]
        %v436 = vld [vmem:[#allocation6 + $0x540] sm:$0xff]
        %v437 = vld [vmem:[#allocation6 + $0x548] sm:$0xff]
        %v438 = vld [vmem:[#allocation6 + $0x550] sm:$0xff]
        %v439 = vld [vmem:[#allocation6 + $0x558] sm:$0xff]
        %v440 = vld [vmem:[#allocation6 + $0x580] sm:$0xff]
        %v441 = vld [vmem:[#allocation6 + $0x588] sm:$0xff]
        %v442 = vld [vmem:[#allocation6 + $0x590] sm:$0xff]
        %v443 = vld [vmem:[#allocation6 + $0x598] sm:$0xff]
        %v444 = vld [vmem:[#allocation6 + $0x5c0] sm:$0xff]
        %v445 = vld [vmem:[#allocation6 + $0x5c8] sm:$0xff]
        %v446 = vld [vmem:[#allocation6 + $0x5d0] sm:$0xff]
        %v447 = vld [vmem:[#allocation6 + $0x5d8] sm:$0xff]
        %v448 = vld [vmem:[#allocation6 + $0x600] sm:$0xff]
        %v449 = vld [vmem:[#allocation6 + $0x608] sm:$0xff]
        %v450 = vld [vmem:[#allocation6 + $0x610] sm:$0xff]
        %v451 = vld [vmem:[#allocation6 + $0x618] sm:$0xff]
        %v452 = vld [vmem:[#allocation6 + $0x640] sm:$0xff]
        %v453 = vld [vmem:[#allocation6 + $0x648] sm:$0xff]
        %v454 = vld [vmem:[#allocation6 + $0x650] sm:$0xff]
        %v455 = vld [vmem:[#allocation6 + $0x658] sm:$0xff]
        %v456 = vld [vmem:[#allocation6 + $0x680] sm:$0xff]
        %v457 = vld [vmem:[#allocation6 + $0x688] sm:$0xff]
        %v458 = vld [vmem:[#allocation6 + $0x690] sm:$0xff]
        %v459 = vld [vmem:[#allocation6 + $0x698] sm:$0xff]
        %v460 = vld [vmem:[#allocation6 + $0x6c0] sm:$0xff]
        %v461 = vld [vmem:[#allocation6 + $0x6c8] sm:$0xff]
        %v462 = vld [vmem:[#allocation6 + $0x6d0] sm:$0xff]
        %v463 = vld [vmem:[#allocation6 + $0x6d8] sm:$0xff]
        %v464 = vld [vmem:[#allocation6 + $0x700] sm:$0xff]
        %v465 = vld [vmem:[#allocation6 + $0x708] sm:$0xff]
        %v466 = vld [vmem:[#allocation6 + $0x710] sm:$0xff]
        %v467 = vld [vmem:[#allocation6 + $0x718] sm:$0xff]
        %v468 = vld [vmem:[#allocation6 + $0x740] sm:$0xff]
        %v469 = vld [vmem:[#allocation6 + $0x748] sm:$0xff]
        %v470 = vld [vmem:[#allocation6 + $0x750] sm:$0xff]
        %v471 = vld [vmem:[#allocation6 + $0x758] sm:$0xff]
        %v472 = vld [vmem:[#allocation6 + $0x780] sm:$0xff]
        %v473 = vld [vmem:[#allocation6 + $0x788] sm:$0xff]
        %v474 = vld [vmem:[#allocation6 + $0x790] sm:$0xff]
        %v475 = vld [vmem:[#allocation6 + $0x798] sm:$0xff]
        %v476 = vld [vmem:[#allocation6 + $0x7c0] sm:$0xff]
        %v477 = vld [vmem:[#allocation6 + $0x7c8] sm:$0xff]
        %v478 = vld [vmem:[#allocation6 + $0x7d0] sm:$0xff]
        %v479 = vld [vmem:[#allocation6 + $0x7d8] sm:$0xff]
        %v480 = vld [vmem:[#allocation8] sm:$0xf]
        %v482 = vlaneseq
        %v483 = vshrl.u32 %v482, 7
        %v484 = vsub.s32 0, %v483
        %v485 = vrot.slane %v480, %v484
        %v486 = vlaneseq
        %v487 = vshrl.u32 %v486, 7
        %v488 = vsub.s32 1, %v487
        %v489 = vrot.slane %v480, %v488
        %v490 = vlaneseq
        %v491 = vshrl.u32 %v490, 7
        %v492 = vsub.s32 2, %v491
        %v493 = vrot.slane %v480, %v492
        %v494 = vlaneseq
        %v495 = vshrl.u32 %v494, 7
        %v496 = vsub.s32 3, %v495
        %v497 = vrot.slane %v480, %v496
        %502 = vmatprep.subr.mxu0 %v413
        %503 = vmatpush1.msra.mxu0 %v412
        %504 = vmatprep.subr.mxu0 %v409
        %505 = vmatpush1.msra.mxu0 %v408
        %506 = vmatprep.subr.mxu0 %v405
        %507 = vmatpush1.msra.mxu0 %v404
        %508 = vmatprep.subr.mxu0 %v401
        %509 = vmatpush1.msra.mxu0 %v400
        %510 = vmatprep.subr.mxu0 %v397
        %511 = vmatpush1.msra.mxu0 %v396
        %512 = vmatprep.subr.mxu0 %v393
        %513 = vmatpush1.msra.mxu0 %v392
        %514 = vmatprep.subr.mxu0 %v389
        %515 = vmatpush1.msra.mxu0 %v388
        %516 = vmatprep.subr.mxu0 %v385
        %517 = vmatpush1.msra.mxu0 %v384
        %518 = vmatprep.subr.mxu0 %v381
        %519 = vmatpush1.msra.mxu0 %v380
        %520 = vmatprep.subr.mxu0 %v377
        %521 = vmatpush1.msra.mxu0 %v376
        %522 = vmatprep.subr.mxu0 %v373
        %523 = vmatpush1.msra.mxu0 %v372
        %524 = vmatprep.subr.mxu0 %v369
        %525 = vmatpush1.msra.mxu0 %v368
        %526 = vmatprep.subr.mxu0 %v365
        %527 = vmatpush1.msra.mxu0 %v364
        %528 = vmatprep.subr.mxu0 %v361
        %529 = vmatpush1.msra.mxu0 %v360
        %530 = vmatprep.subr.mxu0 %v357
        %531 = vmatpush1.msra.mxu0 %v356
        %532 = vmatprep.subr.mxu0 %v353
        %533 = vmatpush1.msra.mxu0 %v352
        %534 = vmatprep.subr.mxu0 %v477
        %535 = vmatpush2.msra.mxu0 %v476
        %536 = vmatprep.subr.mxu0 %v473
        %537 = vmatpush2.msra.mxu0 %v472
        %538 = vmatprep.subr.mxu0 %v469
        %539 = vmatpush2.msra.mxu0 %v468
        %540 = vmatprep.subr.mxu0 %v465
        %541 = vmatpush2.msra.mxu0 %v464
        %542 = vmatprep.subr.mxu0 %v461
        %543 = vmatpush2.msra.mxu0 %v460
        %544 = vmatprep.subr.mxu0 %v457
        %545 = vmatpush2.msra.mxu0 %v456
        %546 = vmatprep.subr.mxu0 %v453
        %547 = vmatpush2.msra.mxu0 %v452
        %548 = vmatprep.subr.mxu0 %v449
        %549 = vmatpush2.msra.mxu0 %v448
        %550 = vmatprep.subr.mxu0 %v445
        %551 = vmatpush2.msra.mxu0 %v444
        %552 = vmatprep.subr.mxu0 %v441
        %553 = vmatpush2.msra.mxu0 %v440
        %554 = vmatprep.subr.mxu0 %v437
        %555 = vmatpush2.msra.mxu0 %v436
        %556 = vmatprep.subr.mxu0 %v433
        %557 = vmatpush2.msra.mxu0 %v432
        %558 = vmatprep.subr.mxu0 %v429
        %559 = vmatpush2.msra.mxu0 %v428
        %560 = vmatprep.subr.mxu0 %v425
        %561 = vmatpush2.msra.mxu0 %v424
        %562 = vmatprep.subr.mxu0 %v421
        %563 = vmatpush2.msra.mxu0 %v420
        %564 = vmatprep.subr.mxu0 %v417
        %565 = vmatpush2.msra.mxu0 %v416
        %566 = vmatprep.mubr.f32.mxu0 %v289
        %567 = vmatmul.mubr.f32.gmra.mxu0 %v288
        %v568 = vpop.f32.mrf.mxu0
        %v569 = vadd.f32 %v485, %v568
        %v570 = vpop.f32.mrf.mxu0
        %v571 = vadd.f32 %v489, %v570
        %572 = vmatprep.mubr.f32.mxu0 %v291
        %573 = vmatmul.mubr.f32.gmra.mxu0 %v290
        %v574 = vpop.f32.mrf.mxu0
        %v575 = vadd.f32 %v485, %v574
        %v576 = vpop.f32.mrf.mxu0
        %v577 = vadd.f32 %v489, %v576
        %578 = vmatprep.mubr.f32.mxu0 %v293
        %579 = vmatmul.mubr.f32.gmra.mxu0 %v292
        %v580 = vpop.f32.mrf.mxu0
        %v581 = vadd.f32 %v485, %v580
        %v582 = vpop.f32.mrf.mxu0
        %v583 = vadd.f32 %v489, %v582
        %584 = vmatprep.mubr.f32.mxu0 %v295
        %585 = vmatmul.mubr.f32.gmra.mxu0 %v294
        %v586 = vpop.f32.mrf.mxu0
        %v587 = vadd.f32 %v485, %v586
        %v588 = vpop.f32.mrf.mxu0
        %v589 = vadd.f32 %v489, %v588
        %590 = vmatprep.mubr.f32.mxu0 %v297
        %591 = vmatmul.mubr.f32.gmra.mxu0 %v296
        %v592 = vpop.f32.mrf.mxu0
        %v593 = vadd.f32 %v485, %v592
        %v594 = vpop.f32.mrf.mxu0
        %v595 = vadd.f32 %v489, %v594
        %596 = vmatprep.mubr.f32.mxu0 %v299
        %597 = vmatmul.mubr.f32.gmra.mxu0 %v298
        %v598 = vpop.f32.mrf.mxu0
        %v599 = vadd.f32 %v485, %v598
        %v600 = vpop.f32.mrf.mxu0
        %v601 = vadd.f32 %v489, %v600
        %602 = vmatprep.mubr.f32.mxu0 %v301
        %603 = vmatmul.mubr.f32.gmra.mxu0 %v300
        %v604 = vpop.f32.mrf.mxu0
        %v605 = vadd.f32 %v485, %v604
        %v606 = vpop.f32.mrf.mxu0
        %v607 = vadd.f32 %v489, %v606
        %608 = vmatprep.mubr.f32.mxu0 %v303
        %609 = vmatmul.mubr.f32.gmra.mxu0 %v302
        %v610 = vpop.f32.mrf.mxu0
        %v611 = vadd.f32 %v485, %v610
        %v612 = vpop.f32.mrf.mxu0
        %v613 = vadd.f32 %v489, %v612
        %614 = vmatprep.mubr.f32.mxu0 %v305
        %615 = vmatmul.mubr.f32.gmra.mxu0 %v304
        %v616 = vpop.f32.mrf.mxu0
        %v617 = vadd.f32 %v485, %v616
        %v618 = vpop.f32.mrf.mxu0
        %v619 = vadd.f32 %v489, %v618
        %620 = vmatprep.mubr.f32.mxu0 %v307
        %621 = vmatmul.mubr.f32.gmra.mxu0 %v306
        %v622 = vpop.f32.mrf.mxu0
        %v623 = vadd.f32 %v485, %v622
        %v624 = vpop.f32.mrf.mxu0
        %v625 = vadd.f32 %v489, %v624
        %626 = vmatprep.mubr.f32.mxu0 %v309
        %627 = vmatmul.mubr.f32.gmra.mxu0 %v308
        %v628 = vpop.f32.mrf.mxu0
        %v629 = vadd.f32 %v485, %v628
        %v630 = vpop.f32.mrf.mxu0
        %v631 = vadd.f32 %v489, %v630
        %632 = vmatprep.mubr.f32.mxu0 %v311
        %633 = vmatmul.mubr.f32.gmra.mxu0 %v310
        %v634 = vpop.f32.mrf.mxu0
        %v635 = vadd.f32 %v485, %v634
        %v636 = vpop.f32.mrf.mxu0
        %v637 = vadd.f32 %v489, %v636
        %638 = vmatprep.mubr.f32.mxu0 %v313
        %639 = vmatmul.mubr.f32.gmra.mxu0 %v312
        %v640 = vpop.f32.mrf.mxu0
        %v641 = vadd.f32 %v485, %v640
        %v642 = vpop.f32.mrf.mxu0
        %v643 = vadd.f32 %v489, %v642
        %644 = vmatprep.mubr.f32.mxu0 %v315
        %645 = vmatmul.mubr.f32.gmra.mxu0 %v314
        %v646 = vpop.f32.mrf.mxu0
        %v647 = vadd.f32 %v485, %v646
        %v648 = vpop.f32.mrf.mxu0
        %v649 = vadd.f32 %v489, %v648
        %650 = vmatprep.mubr.f32.mxu0 %v317
        %651 = vmatmul.mubr.f32.gmra.mxu0 %v316
        %v652 = vpop.f32.mrf.mxu0
        %v653 = vadd.f32 %v485, %v652
        %v654 = vpop.f32.mrf.mxu0
        %v655 = vadd.f32 %v489, %v654
        %656 = vmatprep.mubr.f32.mxu0 %v319
        %657 = vmatmul.mubr.f32.gmra.mxu0 %v318
        %v658 = vpop.f32.mrf.mxu0
        %v659 = vadd.f32 %v485, %v658
        %v660 = vpop.f32.mrf.mxu0
        %v661 = vadd.f32 %v489, %v660
        %662 = vdwg.mxu0
        %663 = vmatprep.subr.mxu0 %v415
        %664 = vmatpush1.msra.mxu0 %v414
        %665 = vmatprep.subr.mxu0 %v411
        %666 = vmatpush1.msra.mxu0 %v410
        %667 = vmatprep.subr.mxu0 %v407
        %668 = vmatpush1.msra.mxu0 %v406
        %669 = vmatprep.subr.mxu0 %v403
        %670 = vmatpush1.msra.mxu0 %v402
        %671 = vmatprep.subr.mxu0 %v399
        %672 = vmatpush1.msra.mxu0 %v398
        %673 = vmatprep.subr.mxu0 %v395
        %674 = vmatpush1.msra.mxu0 %v394
        %675 = vmatprep.subr.mxu0 %v391
        %676 = vmatpush1.msra.mxu0 %v390
        %677 = vmatprep.subr.mxu0 %v387
        %678 = vmatpush1.msra.mxu0 %v386
        %679 = vmatprep.subr.mxu0 %v383
        %680 = vmatpush1.msra.mxu0 %v382
        %681 = vmatprep.subr.mxu0 %v379
        %682 = vmatpush1.msra.mxu0 %v378
        %683 = vmatprep.subr.mxu0 %v375
        %684 = vmatpush1.msra.mxu0 %v374
        %685 = vmatprep.subr.mxu0 %v371
        %686 = vmatpush1.msra.mxu0 %v370
        %687 = vmatprep.subr.mxu0 %v367
        %688 = vmatpush1.msra.mxu0 %v366
        %689 = vmatprep.subr.mxu0 %v363
        %690 = vmatpush1.msra.mxu0 %v362
        %691 = vmatprep.subr.mxu0 %v359
        %692 = vmatpush1.msra.mxu0 %v358
        %693 = vmatprep.subr.mxu0 %v355
        %694 = vmatpush1.msra.mxu0 %v354
        %695 = vmatprep.subr.mxu0 %v479
        %696 = vmatpush2.msra.mxu0 %v478
        %697 = vmatprep.subr.mxu0 %v475
        %698 = vmatpush2.msra.mxu0 %v474
        %699 = vmatprep.subr.mxu0 %v471
        %700 = vmatpush2.msra.mxu0 %v470
        %701 = vmatprep.subr.mxu0 %v467
        %702 = vmatpush2.msra.mxu0 %v466
        %703 = vmatprep.subr.mxu0 %v463
        %704 = vmatpush2.msra.mxu0 %v462
        %705 = vmatprep.subr.mxu0 %v459
        %706 = vmatpush2.msra.mxu0 %v458
        %707 = vmatprep.subr.mxu0 %v455
        %708 = vmatpush2.msra.mxu0 %v454
        %709 = vmatprep.subr.mxu0 %v451
        %710 = vmatpush2.msra.mxu0 %v450
        %711 = vmatprep.subr.mxu0 %v447
        %712 = vmatpush2.msra.mxu0 %v446
        %713 = vmatprep.subr.mxu0 %v443
        %714 = vmatpush2.msra.mxu0 %v442
        %715 = vmatprep.subr.mxu0 %v439
        %716 = vmatpush2.msra.mxu0 %v438
        %717 = vmatprep.subr.mxu0 %v435
        %718 = vmatpush2.msra.mxu0 %v434
        %719 = vmatprep.subr.mxu0 %v431
        %720 = vmatpush2.msra.mxu0 %v430
        %721 = vmatprep.subr.mxu0 %v427
        %722 = vmatpush2.msra.mxu0 %v426
        %723 = vmatprep.subr.mxu0 %v423
        %724 = vmatpush2.msra.mxu0 %v422
        %725 = vmatprep.subr.mxu0 %v419
        %726 = vmatpush2.msra.mxu0 %v418
        %727 = vmatprep.mubr.f32.mxu0 %v289
        %728 = vmatmul.mubr.f32.gmra.mxu0 %v288
        %v729 = vpop.f32.mrf.mxu0
        %v730 = vadd.f32 %v493, %v729
        %v731 = vpop.f32.mrf.mxu0
        %v732 = vadd.f32 %v497, %v731
        %733 = vmatprep.mubr.f32.mxu0 %v291
        %734 = vmatmul.mubr.f32.gmra.mxu0 %v290
        %v735 = vpop.f32.mrf.mxu0
        %v736 = vadd.f32 %v493, %v735
        %v737 = vpop.f32.mrf.mxu0
        %v738 = vadd.f32 %v497, %v737
        %739 = vmatprep.mubr.f32.mxu0 %v293
        %740 = vmatmul.mubr.f32.gmra.mxu0 %v292
        %v741 = vpop.f32.mrf.mxu0
        %v742 = vadd.f32 %v493, %v741
        %v743 = vpop.f32.mrf.mxu0
        %v744 = vadd.f32 %v497, %v743
        %745 = vmatprep.mubr.f32.mxu0 %v295
        %746 = vmatmul.mubr.f32.gmra.mxu0 %v294
        %v747 = vpop.f32.mrf.mxu0
        %v748 = vadd.f32 %v493, %v747
        %v749 = vpop.f32.mrf.mxu0
        %v750 = vadd.f32 %v497, %v749
        %751 = vmatprep.mubr.f32.mxu0 %v297
        %752 = vmatmul.mubr.f32.gmra.mxu0 %v296
        %v753 = vpop.f32.mrf.mxu0
        %v754 = vadd.f32 %v493, %v753
        %v755 = vpop.f32.mrf.mxu0
        %v756 = vadd.f32 %v497, %v755
        %757 = vmatprep.mubr.f32.mxu0 %v299
        %758 = vmatmul.mubr.f32.gmra.mxu0 %v298
        %v759 = vpop.f32.mrf.mxu0
        %v760 = vadd.f32 %v493, %v759
        %v761 = vpop.f32.mrf.mxu0
        %v762 = vadd.f32 %v497, %v761
        %763 = vmatprep.mubr.f32.mxu0 %v301
        %764 = vmatmul.mubr.f32.gmra.mxu0 %v300
        %v765 = vpop.f32.mrf.mxu0
        %v766 = vadd.f32 %v493, %v765
        %v767 = vpop.f32.mrf.mxu0
        %v768 = vadd.f32 %v497, %v767
        %769 = vmatprep.mubr.f32.mxu0 %v303
        %770 = vmatmul.mubr.f32.gmra.mxu0 %v302
        %v771 = vpop.f32.mrf.mxu0
        %v772 = vadd.f32 %v493, %v771
        %v773 = vpop.f32.mrf.mxu0
        %v774 = vadd.f32 %v497, %v773
        %775 = vmatprep.mubr.f32.mxu0 %v305
        %776 = vmatmul.mubr.f32.gmra.mxu0 %v304
        %v777 = vpop.f32.mrf.mxu0
        %v778 = vadd.f32 %v493, %v777
        %v779 = vpop.f32.mrf.mxu0
        %v780 = vadd.f32 %v497, %v779
        %781 = vmatprep.mubr.f32.mxu0 %v307
        %782 = vmatmul.mubr.f32.gmra.mxu0 %v306
        %v783 = vpop.f32.mrf.mxu0
        %v784 = vadd.f32 %v493, %v783
        %v785 = vpop.f32.mrf.mxu0
        %v786 = vadd.f32 %v497, %v785
        %787 = vmatprep.mubr.f32.mxu0 %v309
        %788 = vmatmul.mubr.f32.gmra.mxu0 %v308
        %v789 = vpop.f32.mrf.mxu0
        %v790 = vadd.f32 %v493, %v789
        %v791 = vpop.f32.mrf.mxu0
        %v792 = vadd.f32 %v497, %v791
        %793 = vmatprep.mubr.f32.mxu0 %v311
        %794 = vmatmul.mubr.f32.gmra.mxu0 %v310
        %v795 = vpop.f32.mrf.mxu0
        %v796 = vadd.f32 %v493, %v795
        %v797 = vpop.f32.mrf.mxu0
        %v798 = vadd.f32 %v497, %v797
        %799 = vmatprep.mubr.f32.mxu0 %v313
        %800 = vmatmul.mubr.f32.gmra.mxu0 %v312
        %v801 = vpop.f32.mrf.mxu0
        %v802 = vadd.f32 %v493, %v801
        %v803 = vpop.f32.mrf.mxu0
        %v804 = vadd.f32 %v497, %v803
        %805 = vmatprep.mubr.f32.mxu0 %v315
        %806 = vmatmul.mubr.f32.gmra.mxu0 %v314
        %v807 = vpop.f32.mrf.mxu0
        %v808 = vadd.f32 %v493, %v807
        %v809 = vpop.f32.mrf.mxu0
        %v810 = vadd.f32 %v497, %v809
        %811 = vmatprep.mubr.f32.mxu0 %v317
        %812 = vmatmul.mubr.f32.gmra.mxu0 %v316
        %v813 = vpop.f32.mrf.mxu0
        %v814 = vadd.f32 %v493, %v813
        %v815 = vpop.f32.mrf.mxu0
        %v816 = vadd.f32 %v497, %v815
        %817 = vmatprep.mubr.f32.mxu0 %v319
        %818 = vmatmul.mubr.f32.gmra.mxu0 %v318
        %v819 = vpop.f32.mrf.mxu0
        %v820 = vadd.f32 %v493, %v819
        %v821 = vpop.f32.mrf.mxu0
        %v822 = vadd.f32 %v497, %v821
        %823 = vdwg.mxu0
        %v824 = vmul.f32 %v569, 0.5
        %v825 = vmul.f32 %v571, 0.5
        %v826 = vmul.f32 %v730, 0.5
        %v827 = vmul.f32 %v732, 0.5
        %v828 = vmul.f32 %v575, 0.5
        %v829 = vmul.f32 %v577, 0.5
        %v830 = vmul.f32 %v736, 0.5
        %v831 = vmul.f32 %v738, 0.5
        %v832 = vmul.f32 %v581, 0.5
        %v833 = vmul.f32 %v583, 0.5
        %v834 = vmul.f32 %v742, 0.5
        %v835 = vmul.f32 %v744, 0.5
        %v836 = vmul.f32 %v587, 0.5
        %v837 = vmul.f32 %v589, 0.5
        %v838 = vmul.f32 %v748, 0.5
        %v839 = vmul.f32 %v750, 0.5
        %v840 = vmul.f32 %v593, 0.5
        %v841 = vmul.f32 %v595, 0.5
        %v842 = vmul.f32 %v754, 0.5
        %v843 = vmul.f32 %v756, 0.5
        %v844 = vmul.f32 %v599, 0.5
        %v845 = vmul.f32 %v601, 0.5
        %v846 = vmul.f32 %v760, 0.5
        %v847 = vmul.f32 %v762, 0.5
        %v848 = vmul.f32 %v605, 0.5
        %v849 = vmul.f32 %v607, 0.5
        %v850 = vmul.f32 %v766, 0.5
        %v851 = vmul.f32 %v768, 0.5
        %v852 = vmul.f32 %v611, 0.5
        %v853 = vmul.f32 %v613, 0.5
        %v854 = vmul.f32 %v772, 0.5
        %v855 = vmul.f32 %v774, 0.5
        %v856 = vmul.f32 %v617, 0.5
        %v857 = vmul.f32 %v619, 0.5
        %v858 = vmul.f32 %v778, 0.5
        %v859 = vmul.f32 %v780, 0.5
        %v860 = vmul.f32 %v623, 0.5
        %v861 = vmul.f32 %v625, 0.5
        %v862 = vmul.f32 %v784, 0.5
        %v863 = vmul.f32 %v786, 0.5
        %v864 = vmul.f32 %v629, 0.5
        %v865 = vmul.f32 %v631, 0.5
        %v866 = vmul.f32 %v790, 0.5
        %v867 = vmul.f32 %v792, 0.5
        %v868 = vmul.f32 %v635, 0.5
        %v869 = vmul.f32 %v637, 0.5
        %v870 = vmul.f32 %v796, 0.5
        %v871 = vmul.f32 %v798, 0.5
        %v872 = vmul.f32 %v641, 0.5
        %v873 = vmul.f32 %v643, 0.5
        %v874 = vmul.f32 %v802, 0.5
        %v875 = vmul.f32 %v804, 0.5
        %v876 = vmul.f32 %v647, 0.5
        %v877 = vmul.f32 %v649, 0.5
        %v878 = vmul.f32 %v808, 0.5
        %v879 = vmul.f32 %v810, 0.5
        %v880 = vmul.f32 %v653, 0.5
        %v881 = vmul.f32 %v655, 0.5
        %v882 = vmul.f32 %v814, 0.5
        %v883 = vmul.f32 %v816, 0.5
        %v884 = vmul.f32 %v659, 0.5
        %v885 = vmul.f32 %v661, 0.5
        %v886 = vmul.f32 %v820, 0.5
        %v887 = vmul.f32 %v822, 0.5
        %v888 = vmul.f32 %v569, 0.044715
        %v889 = vmul.f32 %v571, 0.044715
        %v890 = vmul.f32 %v730, 0.044715
        %v891 = vmul.f32 %v732, 0.044715
        %v892 = vmul.f32 %v575, 0.044715
        %v893 = vmul.f32 %v577, 0.044715
        %v894 = vmul.f32 %v736, 0.044715
        %v895 = vmul.f32 %v738, 0.044715
        %v896 = vmul.f32 %v581, 0.044715
        %v897 = vmul.f32 %v583, 0.044715
        %v898 = vmul.f32 %v742, 0.044715
        %v899 = vmul.f32 %v744, 0.044715
        %v900 = vmul.f32 %v587, 0.044715
        %v901 = vmul.f32 %v589, 0.044715
        %v902 = vmul.f32 %v748, 0.044715
        %v903 = vmul.f32 %v750, 0.044715
        %v904 = vmul.f32 %v593, 0.044715
        %v905 = vmul.f32 %v595, 0.044715
        %v906 = vmul.f32 %v754, 0.044715
        %v907 = vmul.f32 %v756, 0.044715
        %v908 = vmul.f32 %v599, 0.044715
        %v909 = vmul.f32 %v601, 0.044715
        %v910 = vmul.f32 %v760, 0.044715
        %v911 = vmul.f32 %v762, 0.044715
        %v912 = vmul.f32 %v605, 0.044715
        %v913 = vmul.f32 %v607, 0.044715
        %v914 = vmul.f32 %v766, 0.044715
        %v915 = vmul.f32 %v768, 0.044715
        %v916 = vmul.f32 %v611, 0.044715
        %v917 = vmul.f32 %v613, 0.044715
        %v918 = vmul.f32 %v772, 0.044715
        %v919 = vmul.f32 %v774, 0.044715
        %v920 = vmul.f32 %v617, 0.044715
        %v921 = vmul.f32 %v619, 0.044715
        %v922 = vmul.f32 %v778, 0.044715
        %v923 = vmul.f32 %v780, 0.044715
        %v924 = vmul.f32 %v623, 0.044715
        %v925 = vmul.f32 %v625, 0.044715
        %v926 = vmul.f32 %v784, 0.044715
        %v927 = vmul.f32 %v786, 0.044715
        %v928 = vmul.f32 %v629, 0.044715
        %v929 = vmul.f32 %v631, 0.044715
        %v930 = vmul.f32 %v790, 0.044715
        %v931 = vmul.f32 %v792, 0.044715
        %v932 = vmul.f32 %v635, 0.044715
        %v933 = vmul.f32 %v637, 0.044715
        %v934 = vmul.f32 %v796, 0.044715
        %v935 = vmul.f32 %v798, 0.044715
        %v936 = vmul.f32 %v641, 0.044715
        %v937 = vmul.f32 %v643, 0.044715
        %v938 = vmul.f32 %v802, 0.044715
        %v939 = vmul.f32 %v804, 0.044715
        %v940 = vmul.f32 %v647, 0.044715
        %v941 = vmul.f32 %v649, 0.044715
        %v942 = vmul.f32 %v808, 0.044715
        %v943 = vmul.f32 %v810, 0.044715
        %v944 = vmul.f32 %v653, 0.044715
        %v945 = vmul.f32 %v655, 0.044715
        %v946 = vmul.f32 %v814, 0.044715
        %v947 = vmul.f32 %v816, 0.044715
        %v948 = vmul.f32 %v659, 0.044715
        %v949 = vmul.f32 %v661, 0.044715
        %v950 = vmul.f32 %v820, 0.044715
        %v951 = vmul.f32 %v822, 0.044715
        %v952 = vmul.f32 %v888, %v569
        %v953 = vmul.f32 %v889, %v571
        %v954 = vmul.f32 %v890, %v730
        %v955 = vmul.f32 %v891, %v732
        %v956 = vmul.f32 %v892, %v575
        %v957 = vmul.f32 %v893, %v577
        %v958 = vmul.f32 %v894, %v736
        %v959 = vmul.f32 %v895, %v738
        %v960 = vmul.f32 %v896, %v581
        %v961 = vmul.f32 %v897, %v583
        %v962 = vmul.f32 %v898, %v742
        %v963 = vmul.f32 %v899, %v744
        %v964 = vmul.f32 %v900, %v587
        %v965 = vmul.f32 %v901, %v589
        %v966 = vmul.f32 %v902, %v748
        %v967 = vmul.f32 %v903, %v750
        %v968 = vmul.f32 %v904, %v593
        %v969 = vmul.f32 %v905, %v595
        %v970 = vmul.f32 %v906, %v754
        %v971 = vmul.f32 %v907, %v756
        %v972 = vmul.f32 %v908, %v599
        %v973 = vmul.f32 %v909, %v601
        %v974 = vmul.f32 %v910, %v760
        %v975 = vmul.f32 %v911, %v762
        %v976 = vmul.f32 %v912, %v605
        %v977 = vmul.f32 %v913, %v607
        %v978 = vmul.f32 %v914, %v766
        %v979 = vmul.f32 %v915, %v768
        %v980 = vmul.f32 %v916, %v611
        %v981 = vmul.f32 %v917, %v613
        %v982 = vmul.f32 %v918, %v772
        %v983 = vmul.f32 %v919, %v774
        %v984 = vmul.f32 %v920, %v617
        %v985 = vmul.f32 %v921, %v619
        %v986 = vmul.f32 %v922, %v778
        %v987 = vmul.f32 %v923, %v780
        %v988 = vmul.f32 %v924, %v623
        %v989 = vmul.f32 %v925, %v625
        %v990 = vmul.f32 %v926, %v784
        %v991 = vmul.f32 %v927, %v786
        %v992 = vmul.f32 %v928, %v629
        %v993 = vmul.f32 %v929, %v631
        %v994 = vmul.f32 %v930, %v790
        %v995 = vmul.f32 %v931, %v792
        %v996 = vmul.f32 %v932, %v635
        %v997 = vmul.f32 %v933, %v637
        %v998 = vmul.f32 %v934, %v796
        %v999 = vmul.f32 %v935, %v798
        %v1000 = vmul.f32 %v936, %v641
        %v1001 = vmul.f32 %v937, %v643
        %v1002 = vmul.f32 %v938, %v802
        %v1003 = vmul.f32 %v939, %v804
        %v1004 = vmul.f32 %v940, %v647
        %v1005 = vmul.f32 %v941, %v649
        %v1006 = vmul.f32 %v942, %v808
        %v1007 = vmul.f32 %v943, %v810
        %v1008 = vmul.f32 %v944, %v653
        %v1009 = vmul.f32 %v945, %v655
        %v1010 = vmul.f32 %v946, %v814
        %v1011 = vmul.f32 %v947, %v816
        %v1012 = vmul.f32 %v948, %v659
        %v1013 = vmul.f32 %v949, %v661
        %v1014 = vmul.f32 %v950, %v820
        %v1015 = vmul.f32 %v951, %v822
        %v1016 = vmul.f32 %v952, %v569
        %v1017 = vmul.f32 %v953, %v571
        %v1018 = vmul.f32 %v954, %v730
        %v1019 = vmul.f32 %v955, %v732
        %v1020 = vmul.f32 %v956, %v575
        %v1021 = vmul.f32 %v957, %v577
        %v1022 = vmul.f32 %v958, %v736
        %v1023 = vmul.f32 %v959, %v738
        %v1024 = vmul.f32 %v960, %v581
        %v1025 = vmul.f32 %v961, %v583
        %v1026 = vmul.f32 %v962, %v742
        %v1027 = vmul.f32 %v963, %v744
        %v1028 = vmul.f32 %v964, %v587
        %v1029 = vmul.f32 %v965, %v589
        %v1030 = vmul.f32 %v966, %v748
        %v1031 = vmul.f32 %v967, %v750
        %v1032 = vmul.f32 %v968, %v593
        %v1033 = vmul.f32 %v969, %v595
        %v1034 = vmul.f32 %v970, %v754
        %v1035 = vmul.f32 %v971, %v756
        %v1036 = vmul.f32 %v972, %v599
        %v1037 = vmul.f32 %v973, %v601
        %v1038 = vmul.f32 %v974, %v760
        %v1039 = vmul.f32 %v975, %v762
        %v1040 = vmul.f32 %v976, %v605
        %v1041 = vmul.f32 %v977, %v607
        %v1042 = vmul.f32 %v978, %v766
        %v1043 = vmul.f32 %v979, %v768
        %v1044 = vmul.f32 %v980, %v611
        %v1045 = vmul.f32 %v981, %v613
        %v1046 = vmul.f32 %v982, %v772
        %v1047 = vmul.f32 %v983, %v774
        %v1048 = vmul.f32 %v984, %v617
        %v1049 = vmul.f32 %v985, %v619
        %v1050 = vmul.f32 %v986, %v778
        %v1051 = vmul.f32 %v987, %v780
        %v1052 = vmul.f32 %v988, %v623
        %v1053 = vmul.f32 %v989, %v625
        %v1054 = vmul.f32 %v990, %v784
        %v1055 = vmul.f32 %v991, %v786
        %v1056 = vmul.f32 %v992, %v629
        %v1057 = vmul.f32 %v993, %v631
        %v1058 = vmul.f32 %v994, %v790
        %v1059 = vmul.f32 %v995, %v792
        %v1060 = vmul.f32 %v996, %v635
        %v1061 = vmul.f32 %v997, %v637
        %v1062 = vmul.f32 %v998, %v796
        %v1063 = vmul.f32 %v999, %v798
        %v1064 = vmul.f32 %v1000, %v641
        %v1065 = vmul.f32 %v1001, %v643
        %v1066 = vmul.f32 %v1002, %v802
        %v1067 = vmul.f32 %v1003, %v804
        %v1068 = vmul.f32 %v1004, %v647
        %v1069 = vmul.f32 %v1005, %v649
        %v1070 = vmul.f32 %v1006, %v808
        %v1071 = vmul.f32 %v1007, %v810
        %v1072 = vmul.f32 %v1008, %v653
        %v1073 = vmul.f32 %v1009, %v655
        %v1074 = vmul.f32 %v1010, %v814
        %v1075 = vmul.f32 %v1011, %v816
        %v1076 = vmul.f32 %v1012, %v659
        %v1077 = vmul.f32 %v1013, %v661
        %v1078 = vmul.f32 %v1014, %v820
        %v1079 = vmul.f32 %v1015, %v822
        %v1080 = vadd.f32 %v569, %v1016
        %v1081 = vadd.f32 %v571, %v1017
        %v1082 = vadd.f32 %v730, %v1018
        %v1083 = vadd.f32 %v732, %v1019
        %v1084 = vadd.f32 %v575, %v1020
        %v1085 = vadd.f32 %v577, %v1021
        %v1086 = vadd.f32 %v736, %v1022
        %v1087 = vadd.f32 %v738, %v1023
        %v1088 = vadd.f32 %v581, %v1024
        %v1089 = vadd.f32 %v583, %v1025
        %v1090 = vadd.f32 %v742, %v1026
        %v1091 = vadd.f32 %v744, %v1027
        %v1092 = vadd.f32 %v587, %v1028
        %v1093 = vadd.f32 %v589, %v1029
        %v1094 = vadd.f32 %v748, %v1030
        %v1095 = vadd.f32 %v750, %v1031
        %v1096 = vadd.f32 %v593, %v1032
        %v1097 = vadd.f32 %v595, %v1033
        %v1098 = vadd.f32 %v754, %v1034
        %v1099 = vadd.f32 %v756, %v1035
        %v1100 = vadd.f32 %v599, %v1036
        %v1101 = vadd.f32 %v601, %v1037
        %v1102 = vadd.f32 %v760, %v1038
        %v1103 = vadd.f32 %v762, %v1039
        %v1104 = vadd.f32 %v605, %v1040
        %v1105 = vadd.f32 %v607, %v1041
        %v1106 = vadd.f32 %v766, %v1042
        %v1107 = vadd.f32 %v768, %v1043
        %v1108 = vadd.f32 %v611, %v1044
        %v1109 = vadd.f32 %v613, %v1045
        %v1110 = vadd.f32 %v772, %v1046
        %v1111 = vadd.f32 %v774, %v1047
        %v1112 = vadd.f32 %v617, %v1048
        %v1113 = vadd.f32 %v619, %v1049
        %v1114 = vadd.f32 %v778, %v1050
        %v1115 = vadd.f32 %v780, %v1051
        %v1116 = vadd.f32 %v623, %v1052
        %v1117 = vadd.f32 %v625, %v1053
        %v1118 = vadd.f32 %v784, %v1054
        %v1119 = vadd.f32 %v786, %v1055
        %v1120 = vadd.f32 %v629, %v1056
        %v1121 = vadd.f32 %v631, %v1057
        %v1122 = vadd.f32 %v790, %v1058
        %v1123 = vadd.f32 %v792, %v1059
        %v1124 = vadd.f32 %v635, %v1060
        %v1125 = vadd.f32 %v637, %v1061
        %v1126 = vadd.f32 %v796, %v1062
        %v1127 = vadd.f32 %v798, %v1063
        %v1128 = vadd.f32 %v641, %v1064
        %v1129 = vadd.f32 %v643, %v1065
        %v1130 = vadd.f32 %v802, %v1066
        %v1131 = vadd.f32 %v804, %v1067
        %v1132 = vadd.f32 %v647, %v1068
        %v1133 = vadd.f32 %v649, %v1069
        %v1134 = vadd.f32 %v808, %v1070
        %v1135 = vadd.f32 %v810, %v1071
        %v1136 = vadd.f32 %v653, %v1072
        %v1137 = vadd.f32 %v655, %v1073
        %v1138 = vadd.f32 %v814, %v1074
        %v1139 = vadd.f32 %v816, %v1075
        %v1140 = vadd.f32 %v659, %v1076
        %v1141 = vadd.f32 %v661, %v1077
        %v1142 = vadd.f32 %v820, %v1078
        %v1143 = vadd.f32 %v822, %v1079
        %v1144 = vmul.f32 %v1080, 0.7978846
        %v1145 = vmul.f32 %v1081, 0.7978846
        %v1146 = vmul.f32 %v1082, 0.7978846
        %v1147 = vmul.f32 %v1083, 0.7978846
        %v1148 = vmul.f32 %v1084, 0.7978846
        %v1149 = vmul.f32 %v1085, 0.7978846
        %v1150 = vmul.f32 %v1086, 0.7978846
        %v1151 = vmul.f32 %v1087, 0.7978846
        %v1152 = vmul.f32 %v1088, 0.7978846
        %v1153 = vmul.f32 %v1089, 0.7978846
        %v1154 = vmul.f32 %v1090, 0.7978846
        %v1155 = vmul.f32 %v1091, 0.7978846
        %v1156 = vmul.f32 %v1092, 0.7978846
        %v1157 = vmul.f32 %v1093, 0.7978846
        %v1158 = vmul.f32 %v1094, 0.7978846
        %v1159 = vmul.f32 %v1095, 0.7978846
        %v1160 = vmul.f32 %v1096, 0.7978846
        %v1161 = vmul.f32 %v1097, 0.7978846
        %v1162 = vmul.f32 %v1098, 0.7978846
        %v1163 = vmul.f32 %v1099, 0.7978846
        %v1164 = vmul.f32 %v1100, 0.7978846
        %v1165 = vmul.f32 %v1101, 0.7978846
        %v1166 = vmul.f32 %v1102, 0.7978846
        %v1167 = vmul.f32 %v1103, 0.7978846
        %v1168 = vmul.f32 %v1104, 0.7978846
        %v1169 = vmul.f32 %v1105, 0.7978846
        %v1170 = vmul.f32 %v1106, 0.7978846
        %v1171 = vmul.f32 %v1107, 0.7978846
        %v1172 = vmul.f32 %v1108, 0.7978846
        %v1173 = vmul.f32 %v1109, 0.7978846
        %v1174 = vmul.f32 %v1110, 0.7978846
        %v1175 = vmul.f32 %v1111, 0.7978846
        %v1176 = vmul.f32 %v1112, 0.7978846
        %v1177 = vmul.f32 %v1113, 0.7978846
        %v1178 = vmul.f32 %v1114, 0.7978846
        %v1179 = vmul.f32 %v1115, 0.7978846
        %v1180 = vmul.f32 %v1116, 0.7978846
        %v1181 = vmul.f32 %v1117, 0.7978846
        %v1182 = vmul.f32 %v1118, 0.7978846
        %v1183 = vmul.f32 %v1119, 0.7978846
        %v1184 = vmul.f32 %v1120, 0.7978846
        %v1185 = vmul.f32 %v1121, 0.7978846
        %v1186 = vmul.f32 %v1122, 0.7978846
        %v1187 = vmul.f32 %v1123, 0.7978846
        %v1188 = vmul.f32 %v1124, 0.7978846
        %v1189 = vmul.f32 %v1125, 0.7978846
        %v1190 = vmul.f32 %v1126, 0.7978846
        %v1191 = vmul.f32 %v1127, 0.7978846
        %v1192 = vmul.f32 %v1128, 0.7978846
        %v1193 = vmul.f32 %v1129, 0.7978846
        %v1194 = vmul.f32 %v1130, 0.7978846
        %v1195 = vmul.f32 %v1131, 0.7978846
        %v1196 = vmul.f32 %v1132, 0.7978846
        %v1197 = vmul.f32 %v1133, 0.7978846
        %v1198 = vmul.f32 %v1134, 0.7978846
        %v1199 = vmul.f32 %v1135, 0.7978846
        %v1200 = vmul.f32 %v1136, 0.7978846
        %v1201 = vmul.f32 %v1137, 0.7978846
        %v1202 = vmul.f32 %v1138, 0.7978846
        %v1203 = vmul.f32 %v1139, 0.7978846
        %v1204 = vmul.f32 %v1140, 0.7978846
        %v1205 = vmul.f32 %v1141, 0.7978846
        %v1206 = vmul.f32 %v1142, 0.7978846
        %v1207 = vmul.f32 %v1143, 0.7978846
        %v1208 = vtanh.pop %v1144
        %v1209 = vtanh.pop %v1145
        %v1210 = vtanh.pop %v1146
        %v1211 = vtanh.pop %v1147
        %v1212 = vtanh.pop %v1148
        %v1213 = vtanh.pop %v1149
        %v1214 = vtanh.pop %v1150
        %v1215 = vtanh.pop %v1151
        %v1216 = vtanh.pop %v1152
        %v1217 = vtanh.pop %v1153
        %v1218 = vtanh.pop %v1154
        %v1219 = vtanh.pop %v1155
        %v1220 = vtanh.pop %v1156
        %v1221 = vtanh.pop %v1157
        %v1222 = vtanh.pop %v1158
        %v1223 = vtanh.pop %v1159
        %v1224 = vtanh.pop %v1160
        %v1225 = vtanh.pop %v1161
        %v1226 = vtanh.pop %v1162
        %v1227 = vtanh.pop %v1163
        %v1228 = vtanh.pop %v1164
        %v1229 = vtanh.pop %v1165
        %v1230 = vtanh.pop %v1166
        %v1231 = vtanh.pop %v1167
        %v1232 = vtanh.pop %v1168
        %v1233 = vtanh.pop %v1169
        %v1234 = vtanh.pop %v1170
        %v1235 = vtanh.pop %v1171
        %v1236 = vtanh.pop %v1172
        %v1237 = vtanh.pop %v1173
        %v1238 = vtanh.pop %v1174
        %v1239 = vtanh.pop %v1175
        %v1240 = vtanh.pop %v1176
        %v1241 = vtanh.pop %v1177
        %v1242 = vtanh.pop %v1178
        %v1243 = vtanh.pop %v1179
        %v1244 = vtanh.pop %v1180
        %v1245 = vtanh.pop %v1181
        %v1246 = vtanh.pop %v1182
        %v1247 = vtanh.pop %v1183
        %v1248 = vtanh.pop %v1184
        %v1249 = vtanh.pop %v1185
        %v1250 = vtanh.pop %v1186
        %v1251 = vtanh.pop %v1187
        %v1252 = vtanh.pop %v1188
        %v1253 = vtanh.pop %v1189
        %v1254 = vtanh.pop %v1190
        %v1255 = vtanh.pop %v1191
        %v1256 = vtanh.pop %v1192
        %v1257 = vtanh.pop %v1193
        %v1258 = vtanh.pop %v1194
        %v1259 = vtanh.pop %v1195
        %v1260 = vtanh.pop %v1196
        %v1261 = vtanh.pop %v1197
        %v1262 = vtanh.pop %v1198
        %v1263 = vtanh.pop %v1199
        %v1264 = vtanh.pop %v1200
        %v1265 = vtanh.pop %v1201
        %v1266 = vtanh.pop %v1202
        %v1267 = vtanh.pop %v1203
        %v1268 = vtanh.pop %v1204
        %v1269 = vtanh.pop %v1205
        %v1270 = vtanh.pop %v1206
        %v1271 = vtanh.pop %v1207
        %v1272 = vadd.f32 %v1208, 1.0
        %v1273 = vadd.f32 %v1209, 1.0
        %v1274 = vadd.f32 %v1210, 1.0
        %v1275 = vadd.f32 %v1211, 1.0
        %v1276 = vadd.f32 %v1212, 1.0
        %v1277 = vadd.f32 %v1213, 1.0
        %v1278 = vadd.f32 %v1214, 1.0
        %v1279 = vadd.f32 %v1215, 1.0
        %v1280 = vadd.f32 %v1216, 1.0
        %v1281 = vadd.f32 %v1217, 1.0
        %v1282 = vadd.f32 %v1218, 1.0
        %v1283 = vadd.f32 %v1219, 1.0
        %v1284 = vadd.f32 %v1220, 1.0
        %v1285 = vadd.f32 %v1221, 1.0
        %v1286 = vadd.f32 %v1222, 1.0
        %v1287 = vadd.f32 %v1223, 1.0
        %v1288 = vadd.f32 %v1224, 1.0
        %v1289 = vadd.f32 %v1225, 1.0
        %v1290 = vadd.f32 %v1226, 1.0
        %v1291 = vadd.f32 %v1227, 1.0
        %v1292 = vadd.f32 %v1228, 1.0
        %v1293 = vadd.f32 %v1229, 1.0
        %v1294 = vadd.f32 %v1230, 1.0
        %v1295 = vadd.f32 %v1231, 1.0
        %v1296 = vadd.f32 %v1232, 1.0
        %v1297 = vadd.f32 %v1233, 1.0
        %v1298 = vadd.f32 %v1234, 1.0
        %v1299 = vadd.f32 %v1235, 1.0
        %v1300 = vadd.f32 %v1236, 1.0
        %v1301 = vadd.f32 %v1237, 1.0
        %v1302 = vadd.f32 %v1238, 1.0
        %v1303 = vadd.f32 %v1239, 1.0
        %v1304 = vadd.f32 %v1240, 1.0
        %v1305 = vadd.f32 %v1241, 1.0
        %v1306 = vadd.f32 %v1242, 1.0
        %v1307 = vadd.f32 %v1243, 1.0
        %v1308 = vadd.f32 %v1244, 1.0
        %v1309 = vadd.f32 %v1245, 1.0
        %v1310 = vadd.f32 %v1246, 1.0
        %v1311 = vadd.f32 %v1247, 1.0
        %v1312 = vadd.f32 %v1248, 1.0
        %v1313 = vadd.f32 %v1249, 1.0
        %v1314 = vadd.f32 %v1250, 1.0
        %v1315 = vadd.f32 %v1251, 1.0
        %v1316 = vadd.f32 %v1252, 1.0
        %v1317 = vadd.f32 %v1253, 1.0
        %v1318 = vadd.f32 %v1254, 1.0
        %v1319 = vadd.f32 %v1255, 1.0
        %v1320 = vadd.f32 %v1256, 1.0
        %v1321 = vadd.f32 %v1257, 1.0
        %v1322 = vadd.f32 %v1258, 1.0
        %v1323 = vadd.f32 %v1259, 1.0
        %v1324 = vadd.f32 %v1260, 1.0
        %v1325 = vadd.f32 %v1261, 1.0
        %v1326 = vadd.f32 %v1262, 1.0
        %v1327 = vadd.f32 %v1263, 1.0
        %v1328 = vadd.f32 %v1264, 1.0
        %v1329 = vadd.f32 %v1265, 1.0
        %v1330 = vadd.f32 %v1266, 1.0
        %v1331 = vadd.f32 %v1267, 1.0
        %v1332 = vadd.f32 %v1268, 1.0
        %v1333 = vadd.f32 %v1269, 1.0
        %v1334 = vadd.f32 %v1270, 1.0
        %v1335 = vadd.f32 %v1271, 1.0
        %v1336 = vmul.f32 %v824, %v1272
        %v1337 = vmul.f32 %v825, %v1273
        %v1338 = vmul.f32 %v826, %v1274
        %v1339 = vmul.f32 %v827, %v1275
        %v1340 = vmul.f32 %v828, %v1276
        %v1341 = vmul.f32 %v829, %v1277
        %v1342 = vmul.f32 %v830, %v1278
        %v1343 = vmul.f32 %v831, %v1279
        %v1344 = vmul.f32 %v832, %v1280
        %v1345 = vmul.f32 %v833, %v1281
        %v1346 = vmul.f32 %v834, %v1282
        %v1347 = vmul.f32 %v835, %v1283
        %v1348 = vmul.f32 %v836, %v1284
        %v1349 = vmul.f32 %v837, %v1285
        %v1350 = vmul.f32 %v838, %v1286
        %v1351 = vmul.f32 %v839, %v1287
        %v1352 = vmul.f32 %v840, %v1288
        %v1353 = vmul.f32 %v841, %v1289
        %v1354 = vmul.f32 %v842, %v1290
        %v1355 = vmul.f32 %v843, %v1291
        %v1356 = vmul.f32 %v844, %v1292
        %v1357 = vmul.f32 %v845, %v1293
        %v1358 = vmul.f32 %v846, %v1294
        %v1359 = vmul.f32 %v847, %v1295
        %v1360 = vmul.f32 %v848, %v1296
        %v1361 = vmul.f32 %v849, %v1297
        %v1362 = vmul.f32 %v850, %v1298
        %v1363 = vmul.f32 %v851, %v1299
        %v1364 = vmul.f32 %v852, %v1300
        %v1365 = vmul.f32 %v853, %v1301
        %v1366 = vmul.f32 %v854, %v1302
        %v1367 = vmul.f32 %v855, %v1303
        %v1368 = vmul.f32 %v856, %v1304
        %v1369 = vmul.f32 %v857, %v1305
        %v1370 = vmul.f32 %v858, %v1306
        %v1371 = vmul.f32 %v859, %v1307
        %v1372 = vmul.f32 %v860, %v1308
        %v1373 = vmul.f32 %v861, %v1309
        %v1374 = vmul.f32 %v862, %v1310
        %v1375 = vmul.f32 %v863, %v1311
        %v1376 = vmul.f32 %v864, %v1312
        %v1377 = vmul.f32 %v865, %v1313
        %v1378 = vmul.f32 %v866, %v1314
        %v1379 = vmul.f32 %v867, %v1315
        %v1380 = vmul.f32 %v868, %v1316
        %v1381 = vmul.f32 %v869, %v1317
        %v1382 = vmul.f32 %v870, %v1318
        %v1383 = vmul.f32 %v871, %v1319
        %v1384 = vmul.f32 %v872, %v1320
        %v1385 = vmul.f32 %v873, %v1321
        %v1386 = vmul.f32 %v874, %v1322
        %v1387 = vmul.f32 %v875, %v1323
        %v1388 = vmul.f32 %v876, %v1324
        %v1389 = vmul.f32 %v877, %v1325
        %v1390 = vmul.f32 %v878, %v1326
        %v1391 = vmul.f32 %v879, %v1327
        %v1392 = vmul.f32 %v880, %v1328
        %v1393 = vmul.f32 %v881, %v1329
        %v1394 = vmul.f32 %v882, %v1330
        %v1395 = vmul.f32 %v883, %v1331
        %v1396 = vmul.f32 %v884, %v1332
        %v1397 = vmul.f32 %v885, %v1333
        %v1398 = vmul.f32 %v886, %v1334
        %v1399 = vmul.f32 %v887, %v1335
        %v1400 = vld [vmem:[#allocation2] sm:$0xff]
        %v1401 = vld [vmem:[#allocation2 + $0x8] sm:$0xff]
        %v1402 = vld [vmem:[#allocation2 + $0x10] sm:$0xff]
        %v1403 = vld [vmem:[#allocation2 + $0x18] sm:$0xff]
        %v1404 = vld [vmem:[#allocation2 + $0x20] sm:$0xff]
        %v1405 = vld [vmem:[#allocation2 + $0x28] sm:$0xff]
        %v1406 = vld [vmem:[#allocation2 + $0x30] sm:$0xff]
        %v1407 = vld [vmem:[#allocation2 + $0x38] sm:$0xff]
        %v1408 = vld [vmem:[#allocation2 + $0x40] sm:$0xff]
        %v1409 = vld [vmem:[#allocation2 + $0x48] sm:$0xff]
        %v1410 = vld [vmem:[#allocation2 + $0x50] sm:$0xff]
        %v1411 = vld [vmem:[#allocation2 + $0x58] sm:$0xff]
        %v1412 = vld [vmem:[#allocation2 + $0x60] sm:$0xff]
        %v1413 = vld [vmem:[#allocation2 + $0x68] sm:$0xff]
        %v1414 = vld [vmem:[#allocation2 + $0x70] sm:$0xff]
        %v1415 = vld [vmem:[#allocation2 + $0x78] sm:$0xff]
        %v1416 = vld [vmem:[#allocation2 + $0x80] sm:$0xff]
        %v1417 = vld [vmem:[#allocation2 + $0x88] sm:$0xff]
        %v1418 = vld [vmem:[#allocation2 + $0x90] sm:$0xff]
        %v1419 = vld [vmem:[#allocation2 + $0x98] sm:$0xff]
        %v1420 = vld [vmem:[#allocation2 + $0xa0] sm:$0xff]
        %v1421 = vld [vmem:[#allocation2 + $0xa8] sm:$0xff]
        %v1422 = vld [vmem:[#allocation2 + $0xb0] sm:$0xff]
        %v1423 = vld [vmem:[#allocation2 + $0xb8] sm:$0xff]
        %v1424 = vld [vmem:[#allocation2 + $0xc0] sm:$0xff]
        %v1425 = vld [vmem:[#allocation2 + $0xc8] sm:$0xff]
        %v1426 = vld [vmem:[#allocation2 + $0xd0] sm:$0xff]
        %v1427 = vld [vmem:[#allocation2 + $0xd8] sm:$0xff]
        %v1428 = vld [vmem:[#allocation2 + $0xe0] sm:$0xff]
        %v1429 = vld [vmem:[#allocation2 + $0xe8] sm:$0xff]
        %v1430 = vld [vmem:[#allocation2 + $0xf0] sm:$0xff]
        %v1431 = vld [vmem:[#allocation2 + $0xf8] sm:$0xff]
        %v1432 = vld [vmem:[#allocation9] sm:$0xff]
        %v1433 = vld [vmem:[#allocation9 + $0x8] sm:$0xff]
        %v1434 = vld [vmem:[#allocation9 + $0x10] sm:$0xff]
        %v1435 = vld [vmem:[#allocation9 + $0x18] sm:$0xff]
        %v1436 = vld [vmem:[#allocation9 + $0x20] sm:$0xff]
        %v1437 = vld [vmem:[#allocation9 + $0x28] sm:$0xff]
        %v1438 = vld [vmem:[#allocation9 + $0x30] sm:$0xff]
        %v1439 = vld [vmem:[#allocation9 + $0x38] sm:$0xff]
        %v1440 = vld [vmem:[#allocation9 + $0x40] sm:$0xff]
        %v1441 = vld [vmem:[#allocation9 + $0x48] sm:$0xff]
        %v1442 = vld [vmem:[#allocation9 + $0x50] sm:$0xff]
        %v1443 = vld [vmem:[#allocation9 + $0x58] sm:$0xff]
        %v1444 = vld [vmem:[#allocation9 + $0x60] sm:$0xff]
        %v1445 = vld [vmem:[#allocation9 + $0x68] sm:$0xff]
        %v1446 = vld [vmem:[#allocation9 + $0x70] sm:$0xff]
        %v1447 = vld [vmem:[#allocation9 + $0x78] sm:$0xff]
        %v1448 = vld [vmem:[#allocation9 + $0x80] sm:$0xff]
        %v1449 = vld [vmem:[#allocation9 + $0x88] sm:$0xff]
        %v1450 = vld [vmem:[#allocation9 + $0x90] sm:$0xff]
        %v1451 = vld [vmem:[#allocation9 + $0x98] sm:$0xff]
        %v1452 = vld [vmem:[#allocation9 + $0xa0] sm:$0xff]
        %v1453 = vld [vmem:[#allocation9 + $0xa8] sm:$0xff]
        %v1454 = vld [vmem:[#allocation9 + $0xb0] sm:$0xff]
        %v1455 = vld [vmem:[#allocation9 + $0xb8] sm:$0xff]
        %v1456 = vld [vmem:[#allocation9 + $0xc0] sm:$0xff]
        %v1457 = vld [vmem:[#allocation9 + $0xc8] sm:$0xff]
        %v1458 = vld [vmem:[#allocation9 + $0xd0] sm:$0xff]
        %v1459 = vld [vmem:[#allocation9 + $0xd8] sm:$0xff]
        %v1460 = vld [vmem:[#allocation9 + $0xe0] sm:$0xff]
        %v1461 = vld [vmem:[#allocation9 + $0xe8] sm:$0xff]
        %v1462 = vld [vmem:[#allocation9 + $0xf0] sm:$0xff]
        %v1463 = vld [vmem:[#allocation9 + $0xf8] sm:$0xff]
        %v1464 = vld [vmem:[#allocation9 + $0x100] sm:$0xff]
        %v1465 = vld [vmem:[#allocation9 + $0x108] sm:$0xff]
        %v1466 = vld [vmem:[#allocation9 + $0x110] sm:$0xff]
        %v1467 = vld [vmem:[#allocation9 + $0x118] sm:$0xff]
        %v1468 = vld [vmem:[#allocation9 + $0x120] sm:$0xff]
        %v1469 = vld [vmem:[#allocation9 + $0x128] sm:$0xff]
        %v1470 = vld [vmem:[#allocation9 + $0x130] sm:$0xff]
        %v1471 = vld [vmem:[#allocation9 + $0x138] sm:$0xff]
        %v1472 = vld [vmem:[#allocation9 + $0x140] sm:$0xff]
        %v1473 = vld [vmem:[#allocation9 + $0x148] sm:$0xff]
        %v1474 = vld [vmem:[#allocation9 + $0x150] sm:$0xff]
        %v1475 = vld [vmem:[#allocation9 + $0x158] sm:$0xff]
        %v1476 = vld [vmem:[#allocation9 + $0x160] sm:$0xff]
        %v1477 = vld [vmem:[#allocation9 + $0x168] sm:$0xff]
        %v1478 = vld [vmem:[#allocation9 + $0x170] sm:$0xff]
        %v1479 = vld [vmem:[#allocation9 + $0x178] sm:$0xff]
        %v1480 = vld [vmem:[#allocation9 + $0x180] sm:$0xff]
        %v1481 = vld [vmem:[#allocation9 + $0x188] sm:$0xff]
        %v1482 = vld [vmem:[#allocation9 + $0x190] sm:$0xff]
        %v1483 = vld [vmem:[#allocation9 + $0x198] sm:$0xff]
        %v1484 = vld [vmem:[#allocation9 + $0x1a0] sm:$0xff]
        %v1485 = vld [vmem:[#allocation9 + $0x1a8] sm:$0xff]
        %v1486 = vld [vmem:[#allocation9 + $0x1b0] sm:$0xff]
        %v1487 = vld [vmem:[#allocation9 + $0x1b8] sm:$0xff]
        %v1488 = vld [vmem:[#allocation9 + $0x1c0] sm:$0xff]
        %v1489 = vld [vmem:[#allocation9 + $0x1c8] sm:$0xff]
        %v1490 = vld [vmem:[#allocation9 + $0x1d0] sm:$0xff]
        %v1491 = vld [vmem:[#allocation9 + $0x1d8] sm:$0xff]
        %v1492 = vld [vmem:[#allocation9 + $0x1e0] sm:$0xff]
        %v1493 = vld [vmem:[#allocation9 + $0x1e8] sm:$0xff]
        %v1494 = vld [vmem:[#allocation9 + $0x1f0] sm:$0xff]
        %v1495 = vld [vmem:[#allocation9 + $0x1f8] sm:$0xff]
        %v1496 = vld [vmem:[#allocation9 + $0x200] sm:$0xff]
        %v1497 = vld [vmem:[#allocation9 + $0x208] sm:$0xff]
        %v1498 = vld [vmem:[#allocation9 + $0x210] sm:$0xff]
        %v1499 = vld [vmem:[#allocation9 + $0x218] sm:$0xff]
        %v1500 = vld [vmem:[#allocation9 + $0x220] sm:$0xff]
        %v1501 = vld [vmem:[#allocation9 + $0x228] sm:$0xff]
        %v1502 = vld [vmem:[#allocation9 + $0x230] sm:$0xff]
        %v1503 = vld [vmem:[#allocation9 + $0x238] sm:$0xff]
        %v1504 = vld [vmem:[#allocation9 + $0x240] sm:$0xff]
        %v1505 = vld [vmem:[#allocation9 + $0x248] sm:$0xff]
        %v1506 = vld [vmem:[#allocation9 + $0x250] sm:$0xff]
        %v1507 = vld [vmem:[#allocation9 + $0x258] sm:$0xff]
        %v1508 = vld [vmem:[#allocation9 + $0x260] sm:$0xff]
        %v1509 = vld [vmem:[#allocation9 + $0x268] sm:$0xff]
        %v1510 = vld [vmem:[#allocation9 + $0x270] sm:$0xff]
        %v1511 = vld [vmem:[#allocation9 + $0x278] sm:$0xff]
        %v1512 = vld [vmem:[#allocation9 + $0x280] sm:$0xff]
        %v1513 = vld [vmem:[#allocation9 + $0x288] sm:$0xff]
        %v1514 = vld [vmem:[#allocation9 + $0x290] sm:$0xff]
        %v1515 = vld [vmem:[#allocation9 + $0x298] sm:$0xff]
        %v1516 = vld [vmem:[#allocation9 + $0x2a0] sm:$0xff]
        %v1517 = vld [vmem:[#allocation9 + $0x2a8] sm:$0xff]
        %v1518 = vld [vmem:[#allocation9 + $0x2b0] sm:$0xff]
        %v1519 = vld [vmem:[#allocation9 + $0x2b8] sm:$0xff]
        %v1520 = vld [vmem:[#allocation9 + $0x2c0] sm:$0xff]
        %v1521 = vld [vmem:[#allocation9 + $0x2c8] sm:$0xff]
        %v1522 = vld [vmem:[#allocation9 + $0x2d0] sm:$0xff]
        %v1523 = vld [vmem:[#allocation9 + $0x2d8] sm:$0xff]
        %v1524 = vld [vmem:[#allocation9 + $0x2e0] sm:$0xff]
        %v1525 = vld [vmem:[#allocation9 + $0x2e8] sm:$0xff]
        %v1526 = vld [vmem:[#allocation9 + $0x2f0] sm:$0xff]
        %v1527 = vld [vmem:[#allocation9 + $0x2f8] sm:$0xff]
        %v1528 = vld [vmem:[#allocation9 + $0x300] sm:$0xff]
        %v1529 = vld [vmem:[#allocation9 + $0x308] sm:$0xff]
        %v1530 = vld [vmem:[#allocation9 + $0x310] sm:$0xff]
        %v1531 = vld [vmem:[#allocation9 + $0x318] sm:$0xff]
        %v1532 = vld [vmem:[#allocation9 + $0x320] sm:$0xff]
        %v1533 = vld [vmem:[#allocation9 + $0x328] sm:$0xff]
        %v1534 = vld [vmem:[#allocation9 + $0x330] sm:$0xff]
        %v1535 = vld [vmem:[#allocation9 + $0x338] sm:$0xff]
        %v1536 = vld [vmem:[#allocation9 + $0x340] sm:$0xff]
        %v1537 = vld [vmem:[#allocation9 + $0x348] sm:$0xff]
        %v1538 = vld [vmem:[#allocation9 + $0x350] sm:$0xff]
        %v1539 = vld [vmem:[#allocation9 + $0x358] sm:$0xff]
        %v1540 = vld [vmem:[#allocation9 + $0x360] sm:$0xff]
        %v1541 = vld [vmem:[#allocation9 + $0x368] sm:$0xff]
        %v1542 = vld [vmem:[#allocation9 + $0x370] sm:$0xff]
        %v1543 = vld [vmem:[#allocation9 + $0x378] sm:$0xff]
        %v1544 = vld [vmem:[#allocation9 + $0x380] sm:$0xff]
        %v1545 = vld [vmem:[#allocation9 + $0x388] sm:$0xff]
        %v1546 = vld [vmem:[#allocation9 + $0x390] sm:$0xff]
        %v1547 = vld [vmem:[#allocation9 + $0x398] sm:$0xff]
        %v1548 = vld [vmem:[#allocation9 + $0x3a0] sm:$0xff]
        %v1549 = vld [vmem:[#allocation9 + $0x3a8] sm:$0xff]
        %v1550 = vld [vmem:[#allocation9 + $0x3b0] sm:$0xff]
        %v1551 = vld [vmem:[#allocation9 + $0x3b8] sm:$0xff]
        %v1552 = vld [vmem:[#allocation9 + $0x3c0] sm:$0xff]
        %v1553 = vld [vmem:[#allocation9 + $0x3c8] sm:$0xff]
        %v1554 = vld [vmem:[#allocation9 + $0x3d0] sm:$0xff]
        %v1555 = vld [vmem:[#allocation9 + $0x3d8] sm:$0xff]
        %v1556 = vld [vmem:[#allocation9 + $0x3e0] sm:$0xff]
        %v1557 = vld [vmem:[#allocation9 + $0x3e8] sm:$0xff]
        %v1558 = vld [vmem:[#allocation9 + $0x3f0] sm:$0xff]
        %v1559 = vld [vmem:[#allocation9 + $0x3f8] sm:$0xff]
        %1560 = vmatprep.subr.mxu0 %v1463
        %1561 = vmatpush1.msra.mxu0 %v1462
        %1562 = vmatprep.subr.mxu0 %v1461
        %1563 = vmatpush1.msra.mxu0 %v1460
        %1564 = vmatprep.subr.mxu0 %v1459
        %1565 = vmatpush1.msra.mxu0 %v1458
        %1566 = vmatprep.subr.mxu0 %v1457
        %1567 = vmatpush1.msra.mxu0 %v1456
        %1568 = vmatprep.subr.mxu0 %v1455
        %1569 = vmatpush1.msra.mxu0 %v1454
        %1570 = vmatprep.subr.mxu0 %v1453
        %1571 = vmatpush1.msra.mxu0 %v1452
        %1572 = vmatprep.subr.mxu0 %v1451
        %1573 = vmatpush1.msra.mxu0 %v1450
        %1574 = vmatprep.subr.mxu0 %v1449
        %1575 = vmatpush1.msra.mxu0 %v1448
        %1576 = vmatprep.subr.mxu0 %v1447
        %1577 = vmatpush1.msra.mxu0 %v1446
        %1578 = vmatprep.subr.mxu0 %v1445
        %1579 = vmatpush1.msra.mxu0 %v1444
        %1580 = vmatprep.subr.mxu0 %v1443
        %1581 = vmatpush1.msra.mxu0 %v1442
        %1582 = vmatprep.subr.mxu0 %v1441
        %1583 = vmatpush1.msra.mxu0 %v1440
        %1584 = vmatprep.subr.mxu0 %v1439
        %1585 = vmatpush1.msra.mxu0 %v1438
        %1586 = vmatprep.subr.mxu0 %v1437
        %1587 = vmatpush1.msra.mxu0 %v1436
        %1588 = vmatprep.subr.mxu0 %v1435
        %1589 = vmatpush1.msra.mxu0 %v1434
        %1590 = vmatprep.subr.mxu0 %v1433
        %1591 = vmatpush1.msra.mxu0 %v1432
        %1592 = vmatprep.subr.mxu0 %v1495
        %1593 = vmatpush2.msra.mxu0 %v1494
        %1594 = vmatprep.subr.mxu0 %v1493
        %1595 = vmatpush2.msra.mxu0 %v1492
        %1596 = vmatprep.subr.mxu0 %v1491
        %1597 = vmatpush2.msra.mxu0 %v1490
        %1598 = vmatprep.subr.mxu0 %v1489
        %1599 = vmatpush2.msra.mxu0 %v1488
        %1600 = vmatprep.subr.mxu0 %v1487
        %1601 = vmatpush2.msra.mxu0 %v1486
        %1602 = vmatprep.subr.mxu0 %v1485
        %1603 = vmatpush2.msra.mxu0 %v1484
        %1604 = vmatprep.subr.mxu0 %v1483
        %1605 = vmatpush2.msra.mxu0 %v1482
        %1606 = vmatprep.subr.mxu0 %v1481
        %1607 = vmatpush2.msra.mxu0 %v1480
        %1608 = vmatprep.subr.mxu0 %v1479
        %1609 = vmatpush2.msra.mxu0 %v1478
        %1610 = vmatprep.subr.mxu0 %v1477
        %1611 = vmatpush2.msra.mxu0 %v1476
        %1612 = vmatprep.subr.mxu0 %v1475
        %1613 = vmatpush2.msra.mxu0 %v1474
        %1614 = vmatprep.subr.mxu0 %v1473
        %1615 = vmatpush2.msra.mxu0 %v1472
        %1616 = vmatprep.subr.mxu0 %v1471
        %1617 = vmatpush2.msra.mxu0 %v1470
        %1618 = vmatprep.subr.mxu0 %v1469
        %1619 = vmatpush2.msra.mxu0 %v1468
        %1620 = vmatprep.subr.mxu0 %v1467
        %1621 = vmatpush2.msra.mxu0 %v1466
        %1622 = vmatprep.subr.mxu0 %v1465
        %1623 = vmatpush2.msra.mxu0 %v1464
        %1624 = vmatprep.mubr.f32.mxu0 %v1337
        %1625 = vmatmul.mubr.f32.gmra.mxu0 %v1336
        %v1626 = vpop.f32.mrf.mxu0
        %v1627 = vadd.f32 0.0, %v1626
        %v1628 = vpop.f32.mrf.mxu0
        %v1629 = vadd.f32 0.0, %v1628
        %1630 = vmatprep.mubr.f32.mxu0 %v1341
        %1631 = vmatmul.mubr.f32.gmra.mxu0 %v1340
        %v1632 = vpop.f32.mrf.mxu0
        %v1633 = vadd.f32 0.0, %v1632
        %v1634 = vpop.f32.mrf.mxu0
        %v1635 = vadd.f32 0.0, %v1634
        %1636 = vmatprep.mubr.f32.mxu0 %v1345
        %1637 = vmatmul.mubr.f32.gmra.mxu0 %v1344
        %v1638 = vpop.f32.mrf.mxu0
        %v1639 = vadd.f32 0.0, %v1638
        %v1640 = vpop.f32.mrf.mxu0
        %v1641 = vadd.f32 0.0, %v1640
        %1642 = vmatprep.mubr.f32.mxu0 %v1349
        %1643 = vmatmul.mubr.f32.gmra.mxu0 %v1348
        %v1644 = vpop.f32.mrf.mxu0
        %v1645 = vadd.f32 0.0, %v1644
        %v1646 = vpop.f32.mrf.mxu0
        %v1647 = vadd.f32 0.0, %v1646
        %1648 = vmatprep.mubr.f32.mxu0 %v1353
        %1649 = vmatmul.mubr.f32.gmra.mxu0 %v1352
        %v1650 = vpop.f32.mrf.mxu0
        %v1651 = vadd.f32 0.0, %v1650
        %v1652 = vpop.f32.mrf.mxu0
        %v1653 = vadd.f32 0.0, %v1652
        %1654 = vmatprep.mubr.f32.mxu0 %v1357
        %1655 = vmatmul.mubr.f32.gmra.mxu0 %v1356
        %v1656 = vpop.f32.mrf.mxu0
        %v1657 = vadd.f32 0.0, %v1656
        %v1658 = vpop.f32.mrf.mxu0
        %v1659 = vadd.f32 0.0, %v1658
        %1660 = vmatprep.mubr.f32.mxu0 %v1361
        %1661 = vmatmul.mubr.f32.gmra.mxu0 %v1360
        %v1662 = vpop.f32.mrf.mxu0
        %v1663 = vadd.f32 0.0, %v1662
        %v1664 = vpop.f32.mrf.mxu0
        %v1665 = vadd.f32 0.0, %v1664
        %1666 = vmatprep.mubr.f32.mxu0 %v1365
        %1667 = vmatmul.mubr.f32.gmra.mxu0 %v1364
        %v1668 = vpop.f32.mrf.mxu0
        %v1669 = vadd.f32 0.0, %v1668
        %v1670 = vpop.f32.mrf.mxu0
        %v1671 = vadd.f32 0.0, %v1670
        %1672 = vmatprep.mubr.f32.mxu0 %v1369
        %1673 = vmatmul.mubr.f32.gmra.mxu0 %v1368
        %v1674 = vpop.f32.mrf.mxu0
        %v1675 = vadd.f32 0.0, %v1674
        %v1676 = vpop.f32.mrf.mxu0
        %v1677 = vadd.f32 0.0, %v1676
        %1678 = vmatprep.mubr.f32.mxu0 %v1373
        %1679 = vmatmul.mubr.f32.gmra.mxu0 %v1372
        %v1680 = vpop.f32.mrf.mxu0
        %v1681 = vadd.f32 0.0, %v1680
        %v1682 = vpop.f32.mrf.mxu0
        %v1683 = vadd.f32 0.0, %v1682
        %1684 = vmatprep.mubr.f32.mxu0 %v1377
        %1685 = vmatmul.mubr.f32.gmra.mxu0 %v1376
        %v1686 = vpop.f32.mrf.mxu0
        %v1687 = vadd.f32 0.0, %v1686
        %v1688 = vpop.f32.mrf.mxu0
        %v1689 = vadd.f32 0.0, %v1688
        %1690 = vmatprep.mubr.f32.mxu0 %v1381
        %1691 = vmatmul.mubr.f32.gmra.mxu0 %v1380
        %v1692 = vpop.f32.mrf.mxu0
        %v1693 = vadd.f32 0.0, %v1692
        %v1694 = vpop.f32.mrf.mxu0
        %v1695 = vadd.f32 0.0, %v1694
        %1696 = vmatprep.mubr.f32.mxu0 %v1385
        %1697 = vmatmul.mubr.f32.gmra.mxu0 %v1384
        %v1698 = vpop.f32.mrf.mxu0
        %v1699 = vadd.f32 0.0, %v1698
        %v1700 = vpop.f32.mrf.mxu0
        %v1701 = vadd.f32 0.0, %v1700
        %1702 = vmatprep.mubr.f32.mxu0 %v1389
        %1703 = vmatmul.mubr.f32.gmra.mxu0 %v1388
        %v1704 = vpop.f32.mrf.mxu0
        %v1705 = vadd.f32 0.0, %v1704
        %v1706 = vpop.f32.mrf.mxu0
        %v1707 = vadd.f32 0.0, %v1706
        %1708 = vmatprep.mubr.f32.mxu0 %v1393
        %1709 = vmatmul.mubr.f32.gmra.mxu0 %v1392
        %v1710 = vpop.f32.mrf.mxu0
        %v1711 = vadd.f32 0.0, %v1710
        %v1712 = vpop.f32.mrf.mxu0
        %v1713 = vadd.f32 0.0, %v1712
        %1714 = vmatprep.mubr.f32.mxu0 %v1397
        %1715 = vmatmul.mubr.f32.gmra.mxu0 %v1396
        %v1716 = vpop.f32.mrf.mxu0
        %v1717 = vadd.f32 0.0, %v1716
        %v1718 = vpop.f32.mrf.mxu0
        %v1719 = vadd.f32 0.0, %v1718
        %1720 = vdwg.mxu0
        %1721 = vmatprep.subr.mxu0 %v1527
        %1722 = vmatpush1.msra.mxu0 %v1526
        %1723 = vmatprep.subr.mxu0 %v1525
        %1724 = vmatpush1.msra.mxu0 %v1524
        %1725 = vmatprep.subr.mxu0 %v1523
        %1726 = vmatpush1.msra.mxu0 %v1522
        %1727 = vmatprep.subr.mxu0 %v1521
        %1728 = vmatpush1.msra.mxu0 %v1520
        %1729 = vmatprep.subr.mxu0 %v1519
        %1730 = vmatpush1.msra.mxu0 %v1518
        %1731 = vmatprep.subr.mxu0 %v1517
        %1732 = vmatpush1.msra.mxu0 %v1516
        %1733 = vmatprep.subr.mxu0 %v1515
        %1734 = vmatpush1.msra.mxu0 %v1514
        %1735 = vmatprep.subr.mxu0 %v1513
        %1736 = vmatpush1.msra.mxu0 %v1512
        %1737 = vmatprep.subr.mxu0 %v1511
        %1738 = vmatpush1.msra.mxu0 %v1510
        %1739 = vmatprep.subr.mxu0 %v1509
        %1740 = vmatpush1.msra.mxu0 %v1508
        %1741 = vmatprep.subr.mxu0 %v1507
        %1742 = vmatpush1.msra.mxu0 %v1506
        %1743 = vmatprep.subr.mxu0 %v1505
        %1744 = vmatpush1.msra.mxu0 %v1504
        %1745 = vmatprep.subr.mxu0 %v1503
        %1746 = vmatpush1.msra.mxu0 %v1502
        %1747 = vmatprep.subr.mxu0 %v1501
        %1748 = vmatpush1.msra.mxu0 %v1500
        %1749 = vmatprep.subr.mxu0 %v1499
        %1750 = vmatpush1.msra.mxu0 %v1498
        %1751 = vmatprep.subr.mxu0 %v1497
        %1752 = vmatpush1.msra.mxu0 %v1496
        %1753 = vmatprep.subr.mxu0 %v1559
        %1754 = vmatpush2.msra.mxu0 %v1558
        %1755 = vmatprep.subr.mxu0 %v1557
        %1756 = vmatpush2.msra.mxu0 %v1556
        %1757 = vmatprep.subr.mxu0 %v1555
        %1758 = vmatpush2.msra.mxu0 %v1554
        %1759 = vmatprep.subr.mxu0 %v1553
        %1760 = vmatpush2.msra.mxu0 %v1552
        %1761 = vmatprep.subr.mxu0 %v1551
        %1762 = vmatpush2.msra.mxu0 %v1550
        %1763 = vmatprep.subr.mxu0 %v1549
        %1764 = vmatpush2.msra.mxu0 %v1548
        %1765 = vmatprep.subr.mxu0 %v1547
        %1766 = vmatpush2.msra.mxu0 %v1546
        %1767 = vmatprep.subr.mxu0 %v1545
        %1768 = vmatpush2.msra.mxu0 %v1544
        %1769 = vmatprep.subr.mxu0 %v1543
        %1770 = vmatpush2.msra.mxu0 %v1542
        %1771 = vmatprep.subr.mxu0 %v1541
        %1772 = vmatpush2.msra.mxu0 %v1540
        %1773 = vmatprep.subr.mxu0 %v1539
        %1774 = vmatpush2.msra.mxu0 %v1538
        %1775 = vmatprep.subr.mxu0 %v1537
        %1776 = vmatpush2.msra.mxu0 %v1536
        %1777 = vmatprep.subr.mxu0 %v1535
        %1778 = vmatpush2.msra.mxu0 %v1534
        %1779 = vmatprep.subr.mxu0 %v1533
        %1780 = vmatpush2.msra.mxu0 %v1532
        %1781 = vmatprep.subr.mxu0 %v1531
        %1782 = vmatpush2.msra.mxu0 %v1530
        %1783 = vmatprep.subr.mxu0 %v1529
        %1784 = vmatpush2.msra.mxu0 %v1528
        %1785 = vmatprep.mubr.f32.mxu0 %v1339
        %1786 = vmatmul.mubr.f32.gmra.mxu0 %v1338
        %v1787 = vpop.f32.mrf.mxu0
        %v1788 = vadd.f32 %v1627, %v1787
        %v1789 = vpop.f32.mrf.mxu0
        %v1790 = vadd.f32 %v1629, %v1789
        %1791 = vmatprep.mubr.f32.mxu0 %v1343
        %1792 = vmatmul.mubr.f32.gmra.mxu0 %v1342
        %v1793 = vpop.f32.mrf.mxu0
        %v1794 = vadd.f32 %v1633, %v1793
        %v1795 = vpop.f32.mrf.mxu0
        %v1796 = vadd.f32 %v1635, %v1795
        %1797 = vmatprep.mubr.f32.mxu0 %v1347
        %1798 = vmatmul.mubr.f32.gmra.mxu0 %v1346
        %v1799 = vpop.f32.mrf.mxu0
        %v1800 = vadd.f32 %v1639, %v1799
        %v1801 = vpop.f32.mrf.mxu0
        %v1802 = vadd.f32 %v1641, %v1801
        %1803 = vmatprep.mubr.f32.mxu0 %v1351
        %1804 = vmatmul.mubr.f32.gmra.mxu0 %v1350
        %v1805 = vpop.f32.mrf.mxu0
        %v1806 = vadd.f32 %v1645, %v1805
        %v1807 = vpop.f32.mrf.mxu0
        %v1808 = vadd.f32 %v1647, %v1807
        %1809 = vmatprep.mubr.f32.mxu0 %v1355
        %1810 = vmatmul.mubr.f32.gmra.mxu0 %v1354
        %v1811 = vpop.f32.mrf.mxu0
        %v1812 = vadd.f32 %v1651, %v1811
        %v1813 = vpop.f32.mrf.mxu0
        %v1814 = vadd.f32 %v1653, %v1813
        %1815 = vmatprep.mubr.f32.mxu0 %v1359
        %1816 = vmatmul.mubr.f32.gmra.mxu0 %v1358
        %v1817 = vpop.f32.mrf.mxu0
        %v1818 = vadd.f32 %v1657, %v1817
        %v1819 = vpop.f32.mrf.mxu0
        %v1820 = vadd.f32 %v1659, %v1819
        %1821 = vmatprep.mubr.f32.mxu0 %v1363
        %1822 = vmatmul.mubr.f32.gmra.mxu0 %v1362
        %v1823 = vpop.f32.mrf.mxu0
        %v1824 = vadd.f32 %v1663, %v1823
        %v1825 = vpop.f32.mrf.mxu0
        %v1826 = vadd.f32 %v1665, %v1825
        %1827 = vmatprep.mubr.f32.mxu0 %v1367
        %1828 = vmatmul.mubr.f32.gmra.mxu0 %v1366
        %v1829 = vpop.f32.mrf.mxu0
        %v1830 = vadd.f32 %v1669, %v1829
        %v1831 = vpop.f32.mrf.mxu0
        %v1832 = vadd.f32 %v1671, %v1831
        %1833 = vmatprep.mubr.f32.mxu0 %v1371
        %1834 = vmatmul.mubr.f32.gmra.mxu0 %v1370
        %v1835 = vpop.f32.mrf.mxu0
        %v1836 = vadd.f32 %v1675, %v1835
        %v1837 = vpop.f32.mrf.mxu0
        %v1838 = vadd.f32 %v1677, %v1837
        %1839 = vmatprep.mubr.f32.mxu0 %v1375
        %1840 = vmatmul.mubr.f32.gmra.mxu0 %v1374
        %v1841 = vpop.f32.mrf.mxu0
        %v1842 = vadd.f32 %v1681, %v1841
        %v1843 = vpop.f32.mrf.mxu0
        %v1844 = vadd.f32 %v1683, %v1843
        %1845 = vmatprep.mubr.f32.mxu0 %v1379
        %1846 = vmatmul.mubr.f32.gmra.mxu0 %v1378
        %v1847 = vpop.f32.mrf.mxu0
        %v1848 = vadd.f32 %v1687, %v1847
        %v1849 = vpop.f32.mrf.mxu0
        %v1850 = vadd.f32 %v1689, %v1849
        %1851 = vmatprep.mubr.f32.mxu0 %v1383
        %1852 = vmatmul.mubr.f32.gmra.mxu0 %v1382
        %v1853 = vpop.f32.mrf.mxu0
        %v1854 = vadd.f32 %v1693, %v1853
        %v1855 = vpop.f32.mrf.mxu0
        %v1856 = vadd.f32 %v1695, %v1855
        %1857 = vmatprep.mubr.f32.mxu0 %v1387
        %1858 = vmatmul.mubr.f32.gmra.mxu0 %v1386
        %v1859 = vpop.f32.mrf.mxu0
        %v1860 = vadd.f32 %v1699, %v1859
        %v1861 = vpop.f32.mrf.mxu0
        %v1862 = vadd.f32 %v1701, %v1861
        %1863 = vmatprep.mubr.f32.mxu0 %v1391
        %1864 = vmatmul.mubr.f32.gmra.mxu0 %v1390
        %v1865 = vpop.f32.mrf.mxu0
        %v1866 = vadd.f32 %v1705, %v1865
        %v1867 = vpop.f32.mrf.mxu0
        %v1868 = vadd.f32 %v1707, %v1867
        %1869 = vmatprep.mubr.f32.mxu0 %v1395
        %1870 = vmatmul.mubr.f32.gmra.mxu0 %v1394
        %v1871 = vpop.f32.mrf.mxu0
        %v1872 = vadd.f32 %v1711, %v1871
        %v1873 = vpop.f32.mrf.mxu0
        %v1874 = vadd.f32 %v1713, %v1873
        %1875 = vmatprep.mubr.f32.mxu0 %v1399
        %1876 = vmatmul.mubr.f32.gmra.mxu0 %v1398
        %v1877 = vpop.f32.mrf.mxu0
        %v1878 = vadd.f32 %v1717, %v1877
        %v1879 = vpop.f32.mrf.mxu0
        %v1880 = vadd.f32 %v1719, %v1879
        %1881 = vdwg.mxu0
        %v1882 = vadd.f32 %v1400, %v1788
        %v1883 = vadd.f32 %v1401, %v1790
        %v1884 = vadd.f32 %v1402, %v1794
        %v1885 = vadd.f32 %v1403, %v1796
        %v1886 = vadd.f32 %v1404, %v1800
        %v1887 = vadd.f32 %v1405, %v1802
        %v1888 = vadd.f32 %v1406, %v1806
        %v1889 = vadd.f32 %v1407, %v1808
        %v1890 = vadd.f32 %v1408, %v1812
        %v1891 = vadd.f32 %v1409, %v1814
        %v1892 = vadd.f32 %v1410, %v1818
        %v1893 = vadd.f32 %v1411, %v1820
        %v1894 = vadd.f32 %v1412, %v1824
        %v1895 = vadd.f32 %v1413, %v1826
        %v1896 = vadd.f32 %v1414, %v1830
        %v1897 = vadd.f32 %v1415, %v1832
        %v1898 = vadd.f32 %v1416, %v1836
        %v1899 = vadd.f32 %v1417, %v1838
        %v1900 = vadd.f32 %v1418, %v1842
        %v1901 = vadd.f32 %v1419, %v1844
        %v1902 = vadd.f32 %v1420, %v1848
        %v1903 = vadd.f32 %v1421, %v1850
        %v1904 = vadd.f32 %v1422, %v1854
        %v1905 = vadd.f32 %v1423, %v1856
        %v1906 = vadd.f32 %v1424, %v1860
        %v1907 = vadd.f32 %v1425, %v1862
        %v1908 = vadd.f32 %v1426, %v1866
        %v1909 = vadd.f32 %v1427, %v1868
        %v1910 = vadd.f32 %v1428, %v1872
        %v1911 = vadd.f32 %v1429, %v1874
        %v1912 = vadd.f32 %v1430, %v1878
        %v1913 = vadd.f32 %v1431, %v1880
        %1914 = vst [vmem:[#allocation2] sm:$0xff] %v1882
        %1915 = vst [vmem:[#allocation2 + $0x8] sm:$0xff] %v1883
        %1916 = vst [vmem:[#allocation2 + $0x10] sm:$0xff] %v1884
        %1917 = vst [vmem:[#allocation2 + $0x18] sm:$0xff] %v1885
        %1918 = vst [vmem:[#allocation2 + $0x20] sm:$0xff] %v1886
        %1919 = vst [vmem:[#allocation2 + $0x28] sm:$0xff] %v1887
        %1920 = vst [vmem:[#allocation2 + $0x30] sm:$0xff] %v1888
        %1921 = vst [vmem:[#allocation2 + $0x38] sm:$0xff] %v1889
        %1922 = vst [vmem:[#allocation2 + $0x40] sm:$0xff] %v1890
        %1923 = vst [vmem:[#allocation2 + $0x48] sm:$0xff] %v1891
        %1924 = vst [vmem:[#allocation2 + $0x50] sm:$0xff] %v1892
        %1925 = vst [vmem:[#allocation2 + $0x58] sm:$0xff] %v1893
        %1926 = vst [vmem:[#allocation2 + $0x60] sm:$0xff] %v1894
        %1927 = vst [vmem:[#allocation2 + $0x68] sm:$0xff] %v1895
        %1928 = vst [vmem:[#allocation2 + $0x70] sm:$0xff] %v1896
        %1929 = vst [vmem:[#allocation2 + $0x78] sm:$0xff] %v1897
        %1930 = vst [vmem:[#allocation2 + $0x80] sm:$0xff] %v1898
        %1931 = vst [vmem:[#allocation2 + $0x88] sm:$0xff] %v1899
        %1932 = vst [vmem:[#allocation2 + $0x90] sm:$0xff] %v1900
        %1933 = vst [vmem:[#allocation2 + $0x98] sm:$0xff] %v1901
        %1934 = vst [vmem:[#allocation2 + $0xa0] sm:$0xff] %v1902
        %1935 = vst [vmem:[#allocation2 + $0xa8] sm:$0xff] %v1903
        %1936 = vst [vmem:[#allocation2 + $0xb0] sm:$0xff] %v1904
        %1937 = vst [vmem:[#allocation2 + $0xb8] sm:$0xff] %v1905
        %1938 = vst [vmem:[#allocation2 + $0xc0] sm:$0xff] %v1906
        %1939 = vst [vmem:[#allocation2 + $0xc8] sm:$0xff] %v1907
        %1940 = vst [vmem:[#allocation2 + $0xd0] sm:$0xff] %v1908
        %1941 = vst [vmem:[#allocation2 + $0xd8] sm:$0xff] %v1909
        %1942 = vst [vmem:[#allocation2 + $0xe0] sm:$0xff] %v1910
        %1943 = vst [vmem:[#allocation2 + $0xe8] sm:$0xff] %v1911
        %1944 = vst [vmem:[#allocation2 + $0xf0] sm:$0xff] %v1912
        %1945 = vst [vmem:[#allocation2 + $0xf8] sm:$0xff] %v1913
        %v1946 = vld [vmem:[#allocation6 + $0x20] sm:$0xff]
        %v1947 = vld [vmem:[#allocation6 + $0x28] sm:$0xff]
        %v1948 = vld [vmem:[#allocation6 + $0x30] sm:$0xff]
        %v1949 = vld [vmem:[#allocation6 + $0x38] sm:$0xff]
        %v1950 = vld [vmem:[#allocation6 + $0x60] sm:$0xff]
        %v1951 = vld [vmem:[#allocation6 + $0x68] sm:$0xff]
        %v1952 = vld [vmem:[#allocation6 + $0x70] sm:$0xff]
        %v1953 = vld [vmem:[#allocation6 + $0x78] sm:$0xff]
        %v1954 = vld [vmem:[#allocation6 + $0xa0] sm:$0xff]
        %v1955 = vld [vmem:[#allocation6 + $0xa8] sm:$0xff]
        %v1956 = vld [vmem:[#allocation6 + $0xb0] sm:$0xff]
        %v1957 = vld [vmem:[#allocation6 + $0xb8] sm:$0xff]
        %v1958 = vld [vmem:[#allocation6 + $0xe0] sm:$0xff]
        %v1959 = vld [vmem:[#allocation6 + $0xe8] sm:$0xff]
        %v1960 = vld [vmem:[#allocation6 + $0xf0] sm:$0xff]
        %v1961 = vld [vmem:[#allocation6 + $0xf8] sm:$0xff]
        %v1962 = vld [vmem:[#allocation6 + $0x120] sm:$0xff]
        %v1963 = vld [vmem:[#allocation6 + $0x128] sm:$0xff]
        %v1964 = vld [vmem:[#allocation6 + $0x130] sm:$0xff]
        %v1965 = vld [vmem:[#allocation6 + $0x138] sm:$0xff]
        %v1966 = vld [vmem:[#allocation6 + $0x160] sm:$0xff]
        %v1967 = vld [vmem:[#allocation6 + $0x168] sm:$0xff]
        %v1968 = vld [vmem:[#allocation6 + $0x170] sm:$0xff]
        %v1969 = vld [vmem:[#allocation6 + $0x178] sm:$0xff]
        %v1970 = vld [vmem:[#allocation6 + $0x1a0] sm:$0xff]
        %v1971 = vld [vmem:[#allocation6 + $0x1a8] sm:$0xff]
        %v1972 = vld [vmem:[#allocation6 + $0x1b0] sm:$0xff]
        %v1973 = vld [vmem:[#allocation6 + $0x1b8] sm:$0xff]
        %v1974 = vld [vmem:[#allocation6 + $0x1e0] sm:$0xff]
        %v1975 = vld [vmem:[#allocation6 + $0x1e8] sm:$0xff]
        %v1976 = vld [vmem:[#allocation6 + $0x1f0] sm:$0xff]
        %v1977 = vld [vmem:[#allocation6 + $0x1f8] sm:$0xff]
        %v1978 = vld [vmem:[#allocation6 + $0x220] sm:$0xff]
        %v1979 = vld [vmem:[#allocation6 + $0x228] sm:$0xff]
        %v1980 = vld [vmem:[#allocation6 + $0x230] sm:$0xff]
        %v1981 = vld [vmem:[#allocation6 + $0x238] sm:$0xff]
        %v1982 = vld [vmem:[#allocation6 + $0x260] sm:$0xff]
        %v1983 = vld [vmem:[#allocation6 + $0x268] sm:$0xff]
        %v1984 = vld [vmem:[#allocation6 + $0x270] sm:$0xff]
        %v1985 = vld [vmem:[#allocation6 + $0x278] sm:$0xff]
        %v1986 = vld [vmem:[#allocation6 + $0x2a0] sm:$0xff]
        %v1987 = vld [vmem:[#allocation6 + $0x2a8] sm:$0xff]
        %v1988 = vld [vmem:[#allocation6 + $0x2b0] sm:$0xff]
        %v1989 = vld [vmem:[#allocation6 + $0x2b8] sm:$0xff]
        %v1990 = vld [vmem:[#allocation6 + $0x2e0] sm:$0xff]
        %v1991 = vld [vmem:[#allocation6 + $0x2e8] sm:$0xff]
        %v1992 = vld [vmem:[#allocation6 + $0x2f0] sm:$0xff]
        %v1993 = vld [vmem:[#allocation6 + $0x2f8] sm:$0xff]
        %v1994 = vld [vmem:[#allocation6 + $0x320] sm:$0xff]
        %v1995 = vld [vmem:[#allocation6 + $0x328] sm:$0xff]
        %v1996 = vld [vmem:[#allocation6 + $0x330] sm:$0xff]
        %v1997 = vld [vmem:[#allocation6 + $0x338] sm:$0xff]
        %v1998 = vld [vmem:[#allocation6 + $0x360] sm:$0xff]
        %v1999 = vld [vmem:[#allocation6 + $0x368] sm:$0xff]
        %v2000 = vld [vmem:[#allocation6 + $0x370] sm:$0xff]
        %v2001 = vld [vmem:[#allocation6 + $0x378] sm:$0xff]
        %v2002 = vld [vmem:[#allocation6 + $0x3a0] sm:$0xff]
        %v2003 = vld [vmem:[#allocation6 + $0x3a8] sm:$0xff]
        %v2004 = vld [vmem:[#allocation6 + $0x3b0] sm:$0xff]
        %v2005 = vld [vmem:[#allocation6 + $0x3b8] sm:$0xff]
        %v2006 = vld [vmem:[#allocation6 + $0x3e0] sm:$0xff]
        %v2007 = vld [vmem:[#allocation6 + $0x3e8] sm:$0xff]
        %v2008 = vld [vmem:[#allocation6 + $0x3f0] sm:$0xff]
        %v2009 = vld [vmem:[#allocation6 + $0x3f8] sm:$0xff]
        %v2010 = vld [vmem:[#allocation6 + $0x420] sm:$0xff]
        %v2011 = vld [vmem:[#allocation6 + $0x428] sm:$0xff]
        %v2012 = vld [vmem:[#allocation6 + $0x430] sm:$0xff]
        %v2013 = vld [vmem:[#allocation6 + $0x438] sm:$0xff]
        %v2014 = vld [vmem:[#allocation6 + $0x460] sm:$0xff]
        %v2015 = vld [vmem:[#allocation6 + $0x468] sm:$0xff]
        %v2016 = vld [vmem:[#allocation6 + $0x470] sm:$0xff]
        %v2017 = vld [vmem:[#allocation6 + $0x478] sm:$0xff]
        %v2018 = vld [vmem:[#allocation6 + $0x4a0] sm:$0xff]
        %v2019 = vld [vmem:[#allocation6 + $0x4a8] sm:$0xff]
        %v2020 = vld [vmem:[#allocation6 + $0x4b0] sm:$0xff]
        %v2021 = vld [vmem:[#allocation6 + $0x4b8] sm:$0xff]
        %v2022 = vld [vmem:[#allocation6 + $0x4e0] sm:$0xff]
        %v2023 = vld [vmem:[#allocation6 + $0x4e8] sm:$0xff]
        %v2024 = vld [vmem:[#allocation6 + $0x4f0] sm:$0xff]
        %v2025 = vld [vmem:[#allocation6 + $0x4f8] sm:$0xff]
        %v2026 = vld [vmem:[#allocation6 + $0x520] sm:$0xff]
        %v2027 = vld [vmem:[#allocation6 + $0x528] sm:$0xff]
        %v2028 = vld [vmem:[#allocation6 + $0x530] sm:$0xff]
        %v2029 = vld [vmem:[#allocation6 + $0x538] sm:$0xff]
        %v2030 = vld [vmem:[#allocation6 + $0x560] sm:$0xff]
        %v2031 = vld [vmem:[#allocation6 + $0x568] sm:$0xff]
        %v2032 = vld [vmem:[#allocation6 + $0x570] sm:$0xff]
        %v2033 = vld [vmem:[#allocation6 + $0x578] sm:$0xff]
        %v2034 = vld [vmem:[#allocation6 + $0x5a0] sm:$0xff]
        %v2035 = vld [vmem:[#allocation6 + $0x5a8] sm:$0xff]
        %v2036 = vld [vmem:[#allocation6 + $0x5b0] sm:$0xff]
        %v2037 = vld [vmem:[#allocation6 + $0x5b8] sm:$0xff]
        %v2038 = vld [vmem:[#allocation6 + $0x5e0] sm:$0xff]
        %v2039 = vld [vmem:[#allocation6 + $0x5e8] sm:$0xff]
        %v2040 = vld [vmem:[#allocation6 + $0x5f0] sm:$0xff]
        %v2041 = vld [vmem:[#allocation6 + $0x5f8] sm:$0xff]
        %v2042 = vld [vmem:[#allocation6 + $0x620] sm:$0xff]
        %v2043 = vld [vmem:[#allocation6 + $0x628] sm:$0xff]
        %v2044 = vld [vmem:[#allocation6 + $0x630] sm:$0xff]
        %v2045 = vld [vmem:[#allocation6 + $0x638] sm:$0xff]
        %v2046 = vld [vmem:[#allocation6 + $0x660] sm:$0xff]
        %v2047 = vld [vmem:[#allocation6 + $0x668] sm:$0xff]
        %v2048 = vld [vmem:[#allocation6 + $0x670] sm:$0xff]
        %v2049 = vld [vmem:[#allocation6 + $0x678] sm:$0xff]
        %v2050 = vld [vmem:[#allocation6 + $0x6a0] sm:$0xff]
        %v2051 = vld [vmem:[#allocation6 + $0x6a8] sm:$0xff]
        %v2052 = vld [vmem:[#allocation6 + $0x6b0] sm:$0xff]
        %v2053 = vld [vmem:[#allocation6 + $0x6b8] sm:$0xff]
        %v2054 = vld [vmem:[#allocation6 + $0x6e0] sm:$0xff]
        %v2055 = vld [vmem:[#allocation6 + $0x6e8] sm:$0xff]
        %v2056 = vld [vmem:[#allocation6 + $0x6f0] sm:$0xff]
        %v2057 = vld [vmem:[#allocation6 + $0x6f8] sm:$0xff]
        %v2058 = vld [vmem:[#allocation6 + $0x720] sm:$0xff]
        %v2059 = vld [vmem:[#allocation6 + $0x728] sm:$0xff]
        %v2060 = vld [vmem:[#allocation6 + $0x730] sm:$0xff]
        %v2061 = vld [vmem:[#allocation6 + $0x738] sm:$0xff]
        %v2062 = vld [vmem:[#allocation6 + $0x760] sm:$0xff]
        %v2063 = vld [vmem:[#allocation6 + $0x768] sm:$0xff]
        %v2064 = vld [vmem:[#allocation6 + $0x770] sm:$0xff]
        %v2065 = vld [vmem:[#allocation6 + $0x778] sm:$0xff]
        %v2066 = vld [vmem:[#allocation6 + $0x7a0] sm:$0xff]
        %v2067 = vld [vmem:[#allocation6 + $0x7a8] sm:$0xff]
        %v2068 = vld [vmem:[#allocation6 + $0x7b0] sm:$0xff]
        %v2069 = vld [vmem:[#allocation6 + $0x7b8] sm:$0xff]
        %v2070 = vld [vmem:[#allocation6 + $0x7e0] sm:$0xff]
        %v2071 = vld [vmem:[#allocation6 + $0x7e8] sm:$0xff]
        %v2072 = vld [vmem:[#allocation6 + $0x7f0] sm:$0xff]
        %v2073 = vld [vmem:[#allocation6 + $0x7f8] sm:$0xff]
        %v2074 = vld [vmem:[#allocation8 + $0x4] sm:$0xf]
        %v2076 = vlaneseq
        %v2077 = vshrl.u32 %v2076, 7
        %v2078 = vsub.s32 0, %v2077
        %v2079 = vrot.slane %v2074, %v2078
        %v2080 = vlaneseq
        %v2081 = vshrl.u32 %v2080, 7
        %v2082 = vsub.s32 1, %v2081
        %v2083 = vrot.slane %v2074, %v2082
        %v2084 = vlaneseq
        %v2085 = vshrl.u32 %v2084, 7
        %v2086 = vsub.s32 2, %v2085
        %v2087 = vrot.slane %v2074, %v2086
        %v2088 = vlaneseq
        %v2089 = vshrl.u32 %v2088, 7
        %v2090 = vsub.s32 3, %v2089
        %v2091 = vrot.slane %v2074, %v2090
        %2096 = vmatprep.subr.mxu0 %v2007
        %2097 = vmatpush1.msra.mxu0 %v2006
        %2098 = vmatprep.subr.mxu0 %v2003
        %2099 = vmatpush1.msra.mxu0 %v2002
        %2100 = vmatprep.subr.mxu0 %v1999
        %2101 = vmatpush1.msra.mxu0 %v1998
        %2102 = vmatprep.subr.mxu0 %v1995
        %2103 = vmatpush1.msra.mxu0 %v1994
        %2104 = vmatprep.subr.mxu0 %v1991
        %2105 = vmatpush1.msra.mxu0 %v1990
        %2106 = vmatprep.subr.mxu0 %v1987
        %2107 = vmatpush1.msra.mxu0 %v1986
        %2108 = vmatprep.subr.mxu0 %v1983
        %2109 = vmatpush1.msra.mxu0 %v1982
        %2110 = vmatprep.subr.mxu0 %v1979
        %2111 = vmatpush1.msra.mxu0 %v1978
        %2112 = vmatprep.subr.mxu0 %v1975
        %2113 = vmatpush1.msra.mxu0 %v1974
        %2114 = vmatprep.subr.mxu0 %v1971
        %2115 = vmatpush1.msra.mxu0 %v1970
        %2116 = vmatprep.subr.mxu0 %v1967
        %2117 = vmatpush1.msra.mxu0 %v1966
        %2118 = vmatprep.subr.mxu0 %v1963
        %2119 = vmatpush1.msra.mxu0 %v1962
        %2120 = vmatprep.subr.mxu0 %v1959
        %2121 = vmatpush1.msra.mxu0 %v1958
        %2122 = vmatprep.subr.mxu0 %v1955
        %2123 = vmatpush1.msra.mxu0 %v1954
        %2124 = vmatprep.subr.mxu0 %v1951
        %2125 = vmatpush1.msra.mxu0 %v1950
        %2126 = vmatprep.subr.mxu0 %v1947
        %2127 = vmatpush1.msra.mxu0 %v1946
        %2128 = vmatprep.subr.mxu0 %v2071
        %2129 = vmatpush2.msra.mxu0 %v2070
        %2130 = vmatprep.subr.mxu0 %v2067
        %2131 = vmatpush2.msra.mxu0 %v2066
        %2132 = vmatprep.subr.mxu0 %v2063
        %2133 = vmatpush2.msra.mxu0 %v2062
        %2134 = vmatprep.subr.mxu0 %v2059
        %2135 = vmatpush2.msra.mxu0 %v2058
        %2136 = vmatprep.subr.mxu0 %v2055
        %2137 = vmatpush2.msra.mxu0 %v2054
        %2138 = vmatprep.subr.mxu0 %v2051
        %2139 = vmatpush2.msra.mxu0 %v2050
        %2140 = vmatprep.subr.mxu0 %v2047
        %2141 = vmatpush2.msra.mxu0 %v2046
        %2142 = vmatprep.subr.mxu0 %v2043
        %2143 = vmatpush2.msra.mxu0 %v2042
        %2144 = vmatprep.subr.mxu0 %v2039
        %2145 = vmatpush2.msra.mxu0 %v2038
        %2146 = vmatprep.subr.mxu0 %v2035
        %2147 = vmatpush2.msra.mxu0 %v2034
        %2148 = vmatprep.subr.mxu0 %v2031
        %2149 = vmatpush2.msra.mxu0 %v2030
        %2150 = vmatprep.subr.mxu0 %v2027
        %2151 = vmatpush2.msra.mxu0 %v2026
        %2152 = vmatprep.subr.mxu0 %v2023
        %2153 = vmatpush2.msra.mxu0 %v2022
        %2154 = vmatprep.subr.mxu0 %v2019
        %2155 = vmatpush2.msra.mxu0 %v2018
        %2156 = vmatprep.subr.mxu0 %v2015
        %2157 = vmatpush2.msra.mxu0 %v2014
        %2158 = vmatprep.subr.mxu0 %v2011
        %2159 = vmatpush2.msra.mxu0 %v2010
        %2160 = vmatprep.mubr.f32.mxu0 %v289
        %2161 = vmatmul.mubr.f32.gmra.mxu0 %v288
        %v2162 = vpop.f32.mrf.mxu0
        %v2163 = vadd.f32 %v2079, %v2162
        %v2164 = vpop.f32.mrf.mxu0
        %v2165 = vadd.f32 %v2083, %v2164
        %2166 = vmatprep.mubr.f32.mxu0 %v291
        %2167 = vmatmul.mubr.f32.gmra.mxu0 %v290
        %v2168 = vpop.f32.mrf.mxu0
        %v2169 = vadd.f32 %v2079, %v2168
        %v2170 = vpop.f32.mrf.mxu0
        %v2171 = vadd.f32 %v2083, %v2170
        %2172 = vmatprep.mubr.f32.mxu0 %v293
        %2173 = vmatmul.mubr.f32.gmra.mxu0 %v292
        %v2174 = vpop.f32.mrf.mxu0
        %v2175 = vadd.f32 %v2079, %v2174
        %v2176 = vpop.f32.mrf.mxu0
        %v2177 = vadd.f32 %v2083, %v2176
        %2178 = vmatprep.mubr.f32.mxu0 %v295
        %2179 = vmatmul.mubr.f32.gmra.mxu0 %v294
        %v2180 = vpop.f32.mrf.mxu0
        %v2181 = vadd.f32 %v2079, %v2180
        %v2182 = vpop.f32.mrf.mxu0
        %v2183 = vadd.f32 %v2083, %v2182
        %2184 = vmatprep.mubr.f32.mxu0 %v297
        %2185 = vmatmul.mubr.f32.gmra.mxu0 %v296
        %v2186 = vpop.f32.mrf.mxu0
        %v2187 = vadd.f32 %v2079, %v2186
        %v2188 = vpop.f32.mrf.mxu0
        %v2189 = vadd.f32 %v2083, %v2188
        %2190 = vmatprep.mubr.f32.mxu0 %v299
        %2191 = vmatmul.mubr.f32.gmra.mxu0 %v298
        %v2192 = vpop.f32.mrf.mxu0
        %v2193 = vadd.f32 %v2079, %v2192
        %v2194 = vpop.f32.mrf.mxu0
        %v2195 = vadd.f32 %v2083, %v2194
        %2196 = vmatprep.mubr.f32.mxu0 %v301
        %2197 = vmatmul.mubr.f32.gmra.mxu0 %v300
        %v2198 = vpop.f32.mrf.mxu0
        %v2199 = vadd.f32 %v2079, %v2198
        %v2200 = vpop.f32.mrf.mxu0
        %v2201 = vadd.f32 %v2083, %v2200
        %2202 = vmatprep.mubr.f32.mxu0 %v303
        %2203 = vmatmul.mubr.f32.gmra.mxu0 %v302
        %v2204 = vpop.f32.mrf.mxu0
        %v2205 = vadd.f32 %v2079, %v2204
        %v2206 = vpop.f32.mrf.mxu0
        %v2207 = vadd.f32 %v2083, %v2206
        %2208 = vmatprep.mubr.f32.mxu0 %v305
        %2209 = vmatmul.mubr.f32.gmra.mxu0 %v304
        %v2210 = vpop.f32.mrf.mxu0
        %v2211 = vadd.f32 %v2079, %v2210
        %v2212 = vpop.f32.mrf.mxu0
        %v2213 = vadd.f32 %v2083, %v2212
        %2214 = vmatprep.mubr.f32.mxu0 %v307
        %2215 = vmatmul.mubr.f32.gmra.mxu0 %v306
        %v2216 = vpop.f32.mrf.mxu0
        %v2217 = vadd.f32 %v2079, %v2216
        %v2218 = vpop.f32.mrf.mxu0
        %v2219 = vadd.f32 %v2083, %v2218
        %2220 = vmatprep.mubr.f32.mxu0 %v309
        %2221 = vmatmul.mubr.f32.gmra.mxu0 %v308
        %v2222 = vpop.f32.mrf.mxu0
        %v2223 = vadd.f32 %v2079, %v2222
        %v2224 = vpop.f32.mrf.mxu0
        %v2225 = vadd.f32 %v2083, %v2224
        %2226 = vmatprep.mubr.f32.mxu0 %v311
        %2227 = vmatmul.mubr.f32.gmra.mxu0 %v310
        %v2228 = vpop.f32.mrf.mxu0
        %v2229 = vadd.f32 %v2079, %v2228
        %v2230 = vpop.f32.mrf.mxu0
        %v2231 = vadd.f32 %v2083, %v2230
        %2232 = vmatprep.mubr.f32.mxu0 %v313
        %2233 = vmatmul.mubr.f32.gmra.mxu0 %v312
        %v2234 = vpop.f32.mrf.mxu0
        %v2235 = vadd.f32 %v2079, %v2234
        %v2236 = vpop.f32.mrf.mxu0
        %v2237 = vadd.f32 %v2083, %v2236
        %2238 = vmatprep.mubr.f32.mxu0 %v315
        %2239 = vmatmul.mubr.f32.gmra.mxu0 %v314
        %v2240 = vpop.f32.mrf.mxu0
        %v2241 = vadd.f32 %v2079, %v2240
        %v2242 = vpop.f32.mrf.mxu0
        %v2243 = vadd.f32 %v2083, %v2242
        %2244 = vmatprep.mubr.f32.mxu0 %v317
        %2245 = vmatmul.mubr.f32.gmra.mxu0 %v316
        %v2246 = vpop.f32.mrf.mxu0
        %v2247 = vadd.f32 %v2079, %v2246
        %v2248 = vpop.f32.mrf.mxu0
        %v2249 = vadd.f32 %v2083, %v2248
        %2250 = vmatprep.mubr.f32.mxu0 %v319
        %2251 = vmatmul.mubr.f32.gmra.mxu0 %v318
        %v2252 = vpop.f32.mrf.mxu0
        %v2253 = vadd.f32 %v2079, %v2252
        %v2254 = vpop.f32.mrf.mxu0
        %v2255 = vadd.f32 %v2083, %v2254
        %2256 = vdwg.mxu0
        %2257 = vmatprep.subr.mxu0 %v2009
        %2258 = vmatpush1.msra.mxu0 %v2008
        %2259 = vmatprep.subr.mxu0 %v2005
        %2260 = vmatpush1.msra.mxu0 %v2004
        %2261 = vmatprep.subr.mxu0 %v2001
        %2262 = vmatpush1.msra.mxu0 %v2000
        %2263 = vmatprep.subr.mxu0 %v1997
        %2264 = vmatpush1.msra.mxu0 %v1996
        %2265 = vmatprep.subr.mxu0 %v1993
        %2266 = vmatpush1.msra.mxu0 %v1992
        %2267 = vmatprep.subr.mxu0 %v1989
        %2268 = vmatpush1.msra.mxu0 %v1988
        %2269 = vmatprep.subr.mxu0 %v1985
        %2270 = vmatpush1.msra.mxu0 %v1984
        %2271 = vmatprep.subr.mxu0 %v1981
        %2272 = vmatpush1.msra.mxu0 %v1980
        %2273 = vmatprep.subr.mxu0 %v1977
        %2274 = vmatpush1.msra.mxu0 %v1976
        %2275 = vmatprep.subr.mxu0 %v1973
        %2276 = vmatpush1.msra.mxu0 %v1972
        %2277 = vmatprep.subr.mxu0 %v1969
        %2278 = vmatpush1.msra.mxu0 %v1968
        %2279 = vmatprep.subr.mxu0 %v1965
        %2280 = vmatpush1.msra.mxu0 %v1964
        %2281 = vmatprep.subr.mxu0 %v1961
        %2282 = vmatpush1.msra.mxu0 %v1960
        %2283 = vmatprep.subr.mxu0 %v1957
        %2284 = vmatpush1.msra.mxu0 %v1956
        %2285 = vmatprep.subr.mxu0 %v1953
        %2286 = vmatpush1.msra.mxu0 %v1952
        %2287 = vmatprep.subr.mxu0 %v1949
        %2288 = vmatpush1.msra.mxu0 %v1948
        %2289 = vmatprep.subr.mxu0 %v2073
        %2290 = vmatpush2.msra.mxu0 %v2072
        %2291 = vmatprep.subr.mxu0 %v2069
        %2292 = vmatpush2.msra.mxu0 %v2068
        %2293 = vmatprep.subr.mxu0 %v2065
        %2294 = vmatpush2.msra.mxu0 %v2064
        %2295 = vmatprep.subr.mxu0 %v2061
        %2296 = vmatpush2.msra.mxu0 %v2060
        %2297 = vmatprep.subr.mxu0 %v2057
        %2298 = vmatpush2.msra.mxu0 %v2056
        %2299 = vmatprep.subr.mxu0 %v2053
        %2300 = vmatpush2.msra.mxu0 %v2052
        %2301 = vmatprep.subr.mxu0 %v2049
        %2302 = vmatpush2.msra.mxu0 %v2048
        %2303 = vmatprep.subr.mxu0 %v2045
        %2304 = vmatpush2.msra.mxu0 %v2044
        %2305 = vmatprep.subr.mxu0 %v2041
        %2306 = vmatpush2.msra.mxu0 %v2040
        %2307 = vmatprep.subr.mxu0 %v2037
        %2308 = vmatpush2.msra.mxu0 %v2036
        %2309 = vmatprep.subr.mxu0 %v2033
        %2310 = vmatpush2.msra.mxu0 %v2032
        %2311 = vmatprep.subr.mxu0 %v2029
        %2312 = vmatpush2.msra.mxu0 %v2028
        %2313 = vmatprep.subr.mxu0 %v2025
        %2314 = vmatpush2.msra.mxu0 %v2024
        %2315 = vmatprep.subr.mxu0 %v2021
        %2316 = vmatpush2.msra.mxu0 %v2020
        %2317 = vmatprep.subr.mxu0 %v2017
        %2318 = vmatpush2.msra.mxu0 %v2016
        %2319 = vmatprep.subr.mxu0 %v2013
        %2320 = vmatpush2.msra.mxu0 %v2012
        %2321 = vmatprep.mubr.f32.mxu0 %v289
        %2322 = vmatmul.mubr.f32.gmra.mxu0 %v288
        %v2323 = vpop.f32.mrf.mxu0
        %v2324 = vadd.f32 %v2087, %v2323
        %v2325 = vpop.f32.mrf.mxu0
        %v2326 = vadd.f32 %v2091, %v2325
        %2327 = vmatprep.mubr.f32.mxu0 %v291
        %2328 = vmatmul.mubr.f32.gmra.mxu0 %v290
        %v2329 = vpop.f32.mrf.mxu0
        %v2330 = vadd.f32 %v2087, %v2329
        %v2331 = vpop.f32.mrf.mxu0
        %v2332 = vadd.f32 %v2091, %v2331
        %2333 = vmatprep.mubr.f32.mxu0 %v293
        %2334 = vmatmul.mubr.f32.gmra.mxu0 %v292
        %v2335 = vpop.f32.mrf.mxu0
        %v2336 = vadd.f32 %v2087, %v2335
        %v2337 = vpop.f32.mrf.mxu0
        %v2338 = vadd.f32 %v2091, %v2337
        %2339 = vmatprep.mubr.f32.mxu0 %v295
        %2340 = vmatmul.mubr.f32.gmra.mxu0 %v294
        %v2341 = vpop.f32.mrf.mxu0
        %v2342 = vadd.f32 %v2087, %v2341
        %v2343 = vpop.f32.mrf.mxu0
        %v2344 = vadd.f32 %v2091, %v2343
        %2345 = vmatprep.mubr.f32.mxu0 %v297
        %2346 = vmatmul.mubr.f32.gmra.mxu0 %v296
        %v2347 = vpop.f32.mrf.mxu0
        %v2348 = vadd.f32 %v2087, %v2347
        %v2349 = vpop.f32.mrf.mxu0
        %v2350 = vadd.f32 %v2091, %v2349
        %2351 = vmatprep.mubr.f32.mxu0 %v299
        %2352 = vmatmul.mubr.f32.gmra.mxu0 %v298
        %v2353 = vpop.f32.mrf.mxu0
        %v2354 = vadd.f32 %v2087, %v2353
        %v2355 = vpop.f32.mrf.mxu0
        %v2356 = vadd.f32 %v2091, %v2355
        %2357 = vmatprep.mubr.f32.mxu0 %v301
        %2358 = vmatmul.mubr.f32.gmra.mxu0 %v300
        %v2359 = vpop.f32.mrf.mxu0
        %v2360 = vadd.f32 %v2087, %v2359
        %v2361 = vpop.f32.mrf.mxu0
        %v2362 = vadd.f32 %v2091, %v2361
        %2363 = vmatprep.mubr.f32.mxu0 %v303
        %2364 = vmatmul.mubr.f32.gmra.mxu0 %v302
        %v2365 = vpop.f32.mrf.mxu0
        %v2366 = vadd.f32 %v2087, %v2365
        %v2367 = vpop.f32.mrf.mxu0
        %v2368 = vadd.f32 %v2091, %v2367
        %2369 = vmatprep.mubr.f32.mxu0 %v305
        %2370 = vmatmul.mubr.f32.gmra.mxu0 %v304
        %v2371 = vpop.f32.mrf.mxu0
        %v2372 = vadd.f32 %v2087, %v2371
        %v2373 = vpop.f32.mrf.mxu0
        %v2374 = vadd.f32 %v2091, %v2373
        %2375 = vmatprep.mubr.f32.mxu0 %v307
        %2376 = vmatmul.mubr.f32.gmra.mxu0 %v306
        %v2377 = vpop.f32.mrf.mxu0
        %v2378 = vadd.f32 %v2087, %v2377
        %v2379 = vpop.f32.mrf.mxu0
        %v2380 = vadd.f32 %v2091, %v2379
        %2381 = vmatprep.mubr.f32.mxu0 %v309
        %2382 = vmatmul.mubr.f32.gmra.mxu0 %v308
        %v2383 = vpop.f32.mrf.mxu0
        %v2384 = vadd.f32 %v2087, %v2383
        %v2385 = vpop.f32.mrf.mxu0
        %v2386 = vadd.f32 %v2091, %v2385
        %2387 = vmatprep.mubr.f32.mxu0 %v311
        %2388 = vmatmul.mubr.f32.gmra.mxu0 %v310
        %v2389 = vpop.f32.mrf.mxu0
        %v2390 = vadd.f32 %v2087, %v2389
        %v2391 = vpop.f32.mrf.mxu0
        %v2392 = vadd.f32 %v2091, %v2391
        %2393 = vmatprep.mubr.f32.mxu0 %v313
        %2394 = vmatmul.mubr.f32.gmra.mxu0 %v312
        %v2395 = vpop.f32.mrf.mxu0
        %v2396 = vadd.f32 %v2087, %v2395
        %v2397 = vpop.f32.mrf.mxu0
        %v2398 = vadd.f32 %v2091, %v2397
        %2399 = vmatprep.mubr.f32.mxu0 %v315
        %2400 = vmatmul.mubr.f32.gmra.mxu0 %v314
        %v2401 = vpop.f32.mrf.mxu0
        %v2402 = vadd.f32 %v2087, %v2401
        %v2403 = vpop.f32.mrf.mxu0
        %v2404 = vadd.f32 %v2091, %v2403
        %2405 = vmatprep.mubr.f32.mxu0 %v317
        %2406 = vmatmul.mubr.f32.gmra.mxu0 %v316
        %v2407 = vpop.f32.mrf.mxu0
        %v2408 = vadd.f32 %v2087, %v2407
        %v2409 = vpop.f32.mrf.mxu0
        %v2410 = vadd.f32 %v2091, %v2409
        %2411 = vmatprep.mubr.f32.mxu0 %v319
        %2412 = vmatmul.mubr.f32.gmra.mxu0 %v318
        %v2413 = vpop.f32.mrf.mxu0
        %v2414 = vadd.f32 %v2087, %v2413
        %v2415 = vpop.f32.mrf.mxu0
        %v2416 = vadd.f32 %v2091, %v2415
        %2417 = vdwg.mxu0
        %v2418 = vmul.f32 %v2163, 0.5
        %v2419 = vmul.f32 %v2165, 0.5
        %v2420 = vmul.f32 %v2324, 0.5
        %v2421 = vmul.f32 %v2326, 0.5
        %v2422 = vmul.f32 %v2169, 0.5
        %v2423 = vmul.f32 %v2171, 0.5
        %v2424 = vmul.f32 %v2330, 0.5
        %v2425 = vmul.f32 %v2332, 0.5
        %v2426 = vmul.f32 %v2175, 0.5
        %v2427 = vmul.f32 %v2177, 0.5
        %v2428 = vmul.f32 %v2336, 0.5
        %v2429 = vmul.f32 %v2338, 0.5
        %v2430 = vmul.f32 %v2181, 0.5
        %v2431 = vmul.f32 %v2183, 0.5
        %v2432 = vmul.f32 %v2342, 0.5
        %v2433 = vmul.f32 %v2344, 0.5
        %v2434 = vmul.f32 %v2187, 0.5
        %v2435 = vmul.f32 %v2189, 0.5
        %v2436 = vmul.f32 %v2348, 0.5
        %v2437 = vmul.f32 %v2350, 0.5
        %v2438 = vmul.f32 %v2193, 0.5
        %v2439 = vmul.f32 %v2195, 0.5
        %v2440 = vmul.f32 %v2354, 0.5
        %v2441 = vmul.f32 %v2356, 0.5
        %v2442 = vmul.f32 %v2199, 0.5
        %v2443 = vmul.f32 %v2201, 0.5
        %v2444 = vmul.f32 %v2360, 0.5
        %v2445 = vmul.f32 %v2362, 0.5
        %v2446 = vmul.f32 %v2205, 0.5
        %v2447 = vmul.f32 %v2207, 0.5
        %v2448 = vmul.f32 %v2366, 0.5
        %v2449 = vmul.f32 %v2368, 0.5
        %v2450 = vmul.f32 %v2211, 0.5
        %v2451 = vmul.f32 %v2213, 0.5
        %v2452 = vmul.f32 %v2372, 0.5
        %v2453 = vmul.f32 %v2374, 0.5
        %v2454 = vmul.f32 %v2217, 0.5
        %v2455 = vmul.f32 %v2219, 0.5
        %v2456 = vmul.f32 %v2378, 0.5
        %v2457 = vmul.f32 %v2380, 0.5
        %v2458 = vmul.f32 %v2223, 0.5
        %v2459 = vmul.f32 %v2225, 0.5
        %v2460 = vmul.f32 %v2384, 0.5
        %v2461 = vmul.f32 %v2386, 0.5
        %v2462 = vmul.f32 %v2229, 0.5
        %v2463 = vmul.f32 %v2231, 0.5
        %v2464 = vmul.f32 %v2390, 0.5
        %v2465 = vmul.f32 %v2392, 0.5
        %v2466 = vmul.f32 %v2235, 0.5
        %v2467 = vmul.f32 %v2237, 0.5
        %v2468 = vmul.f32 %v2396, 0.5
        %v2469 = vmul.f32 %v2398, 0.5
        %v2470 = vmul.f32 %v2241, 0.5
        %v2471 = vmul.f32 %v2243, 0.5
        %v2472 = vmul.f32 %v2402, 0.5
        %v2473 = vmul.f32 %v2404, 0.5
        %v2474 = vmul.f32 %v2247, 0.5
        %v2475 = vmul.f32 %v2249, 0.5
        %v2476 = vmul.f32 %v2408, 0.5
        %v2477 = vmul.f32 %v2410, 0.5
        %v2478 = vmul.f32 %v2253, 0.5
        %v2479 = vmul.f32 %v2255, 0.5
        %v2480 = vmul.f32 %v2414, 0.5
        %v2481 = vmul.f32 %v2416, 0.5
        %v2482 = vmul.f32 %v2163, 0.044715
        %v2483 = vmul.f32 %v2165, 0.044715
        %v2484 = vmul.f32 %v2324, 0.044715
        %v2485 = vmul.f32 %v2326, 0.044715
        %v2486 = vmul.f32 %v2169, 0.044715
        %v2487 = vmul.f32 %v2171, 0.044715
        %v2488 = vmul.f32 %v2330, 0.044715
        %v2489 = vmul.f32 %v2332, 0.044715
        %v2490 = vmul.f32 %v2175, 0.044715
        %v2491 = vmul.f32 %v2177, 0.044715
        %v2492 = vmul.f32 %v2336, 0.044715
        %v2493 = vmul.f32 %v2338, 0.044715
        %v2494 = vmul.f32 %v2181, 0.044715
        %v2495 = vmul.f32 %v2183, 0.044715
        %v2496 = vmul.f32 %v2342, 0.044715
        %v2497 = vmul.f32 %v2344, 0.044715
        %v2498 = vmul.f32 %v2187, 0.044715
        %v2499 = vmul.f32 %v2189, 0.044715
        %v2500 = vmul.f32 %v2348, 0.044715
        %v2501 = vmul.f32 %v2350, 0.044715
        %v2502 = vmul.f32 %v2193, 0.044715
        %v2503 = vmul.f32 %v2195, 0.044715
        %v2504 = vmul.f32 %v2354, 0.044715
        %v2505 = vmul.f32 %v2356, 0.044715
        %v2506 = vmul.f32 %v2199, 0.044715
        %v2507 = vmul.f32 %v2201, 0.044715
        %v2508 = vmul.f32 %v2360, 0.044715
        %v2509 = vmul.f32 %v2362, 0.044715
        %v2510 = vmul.f32 %v2205, 0.044715
        %v2511 = vmul.f32 %v2207, 0.044715
        %v2512 = vmul.f32 %v2366, 0.044715
        %v2513 = vmul.f32 %v2368, 0.044715
        %v2514 = vmul.f32 %v2211, 0.044715
        %v2515 = vmul.f32 %v2213, 0.044715
        %v2516 = vmul.f32 %v2372, 0.044715
        %v2517 = vmul.f32 %v2374, 0.044715
        %v2518 = vmul.f32 %v2217, 0.044715
        %v2519 = vmul.f32 %v2219, 0.044715
        %v2520 = vmul.f32 %v2378, 0.044715
        %v2521 = vmul.f32 %v2380, 0.044715
        %v2522 = vmul.f32 %v2223, 0.044715
        %v2523 = vmul.f32 %v2225, 0.044715
        %v2524 = vmul.f32 %v2384, 0.044715
        %v2525 = vmul.f32 %v2386, 0.044715
        %v2526 = vmul.f32 %v2229, 0.044715
        %v2527 = vmul.f32 %v2231, 0.044715
        %v2528 = vmul.f32 %v2390, 0.044715
        %v2529 = vmul.f32 %v2392, 0.044715
        %v2530 = vmul.f32 %v2235, 0.044715
        %v2531 = vmul.f32 %v2237, 0.044715
        %v2532 = vmul.f32 %v2396, 0.044715
        %v2533 = vmul.f32 %v2398, 0.044715
        %v2534 = vmul.f32 %v2241, 0.044715
        %v2535 = vmul.f32 %v2243, 0.044715
        %v2536 = vmul.f32 %v2402, 0.044715
        %v2537 = vmul.f32 %v2404, 0.044715
        %v2538 = vmul.f32 %v2247, 0.044715
        %v2539 = vmul.f32 %v2249, 0.044715
        %v2540 = vmul.f32 %v2408, 0.044715
        %v2541 = vmul.f32 %v2410, 0.044715
        %v2542 = vmul.f32 %v2253, 0.044715
        %v2543 = vmul.f32 %v2255, 0.044715
        %v2544 = vmul.f32 %v2414, 0.044715
        %v2545 = vmul.f32 %v2416, 0.044715
        %v2546 = vmul.f32 %v2482, %v2163
        %v2547 = vmul.f32 %v2483, %v2165
        %v2548 = vmul.f32 %v2484, %v2324
        %v2549 = vmul.f32 %v2485, %v2326
        %v2550 = vmul.f32 %v2486, %v2169
        %v2551 = vmul.f32 %v2487, %v2171
        %v2552 = vmul.f32 %v2488, %v2330
        %v2553 = vmul.f32 %v2489, %v2332
        %v2554 = vmul.f32 %v2490, %v2175
        %v2555 = vmul.f32 %v2491, %v2177
        %v2556 = vmul.f32 %v2492, %v2336
        %v2557 = vmul.f32 %v2493, %v2338
        %v2558 = vmul.f32 %v2494, %v2181
        %v2559 = vmul.f32 %v2495, %v2183
        %v2560 = vmul.f32 %v2496, %v2342
        %v2561 = vmul.f32 %v2497, %v2344
        %v2562 = vmul.f32 %v2498, %v2187
        %v2563 = vmul.f32 %v2499, %v2189
        %v2564 = vmul.f32 %v2500, %v2348
        %v2565 = vmul.f32 %v2501, %v2350
        %v2566 = vmul.f32 %v2502, %v2193
        %v2567 = vmul.f32 %v2503, %v2195
        %v2568 = vmul.f32 %v2504, %v2354
        %v2569 = vmul.f32 %v2505, %v2356
        %v2570 = vmul.f32 %v2506, %v2199
        %v2571 = vmul.f32 %v2507, %v2201
        %v2572 = vmul.f32 %v2508, %v2360
        %v2573 = vmul.f32 %v2509, %v2362
        %v2574 = vmul.f32 %v2510, %v2205
        %v2575 = vmul.f32 %v2511, %v2207
        %v2576 = vmul.f32 %v2512, %v2366
        %v2577 = vmul.f32 %v2513, %v2368
        %v2578 = vmul.f32 %v2514, %v2211
        %v2579 = vmul.f32 %v2515, %v2213
        %v2580 = vmul.f32 %v2516, %v2372
        %v2581 = vmul.f32 %v2517, %v2374
        %v2582 = vmul.f32 %v2518, %v2217
        %v2583 = vmul.f32 %v2519, %v2219
        %v2584 = vmul.f32 %v2520, %v2378
        %v2585 = vmul.f32 %v2521, %v2380
        %v2586 = vmul.f32 %v2522, %v2223
        %v2587 = vmul.f32 %v2523, %v2225
        %v2588 = vmul.f32 %v2524, %v2384
        %v2589 = vmul.f32 %v2525, %v2386
        %v2590 = vmul.f32 %v2526, %v2229
        %v2591 = vmul.f32 %v2527, %v2231
        %v2592 = vmul.f32 %v2528, %v2390
        %v2593 = vmul.f32 %v2529, %v2392
        %v2594 = vmul.f32 %v2530, %v2235
        %v2595 = vmul.f32 %v2531, %v2237
        %v2596 = vmul.f32 %v2532, %v2396
        %v2597 = vmul.f32 %v2533, %v2398
        %v2598 = vmul.f32 %v2534, %v2241
        %v2599 = vmul.f32 %v2535, %v2243
        %v2600 = vmul.f32 %v2536, %v2402
        %v2601 = vmul.f32 %v2537, %v2404
        %v2602 = vmul.f32 %v2538, %v2247
        %v2603 = vmul.f32 %v2539, %v2249
        %v2604 = vmul.f32 %v2540, %v2408
        %v2605 = vmul.f32 %v2541, %v2410
        %v2606 = vmul.f32 %v2542, %v2253
        %v2607 = vmul.f32 %v2543, %v2255
        %v2608 = vmul.f32 %v2544, %v2414
        %v2609 = vmul.f32 %v2545, %v2416
        %v2610 = vmul.f32 %v2546, %v2163
        %v2611 = vmul.f32 %v2547, %v2165
        %v2612 = vmul.f32 %v2548, %v2324
        %v2613 = vmul.f32 %v2549, %v2326
        %v2614 = vmul.f32 %v2550, %v2169
        %v2615 = vmul.f32 %v2551, %v2171
        %v2616 = vmul.f32 %v2552, %v2330
        %v2617 = vmul.f32 %v2553, %v2332
        %v2618 = vmul.f32 %v2554, %v2175
        %v2619 = vmul.f32 %v2555, %v2177
        %v2620 = vmul.f32 %v2556, %v2336
        %v2621 = vmul.f32 %v2557, %v2338
        %v2622 = vmul.f32 %v2558, %v2181
        %v2623 = vmul.f32 %v2559, %v2183
        %v2624 = vmul.f32 %v2560, %v2342
        %v2625 = vmul.f32 %v2561, %v2344
        %v2626 = vmul.f32 %v2562, %v2187
        %v2627 = vmul.f32 %v2563, %v2189
        %v2628 = vmul.f32 %v2564, %v2348
        %v2629 = vmul.f32 %v2565, %v2350
        %v2630 = vmul.f32 %v2566, %v2193
        %v2631 = vmul.f32 %v2567, %v2195
        %v2632 = vmul.f32 %v2568, %v2354
        %v2633 = vmul.f32 %v2569, %v2356
        %v2634 = vmul.f32 %v2570, %v2199
        %v2635 = vmul.f32 %v2571, %v2201
        %v2636 = vmul.f32 %v2572, %v2360
        %v2637 = vmul.f32 %v2573, %v2362
        %v2638 = vmul.f32 %v2574, %v2205
        %v2639 = vmul.f32 %v2575, %v2207
        %v2640 = vmul.f32 %v2576, %v2366
        %v2641 = vmul.f32 %v2577, %v2368
        %v2642 = vmul.f32 %v2578, %v2211
        %v2643 = vmul.f32 %v2579, %v2213
        %v2644 = vmul.f32 %v2580, %v2372
        %v2645 = vmul.f32 %v2581, %v2374
        %v2646 = vmul.f32 %v2582, %v2217
        %v2647 = vmul.f32 %v2583, %v2219
        %v2648 = vmul.f32 %v2584, %v2378
        %v2649 = vmul.f32 %v2585, %v2380
        %v2650 = vmul.f32 %v2586, %v2223
        %v2651 = vmul.f32 %v2587, %v2225
        %v2652 = vmul.f32 %v2588, %v2384
        %v2653 = vmul.f32 %v2589, %v2386
        %v2654 = vmul.f32 %v2590, %v2229
        %v2655 = vmul.f32 %v2591, %v2231
        %v2656 = vmul.f32 %v2592, %v2390
        %v2657 = vmul.f32 %v2593, %v2392
        %v2658 = vmul.f32 %v2594, %v2235
        %v2659 = vmul.f32 %v2595, %v2237
        %v2660 = vmul.f32 %v2596, %v2396
        %v2661 = vmul.f32 %v2597, %v2398
        %v2662 = vmul.f32 %v2598, %v2241
        %v2663 = vmul.f32 %v2599, %v2243
        %v2664 = vmul.f32 %v2600, %v2402
        %v2665 = vmul.f32 %v2601, %v2404
        %v2666 = vmul.f32 %v2602, %v2247
        %v2667 = vmul.f32 %v2603, %v2249
        %v2668 = vmul.f32 %v2604, %v2408
        %v2669 = vmul.f32 %v2605, %v2410
        %v2670 = vmul.f32 %v2606, %v2253
        %v2671 = vmul.f32 %v2607, %v2255
        %v2672 = vmul.f32 %v2608, %v2414
        %v2673 = vmul.f32 %v2609, %v2416
        %v2674 = vadd.f32 %v2163, %v2610
        %v2675 = vadd.f32 %v2165, %v2611
        %v2676 = vadd.f32 %v2324, %v2612
        %v2677 = vadd.f32 %v2326, %v2613
        %v2678 = vadd.f32 %v2169, %v2614
        %v2679 = vadd.f32 %v2171, %v2615
        %v2680 = vadd.f32 %v2330, %v2616
        %v2681 = vadd.f32 %v2332, %v2617
        %v2682 = vadd.f32 %v2175, %v2618
        %v2683 = vadd.f32 %v2177, %v2619
        %v2684 = vadd.f32 %v2336, %v2620
        %v2685 = vadd.f32 %v2338, %v2621
        %v2686 = vadd.f32 %v2181, %v2622
        %v2687 = vadd.f32 %v2183, %v2623
        %v2688 = vadd.f32 %v2342, %v2624
        %v2689 = vadd.f32 %v2344, %v2625
        %v2690 = vadd.f32 %v2187, %v2626
        %v2691 = vadd.f32 %v2189, %v2627
        %v2692 = vadd.f32 %v2348, %v2628
        %v2693 = vadd.f32 %v2350, %v2629
        %v2694 = vadd.f32 %v2193, %v2630
        %v2695 = vadd.f32 %v2195, %v2631
        %v2696 = vadd.f32 %v2354, %v2632
        %v2697 = vadd.f32 %v2356, %v2633
        %v2698 = vadd.f32 %v2199, %v2634
        %v2699 = vadd.f32 %v2201, %v2635
        %v2700 = vadd.f32 %v2360, %v2636
        %v2701 = vadd.f32 %v2362, %v2637
        %v2702 = vadd.f32 %v2205, %v2638
        %v2703 = vadd.f32 %v2207, %v2639
        %v2704 = vadd.f32 %v2366, %v2640
        %v2705 = vadd.f32 %v2368, %v2641
        %v2706 = vadd.f32 %v2211, %v2642
        %v2707 = vadd.f32 %v2213, %v2643
        %v2708 = vadd.f32 %v2372, %v2644
        %v2709 = vadd.f32 %v2374, %v2645
        %v2710 = vadd.f32 %v2217, %v2646
        %v2711 = vadd.f32 %v2219, %v2647
        %v2712 = vadd.f32 %v2378, %v2648
        %v2713 = vadd.f32 %v2380, %v2649
        %v2714 = vadd.f32 %v2223, %v2650
        %v2715 = vadd.f32 %v2225, %v2651
        %v2716 = vadd.f32 %v2384, %v2652
        %v2717 = vadd.f32 %v2386, %v2653
        %v2718 = vadd.f32 %v2229, %v2654
        %v2719 = vadd.f32 %v2231, %v2655
        %v2720 = vadd.f32 %v2390, %v2656
        %v2721 = vadd.f32 %v2392, %v2657
        %v2722 = vadd.f32 %v2235, %v2658
        %v2723 = vadd.f32 %v2237, %v2659
        %v2724 = vadd.f32 %v2396, %v2660
        %v2725 = vadd.f32 %v2398, %v2661
        %v2726 = vadd.f32 %v2241, %v2662
        %v2727 = vadd.f32 %v2243, %v2663
        %v2728 = vadd.f32 %v2402, %v2664
        %v2729 = vadd.f32 %v2404, %v2665
        %v2730 = vadd.f32 %v2247, %v2666
        %v2731 = vadd.f32 %v2249, %v2667
        %v2732 = vadd.f32 %v2408, %v2668
        %v2733 = vadd.f32 %v2410, %v2669
        %v2734 = vadd.f32 %v2253, %v2670
        %v2735 = vadd.f32 %v2255, %v2671
        %v2736 = vadd.f32 %v2414, %v2672
        %v2737 = vadd.f32 %v2416, %v2673
        %v2738 = vmul.f32 %v2674, 0.7978846
        %v2739 = vmul.f32 %v2675, 0.7978846
        %v2740 = vmul.f32 %v2676, 0.7978846
        %v2741 = vmul.f32 %v2677, 0.7978846
        %v2742 = vmul.f32 %v2678, 0.7978846
        %v2743 = vmul.f32 %v2679, 0.7978846
        %v2744 = vmul.f32 %v2680, 0.7978846
        %v2745 = vmul.f32 %v2681, 0.7978846
        %v2746 = vmul.f32 %v2682, 0.7978846
        %v2747 = vmul.f32 %v2683, 0.7978846
        %v2748 = vmul.f32 %v2684, 0.7978846
        %v2749 = vmul.f32 %v2685, 0.7978846
        %v2750 = vmul.f32 %v2686, 0.7978846
        %v2751 = vmul.f32 %v2687, 0.7978846
        %v2752 = vmul.f32 %v2688, 0.7978846
        %v2753 = vmul.f32 %v2689, 0.7978846
        %v2754 = vmul.f32 %v2690, 0.7978846
        %v2755 = vmul.f32 %v2691, 0.7978846
        %v2756 = vmul.f32 %v2692, 0.7978846
        %v2757 = vmul.f32 %v2693, 0.7978846
        %v2758 = vmul.f32 %v2694, 0.7978846
        %v2759 = vmul.f32 %v2695, 0.7978846
        %v2760 = vmul.f32 %v2696, 0.7978846
        %v2761 = vmul.f32 %v2697, 0.7978846
        %v2762 = vmul.f32 %v2698, 0.7978846
        %v2763 = vmul.f32 %v2699, 0.7978846
        %v2764 = vmul.f32 %v2700, 0.7978846
        %v2765 = vmul.f32 %v2701, 0.7978846
        %v2766 = vmul.f32 %v2702, 0.7978846
        %v2767 = vmul.f32 %v2703, 0.7978846
        %v2768 = vmul.f32 %v2704, 0.7978846
        %v2769 = vmul.f32 %v2705, 0.7978846
        %v2770 = vmul.f32 %v2706, 0.7978846
        %v2771 = vmul.f32 %v2707, 0.7978846
        %v2772 = vmul.f32 %v2708, 0.7978846
        %v2773 = vmul.f32 %v2709, 0.7978846
        %v2774 = vmul.f32 %v2710, 0.7978846
        %v2775 = vmul.f32 %v2711, 0.7978846
        %v2776 = vmul.f32 %v2712, 0.7978846
        %v2777 = vmul.f32 %v2713, 0.7978846
        %v2778 = vmul.f32 %v2714, 0.7978846
        %v2779 = vmul.f32 %v2715, 0.7978846
        %v2780 = vmul.f32 %v2716, 0.7978846
        %v2781 = vmul.f32 %v2717, 0.7978846
        %v2782 = vmul.f32 %v2718, 0.7978846
        %v2783 = vmul.f32 %v2719, 0.7978846
        %v2784 = vmul.f32 %v2720, 0.7978846
        %v2785 = vmul.f32 %v2721, 0.7978846
        %v2786 = vmul.f32 %v2722, 0.7978846
        %v2787 = vmul.f32 %v2723, 0.7978846
        %v2788 = vmul.f32 %v2724, 0.7978846
        %v2789 = vmul.f32 %v2725, 0.7978846
        %v2790 = vmul.f32 %v2726, 0.7978846
        %v2791 = vmul.f32 %v2727, 0.7978846
        %v2792 = vmul.f32 %v2728, 0.7978846
        %v2793 = vmul.f32 %v2729, 0.7978846
        %v2794 = vmul.f32 %v2730, 0.7978846
        %v2795 = vmul.f32 %v2731, 0.7978846
        %v2796 = vmul.f32 %v2732, 0.7978846
        %v2797 = vmul.f32 %v2733, 0.7978846
        %v2798 = vmul.f32 %v2734, 0.7978846
        %v2799 = vmul.f32 %v2735, 0.7978846
        %v2800 = vmul.f32 %v2736, 0.7978846
        %v2801 = vmul.f32 %v2737, 0.7978846
        %v2802 = vtanh.pop %v2738
        %v2803 = vtanh.pop %v2739
        %v2804 = vtanh.pop %v2740
        %v2805 = vtanh.pop %v2741
        %v2806 = vtanh.pop %v2742
        %v2807 = vtanh.pop %v2743
        %v2808 = vtanh.pop %v2744
        %v2809 = vtanh.pop %v2745
        %v2810 = vtanh.pop %v2746
        %v2811 = vtanh.pop %v2747
        %v2812 = vtanh.pop %v2748
        %v2813 = vtanh.pop %v2749
        %v2814 = vtanh.pop %v2750
        %v2815 = vtanh.pop %v2751
        %v2816 = vtanh.pop %v2752
        %v2817 = vtanh.pop %v2753
        %v2818 = vtanh.pop %v2754
        %v2819 = vtanh.pop %v2755
        %v2820 = vtanh.pop %v2756
        %v2821 = vtanh.pop %v2757
        %v2822 = vtanh.pop %v2758
        %v2823 = vtanh.pop %v2759
        %v2824 = vtanh.pop %v2760
        %v2825 = vtanh.pop %v2761
        %v2826 = vtanh.pop %v2762
        %v2827 = vtanh.pop %v2763
        %v2828 = vtanh.pop %v2764
        %v2829 = vtanh.pop %v2765
        %v2830 = vtanh.pop %v2766
        %v2831 = vtanh.pop %v2767
        %v2832 = vtanh.pop %v2768
        %v2833 = vtanh.pop %v2769
        %v2834 = vtanh.pop %v2770
        %v2835 = vtanh.pop %v2771
        %v2836 = vtanh.pop %v2772
        %v2837 = vtanh.pop %v2773
        %v2838 = vtanh.pop %v2774
        %v2839 = vtanh.pop %v2775
        %v2840 = vtanh.pop %v2776
        %v2841 = vtanh.pop %v2777
        %v2842 = vtanh.pop %v2778
        %v2843 = vtanh.pop %v2779
        %v2844 = vtanh.pop %v2780
        %v2845 = vtanh.pop %v2781
        %v2846 = vtanh.pop %v2782
        %v2847 = vtanh.pop %v2783
        %v2848 = vtanh.pop %v2784
        %v2849 = vtanh.pop %v2785
        %v2850 = vtanh.pop %v2786
        %v2851 = vtanh.pop %v2787
        %v2852 = vtanh.pop %v2788
        %v2853 = vtanh.pop %v2789
        %v2854 = vtanh.pop %v2790
        %v2855 = vtanh.pop %v2791
        %v2856 = vtanh.pop %v2792
        %v2857 = vtanh.pop %v2793
        %v2858 = vtanh.pop %v2794
        %v2859 = vtanh.pop %v2795
        %v2860 = vtanh.pop %v2796
        %v2861 = vtanh.pop %v2797
        %v2862 = vtanh.pop %v2798
        %v2863 = vtanh.pop %v2799
        %v2864 = vtanh.pop %v2800
        %v2865 = vtanh.pop %v2801
        %v2866 = vadd.f32 %v2802, 1.0
        %v2867 = vadd.f32 %v2803, 1.0
        %v2868 = vadd.f32 %v2804, 1.0
        %v2869 = vadd.f32 %v2805, 1.0
        %v2870 = vadd.f32 %v2806, 1.0
        %v2871 = vadd.f32 %v2807, 1.0
        %v2872 = vadd.f32 %v2808, 1.0
        %v2873 = vadd.f32 %v2809, 1.0
        %v2874 = vadd.f32 %v2810, 1.0
        %v2875 = vadd.f32 %v2811, 1.0
        %v2876 = vadd.f32 %v2812, 1.0
        %v2877 = vadd.f32 %v2813, 1.0
        %v2878 = vadd.f32 %v2814, 1.0
        %v2879 = vadd.f32 %v2815, 1.0
        %v2880 = vadd.f32 %v2816, 1.0
        %v2881 = vadd.f32 %v2817, 1.0
        %v2882 = vadd.f32 %v2818, 1.0
        %v2883 = vadd.f32 %v2819, 1.0
        %v2884 = vadd.f32 %v2820, 1.0
        %v2885 = vadd.f32 %v2821, 1.0
        %v2886 = vadd.f32 %v2822, 1.0
        %v2887 = vadd.f32 %v2823, 1.0
        %v2888 = vadd.f32 %v2824, 1.0
        %v2889 = vadd.f32 %v2825, 1.0
        %v2890 = vadd.f32 %v2826, 1.0
        %v2891 = vadd.f32 %v2827, 1.0
        %v2892 = vadd.f32 %v2828, 1.0
        %v2893 = vadd.f32 %v2829, 1.0
        %v2894 = vadd.f32 %v2830, 1.0
        %v2895 = vadd.f32 %v2831, 1.0
        %v2896 = vadd.f32 %v2832, 1.0
        %v2897 = vadd.f32 %v2833, 1.0
        %v2898 = vadd.f32 %v2834, 1.0
        %v2899 = vadd.f32 %v2835, 1.0
        %v2900 = vadd.f32 %v2836, 1.0
        %v2901 = vadd.f32 %v2837, 1.0
        %v2902 = vadd.f32 %v2838, 1.0
        %v2903 = vadd.f32 %v2839, 1.0
        %v2904 = vadd.f32 %v2840, 1.0
        %v2905 = vadd.f32 %v2841, 1.0
        %v2906 = vadd.f32 %v2842, 1.0
        %v2907 = vadd.f32 %v2843, 1.0
        %v2908 = vadd.f32 %v2844, 1.0
        %v2909 = vadd.f32 %v2845, 1.0
        %v2910 = vadd.f32 %v2846, 1.0
        %v2911 = vadd.f32 %v2847, 1.0
        %v2912 = vadd.f32 %v2848, 1.0
        %v2913 = vadd.f32 %v2849, 1.0
        %v2914 = vadd.f32 %v2850, 1.0
        %v2915 = vadd.f32 %v2851, 1.0
        %v2916 = vadd.f32 %v2852, 1.0
        %v2917 = vadd.f32 %v2853, 1.0
        %v2918 = vadd.f32 %v2854, 1.0
        %v2919 = vadd.f32 %v2855, 1.0
        %v2920 = vadd.f32 %v2856, 1.0
        %v2921 = vadd.f32 %v2857, 1.0
        %v2922 = vadd.f32 %v2858, 1.0
        %v2923 = vadd.f32 %v2859, 1.0
        %v2924 = vadd.f32 %v2860, 1.0
        %v2925 = vadd.f32 %v2861, 1.0
        %v2926 = vadd.f32 %v2862, 1.0
        %v2927 = vadd.f32 %v2863, 1.0
        %v2928 = vadd.f32 %v2864, 1.0
        %v2929 = vadd.f32 %v2865, 1.0
        %v2930 = vmul.f32 %v2418, %v2866
        %v2931 = vmul.f32 %v2419, %v2867
        %v2932 = vmul.f32 %v2420, %v2868
        %v2933 = vmul.f32 %v2421, %v2869
        %v2934 = vmul.f32 %v2422, %v2870
        %v2935 = vmul.f32 %v2423, %v2871
        %v2936 = vmul.f32 %v2424, %v2872
        %v2937 = vmul.f32 %v2425, %v2873
        %v2938 = vmul.f32 %v2426, %v2874
        %v2939 = vmul.f32 %v2427, %v2875
        %v2940 = vmul.f32 %v2428, %v2876
        %v2941 = vmul.f32 %v2429, %v2877
        %v2942 = vmul.f32 %v2430, %v2878
        %v2943 = vmul.f32 %v2431, %v2879
        %v2944 = vmul.f32 %v2432, %v2880
        %v2945 = vmul.f32 %v2433, %v2881
        %v2946 = vmul.f32 %v2434, %v2882
        %v2947 = vmul.f32 %v2435, %v2883
        %v2948 = vmul.f32 %v2436, %v2884
        %v2949 = vmul.f32 %v2437, %v2885
        %v2950 = vmul.f32 %v2438, %v2886
        %v2951 = vmul.f32 %v2439, %v2887
        %v2952 = vmul.f32 %v2440, %v2888
        %v2953 = vmul.f32 %v2441, %v2889
        %v2954 = vmul.f32 %v2442, %v2890
        %v2955 = vmul.f32 %v2443, %v2891
        %v2956 = vmul.f32 %v2444, %v2892
        %v2957 = vmul.f32 %v2445, %v2893
        %v2958 = vmul.f32 %v2446, %v2894
        %v2959 = vmul.f32 %v2447, %v2895
        %v2960 = vmul.f32 %v2448, %v2896
        %v2961 = vmul.f32 %v2449, %v2897
        %v2962 = vmul.f32 %v2450, %v2898
        %v2963 = vmul.f32 %v2451, %v2899
        %v2964 = vmul.f32 %v2452, %v2900
        %v2965 = vmul.f32 %v2453, %v2901
        %v2966 = vmul.f32 %v2454, %v2902
        %v2967 = vmul.f32 %v2455, %v2903
        %v2968 = vmul.f32 %v2456, %v2904
        %v2969 = vmul.f32 %v2457, %v2905
        %v2970 = vmul.f32 %v2458, %v2906
        %v2971 = vmul.f32 %v2459, %v2907
        %v2972 = vmul.f32 %v2460, %v2908
        %v2973 = vmul.f32 %v2461, %v2909
        %v2974 = vmul.f32 %v2462, %v2910
        %v2975 = vmul.f32 %v2463, %v2911
        %v2976 = vmul.f32 %v2464, %v2912
        %v2977 = vmul.f32 %v2465, %v2913
        %v2978 = vmul.f32 %v2466, %v2914
        %v2979 = vmul.f32 %v2467, %v2915
        %v2980 = vmul.f32 %v2468, %v2916
        %v2981 = vmul.f32 %v2469, %v2917
        %v2982 = vmul.f32 %v2470, %v2918
        %v2983 = vmul.f32 %v2471, %v2919
        %v2984 = vmul.f32 %v2472, %v2920
        %v2985 = vmul.f32 %v2473, %v2921
        %v2986 = vmul.f32 %v2474, %v2922
        %v2987 = vmul.f32 %v2475, %v2923
        %v2988 = vmul.f32 %v2476, %v2924
        %v2989 = vmul.f32 %v2477, %v2925
        %v2990 = vmul.f32 %v2478, %v2926
        %v2991 = vmul.f32 %v2479, %v2927
        %v2992 = vmul.f32 %v2480, %v2928
        %v2993 = vmul.f32 %v2481, %v2929
        %v2994 = vld [vmem:[#allocation2] sm:$0xff]
        %v2995 = vld [vmem:[#allocation2 + $0x8] sm:$0xff]
        %v2996 = vld [vmem:[#allocation2 + $0x10] sm:$0xff]
        %v2997 = vld [vmem:[#allocation2 + $0x18] sm:$0xff]
        %v2998 = vld [vmem:[#allocation2 + $0x20] sm:$0xff]
        %v2999 = vld [vmem:[#allocation2 + $0x28] sm:$0xff]
        %v3000 = vld [vmem:[#allocation2 + $0x30] sm:$0xff]
        %v3001 = vld [vmem:[#allocation2 + $0x38] sm:$0xff]
        %v3002 = vld [vmem:[#allocation2 + $0x40] sm:$0xff]
        %v3003 = vld [vmem:[#allocation2 + $0x48] sm:$0xff]
        %v3004 = vld [vmem:[#allocation2 + $0x50] sm:$0xff]
        %v3005 = vld [vmem:[#allocation2 + $0x58] sm:$0xff]
        %v3006 = vld [vmem:[#allocation2 + $0x60] sm:$0xff]
        %v3007 = vld [vmem:[#allocation2 + $0x68] sm:$0xff]
        %v3008 = vld [vmem:[#allocation2 + $0x70] sm:$0xff]
        %v3009 = vld [vmem:[#allocation2 + $0x78] sm:$0xff]
        %v3010 = vld [vmem:[#allocation2 + $0x80] sm:$0xff]
        %v3011 = vld [vmem:[#allocation2 + $0x88] sm:$0xff]
        %v3012 = vld [vmem:[#allocation2 + $0x90] sm:$0xff]
        %v3013 = vld [vmem:[#allocation2 + $0x98] sm:$0xff]
        %v3014 = vld [vmem:[#allocation2 + $0xa0] sm:$0xff]
        %v3015 = vld [vmem:[#allocation2 + $0xa8] sm:$0xff]
        %v3016 = vld [vmem:[#allocation2 + $0xb0] sm:$0xff]
        %v3017 = vld [vmem:[#allocation2 + $0xb8] sm:$0xff]
        %v3018 = vld [vmem:[#allocation2 + $0xc0] sm:$0xff]
        %v3019 = vld [vmem:[#allocation2 + $0xc8] sm:$0xff]
        %v3020 = vld [vmem:[#allocation2 + $0xd0] sm:$0xff]
        %v3021 = vld [vmem:[#allocation2 + $0xd8] sm:$0xff]
        %v3022 = vld [vmem:[#allocation2 + $0xe0] sm:$0xff]
        %v3023 = vld [vmem:[#allocation2 + $0xe8] sm:$0xff]
        %v3024 = vld [vmem:[#allocation2 + $0xf0] sm:$0xff]
        %v3025 = vld [vmem:[#allocation2 + $0xf8] sm:$0xff]
        %v3026 = vld [vmem:[#allocation9 + $0x400] sm:$0xff]
        %v3027 = vld [vmem:[#allocation9 + $0x408] sm:$0xff]
        %v3028 = vld [vmem:[#allocation9 + $0x410] sm:$0xff]
        %v3029 = vld [vmem:[#allocation9 + $0x418] sm:$0xff]
        %v3030 = vld [vmem:[#allocation9 + $0x420] sm:$0xff]
        %v3031 = vld [vmem:[#allocation9 + $0x428] sm:$0xff]
        %v3032 = vld [vmem:[#allocation9 + $0x430] sm:$0xff]
        %v3033 = vld [vmem:[#allocation9 + $0x438] sm:$0xff]
        %v3034 = vld [vmem:[#allocation9 + $0x440] sm:$0xff]
        %v3035 = vld [vmem:[#allocation9 + $0x448] sm:$0xff]
        %v3036 = vld [vmem:[#allocation9 + $0x450] sm:$0xff]
        %v3037 = vld [vmem:[#allocation9 + $0x458] sm:$0xff]
        %v3038 = vld [vmem:[#allocation9 + $0x460] sm:$0xff]
        %v3039 = vld [vmem:[#allocation9 + $0x468] sm:$0xff]
        %v3040 = vld [vmem:[#allocation9 + $0x470] sm:$0xff]
        %v3041 = vld [vmem:[#allocation9 + $0x478] sm:$0xff]
        %v3042 = vld [vmem:[#allocation9 + $0x480] sm:$0xff]
        %v3043 = vld [vmem:[#allocation9 + $0x488] sm:$0xff]
        %v3044 = vld [vmem:[#allocation9 + $0x490] sm:$0xff]
        %v3045 = vld [vmem:[#allocation9 + $0x498] sm:$0xff]
        %v3046 = vld [vmem:[#allocation9 + $0x4a0] sm:$0xff]
        %v3047 = vld [vmem:[#allocation9 + $0x4a8] sm:$0xff]
        %v3048 = vld [vmem:[#allocation9 + $0x4b0] sm:$0xff]
        %v3049 = vld [vmem:[#allocation9 + $0x4b8] sm:$0xff]
        %v3050 = vld [vmem:[#allocation9 + $0x4c0] sm:$0xff]
        %v3051 = vld [vmem:[#allocation9 + $0x4c8] sm:$0xff]
        %v3052 = vld [vmem:[#allocation9 + $0x4d0] sm:$0xff]
        %v3053 = vld [vmem:[#allocation9 + $0x4d8] sm:$0xff]
        %v3054 = vld [vmem:[#allocation9 + $0x4e0] sm:$0xff]
        %v3055 = vld [vmem:[#allocation9 + $0x4e8] sm:$0xff]
        %v3056 = vld [vmem:[#allocation9 + $0x4f0] sm:$0xff]
        %v3057 = vld [vmem:[#allocation9 + $0x4f8] sm:$0xff]
        %v3058 = vld [vmem:[#allocation9 + $0x500] sm:$0xff]
        %v3059 = vld [vmem:[#allocation9 + $0x508] sm:$0xff]
        %v3060 = vld [vmem:[#allocation9 + $0x510] sm:$0xff]
        %v3061 = vld [vmem:[#allocation9 + $0x518] sm:$0xff]
        %v3062 = vld [vmem:[#allocation9 + $0x520] sm:$0xff]
        %v3063 = vld [vmem:[#allocation9 + $0x528] sm:$0xff]
        %v3064 = vld [vmem:[#allocation9 + $0x530] sm:$0xff]
        %v3065 = vld [vmem:[#allocation9 + $0x538] sm:$0xff]
        %v3066 = vld [vmem:[#allocation9 + $0x540] sm:$0xff]
        %v3067 = vld [vmem:[#allocation9 + $0x548] sm:$0xff]
        %v3068 = vld [vmem:[#allocation9 + $0x550] sm:$0xff]
        %v3069 = vld [vmem:[#allocation9 + $0x558] sm:$0xff]
        %v3070 = vld [vmem:[#allocation9 + $0x560] sm:$0xff]
        %v3071 = vld [vmem:[#allocation9 + $0x568] sm:$0xff]
        %v3072 = vld [vmem:[#allocation9 + $0x570] sm:$0xff]
        %v3073 = vld [vmem:[#allocation9 + $0x578] sm:$0xff]
        %v3074 = vld [vmem:[#allocation9 + $0x580] sm:$0xff]
        %v3075 = vld [vmem:[#allocation9 + $0x588] sm:$0xff]
        %v3076 = vld [vmem:[#allocation9 + $0x590] sm:$0xff]
        %v3077 = vld [vmem:[#allocation9 + $0x598] sm:$0xff]
        %v3078 = vld [vmem:[#allocation9 + $0x5a0] sm:$0xff]
        %v3079 = vld [vmem:[#allocation9 + $0x5a8] sm:$0xff]
        %v3080 = vld [vmem:[#allocation9 + $0x5b0] sm:$0xff]
        %v3081 = vld [vmem:[#allocation9 + $0x5b8] sm:$0xff]
        %v3082 = vld [vmem:[#allocation9 + $0x5c0] sm:$0xff]
        %v3083 = vld [vmem:[#allocation9 + $0x5c8] sm:$0xff]
        %v3084 = vld [vmem:[#allocation9 + $0x5d0] sm:$0xff]
        %v3085 = vld [vmem:[#allocation9 + $0x5d8] sm:$0xff]
        %v3086 = vld [vmem:[#allocation9 + $0x5e0] sm:$0xff]
        %v3087 = vld [vmem:[#allocation9 + $0x5e8] sm:$0xff]
        %v3088 = vld [vmem:[#allocation9 + $0x5f0] sm:$0xff]
        %v3089 = vld [vmem:[#allocation9 + $0x5f8] sm:$0xff]
        %v3090 = vld [vmem:[#allocation9 + $0x600] sm:$0xff]
        %v3091 = vld [vmem:[#allocation9 + $0x608] sm:$0xff]
        %v3092 = vld [vmem:[#allocation9 + $0x610] sm:$0xff]
        %v3093 = vld [vmem:[#allocation9 + $0x618] sm:$0xff]
        %v3094 = vld [vmem:[#allocation9 + $0x620] sm:$0xff]
        %v3095 = vld [vmem:[#allocation9 + $0x628] sm:$0xff]
        %v3096 = vld [vmem:[#allocation9 + $0x630] sm:$0xff]
        %v3097 = vld [vmem:[#allocation9 + $0x638] sm:$0xff]
        %v3098 = vld [vmem:[#allocation9 + $0x640] sm:$0xff]
        %v3099 = vld [vmem:[#allocation9 + $0x648] sm:$0xff]
        %v3100 = vld [vmem:[#allocation9 + $0x650] sm:$0xff]
        %v3101 = vld [vmem:[#allocation9 + $0x658] sm:$0xff]
        %v3102 = vld [vmem:[#allocation9 + $0x660] sm:$0xff]
        %v3103 = vld [vmem:[#allocation9 + $0x668] sm:$0xff]
        %v3104 = vld [vmem:[#allocation9 + $0x670] sm:$0xff]
        %v3105 = vld [vmem:[#allocation9 + $0x678] sm:$0xff]
        %v3106 = vld [vmem:[#allocation9 + $0x680] sm:$0xff]
        %v3107 = vld [vmem:[#allocation9 + $0x688] sm:$0xff]
        %v3108 = vld [vmem:[#allocation9 + $0x690] sm:$0xff]
        %v3109 = vld [vmem:[#allocation9 + $0x698] sm:$0xff]
        %v3110 = vld [vmem:[#allocation9 + $0x6a0] sm:$0xff]
        %v3111 = vld [vmem:[#allocation9 + $0x6a8] sm:$0xff]
        %v3112 = vld [vmem:[#allocation9 + $0x6b0] sm:$0xff]
        %v3113 = vld [vmem:[#allocation9 + $0x6b8] sm:$0xff]
        %v3114 = vld [vmem:[#allocation9 + $0x6c0] sm:$0xff]
        %v3115 = vld [vmem:[#allocation9 + $0x6c8] sm:$0xff]
        %v3116 = vld [vmem:[#allocation9 + $0x6d0] sm:$0xff]
        %v3117 = vld [vmem:[#allocation9 + $0x6d8] sm:$0xff]
        %v3118 = vld [vmem:[#allocation9 + $0x6e0] sm:$0xff]
        %v3119 = vld [vmem:[#allocation9 + $0x6e8] sm:$0xff]
        %v3120 = vld [vmem:[#allocation9 + $0x6f0] sm:$0xff]
        %v3121 = vld [vmem:[#allocation9 + $0x6f8] sm:$0xff]
        %v3122 = vld [vmem:[#allocation9 + $0x700] sm:$0xff]
        %v3123 = vld [vmem:[#allocation9 + $0x708] sm:$0xff]
        %v3124 = vld [vmem:[#allocation9 + $0x710] sm:$0xff]
        %v3125 = vld [vmem:[#allocation9 + $0x718] sm:$0xff]
        %v3126 = vld [vmem:[#allocation9 + $0x720] sm:$0xff]
        %v3127 = vld [vmem:[#allocation9 + $0x728] sm:$0xff]
        %v3128 = vld [vmem:[#allocation9 + $0x730] sm:$0xff]
        %v3129 = vld [vmem:[#allocation9 + $0x738] sm:$0xff]
        %v3130 = vld [vmem:[#allocation9 + $0x740] sm:$0xff]
        %v3131 = vld [vmem:[#allocation9 + $0x748] sm:$0xff]
        %v3132 = vld [vmem:[#allocation9 + $0x750] sm:$0xff]
        %v3133 = vld [vmem:[#allocation9 + $0x758] sm:$0xff]
        %v3134 = vld [vmem:[#allocation9 + $0x760] sm:$0xff]
        %v3135 = vld [vmem:[#allocation9 + $0x768] sm:$0xff]
        %v3136 = vld [vmem:[#allocation9 + $0x770] sm:$0xff]
        %v3137 = vld [vmem:[#allocation9 + $0x778] sm:$0xff]
        %v3138 = vld [vmem:[#allocation9 + $0x780] sm:$0xff]
        %v3139 = vld [vmem:[#allocation9 + $0x788] sm:$0xff]
        %v3140 = vld [vmem:[#allocation9 + $0x790] sm:$0xff]
        %v3141 = vld [vmem:[#allocation9 + $0x798] sm:$0xff]
        %v3142 = vld [vmem:[#allocation9 + $0x7a0] sm:$0xff]
        %v3143 = vld [vmem:[#allocation9 + $0x7a8] sm:$0xff]
        %v3144 = vld [vmem:[#allocation9 + $0x7b0] sm:$0xff]
        %v3145 = vld [vmem:[#allocation9 + $0x7b8] sm:$0xff]
        %v3146 = vld [vmem:[#allocation9 + $0x7c0] sm:$0xff]
        %v3147 = vld [vmem:[#allocation9 + $0x7c8] sm:$0xff]
        %v3148 = vld [vmem:[#allocation9 + $0x7d0] sm:$0xff]
        %v3149 = vld [vmem:[#allocation9 + $0x7d8] sm:$0xff]
        %v3150 = vld [vmem:[#allocation9 + $0x7e0] sm:$0xff]
        %v3151 = vld [vmem:[#allocation9 + $0x7e8] sm:$0xff]
        %v3152 = vld [vmem:[#allocation9 + $0x7f0] sm:$0xff]
        %v3153 = vld [vmem:[#allocation9 + $0x7f8] sm:$0xff]
        %3154 = vmatprep.subr.mxu0 %v3057
        %3155 = vmatpush1.msra.mxu0 %v3056
        %3156 = vmatprep.subr.mxu0 %v3055
        %3157 = vmatpush1.msra.mxu0 %v3054
        %3158 = vmatprep.subr.mxu0 %v3053
        %3159 = vmatpush1.msra.mxu0 %v3052
        %3160 = vmatprep.subr.mxu0 %v3051
        %3161 = vmatpush1.msra.mxu0 %v3050
        %3162 = vmatprep.subr.mxu0 %v3049
        %3163 = vmatpush1.msra.mxu0 %v3048
        %3164 = vmatprep.subr.mxu0 %v3047
        %3165 = vmatpush1.msra.mxu0 %v3046
        %3166 = vmatprep.subr.mxu0 %v3045
        %3167 = vmatpush1.msra.mxu0 %v3044
        %3168 = vmatprep.subr.mxu0 %v3043
        %3169 = vmatpush1.msra.mxu0 %v3042
        %3170 = vmatprep.subr.mxu0 %v3041
        %3171 = vmatpush1.msra.mxu0 %v3040
        %3172 = vmatprep.subr.mxu0 %v3039
        %3173 = vmatpush1.msra.mxu0 %v3038
        %3174 = vmatprep.subr.mxu0 %v3037
        %3175 = vmatpush1.msra.mxu0 %v3036
        %3176 = vmatprep.subr.mxu0 %v3035
        %3177 = vmatpush1.msra.mxu0 %v3034
        %3178 = vmatprep.subr.mxu0 %v3033
        %3179 = vmatpush1.msra.mxu0 %v3032
        %3180 = vmatprep.subr.mxu0 %v3031
        %3181 = vmatpush1.msra.mxu0 %v3030
        %3182 = vmatprep.subr.mxu0 %v3029
        %3183 = vmatpush1.msra.mxu0 %v3028
        %3184 = vmatprep.subr.mxu0 %v3027
        %3185 = vmatpush1.msra.mxu0 %v3026
        %3186 = vmatprep.subr.mxu0 %v3089
        %3187 = vmatpush2.msra.mxu0 %v3088
        %3188 = vmatprep.subr.mxu0 %v3087
        %3189 = vmatpush2.msra.mxu0 %v3086
        %3190 = vmatprep.subr.mxu0 %v3085
        %3191 = vmatpush2.msra.mxu0 %v3084
        %3192 = vmatprep.subr.mxu0 %v3083
        %3193 = vmatpush2.msra.mxu0 %v3082
        %3194 = vmatprep.subr.mxu0 %v3081
        %3195 = vmatpush2.msra.mxu0 %v3080
        %3196 = vmatprep.subr.mxu0 %v3079
        %3197 = vmatpush2.msra.mxu0 %v3078
        %3198 = vmatprep.subr.mxu0 %v3077
        %3199 = vmatpush2.msra.mxu0 %v3076
        %3200 = vmatprep.subr.mxu0 %v3075
        %3201 = vmatpush2.msra.mxu0 %v3074
        %3202 = vmatprep.subr.mxu0 %v3073
        %3203 = vmatpush2.msra.mxu0 %v3072
        %3204 = vmatprep.subr.mxu0 %v3071
        %3205 = vmatpush2.msra.mxu0 %v3070
        %3206 = vmatprep.subr.mxu0 %v3069
        %3207 = vmatpush2.msra.mxu0 %v3068
        %3208 = vmatprep.subr.mxu0 %v3067
        %3209 = vmatpush2.msra.mxu0 %v3066
        %3210 = vmatprep.subr.mxu0 %v3065
        %3211 = vmatpush2.msra.mxu0 %v3064
        %3212 = vmatprep.subr.mxu0 %v3063
        %3213 = vmatpush2.msra.mxu0 %v3062
        %3214 = vmatprep.subr.mxu0 %v3061
        %3215 = vmatpush2.msra.mxu0 %v3060
        %3216 = vmatprep.subr.mxu0 %v3059
        %3217 = vmatpush2.msra.mxu0 %v3058
        %3218 = vmatprep.mubr.f32.mxu0 %v2931
        %3219 = vmatmul.mubr.f32.gmra.mxu0 %v2930
        %v3220 = vpop.f32.mrf.mxu0
        %v3221 = vadd.f32 0.0, %v3220
        %v3222 = vpop.f32.mrf.mxu0
        %v3223 = vadd.f32 0.0, %v3222
        %3224 = vmatprep.mubr.f32.mxu0 %v2935
        %3225 = vmatmul.mubr.f32.gmra.mxu0 %v2934
        %v3226 = vpop.f32.mrf.mxu0
        %v3227 = vadd.f32 0.0, %v3226
        %v3228 = vpop.f32.mrf.mxu0
        %v3229 = vadd.f32 0.0, %v3228
        %3230 = vmatprep.mubr.f32.mxu0 %v2939
        %3231 = vmatmul.mubr.f32.gmra.mxu0 %v2938
        %v3232 = vpop.f32.mrf.mxu0
        %v3233 = vadd.f32 0.0, %v3232
        %v3234 = vpop.f32.mrf.mxu0
        %v3235 = vadd.f32 0.0, %v3234
        %3236 = vmatprep.mubr.f32.mxu0 %v2943
        %3237 = vmatmul.mubr.f32.gmra.mxu0 %v2942
        %v3238 = vpop.f32.mrf.mxu0
        %v3239 = vadd.f32 0.0, %v3238
        %v3240 = vpop.f32.mrf.mxu0
        %v3241 = vadd.f32 0.0, %v3240
        %3242 = vmatprep.mubr.f32.mxu0 %v2947
        %3243 = vmatmul.mubr.f32.gmra.mxu0 %v2946
        %v3244 = vpop.f32.mrf.mxu0
        %v3245 = vadd.f32 0.0, %v3244
        %v3246 = vpop.f32.mrf.mxu0
        %v3247 = vadd.f32 0.0, %v3246
        %3248 = vmatprep.mubr.f32.mxu0 %v2951
        %3249 = vmatmul.mubr.f32.gmra.mxu0 %v2950
        %v3250 = vpop.f32.mrf.mxu0
        %v3251 = vadd.f32 0.0, %v3250
        %v3252 = vpop.f32.mrf.mxu0
        %v3253 = vadd.f32 0.0, %v3252
        %3254 = vmatprep.mubr.f32.mxu0 %v2955
        %3255 = vmatmul.mubr.f32.gmra.mxu0 %v2954
        %v3256 = vpop.f32.mrf.mxu0
        %v3257 = vadd.f32 0.0, %v3256
        %v3258 = vpop.f32.mrf.mxu0
        %v3259 = vadd.f32 0.0, %v3258
        %3260 = vmatprep.mubr.f32.mxu0 %v2959
        %3261 = vmatmul.mubr.f32.gmra.mxu0 %v2958
        %v3262 = vpop.f32.mrf.mxu0
        %v3263 = vadd.f32 0.0, %v3262
        %v3264 = vpop.f32.mrf.mxu0
        %v3265 = vadd.f32 0.0, %v3264
        %3266 = vmatprep.mubr.f32.mxu0 %v2963
        %3267 = vmatmul.mubr.f32.gmra.mxu0 %v2962
        %v3268 = vpop.f32.mrf.mxu0
        %v3269 = vadd.f32 0.0, %v3268
        %v3270 = vpop.f32.mrf.mxu0
        %v3271 = vadd.f32 0.0, %v3270
        %3272 = vmatprep.mubr.f32.mxu0 %v2967
        %3273 = vmatmul.mubr.f32.gmra.mxu0 %v2966
        %v3274 = vpop.f32.mrf.mxu0
        %v3275 = vadd.f32 0.0, %v3274
        %v3276 = vpop.f32.mrf.mxu0
        %v3277 = vadd.f32 0.0, %v3276
        %3278 = vmatprep.mubr.f32.mxu0 %v2971
        %3279 = vmatmul.mubr.f32.gmra.mxu0 %v2970
        %v3280 = vpop.f32.mrf.mxu0
        %v3281 = vadd.f32 0.0, %v3280
        %v3282 = vpop.f32.mrf.mxu0
        %v3283 = vadd.f32 0.0, %v3282
        %3284 = vmatprep.mubr.f32.mxu0 %v2975
        %3285 = vmatmul.mubr.f32.gmra.mxu0 %v2974
        %v3286 = vpop.f32.mrf.mxu0
        %v3287 = vadd.f32 0.0, %v3286
        %v3288 = vpop.f32.mrf.mxu0
        %v3289 = vadd.f32 0.0, %v3288
        %3290 = vmatprep.mubr.f32.mxu0 %v2979
        %3291 = vmatmul.mubr.f32.gmra.mxu0 %v2978
        %v3292 = vpop.f32.mrf.mxu0
        %v3293 = vadd.f32 0.0, %v3292
        %v3294 = vpop.f32.mrf.mxu0
        %v3295 = vadd.f32 0.0, %v3294
        %3296 = vmatprep.mubr.f32.mxu0 %v2983
        %3297 = vmatmul.mubr.f32.gmra.mxu0 %v2982
        %v3298 = vpop.f32.mrf.mxu0
        %v3299 = vadd.f32 0.0, %v3298
        %v3300 = vpop.f32.mrf.mxu0
        %v3301 = vadd.f32 0.0, %v3300
        %3302 = vmatprep.mubr.f32.mxu0 %v2987
        %3303 = vmatmul.mubr.f32.gmra.mxu0 %v2986
        %v3304 = vpop.f32.mrf.mxu0
        %v3305 = vadd.f32 0.0, %v3304
        %v3306 = vpop.f32.mrf.mxu0
        %v3307 = vadd.f32 0.0, %v3306
        %3308 = vmatprep.mubr.f32.mxu0 %v2991
        %3309 = vmatmul.mubr.f32.gmra.mxu0 %v2990
        %v3310 = vpop.f32.mrf.mxu0
        %v3311 = vadd.f32 0.0, %v3310
        %v3312 = vpop.f32.mrf.mxu0
        %v3313 = vadd.f32 0.0, %v3312
        %3314 = vdwg.mxu0
        %3315 = vmatprep.subr.mxu0 %v3121
        %3316 = vmatpush1.msra.mxu0 %v3120
        %3317 = vmatprep.subr.mxu0 %v3119
        %3318 = vmatpush1.msra.mxu0 %v3118
        %3319 = vmatprep.subr.mxu0 %v3117
        %3320 = vmatpush1.msra.mxu0 %v3116
        %3321 = vmatprep.subr.mxu0 %v3115
        %3322 = vmatpush1.msra.mxu0 %v3114
        %3323 = vmatprep.subr.mxu0 %v3113
        %3324 = vmatpush1.msra.mxu0 %v3112
        %3325 = vmatprep.subr.mxu0 %v3111
        %3326 = vmatpush1.msra.mxu0 %v3110
        %3327 = vmatprep.subr.mxu0 %v3109
        %3328 = vmatpush1.msra.mxu0 %v3108
        %3329 = vmatprep.subr.mxu0 %v3107
        %3330 = vmatpush1.msra.mxu0 %v3106
        %3331 = vmatprep.subr.mxu0 %v3105
        %3332 = vmatpush1.msra.mxu0 %v3104
        %3333 = vmatprep.subr.mxu0 %v3103
        %3334 = vmatpush1.msra.mxu0 %v3102
        %3335 = vmatprep.subr.mxu0 %v3101
        %3336 = vmatpush1.msra.mxu0 %v3100
        %3337 = vmatprep.subr.mxu0 %v3099
        %3338 = vmatpush1.msra.mxu0 %v3098
        %3339 = vmatprep.subr.mxu0 %v3097
        %3340 = vmatpush1.msra.mxu0 %v3096
        %3341 = vmatprep.subr.mxu0 %v3095
        %3342 = vmatpush1.msra.mxu0 %v3094
        %3343 = vmatprep.subr.mxu0 %v3093
        %3344 = vmatpush1.msra.mxu0 %v3092
        %3345 = vmatprep.subr.mxu0 %v3091
        %3346 = vmatpush1.msra.mxu0 %v3090
        %3347 = vmatprep.subr.mxu0 %v3153
        %3348 = vmatpush2.msra.mxu0 %v3152
        %3349 = vmatprep.subr.mxu0 %v3151
        %3350 = vmatpush2.msra.mxu0 %v3150
        %3351 = vmatprep.subr.mxu0 %v3149
        %3352 = vmatpush2.msra.mxu0 %v3148
        %3353 = vmatprep.subr.mxu0 %v3147
        %3354 = vmatpush2.msra.mxu0 %v3146
        %3355 = vmatprep.subr.mxu0 %v3145
        %3356 = vmatpush2.msra.mxu0 %v3144
        %3357 = vmatprep.subr.mxu0 %v3143
        %3358 = vmatpush2.msra.mxu0 %v3142
        %3359 = vmatprep.subr.mxu0 %v3141
        %3360 = vmatpush2.msra.mxu0 %v3140
        %3361 = vmatprep.subr.mxu0 %v3139
        %3362 = vmatpush2.msra.mxu0 %v3138
        %3363 = vmatprep.subr.mxu0 %v3137
        %3364 = vmatpush2.msra.mxu0 %v3136
        %3365 = vmatprep.subr.mxu0 %v3135
        %3366 = vmatpush2.msra.mxu0 %v3134
        %3367 = vmatprep.subr.mxu0 %v3133
        %3368 = vmatpush2.msra.mxu0 %v3132
        %3369 = vmatprep.subr.mxu0 %v3131
        %3370 = vmatpush2.msra.mxu0 %v3130
        %3371 = vmatprep.subr.mxu0 %v3129
        %3372 = vmatpush2.msra.mxu0 %v3128
        %3373 = vmatprep.subr.mxu0 %v3127
        %3374 = vmatpush2.msra.mxu0 %v3126
        %3375 = vmatprep.subr.mxu0 %v3125
        %3376 = vmatpush2.msra.mxu0 %v3124
        %3377 = vmatprep.subr.mxu0 %v3123
        %3378 = vmatpush2.msra.mxu0 %v3122
        %3379 = vmatprep.mubr.f32.mxu0 %v2933
        %3380 = vmatmul.mubr.f32.gmra.mxu0 %v2932
        %v3381 = vpop.f32.mrf.mxu0
        %v3382 = vadd.f32 %v3221, %v3381
        %v3383 = vpop.f32.mrf.mxu0
        %v3384 = vadd.f32 %v3223, %v3383
        %3385 = vmatprep.mubr.f32.mxu0 %v2937
        %3386 = vmatmul.mubr.f32.gmra.mxu0 %v2936
        %v3387 = vpop.f32.mrf.mxu0
        %v3388 = vadd.f32 %v3227, %v3387
        %v3389 = vpop.f32.mrf.mxu0
        %v3390 = vadd.f32 %v3229, %v3389
        %3391 = vmatprep.mubr.f32.mxu0 %v2941
        %3392 = vmatmul.mubr.f32.gmra.mxu0 %v2940
        %v3393 = vpop.f32.mrf.mxu0
        %v3394 = vadd.f32 %v3233, %v3393
        %v3395 = vpop.f32.mrf.mxu0
        %v3396 = vadd.f32 %v3235, %v3395
        %3397 = vmatprep.mubr.f32.mxu0 %v2945
        %3398 = vmatmul.mubr.f32.gmra.mxu0 %v2944
        %v3399 = vpop.f32.mrf.mxu0
        %v3400 = vadd.f32 %v3239, %v3399
        %v3401 = vpop.f32.mrf.mxu0
        %v3402 = vadd.f32 %v3241, %v3401
        %3403 = vmatprep.mubr.f32.mxu0 %v2949
        %3404 = vmatmul.mubr.f32.gmra.mxu0 %v2948
        %v3405 = vpop.f32.mrf.mxu0
        %v3406 = vadd.f32 %v3245, %v3405
        %v3407 = vpop.f32.mrf.mxu0
        %v3408 = vadd.f32 %v3247, %v3407
        %3409 = vmatprep.mubr.f32.mxu0 %v2953
        %3410 = vmatmul.mubr.f32.gmra.mxu0 %v2952
        %v3411 = vpop.f32.mrf.mxu0
        %v3412 = vadd.f32 %v3251, %v3411
        %v3413 = vpop.f32.mrf.mxu0
        %v3414 = vadd.f32 %v3253, %v3413
        %3415 = vmatprep.mubr.f32.mxu0 %v2957
        %3416 = vmatmul.mubr.f32.gmra.mxu0 %v2956
        %v3417 = vpop.f32.mrf.mxu0
        %v3418 = vadd.f32 %v3257, %v3417
        %v3419 = vpop.f32.mrf.mxu0
        %v3420 = vadd.f32 %v3259, %v3419
        %3421 = vmatprep.mubr.f32.mxu0 %v2961
        %3422 = vmatmul.mubr.f32.gmra.mxu0 %v2960
        %v3423 = vpop.f32.mrf.mxu0
        %v3424 = vadd.f32 %v3263, %v3423
        %v3425 = vpop.f32.mrf.mxu0
        %v3426 = vadd.f32 %v3265, %v3425
        %3427 = vmatprep.mubr.f32.mxu0 %v2965
        %3428 = vmatmul.mubr.f32.gmra.mxu0 %v2964
        %v3429 = vpop.f32.mrf.mxu0
        %v3430 = vadd.f32 %v3269, %v3429
        %v3431 = vpop.f32.mrf.mxu0
        %v3432 = vadd.f32 %v3271, %v3431
        %3433 = vmatprep.mubr.f32.mxu0 %v2969
        %3434 = vmatmul.mubr.f32.gmra.mxu0 %v2968
        %v3435 = vpop.f32.mrf.mxu0
        %v3436 = vadd.f32 %v3275, %v3435
        %v3437 = vpop.f32.mrf.mxu0
        %v3438 = vadd.f32 %v3277, %v3437
        %3439 = vmatprep.mubr.f32.mxu0 %v2973
        %3440 = vmatmul.mubr.f32.gmra.mxu0 %v2972
        %v3441 = vpop.f32.mrf.mxu0
        %v3442 = vadd.f32 %v3281, %v3441
        %v3443 = vpop.f32.mrf.mxu0
        %v3444 = vadd.f32 %v3283, %v3443
        %3445 = vmatprep.mubr.f32.mxu0 %v2977
        %3446 = vmatmul.mubr.f32.gmra.mxu0 %v2976
        %v3447 = vpop.f32.mrf.mxu0
        %v3448 = vadd.f32 %v3287, %v3447
        %v3449 = vpop.f32.mrf.mxu0
        %v3450 = vadd.f32 %v3289, %v3449
        %3451 = vmatprep.mubr.f32.mxu0 %v2981
        %3452 = vmatmul.mubr.f32.gmra.mxu0 %v2980
        %v3453 = vpop.f32.mrf.mxu0
        %v3454 = vadd.f32 %v3293, %v3453
        %v3455 = vpop.f32.mrf.mxu0
        %v3456 = vadd.f32 %v3295, %v3455
        %3457 = vmatprep.mubr.f32.mxu0 %v2985
        %3458 = vmatmul.mubr.f32.gmra.mxu0 %v2984
        %v3459 = vpop.f32.mrf.mxu0
        %v3460 = vadd.f32 %v3299, %v3459
        %v3461 = vpop.f32.mrf.mxu0
        %v3462 = vadd.f32 %v3301, %v3461
        %3463 = vmatprep.mubr.f32.mxu0 %v2989
        %3464 = vmatmul.mubr.f32.gmra.mxu0 %v2988
        %v3465 = vpop.f32.mrf.mxu0
        %v3466 = vadd.f32 %v3305, %v3465
        %v3467 = vpop.f32.mrf.mxu0
        %v3468 = vadd.f32 %v3307, %v3467
        %3469 = vmatprep.mubr.f32.mxu0 %v2993
        %3470 = vmatmul.mubr.f32.gmra.mxu0 %v2992
        %v3471 = vpop.f32.mrf.mxu0
        %v3472 = vadd.f32 %v3311, %v3471
        %v3473 = vpop.f32.mrf.mxu0
        %v3474 = vadd.f32 %v3313, %v3473
        %3475 = vdwg.mxu0
        %v3476 = vadd.f32 %v2994, %v3382
        %v3477 = vadd.f32 %v2995, %v3384
        %v3478 = vadd.f32 %v2996, %v3388
        %v3479 = vadd.f32 %v2997, %v3390
        %v3480 = vadd.f32 %v2998, %v3394
        %v3481 = vadd.f32 %v2999, %v3396
        %v3482 = vadd.f32 %v3000, %v3400
        %v3483 = vadd.f32 %v3001, %v3402
        %v3484 = vadd.f32 %v3002, %v3406
        %v3485 = vadd.f32 %v3003, %v3408
        %v3486 = vadd.f32 %v3004, %v3412
        %v3487 = vadd.f32 %v3005, %v3414
        %v3488 = vadd.f32 %v3006, %v3418
        %v3489 = vadd.f32 %v3007, %v3420
        %v3490 = vadd.f32 %v3008, %v3424
        %v3491 = vadd.f32 %v3009, %v3426
        %v3492 = vadd.f32 %v3010, %v3430
        %v3493 = vadd.f32 %v3011, %v3432
        %v3494 = vadd.f32 %v3012, %v3436
        %v3495 = vadd.f32 %v3013, %v3438
        %v3496 = vadd.f32 %v3014, %v3442
        %v3497 = vadd.f32 %v3015, %v3444
        %v3498 = vadd.f32 %v3016, %v3448
        %v3499 = vadd.f32 %v3017, %v3450
        %v3500 = vadd.f32 %v3018, %v3454
        %v3501 = vadd.f32 %v3019, %v3456
        %v3502 = vadd.f32 %v3020, %v3460
        %v3503 = vadd.f32 %v3021, %v3462
        %v3504 = vadd.f32 %v3022, %v3466
        %v3505 = vadd.f32 %v3023, %v3468
        %v3506 = vadd.f32 %v3024, %v3472
        %v3507 = vadd.f32 %v3025, %v3474
        %3508 = vst [vmem:[#allocation2] sm:$0xff] %v3476
        %3509 = vst [vmem:[#allocation2 + $0x8] sm:$0xff] %v3477
        %3510 = vst [vmem:[#allocation2 + $0x10] sm:$0xff] %v3478
        %3511 = vst [vmem:[#allocation2 + $0x18] sm:$0xff] %v3479
        %3512 = vst [vmem:[#allocation2 + $0x20] sm:$0xff] %v3480
        %3513 = vst [vmem:[#allocation2 + $0x28] sm:$0xff] %v3481
        %3514 = vst [vmem:[#allocation2 + $0x30] sm:$0xff] %v3482
        %3515 = vst [vmem:[#allocation2 + $0x38] sm:$0xff] %v3483
        %3516 = vst [vmem:[#allocation2 + $0x40] sm:$0xff] %v3484
        %3517 = vst [vmem:[#allocation2 + $0x48] sm:$0xff] %v3485
        %3518 = vst [vmem:[#allocation2 + $0x50] sm:$0xff] %v3486
        %3519 = vst [vmem:[#allocation2 + $0x58] sm:$0xff] %v3487
        %3520 = vst [vmem:[#allocation2 + $0x60] sm:$0xff] %v3488
        %3521 = vst [vmem:[#allocation2 + $0x68] sm:$0xff] %v3489
        %3522 = vst [vmem:[#allocation2 + $0x70] sm:$0xff] %v3490
        %3523 = vst [vmem:[#allocation2 + $0x78] sm:$0xff] %v3491
        %3524 = vst [vmem:[#allocation2 + $0x80] sm:$0xff] %v3492
        %3525 = vst [vmem:[#allocation2 + $0x88] sm:$0xff] %v3493
        %3526 = vst [vmem:[#allocation2 + $0x90] sm:$0xff] %v3494
        %3527 = vst [vmem:[#allocation2 + $0x98] sm:$0xff] %v3495
        %3528 = vst [vmem:[#allocation2 + $0xa0] sm:$0xff] %v3496
        %3529 = vst [vmem:[#allocation2 + $0xa8] sm:$0xff] %v3497
        %3530 = vst [vmem:[#allocation2 + $0xb0] sm:$0xff] %v3498
        %3531 = vst [vmem:[#allocation2 + $0xb8] sm:$0xff] %v3499
        %3532 = vst [vmem:[#allocation2 + $0xc0] sm:$0xff] %v3500
        %3533 = vst [vmem:[#allocation2 + $0xc8] sm:$0xff] %v3501
        %3534 = vst [vmem:[#allocation2 + $0xd0] sm:$0xff] %v3502
        %3535 = vst [vmem:[#allocation2 + $0xd8] sm:$0xff] %v3503
        %3536 = vst [vmem:[#allocation2 + $0xe0] sm:$0xff] %v3504
        %3537 = vst [vmem:[#allocation2 + $0xe8] sm:$0xff] %v3505
        %3538 = vst [vmem:[#allocation2 + $0xf0] sm:$0xff] %v3506
        %3539 = vst [vmem:[#allocation2 + $0xf8] sm:$0xff] %v3507
        %v3540 = vld [vmem:[#allocation2] sm:$0xff]
        %v3541 = vld [vmem:[#allocation2 + $0x8] sm:$0xff]
        %v3542 = vld [vmem:[#allocation2 + $0x10] sm:$0xff]
        %v3543 = vld [vmem:[#allocation2 + $0x18] sm:$0xff]
        %v3544 = vld [vmem:[#allocation2 + $0x20] sm:$0xff]
        %v3545 = vld [vmem:[#allocation2 + $0x28] sm:$0xff]
        %v3546 = vld [vmem:[#allocation2 + $0x30] sm:$0xff]
        %v3547 = vld [vmem:[#allocation2 + $0x38] sm:$0xff]
        %v3548 = vld [vmem:[#allocation2 + $0x40] sm:$0xff]
        %v3549 = vld [vmem:[#allocation2 + $0x48] sm:$0xff]
        %v3550 = vld [vmem:[#allocation2 + $0x50] sm:$0xff]
        %v3551 = vld [vmem:[#allocation2 + $0x58] sm:$0xff]
        %v3552 = vld [vmem:[#allocation2 + $0x60] sm:$0xff]
        %v3553 = vld [vmem:[#allocation2 + $0x68] sm:$0xff]
        %v3554 = vld [vmem:[#allocation2 + $0x70] sm:$0xff]
        %v3555 = vld [vmem:[#allocation2 + $0x78] sm:$0xff]
        %v3556 = vld [vmem:[#allocation2 + $0x80] sm:$0xff]
        %v3557 = vld [vmem:[#allocation2 + $0x88] sm:$0xff]
        %v3558 = vld [vmem:[#allocation2 + $0x90] sm:$0xff]
        %v3559 = vld [vmem:[#allocation2 + $0x98] sm:$0xff]
        %v3560 = vld [vmem:[#allocation2 + $0xa0] sm:$0xff]
        %v3561 = vld [vmem:[#allocation2 + $0xa8] sm:$0xff]
        %v3562 = vld [vmem:[#allocation2 + $0xb0] sm:$0xff]
        %v3563 = vld [vmem:[#allocation2 + $0xb8] sm:$0xff]
        %v3564 = vld [vmem:[#allocation2 + $0xc0] sm:$0xff]
        %v3565 = vld [vmem:[#allocation2 + $0xc8] sm:$0xff]
        %v3566 = vld [vmem:[#allocation2 + $0xd0] sm:$0xff]
        %v3567 = vld [vmem:[#allocation2 + $0xd8] sm:$0xff]
        %v3568 = vld [vmem:[#allocation2 + $0xe0] sm:$0xff]
        %v3569 = vld [vmem:[#allocation2 + $0xe8] sm:$0xff]
        %v3570 = vld [vmem:[#allocation2 + $0xf0] sm:$0xff]
        %v3571 = vld [vmem:[#allocation2 + $0xf8] sm:$0xff]
        %v3572 = vld [vmem:[%s4] sm:$0x3]
        %v3574 = vlaneseq
        %v3575 = vshrl.u32 %v3574, 7
        %v3576 = vsub.s32 0, %v3575
        %v3577 = vrot.slane %v3572, %v3576
        %v3578 = vlaneseq
        %v3579 = vshrl.u32 %v3578, 7
        %v3580 = vsub.s32 1, %v3579
        %v3581 = vrot.slane %v3572, %v3580
        %v3584 = vadd.f32 %v3540, %v3577
        %v3585 = vadd.f32 %v3541, %v3581
        %v3586 = vadd.f32 %v3542, %v3577
        %v3587 = vadd.f32 %v3543, %v3581
        %v3588 = vadd.f32 %v3544, %v3577
        %v3589 = vadd.f32 %v3545, %v3581
        %v3590 = vadd.f32 %v3546, %v3577
        %v3591 = vadd.f32 %v3547, %v3581
        %v3592 = vadd.f32 %v3548, %v3577
        %v3593 = vadd.f32 %v3549, %v3581
        %v3594 = vadd.f32 %v3550, %v3577
        %v3595 = vadd.f32 %v3551, %v3581
        %v3596 = vadd.f32 %v3552, %v3577
        %v3597 = vadd.f32 %v3553, %v3581
        %v3598 = vadd.f32 %v3554, %v3577
        %v3599 = vadd.f32 %v3555, %v3581
        %v3600 = vadd.f32 %v3556, %v3577
        %v3601 = vadd.f32 %v3557, %v3581
        %v3602 = vadd.f32 %v3558, %v3577
        %v3603 = vadd.f32 %v3559, %v3581
        %v3604 = vadd.f32 %v3560, %v3577
        %v3605 = vadd.f32 %v3561, %v3581
        %v3606 = vadd.f32 %v3562, %v3577
        %v3607 = vadd.f32 %v3563, %v3581
        %v3608 = vadd.f32 %v3564, %v3577
        %v3609 = vadd.f32 %v3565, %v3581
        %v3610 = vadd.f32 %v3566, %v3577
        %v3611 = vadd.f32 %v3567, %v3581
        %v3612 = vadd.f32 %v3568, %v3577
        %v3613 = vadd.f32 %v3569, %v3581
        %v3614 = vadd.f32 %v3570, %v3577
        %v3615 = vadd.f32 %v3571, %v3581
        %3616 = vst [vmem:[%s285] sm:$0xff] %v3584
        %3617 = vst [vmem:[%s285 + $0x8] sm:$0xff] %v3585
        %3618 = vst [vmem:[%s285 + $0x10] sm:$0xff] %v3586
        %3619 = vst [vmem:[%s285 + $0x18] sm:$0xff] %v3587
        %3620 = vst [vmem:[%s285 + $0x20] sm:$0xff] %v3588
        %3621 = vst [vmem:[%s285 + $0x28] sm:$0xff] %v3589
        %3622 = vst [vmem:[%s285 + $0x30] sm:$0xff] %v3590
        %3623 = vst [vmem:[%s285 + $0x38] sm:$0xff] %v3591
        %3624 = vst [vmem:[%s285 + $0x40] sm:$0xff] %v3592
        %3625 = vst [vmem:[%s285 + $0x48] sm:$0xff] %v3593
        %3626 = vst [vmem:[%s285 + $0x50] sm:$0xff] %v3594
        %3627 = vst [vmem:[%s285 + $0x58] sm:$0xff] %v3595
        %3628 = vst [vmem:[%s285 + $0x60] sm:$0xff] %v3596
        %3629 = vst [vmem:[%s285 + $0x68] sm:$0xff] %v3597
        %3630 = vst [vmem:[%s285 + $0x70] sm:$0xff] %v3598
        %3631 = vst [vmem:[%s285 + $0x78] sm:$0xff] %v3599
        %3632 = vst [vmem:[%s285 + $0x80] sm:$0xff] %v3600
        %3633 = vst [vmem:[%s285 + $0x88] sm:$0xff] %v3601
        %3634 = vst [vmem:[%s285 + $0x90] sm:$0xff] %v3602
        %3635 = vst [vmem:[%s285 + $0x98] sm:$0xff] %v3603
        %3636 = vst [vmem:[%s285 + $0xa0] sm:$0xff] %v3604
        %3637 = vst [vmem:[%s285 + $0xa8] sm:$0xff] %v3605
        %3638 = vst [vmem:[%s285 + $0xb0] sm:$0xff] %v3606
        %3639 = vst [vmem:[%s285 + $0xb8] sm:$0xff] %v3607
        %3640 = vst [vmem:[%s285 + $0xc0] sm:$0xff] %v3608
        %3641 = vst [vmem:[%s285 + $0xc8] sm:$0xff] %v3609
        %3642 = vst [vmem:[%s285 + $0xd0] sm:$0xff] %v3610
        %3643 = vst [vmem:[%s285 + $0xd8] sm:$0xff] %v3611
        %3644 = vst [vmem:[%s285 + $0xe0] sm:$0xff] %v3612
        %3645 = vst [vmem:[%s285 + $0xe8] sm:$0xff] %v3613
        %3646 = vst [vmem:[%s285 + $0xf0] sm:$0xff] %v3614
        %3647 = vst [vmem:[%s285 + $0xf8] sm:$0xff] %v3615
        %s3648 = sand.u32 %s142, 1
        %s3649 = scalar_lea.sflag [#allocation5], %s3648
        %s3650 = sand.u32 %s142, 1
        %s3651 = smul.addr %s3650, 256
        %s3652 = scalar_lea.vmem [#allocation11], %s3651
        // Predicated region
        $region57: #{tpu_custom_call.1} parent=39 // pred_check
          %p3653 = pneg %p152
        $region58: #{tpu_custom_call.1} parent=39 // pred_check_branch
          %3655 = sbr.rel (%p3653) target = $region60
        $region59: #{tpu_custom_call.1} parent=39 // pred_region
          %s3656 = smul.u32 16, %s24
          %s3658 = ssub.s32 4096, 4096
          %3659 = vsyncadd %s3649, %s3658
          %s3660 = smul.addr %s3656, 2
          %s3661 = smul.addr %s3660, 128
          %s3662 = scalar_lea.hbm %s5, %s3661
          %s3663 = sshll.u32 %s3652, 4
          %s3664 = int_to_ptr.vmem [resolvable:$true] %s3663
          %3669 = dma.vmem_to_hbm [thread:$0]  %s3664, 4096, %s3662, %s3649, 256, 256, 16
        $region60: #{tpu_custom_call.1} parent=39 // pred_fallthru
          _
      $region40: #{tpu_custom_call.1} parent=5 // pred_fallthru
        _
      %p3670 = scmp.le.s32.totalorder 2, %s19
      // Predicated region
      $region61: #{tpu_custom_call.1} parent=5 // pred_check
        %p3671 = pneg %p3670
      $region62: #{tpu_custom_call.1} parent=5 // pred_check_branch
        %3673 = sbr.rel (%p3671) target = $region64
      $region63: #{tpu_custom_call.1} parent=5 // pred_region
        %s3674 = ssub.s32 %s19, 2
        // Predicated region
        $region65: #{tpu_custom_call.1} parent=63 // pred_check
          %p3675 = pneg %p158
        $region66: #{tpu_custom_call.1} parent=63 // pred_check_branch
          %3677 = sbr.rel (%p3675) target = $region68
        $region67: #{tpu_custom_call.1} parent=63 // pred_region
          %s3678 = sand.u32 %s143, 1
          %s3679 = scalar_lea.sflag [#allocation5], %s3678
          %s3680 = sand.u32 %s143, 1
          %s3681 = smul.addr %s3680, 256
          %s3682 = scalar_lea.vmem [#allocation11], %s3681
          %3683 = dma.done %s3679, 4096
        $region68: #{tpu_custom_call.1} parent=63 // pred_fallthru
          _
      $region64: #{tpu_custom_call.1} parent=5 // pred_fallthru
        _
    $region6: #{tpu_custom_call.1} parent=1 // loop_footer
      %s23 = sadd.s32 1, %s19
    $region7: #{tpu_custom_call.1} parent=1 // loop_footer_branch
      %18 = sbr.rel target = $region3
    $region8: #{tpu_custom_call.1} parent=1 // loop_exit
      _
    %3684 = vsyncpa [#allocation4], 1
    %s3685 = scalar_lea.sflag [#allocation4], 1
    %3686 = vsyncpa %s3685, 1
    %3687 = vsyncpa [#allocation7], 1
    %3688 = vsyncpa [#allocation10], 1
    %3689 = vsyncpa [#allocation5], 1
    %s3690 = scalar_lea.sflag [#allocation5], 1
    %3691 = vsyncpa %s3690, 1

// kernel: tpu_custom_call.1
$region0: #{tpu_custom_call.1}
  #allocation0 [shape = 'u32[]', space=smem, size = 0x4, offset = 0x4, fixed_abs, tag = 'smem constant byte address 0x4 - core index']
  #allocation1 [shape = 'u32[144,128]{1,0:T(1,128)}', space=vmem, size = 0x12000, scoped, tag = 'internal scratch']
  #allocation2 [shape = 'f32[128,256]{1,0:T(8,128)}', space=vmem, size = 0x20000, scoped, tag = 'scratch operand']
  %s0 = inlined_call_operand.hbm [shape: f32[512,256], index: 0, kind: input, shape index: {}]
  %s1 = inlined_call_operand.hbm [shape: f32[256,1024], index: 1, kind: input, shape index: {}]
  %s2 = inlined_call_operand.hbm [shape: f32[1,1024], index: 2, kind: input, shape index: {}]
  %s3 = inlined_call_operand.hbm [shape: f32[1024,256], index: 3, kind: input, shape index: {}]
  %s4 = inlined_call_operand.vmem [shape: f32[1,256], index: 4, kind: input, shape index: {}]
  %s5 = inlined_call_operand.hbm [shape: f32[512,256], index: 5, kind: output, shape index: {}]
  %s6 = sld [smem:[#allocation0]]
  $region69: #{tpu_custom_call.1} parent=0
    _
  %s8 = ssub.s32 1, %s6
  %s9 = scalar_select 0, %s8, %s6
  $region1: #{tpu_custom_call.1} parent=0
    #allocation3 [shape = 'u8[262144]{0}', space=vmem, size = 0x40000, scoped, tag = 'input window, operand 0']
    #allocation4 [shape = 's32[2]{0}', space=sflag, size = 0x8, scoped, tag = 'scoped memory for tpu_custom_call.1']
    #allocation5 [shape = 's32[2]{0}', space=sflag, size = 0x8, scoped, tag = 'scoped memory for tpu_custom_call.1']
    #allocation6 [shape = 'u8[1048576]{0}', space=vmem, size = 0x100000, scoped, tag = 'input window, operand 1, single buffered']
    #allocation7 [shape = 's32[1]{0}', space=sflag, size = 0x4, scoped, tag = 'scoped memory for tpu_custom_call.1']
    #allocation8 [shape = 'u8[4096]{0}', space=vmem, size = 0x1000, scoped, tag = 'input window, operand 2, single buffered']
    #allocation9 [shape = 'u8[1048576]{0}', space=vmem, size = 0x100000, scoped, tag = 'input window, operand 3, single buffered']
    #allocation10 [shape = 's32[1]{0}', space=sflag, size = 0x4, scoped, tag = 'scoped memory for tpu_custom_call.1']
    #allocation11 [shape = 'u8[262144]{0}', space=vmem, size = 0x40000, scoped, tag = 'output window, operand 0']
    %10 = vsyncpa [#allocation4], 0
    %s11 = scalar_lea.sflag [#allocation4], 1
    %12 = vsyncpa %s11, 0
    %13 = vsyncpa [#allocation7], 0
    %14 = vsyncpa [#allocation10], 0
    %15 = vsyncpa [#allocation5], 0
    %s16 = scalar_lea.sflag [#allocation5], 1
    %17 = vsyncpa %s16, 0
    loop: start=0, step=1, limit=6
    $region2: #{tpu_custom_call.1} parent=1 // loop_pre_header
      _
    $region3: #{tpu_custom_call.1} parent=1 // loop_header
      %s19 = sphi 0, %s23
      %p20 = scmp.ge.s32.totalorder %s19, 6
      %s29 = sphi 0, %s31
      %s32 = sphi 0, %s29
      %s33 = sphi 0, %s32
      %s49 = sphi 0, %s33
      %s53 = sphi 0, %s53
      %s55 = sphi 0, %s53
      %s56 = sphi 0, %s55
      %s70 = sphi 0, %s56
      %s74 = sphi 0, %s74
      %s76 = sphi 0, %s74
      %s77 = sphi 0, %s76
      %s91 = sphi 0, %s77
      %s95 = sphi 0, %s95
      %s97 = sphi 0, %s95
      %s98 = sphi 0, %s97
      %s112 = sphi 0, %s98
      %s116 = sphi 0, %s116
      %s118 = sphi 0, %s116
      %s119 = sphi 0, %s118
      %s133 = sphi 0, %s119
      %s139 = sphi 0, %s141
      %s142 = sphi 0, %s139
      %s143 = sphi 0, %s142
      %s159 = sphi 0, %s143
    $region4: #{tpu_custom_call.1} parent=1 // loop_header_branch
      %22 = sbr.rel (%p20) target = $region8
    $region5: #{tpu_custom_call.1} parent=1 // loop_body
      %s24 = ssub.s32 %s19, 1
      %s25 = ssub.s32 %s19, 2
      %s26 = sadd.s32 %s19, 1
      %s27 = ssub.s32 %s19, %s26
      %p28 = scmp.eq.s32.totalorder %s27, 0
      %s30 = sadd.s32 %s29, 1
      %s31 = scalar_select %p28, %s29, %s30
      %p34 = pneg %p28
      %p35 = scmp.eq.s32.totalorder %s19, 3
      %p36 = por %p34, %p35
      %p37 = scmp.ne.s32.totalorder %s29, %s32
      %p38 = scmp.eq.s32.totalorder %s19, 0
      %p39 = por %p37, %p38
      %p40 = scmp.ne.s32.totalorder %s29, %s32
      %p41 = scmp.eq.s32.totalorder %s24, 3
      %p42 = por %p40, %p41
      %p43 = scmp.ne.s32.totalorder %s32, %s33
      %p44 = scmp.eq.s32.totalorder %s24, 0
      %p45 = por %p43, %p44
      %p46 = scmp.ne.s32.totalorder %s32, %s33
      %p47 = scmp.eq.s32.totalorder %s25, 3
      %p48 = por %p46, %p47
      %p50 = scmp.ne.s32.totalorder %s33, %s49
      %p51 = scmp.eq.s32.totalorder %s25, 0
      %p52 = por %p50, %p51
      %s54 = sadd.s32 %s53, 1
      %p57 = scmp.eq.s32.totalorder %s19, 3
      %p58 = scmp.ne.s32.totalorder %s53, %s55
      %p59 = scmp.eq.s32.totalorder %s19, 0
      %p60 = por %p58, %p59
      %p61 = scmp.ne.s32.totalorder %s53, %s55
      %p62 = scmp.eq.s32.totalorder %s24, 3
      %p63 = por %p61, %p62
      %p64 = scmp.ne.s32.totalorder %s55, %s56
      %p65 = scmp.eq.s32.totalorder %s24, 0
      %p66 = por %p64, %p65
      %p67 = scmp.ne.s32.totalorder %s55, %s56
      %p68 = scmp.eq.s32.totalorder %s25, 3
      %p69 = por %p67, %p68
      %p71 = scmp.ne.s32.totalorder %s56, %s70
      %p72 = scmp.eq.s32.totalorder %s25, 0
      %p73 = por %p71, %p72
      %s75 = sadd.s32 %s74, 1
      %p78 = scmp.eq.s32.totalorder %s19, 3
      %p79 = scmp.ne.s32.totalorder %s74, %s76
      %p80 = scmp.eq.s32.totalorder %s19, 0
      %p81 = por %p79, %p80
      %p82 = scmp.ne.s32.totalorder %s74, %s76
      %p83 = scmp.eq.s32.totalorder %s24, 3
      %p84 = por %p82, %p83
      %p85 = scmp.ne.s32.totalorder %s76, %s77
      %p86 = scmp.eq.s32.totalorder %s24, 0
      %p87 = por %p85, %p86
      %p88 = scmp.ne.s32.totalorder %s76, %s77
      %p89 = scmp.eq.s32.totalorder %s25, 3
      %p90 = por %p88, %p89
      %p92 = scmp.ne.s32.totalorder %s77, %s91
      %p93 = scmp.eq.s32.totalorder %s25, 0
      %p94 = por %p92, %p93
      %s96 = sadd.s32 %s95, 1
      %p99 = scmp.eq.s32.totalorder %s19, 3
      %p100 = scmp.ne.s32.totalorder %s95, %s97
      %p101 = scmp.eq.s32.totalorder %s19, 0
      %p102 = por %p100, %p101
      %p103 = scmp.ne.s32.totalorder %s95, %s97
      %p104 = scmp.eq.s32.totalorder %s24, 3
      %p105 = por %p103, %p104
      %p106 = scmp.ne.s32.totalorder %s97, %s98
      %p107 = scmp.eq.s32.totalorder %s24, 0
      %p108 = por %p106, %p107
      %p109 = scmp.ne.s32.totalorder %s97, %s98
      %p110 = scmp.eq.s32.totalorder %s25, 3
      %p111 = por %p109, %p110
      %p113 = scmp.ne.s32.totalorder %s98, %s112
      %p114 = scmp.eq.s32.totalorder %s25, 0
      %p115 = por %p113, %p114
      %s117 = sadd.s32 %s116, 1
      %p120 = scmp.eq.s32.totalorder %s19, 3
      %p121 = scmp.ne.s32.totalorder %s116, %s118
      %p122 = scmp.eq.s32.totalorder %s19, 0
      %p123 = por %p121, %p122
      %p124 = scmp.ne.s32.totalorder %s116, %s118
      %p125 = scmp.eq.s32.totalorder %s24, 3
      %p126 = por %p124, %p125
      %p127 = scmp.ne.s32.totalorder %s118, %s119
      %p128 = scmp.eq.s32.totalorder %s24, 0
      %p129 = por %p127, %p128
      %p130 = scmp.ne.s32.totalorder %s118, %s119
      %p131 = scmp.eq.s32.totalorder %s25, 3
      %p132 = por %p130, %p131
      %p134 = scmp.ne.s32.totalorder %s119, %s133
      %p135 = scmp.eq.s32.totalorder %s25, 0
      %p136 = por %p134, %p135
      %s137 = ssub.s32 %s19, %s26
      %p138 = scmp.eq.s32.totalorder %s137, 0
      %s140 = sadd.s32 %s139, 1
      %s141 = scalar_select %p138, %s139, %s140
      %p144 = pneg %p138
      %p145 = scmp.eq.s32.totalorder %s19, 3
      %p146 = por %p144, %p145
      %p147 = scmp.ne.s32.totalorder %s139, %s142
      %p148 = scmp.eq.s32.totalorder %s19, 0
      %p149 = por %p147, %p148
      %p150 = scmp.ne.s32.totalorder %s139, %s142
      %p151 = scmp.eq.s32.totalorder %s24, 3
      %p152 = por %p150, %p151
      %p153 = scmp.ne.s32.totalorder %s142, %s143
      %p154 = scmp.eq.s32.totalorder %s24, 0
      %p155 = por %p153, %p154
      %p156 = scmp.ne.s32.totalorder %s142, %s143
      %p157 = scmp.eq.s32.totalorder %s25, 3
      %p158 = por %p156, %p157
      %p160 = scmp.ne.s32.totalorder %s143, %s159
      %p161 = scmp.eq.s32.totalorder %s25, 0
      %p162 = por %p160, %p161
      %p163 = scmp.le.s32.totalorder 1, %s19
      %p164 = scmp.lt.s32.totalorder %s19, 5
      %p165 = pnand %p163, %p164
      %p166 = pneg %p165
      // Predicated region
      $region9: #{tpu_custom_call.1} parent=5 // pred_check
        _
      $region10: #{tpu_custom_call.1} parent=5 // pred_check_branch
        %168 = sbr.rel (%p165) target = $region12
      $region11: #{tpu_custom_call.1} parent=5 // pred_region
        %s169 = ssub.s32 %s19, 1
        // Predicated region
        $region13: #{tpu_custom_call.1} parent=11 // pred_check
          %p170 = pneg %p66
        $region14: #{tpu_custom_call.1} parent=11 // pred_check_branch
          %172 = sbr.rel (%p170) target = $region16
        $region15: #{tpu_custom_call.1} parent=11 // pred_region
          %s174 = ssub.s32 32768, 32768
          %175 = vsyncadd [#allocation7], %s174
          %s176 = sshll.u32 [#allocation6], 4
          %s177 = int_to_ptr.vmem [resolvable:$true] %s176
          %182 = dma.hbm_to_vmem [thread:$0]  %s1, 32768, %s177, [#allocation7], 1024, 1024, 64
        $region16: #{tpu_custom_call.1} parent=11 // pred_fallthru
          _
        // Predicated region
        $region17: #{tpu_custom_call.1} parent=11 // pred_check
          %p183 = pneg %p87
        $region18: #{tpu_custom_call.1} parent=11 // pred_check_branch
          %185 = sbr.rel (%p183) target = $region20
        $region19: #{tpu_custom_call.1} parent=11 // pred_region
          %s187 = ssub.s32 128, 128
          %188 = vsyncadd [#allocation7], %s187
          %s190 = sshll.u32 [#allocation8], 4
          %s191 = int_to_ptr.vmem [resolvable:$true] %s190
          %193 = dma.hbm_to_vmem [thread:$0]  %s2, 128, %s191, [#allocation7]
        $region20: #{tpu_custom_call.1} parent=11 // pred_fallthru
          _
        // Predicated region
        $region21: #{tpu_custom_call.1} parent=11 // pred_check
          %p194 = pneg %p108
        $region22: #{tpu_custom_call.1} parent=11 // pred_check_branch
          %196 = sbr.rel (%p194) target = $region24
        $region23: #{tpu_custom_call.1} parent=11 // pred_region
          %s198 = ssub.s32 32768, 32768
          %199 = vsyncadd [#allocation10], %s198
          %s200 = sshll.u32 [#allocation9], 4
          %s201 = int_to_ptr.vmem [resolvable:$true] %s200
          %206 = dma.hbm_to_vmem [thread:$0]  %s3, 32768, %s201, [#allocation10], 256, 256, 16
        $region24: #{tpu_custom_call.1} parent=11 // pred_fallthru
          _
        // Predicated region
        $region25: #{tpu_custom_call.1} parent=11 // pred_check
          %p207 = pneg %p129
        $region26: #{tpu_custom_call.1} parent=11 // pred_check_branch
          %209 = sbr.rel (%p207) target = $region28
        $region27: #{tpu_custom_call.1} parent=11 // pred_region
          _
        $region28: #{tpu_custom_call.1} parent=11 // pred_fallthru
          _
      $region12: #{tpu_custom_call.1} parent=5 // pred_fallthru
        _
      %p210 = scmp.lt.s32.totalorder %s19, 4
      // Predicated region
      $region29: #{tpu_custom_call.1} parent=5 // pred_check
        %p211 = pneg %p210
      $region30: #{tpu_custom_call.1} parent=5 // pred_check_branch
        %213 = sbr.rel (%p211) target = $region32
      $region31: #{tpu_custom_call.1} parent=5 // pred_region
        // Predicated region
        $region33: #{tpu_custom_call.1} parent=31 // pred_check
          %p214 = pneg %p39
        $region34: #{tpu_custom_call.1} parent=31 // pred_check_branch
          %216 = sbr.rel (%p214) target = $region36
        $region35: #{tpu_custom_call.1} parent=31 // pred_region
          %s217 = sand.u32 %s29, 1
          %s218 = scalar_lea.sflag [#allocation4], %s217
          %s219 = sand.u32 %s29, 1
          %s220 = smul.addr %s219, 256
          %s221 = scalar_lea.vmem [#allocation3], %s220
          %s222 = smul.u32 16, %s19
          %s224 = ssub.s32 4096, 4096
          %225 = vsyncadd %s218, %s224
          %s226 = smul.addr %s222, 2
          %s227 = smul.addr %s226, 128
          %s228 = scalar_lea.hbm %s0, %s227
          %s229 = sshll.u32 %s221, 4
          %s230 = int_to_ptr.vmem [resolvable:$true] %s229
          %235 = dma.hbm_to_vmem [thread:$0]  %s228, 4096, %s230, %s218, 256, 256, 16
        $region36: #{tpu_custom_call.1} parent=31 // pred_fallthru
          _
      $region32: #{tpu_custom_call.1} parent=5 // pred_fallthru
        _
      %p236 = scmp.le.s32.totalorder 1, %s19
      %p237 = scmp.lt.s32.totalorder %s19, 5
      %p238 = pnand %p236, %p237
      %p239 = pneg %p238
      // Predicated region
      $region37: #{tpu_custom_call.1} parent=5 // pred_check
        _
      $region38: #{tpu_custom_call.1} parent=5 // pred_check_branch
        %241 = sbr.rel (%p238) target = $region40
      $region39: #{tpu_custom_call.1} parent=5 // pred_region
        %s242 = ssub.s32 %s19, 1
        %s243 = sand.u32 %s32, 1
        %s244 = scalar_lea.sflag [#allocation4], %s243
        %s245 = sand.u32 %s32, 1
        %s246 = smul.addr %s245, 256
        %s247 = scalar_lea.vmem [#allocation3], %s246
        // Predicated region
        $region41: #{tpu_custom_call.1} parent=39 // pred_check
          %p248 = pneg %p45
        $region42: #{tpu_custom_call.1} parent=39 // pred_check_branch
          %250 = sbr.rel (%p248) target = $region44
        $region43: #{tpu_custom_call.1} parent=39 // pred_region
          %251 = dma.done %s244, 4096
        $region44: #{tpu_custom_call.1} parent=39 // pred_fallthru
          _
        // Predicated region
        $region45: #{tpu_custom_call.1} parent=39 // pred_check
          %p252 = pneg %p66
        $region46: #{tpu_custom_call.1} parent=39 // pred_check_branch
          %254 = sbr.rel (%p252) target = $region48
        $region47: #{tpu_custom_call.1} parent=39 // pred_region
          %255 = dma.done [#allocation7], 32768
        $region48: #{tpu_custom_call.1} parent=39 // pred_fallthru
          _
        // Predicated region
        $region49: #{tpu_custom_call.1} parent=39 // pred_check
          %p256 = pneg %p87
        $region50: #{tpu_custom_call.1} parent=39 // pred_check_branch
          %258 = sbr.rel (%p256) target = $region52
        $region51: #{tpu_custom_call.1} parent=39 // pred_region
          %259 = dma.done [#allocation7], 128
        $region52: #{tpu_custom_call.1} parent=39 // pred_fallthru
          _
        // Predicated region
        $region53: #{tpu_custom_call.1} parent=39 // pred_check
          %p260 = pneg %p108
        $region54: #{tpu_custom_call.1} parent=39 // pred_check_branch
          %262 = sbr.rel (%p260) target = $region56
        $region55: #{tpu_custom_call.1} parent=39 // pred_region
          %263 = dma.done [#allocation10], 32768
        $region56: #{tpu_custom_call.1} parent=39 // pred_fallthru
          _
        %s264 = sand.u32 %s32, 1
        %s265 = scalar_lea.sflag [#allocation4], %s264
        %s266 = sand.u32 %s32, 1
        %s267 = smul.addr %s266, 256
        %s268 = scalar_lea.vmem [#allocation3], %s267
        %p269 = pneg %p45
        %p270 = pneg %p42
        %p271 = pneg %p66
        %p272 = pneg %p63
        %p273 = pneg %p87
        %p274 = pneg %p84
        %p275 = pneg %p108
        %p276 = pneg %p105
        %p277 = pneg %p129
        %p278 = pneg %p126
        %p279 = pneg %p155
        %p280 = pneg %p152
        %s281 = sand.u32 %s142, 1
        %s282 = scalar_lea.sflag [#allocation5], %s281
        %s283 = sand.u32 %s142, 1
        %s284 = smul.addr %s283, 256
        %s285 = scalar_lea.vmem [#allocation11], %s284
        %s286 = smul.u32 16, %s24
        %s287 = smul.u32 16, %s24
        %v288 = vld [vmem:[%s247] sm:$0xff]
        %v289 = vld [vmem:[%s247 + $0x8] sm:$0xff]
        %v290 = vld [vmem:[%s247 + $0x10] sm:$0xff]
        %v291 = vld [vmem:[%s247 + $0x18] sm:$0xff]
        %v292 = vld [vmem:[%s247 + $0x20] sm:$0xff]
        %v293 = vld [vmem:[%s247 + $0x28] sm:$0xff]
        %v294 = vld [vmem:[%s247 + $0x30] sm:$0xff]
        %v295 = vld [vmem:[%s247 + $0x38] sm:$0xff]
        %v296 = vld [vmem:[%s247 + $0x40] sm:$0xff]
        %v297 = vld [vmem:[%s247 + $0x48] sm:$0xff]
        %v298 = vld [vmem:[%s247 + $0x50] sm:$0xff]
        %v299 = vld [vmem:[%s247 + $0x58] sm:$0xff]
        %v300 = vld [vmem:[%s247 + $0x60] sm:$0xff]
        %v301 = vld [vmem:[%s247 + $0x68] sm:$0xff]
        %v302 = vld [vmem:[%s247 + $0x70] sm:$0xff]
        %v303 = vld [vmem:[%s247 + $0x78] sm:$0xff]
        %v304 = vld [vmem:[%s247 + $0x80] sm:$0xff]
        %v305 = vld [vmem:[%s247 + $0x88] sm:$0xff]
        %v306 = vld [vmem:[%s247 + $0x90] sm:$0xff]
        %v307 = vld [vmem:[%s247 + $0x98] sm:$0xff]
        %v308 = vld [vmem:[%s247 + $0xa0] sm:$0xff]
        %v309 = vld [vmem:[%s247 + $0xa8] sm:$0xff]
        %v310 = vld [vmem:[%s247 + $0xb0] sm:$0xff]
        %v311 = vld [vmem:[%s247 + $0xb8] sm:$0xff]
        %v312 = vld [vmem:[%s247 + $0xc0] sm:$0xff]
        %v313 = vld [vmem:[%s247 + $0xc8] sm:$0xff]
        %v314 = vld [vmem:[%s247 + $0xd0] sm:$0xff]
        %v315 = vld [vmem:[%s247 + $0xd8] sm:$0xff]
        %v316 = vld [vmem:[%s247 + $0xe0] sm:$0xff]
        %v317 = vld [vmem:[%s247 + $0xe8] sm:$0xff]
        %v318 = vld [vmem:[%s247 + $0xf0] sm:$0xff]
        %v319 = vld [vmem:[%s247 + $0xf8] sm:$0xff]
        %320 = vst [vmem:[#allocation2] sm:$0xff] 0.0
        %321 = vst [vmem:[#allocation2 + $0x8] sm:$0xff] 0.0
        %322 = vst [vmem:[#allocation2 + $0x10] sm:$0xff] 0.0
        %323 = vst [vmem:[#allocation2 + $0x18] sm:$0xff] 0.0
        %324 = vst [vmem:[#allocation2 + $0x20] sm:$0xff] 0.0
        %325 = vst [vmem:[#allocation2 + $0x28] sm:$0xff] 0.0
        %326 = vst [vmem:[#allocation2 + $0x30] sm:$0xff] 0.0
        %327 = vst [vmem:[#allocation2 + $0x38] sm:$0xff] 0.0
        %328 = vst [vmem:[#allocation2 + $0x40] sm:$0xff] 0.0
        %329 = vst [vmem:[#allocation2 + $0x48] sm:$0xff] 0.0
        %330 = vst [vmem:[#allocation2 + $0x50] sm:$0xff] 0.0
        %331 = vst [vmem:[#allocation2 + $0x58] sm:$0xff] 0.0
        %332 = vst [vmem:[#allocation2 + $0x60] sm:$0xff] 0.0
        %333 = vst [vmem:[#allocation2 + $0x68] sm:$0xff] 0.0
        %334 = vst [vmem:[#allocation2 + $0x70] sm:$0xff] 0.0
        %335 = vst [vmem:[#allocation2 + $0x78] sm:$0xff] 0.0
        %336 = vst [vmem:[#allocation2 + $0x80] sm:$0xff] 0.0
        %337 = vst [vmem:[#allocation2 + $0x88] sm:$0xff] 0.0
        %338 = vst [vmem:[#allocation2 + $0x90] sm:$0xff] 0.0
        %339 = vst [vmem:[#allocation2 + $0x98] sm:$0xff] 0.0
        %340 = vst [vmem:[#allocation2 + $0xa0] sm:$0xff] 0.0
        %341 = vst [vmem:[#allocation2 + $0xa8] sm:$0xff] 0.0
        %342 = vst [vmem:[#allocation2 + $0xb0] sm:$0xff] 0.0
        %343 = vst [vmem:[#allocation2 + $0xb8] sm:$0xff] 0.0
        %344 = vst [vmem:[#allocation2 + $0xc0] sm:$0xff] 0.0
        %345 = vst [vmem:[#allocation2 + $0xc8] sm:$0xff] 0.0
        %346 = vst [vmem:[#allocation2 + $0xd0] sm:$0xff] 0.0
        %347 = vst [vmem:[#allocation2 + $0xd8] sm:$0xff] 0.0
        %348 = vst [vmem:[#allocation2 + $0xe0] sm:$0xff] 0.0
        %349 = vst [vmem:[#allocation2 + $0xe8] sm:$0xff] 0.0
        %350 = vst [vmem:[#allocation2 + $0xf0] sm:$0xff] 0.0
        %351 = vst [vmem:[#allocation2 + $0xf8] sm:$0xff] 0.0
        %v352 = vld [vmem:[#allocation6] sm:$0xff]
        %v353 = vld [vmem:[#allocation6 + $0x8] sm:$0xff]
        %v354 = vld [vmem:[#allocation6 + $0x10] sm:$0xff]
        %v355 = vld [vmem:[#allocation6 + $0x18] sm:$0xff]
        %v356 = vld [vmem:[#allocation6 + $0x40] sm:$0xff]
        %v357 = vld [vmem:[#allocation6 + $0x48] sm:$0xff]
        %v358 = vld [vmem:[#allocation6 + $0x50] sm:$0xff]
        %v359 = vld [vmem:[#allocation6 + $0x58] sm:$0xff]
        %v360 = vld [vmem:[#allocation6 + $0x80] sm:$0xff]
        %v361 = vld [vmem:[#allocation6 + $0x88] sm:$0xff]
        %v362 = vld [vmem:[#allocation6 + $0x90] sm:$0xff]
        %v363 = vld [vmem:[#allocation6 + $0x98] sm:$0xff]
        %v364 = vld [vmem:[#allocation6 + $0xc0] sm:$0xff]
        %v365 = vld [vmem:[#allocation6 + $0xc8] sm:$0xff]
        %v366 = vld [vmem:[#allocation6 + $0xd0] sm:$0xff]
        %v367 = vld [vmem:[#allocation6 + $0xd8] sm:$0xff]
        %v368 = vld [vmem:[#allocation6 + $0x100] sm:$0xff]
        %v369 = vld [vmem:[#allocation6 + $0x108] sm:$0xff]
        %v370 = vld [vmem:[#allocation6 + $0x110] sm:$0xff]
        %v371 = vld [vmem:[#allocation6 + $0x118] sm:$0xff]
        %v372 = vld [vmem:[#allocation6 + $0x140] sm:$0xff]
        %v373 = vld [vmem:[#allocation6 + $0x148] sm:$0xff]
        %v374 = vld [vmem:[#allocation6 + $0x150] sm:$0xff]
        %v375 = vld [vmem:[#allocation6 + $0x158] sm:$0xff]
        %v376 = vld [vmem:[#allocation6 + $0x180] sm:$0xff]
        %v377 = vld [vmem:[#allocation6 + $0x188] sm:$0xff]
        %v378 = vld [vmem:[#allocation6 + $0x190] sm:$0xff]
        %v379 = vld [vmem:[#allocation6 + $0x198] sm:$0xff]
        %v380 = vld [vmem:[#allocation6 + $0x1c0] sm:$0xff]
        %v381 = vld [vmem:[#allocation6 + $0x1c8] sm:$0xff]
        %v382 = vld [vmem:[#allocation6 + $0x1d0] sm:$0xff]
        %v383 = vld [vmem:[#allocation6 + $0x1d8] sm:$0xff]
        %v384 = vld [vmem:[#allocation6 + $0x200] sm:$0xff]
        %v385 = vld [vmem:[#allocation6 + $0x208] sm:$0xff]
        %v386 = vld [vmem:[#allocation6 + $0x210] sm:$0xff]
        %v387 = vld [vmem:[#allocation6 + $0x218] sm:$0xff]
        %v388 = vld [vmem:[#allocation6 + $0x240] sm:$0xff]
        %v389 = vld [vmem:[#allocation6 + $0x248] sm:$0xff]
        %v390 = vld [vmem:[#allocation6 + $0x250] sm:$0xff]
        %v391 = vld [vmem:[#allocation6 + $0x258] sm:$0xff]
        %v392 = vld [vmem:[#allocation6 + $0x280] sm:$0xff]
        %v393 = vld [vmem:[#allocation6 + $0x288] sm:$0xff]
        %v394 = vld [vmem:[#allocation6 + $0x290] sm:$0xff]
        %v395 = vld [vmem:[#allocation6 + $0x298] sm:$0xff]
        %v396 = vld [vmem:[#allocation6 + $0x2c0] sm:$0xff]
        %v397 = vld [vmem:[#allocation6 + $0x2c8] sm:$0xff]
        %v398 = vld [vmem:[#allocation6 + $0x2d0] sm:$0xff]
        %v399 = vld [vmem:[#allocation6 + $0x2d8] sm:$0xff]
        %v400 = vld [vmem:[#allocation6 + $0x300] sm:$0xff]
        %v401 = vld [vmem:[#allocation6 + $0x308] sm:$0xff]
        %v402 = vld [vmem:[#allocation6 + $0x310] sm:$0xff]
        %v403 = vld [vmem:[#allocation6 + $0x318] sm:$0xff]
        %v404 = vld [vmem:[#allocation6 + $0x340] sm:$0xff]
        %v405 = vld [vmem:[#allocation6 + $0x348] sm:$0xff]
        %v406 = vld [vmem:[#allocation6 + $0x350] sm:$0xff]
        %v407 = vld [vmem:[#allocation6 + $0x358] sm:$0xff]
        %v408 = vld [vmem:[#allocation6 + $0x380] sm:$0xff]
        %v409 = vld [vmem:[#allocation6 + $0x388] sm:$0xff]
        %v410 = vld [vmem:[#allocation6 + $0x390] sm:$0xff]
        %v411 = vld [vmem:[#allocation6 + $0x398] sm:$0xff]
        %v412 = vld [vmem:[#allocation6 + $0x3c0] sm:$0xff]
        %v413 = vld [vmem:[#allocation6 + $0x3c8] sm:$0xff]
        %v414 = vld [vmem:[#allocation6 + $0x3d0] sm:$0xff]
        %v415 = vld [vmem:[#allocation6 + $0x3d8] sm:$0xff]
        %v416 = vld [vmem:[#allocation6 + $0x400] sm:$0xff]
        %v417 = vld [vmem:[#allocation6 + $0x408] sm:$0xff]
        %v418 = vld [vmem:[#allocation6 + $0x410] sm:$0xff]
        %v419 = vld [vmem:[#allocation6 + $0x418] sm:$0xff]
        %v420 = vld [vmem:[#allocation6 + $0x440] sm:$0xff]
        %v421 = vld [vmem:[#allocation6 + $0x448] sm:$0xff]
        %v422 = vld [vmem:[#allocation6 + $0x450] sm:$0xff]
        %v423 = vld [vmem:[#allocation6 + $0x458] sm:$0xff]
        %v424 = vld [vmem:[#allocation6 + $0x480] sm:$0xff]
        %v425 = vld [vmem:[#allocation6 + $0x488] sm:$0xff]
        %v426 = vld [vmem:[#allocation6 + $0x490] sm:$0xff]
        %v427 = vld [vmem:[#allocation6 + $0x498] sm:$0xff]
        %v428 = vld [vmem:[#allocation6 + $0x4c0] sm:$0xff]
        %v429 = vld [vmem:[#allocation6 + $0x4c8] sm:$0xff]
        %v430 = vld [vmem:[#allocation6 + $0x4d0] sm:$0xff]
        %v431 = vld [vmem:[#allocation6 + $0x4d8] sm:$0xff]
        %v432 = vld [vmem:[#allocation6 + $0x500] sm:$0xff]
        %v433 = vld [vmem:[#allocation6 + $0x508] sm:$0xff]
        %v434 = vld [vmem:[#allocation6 + $0x510] sm:$0xff]
        %v435 = vld [vmem:[#allocation6 + $0x518] sm:$0xff]
        %v436 = vld [vmem:[#allocation6 + $0x540] sm:$0xff]
        %v437 = vld [vmem:[#allocation6 + $0x548] sm:$0xff]
        %v438 = vld [vmem:[#allocation6 + $0x550] sm:$0xff]
        %v439 = vld [vmem:[#allocation6 + $0x558] sm:$0xff]
        %v440 = vld [vmem:[#allocation6 + $0x580] sm:$0xff]
        %v441 = vld [vmem:[#allocation6 + $0x588] sm:$0xff]
        %v442 = vld [vmem:[#allocation6 + $0x590] sm:$0xff]
        %v443 = vld [vmem:[#allocation6 + $0x598] sm:$0xff]
        %v444 = vld [vmem:[#allocation6 + $0x5c0] sm:$0xff]
        %v445 = vld [vmem:[#allocation6 + $0x5c8] sm:$0xff]
        %v446 = vld [vmem:[#allocation6 + $0x5d0] sm:$0xff]
        %v447 = vld [vmem:[#allocation6 + $0x5d8] sm:$0xff]
        %v448 = vld [vmem:[#allocation6 + $0x600] sm:$0xff]
        %v449 = vld [vmem:[#allocation6 + $0x608] sm:$0xff]
        %v450 = vld [vmem:[#allocation6 + $0x610] sm:$0xff]
        %v451 = vld [vmem:[#allocation6 + $0x618] sm:$0xff]
        %v452 = vld [vmem:[#allocation6 + $0x640] sm:$0xff]
        %v453 = vld [vmem:[#allocation6 + $0x648] sm:$0xff]
        %v454 = vld [vmem:[#allocation6 + $0x650] sm:$0xff]
        %v455 = vld [vmem:[#allocation6 + $0x658] sm:$0xff]
        %v456 = vld [vmem:[#allocation6 + $0x680] sm:$0xff]
        %v457 = vld [vmem:[#allocation6 + $0x688] sm:$0xff]
        %v458 = vld [vmem:[#allocation6 + $0x690] sm:$0xff]
        %v459 = vld [vmem:[#allocation6 + $0x698] sm:$0xff]
        %v460 = vld [vmem:[#allocation6 + $0x6c0] sm:$0xff]
        %v461 = vld [vmem:[#allocation6 + $0x6c8] sm:$0xff]
        %v462 = vld [vmem:[#allocation6 + $0x6d0] sm:$0xff]
        %v463 = vld [vmem:[#allocation6 + $0x6d8] sm:$0xff]
        %v464 = vld [vmem:[#allocation6 + $0x700] sm:$0xff]
        %v465 = vld [vmem:[#allocation6 + $0x708] sm:$0xff]
        %v466 = vld [vmem:[#allocation6 + $0x710] sm:$0xff]
        %v467 = vld [vmem:[#allocation6 + $0x718] sm:$0xff]
        %v468 = vld [vmem:[#allocation6 + $0x740] sm:$0xff]
        %v469 = vld [vmem:[#allocation6 + $0x748] sm:$0xff]
        %v470 = vld [vmem:[#allocation6 + $0x750] sm:$0xff]
        %v471 = vld [vmem:[#allocation6 + $0x758] sm:$0xff]
        %v472 = vld [vmem:[#allocation6 + $0x780] sm:$0xff]
        %v473 = vld [vmem:[#allocation6 + $0x788] sm:$0xff]
        %v474 = vld [vmem:[#allocation6 + $0x790] sm:$0xff]
        %v475 = vld [vmem:[#allocation6 + $0x798] sm:$0xff]
        %v476 = vld [vmem:[#allocation6 + $0x7c0] sm:$0xff]
        %v477 = vld [vmem:[#allocation6 + $0x7c8] sm:$0xff]
        %v478 = vld [vmem:[#allocation6 + $0x7d0] sm:$0xff]
        %v479 = vld [vmem:[#allocation6 + $0x7d8] sm:$0xff]
        %v480 = vld [vmem:[#allocation8] sm:$0xf]
        %v482 = vlaneseq
        %v483 = vshrl.u32 %v482, 7
        %v484 = vsub.s32 0, %v483
        %v485 = vrot.slane %v480, %v484
        %v486 = vlaneseq
        %v487 = vshrl.u32 %v486, 7
        %v488 = vsub.s32 1, %v487
        %v489 = vrot.slane %v480, %v488
        %v490 = vlaneseq
        %v491 = vshrl.u32 %v490, 7
        %v492 = vsub.s32 2, %v491
        %v493 = vrot.slane %v480, %v492
        %v494 = vlaneseq
        %v495 = vshrl.u32 %v494, 7
        %v496 = vsub.s32 3, %v495
        %v497 = vrot.slane %v480, %v496
        %502 = vmatprep.subr.mxu0 %v413
        %503 = vmatpush1.msra.mxu0 %v412
        %504 = vmatprep.subr.mxu0 %v409
        %505 = vmatpush1.msra.mxu0 %v408
        %506 = vmatprep.subr.mxu0 %v405
        %507 = vmatpush1.msra.mxu0 %v404
        %508 = vmatprep.subr.mxu0 %v401
        %509 = vmatpush1.msra.mxu0 %v400
        %510 = vmatprep.subr.mxu0 %v397
        %511 = vmatpush1.msra.mxu0 %v396
        %512 = vmatprep.subr.mxu0 %v393
        %513 = vmatpush1.msra.mxu0 %v392
        %514 = vmatprep.subr.mxu0 %v389
        %515 = vmatpush1.msra.mxu0 %v388
        %516 = vmatprep.subr.mxu0 %v385
        %517 = vmatpush1.msra.mxu0 %v384
        %518 = vmatprep.subr.mxu0 %v381
        %519 = vmatpush1.msra.mxu0 %v380
        %520 = vmatprep.subr.mxu0 %v377
        %521 = vmatpush1.msra.mxu0 %v376
        %522 = vmatprep.subr.mxu0 %v373
        %523 = vmatpush1.msra.mxu0 %v372
        %524 = vmatprep.subr.mxu0 %v369
        %525 = vmatpush1.msra.mxu0 %v368
        %526 = vmatprep.subr.mxu0 %v365
        %527 = vmatpush1.msra.mxu0 %v364
        %528 = vmatprep.subr.mxu0 %v361
        %529 = vmatpush1.msra.mxu0 %v360
        %530 = vmatprep.subr.mxu0 %v357
        %531 = vmatpush1.msra.mxu0 %v356
        %532 = vmatprep.subr.mxu0 %v353
        %533 = vmatpush1.msra.mxu0 %v352
        %534 = vmatprep.subr.mxu0 %v477
        %535 = vmatpush2.msra.mxu0 %v476
        %536 = vmatprep.subr.mxu0 %v473
        %537 = vmatpush2.msra.mxu0 %v472
        %538 = vmatprep.subr.mxu0 %v469
        %539 = vmatpush2.msra.mxu0 %v468
        %540 = vmatprep.subr.mxu0 %v465
        %541 = vmatpush2.msra.mxu0 %v464
        %542 = vmatprep.subr.mxu0 %v461
        %543 = vmatpush2.msra.mxu0 %v460
        %544 = vmatprep.subr.mxu0 %v457
        %545 = vmatpush2.msra.mxu0 %v456
        %546 = vmatprep.subr.mxu0 %v453
        %547 = vmatpush2.msra.mxu0 %v452
        %548 = vmatprep.subr.mxu0 %v449
        %549 = vmatpush2.msra.mxu0 %v448
        %550 = vmatprep.subr.mxu0 %v445
        %551 = vmatpush2.msra.mxu0 %v444
        %552 = vmatprep.subr.mxu0 %v441
        %553 = vmatpush2.msra.mxu0 %v440
        %554 = vmatprep.subr.mxu0 %v437
        %555 = vmatpush2.msra.mxu0 %v436
        %556 = vmatprep.subr.mxu0 %v433
        %557 = vmatpush2.msra.mxu0 %v432
        %558 = vmatprep.subr.mxu0 %v429
        %559 = vmatpush2.msra.mxu0 %v428
        %560 = vmatprep.subr.mxu0 %v425
        %561 = vmatpush2.msra.mxu0 %v424
        %562 = vmatprep.subr.mxu0 %v421
        %563 = vmatpush2.msra.mxu0 %v420
        %564 = vmatprep.subr.mxu0 %v417
        %565 = vmatpush2.msra.mxu0 %v416
        %566 = vmatprep.mubr.f32.mxu0 %v289
        %567 = vmatmul.mubr.f32.gmra.mxu0 %v288
        %v568 = vpop.f32.mrf.mxu0
        %v569 = vadd.f32 %v485, %v568
        %v570 = vpop.f32.mrf.mxu0
        %v571 = vadd.f32 %v489, %v570
        %572 = vmatprep.mubr.f32.mxu0 %v291
        %573 = vmatmul.mubr.f32.gmra.mxu0 %v290
        %v574 = vpop.f32.mrf.mxu0
        %v575 = vadd.f32 %v485, %v574
        %v576 = vpop.f32.mrf.mxu0
        %v577 = vadd.f32 %v489, %v576
        %578 = vmatprep.mubr.f32.mxu0 %v293
        %579 = vmatmul.mubr.f32.gmra.mxu0 %v292
        %v580 = vpop.f32.mrf.mxu0
        %v581 = vadd.f32 %v485, %v580
        %v582 = vpop.f32.mrf.mxu0
        %v583 = vadd.f32 %v489, %v582
        %584 = vmatprep.mubr.f32.mxu0 %v295
        %585 = vmatmul.mubr.f32.gmra.mxu0 %v294
        %v586 = vpop.f32.mrf.mxu0
        %v587 = vadd.f32 %v485, %v586
        %v588 = vpop.f32.mrf.mxu0
        %v589 = vadd.f32 %v489, %v588
        %590 = vmatprep.mubr.f32.mxu0 %v297
        %591 = vmatmul.mubr.f32.gmra.mxu0 %v296
        %v592 = vpop.f32.mrf.mxu0
        %v593 = vadd.f32 %v485, %v592
        %v594 = vpop.f32.mrf.mxu0
        %v595 = vadd.f32 %v489, %v594
        %596 = vmatprep.mubr.f32.mxu0 %v299
        %597 = vmatmul.mubr.f32.gmra.mxu0 %v298
        %v598 = vpop.f32.mrf.mxu0
        %v599 = vadd.f32 %v485, %v598
        %v600 = vpop.f32.mrf.mxu0
        %v601 = vadd.f32 %v489, %v600
        %602 = vmatprep.mubr.f32.mxu0 %v301
        %603 = vmatmul.mubr.f32.gmra.mxu0 %v300
        %v604 = vpop.f32.mrf.mxu0
        %v605 = vadd.f32 %v485, %v604
        %v606 = vpop.f32.mrf.mxu0
        %v607 = vadd.f32 %v489, %v606
        %608 = vmatprep.mubr.f32.mxu0 %v303
        %609 = vmatmul.mubr.f32.gmra.mxu0 %v302
        %v610 = vpop.f32.mrf.mxu0
        %v611 = vadd.f32 %v485, %v610
        %v612 = vpop.f32.mrf.mxu0
        %v613 = vadd.f32 %v489, %v612
        %614 = vmatprep.mubr.f32.mxu0 %v305
        %615 = vmatmul.mubr.f32.gmra.mxu0 %v304
        %v616 = vpop.f32.mrf.mxu0
        %v617 = vadd.f32 %v485, %v616
        %v618 = vpop.f32.mrf.mxu0
        %v619 = vadd.f32 %v489, %v618
        %620 = vmatprep.mubr.f32.mxu0 %v307
        %621 = vmatmul.mubr.f32.gmra.mxu0 %v306
        %v622 = vpop.f32.mrf.mxu0
        %v623 = vadd.f32 %v485, %v622
        %v624 = vpop.f32.mrf.mxu0
        %v625 = vadd.f32 %v489, %v624
        %626 = vmatprep.mubr.f32.mxu0 %v309
        %627 = vmatmul.mubr.f32.gmra.mxu0 %v308
        %v628 = vpop.f32.mrf.mxu0
        %v629 = vadd.f32 %v485, %v628
        %v630 = vpop.f32.mrf.mxu0
        %v631 = vadd.f32 %v489, %v630
        %632 = vmatprep.mubr.f32.mxu0 %v311
        %633 = vmatmul.mubr.f32.gmra.mxu0 %v310
        %v634 = vpop.f32.mrf.mxu0
        %v635 = vadd.f32 %v485, %v634
        %v636 = vpop.f32.mrf.mxu0
        %v637 = vadd.f32 %v489, %v636
        %638 = vmatprep.mubr.f32.mxu0 %v313
        %639 = vmatmul.mubr.f32.gmra.mxu0 %v312
        %v640 = vpop.f32.mrf.mxu0
        %v641 = vadd.f32 %v485, %v640
        %v642 = vpop.f32.mrf.mxu0
        %v643 = vadd.f32 %v489, %v642
        %644 = vmatprep.mubr.f32.mxu0 %v315
        %645 = vmatmul.mubr.f32.gmra.mxu0 %v314
        %v646 = vpop.f32.mrf.mxu0
        %v647 = vadd.f32 %v485, %v646
        %v648 = vpop.f32.mrf.mxu0
        %v649 = vadd.f32 %v489, %v648
        %650 = vmatprep.mubr.f32.mxu0 %v317
        %651 = vmatmul.mubr.f32.gmra.mxu0 %v316
        %v652 = vpop.f32.mrf.mxu0
        %v653 = vadd.f32 %v485, %v652
        %v654 = vpop.f32.mrf.mxu0
        %v655 = vadd.f32 %v489, %v654
        %656 = vmatprep.mubr.f32.mxu0 %v319
        %657 = vmatmul.mubr.f32.gmra.mxu0 %v318
        %v658 = vpop.f32.mrf.mxu0
        %v659 = vadd.f32 %v485, %v658
        %v660 = vpop.f32.mrf.mxu0
        %v661 = vadd.f32 %v489, %v660
        %662 = vdwg.mxu0
        %663 = vmatprep.subr.mxu0 %v415
        %664 = vmatpush1.msra.mxu0 %v414
        %665 = vmatprep.subr.mxu0 %v411
        %666 = vmatpush1.msra.mxu0 %v410
        %667 = vmatprep.subr.mxu0 %v407
        %668 = vmatpush1.msra.mxu0 %v406
        %669 = vmatprep.subr.mxu0 %v403
        %670 = vmatpush1.msra.mxu0 %v402
        %671 = vmatprep.subr.mxu0 %v399
        %672 = vmatpush1.msra.mxu0 %v398
        %673 = vmatprep.subr.mxu0 %v395
        %674 = vmatpush1.msra.mxu0 %v394
        %675 = vmatprep.subr.mxu0 %v391
        %676 = vmatpush1.msra.mxu0 %v390
        %677 = vmatprep.subr.mxu0 %v387
        %678 = vmatpush1.msra.mxu0 %v386
        %679 = vmatprep.subr.mxu0 %v383
        %680 = vmatpush1.msra.mxu0 %v382
        %681 = vmatprep.subr.mxu0 %v379
        %682 = vmatpush1.msra.mxu0 %v378
        %683 = vmatprep.subr.mxu0 %v375
        %684 = vmatpush1.msra.mxu0 %v374
        %685 = vmatprep.subr.mxu0 %v371
        %686 = vmatpush1.msra.mxu0 %v370
        %687 = vmatprep.subr.mxu0 %v367
        %688 = vmatpush1.msra.mxu0 %v366
        %689 = vmatprep.subr.mxu0 %v363
        %690 = vmatpush1.msra.mxu0 %v362
        %691 = vmatprep.subr.mxu0 %v359
        %692 = vmatpush1.msra.mxu0 %v358
        %693 = vmatprep.subr.mxu0 %v355
        %694 = vmatpush1.msra.mxu0 %v354
        %695 = vmatprep.subr.mxu0 %v479
        %696 = vmatpush2.msra.mxu0 %v478
        %697 = vmatprep.subr.mxu0 %v475
        %698 = vmatpush2.msra.mxu0 %v474
        %699 = vmatprep.subr.mxu0 %v471
        %700 = vmatpush2.msra.mxu0 %v470
        %701 = vmatprep.subr.mxu0 %v467
        %702 = vmatpush2.msra.mxu0 %v466
        %703 = vmatprep.subr.mxu0 %v463
        %704 = vmatpush2.msra.mxu0 %v462
        %705 = vmatprep.subr.mxu0 %v459
        %706 = vmatpush2.msra.mxu0 %v458
        %707 = vmatprep.subr.mxu0 %v455
        %708 = vmatpush2.msra.mxu0 %v454
        %709 = vmatprep.subr.mxu0 %v451
        %710 = vmatpush2.msra.mxu0 %v450
        %711 = vmatprep.subr.mxu0 %v447
        %712 = vmatpush2.msra.mxu0 %v446
        %713 = vmatprep.subr.mxu0 %v443
        %714 = vmatpush2.msra.mxu0 %v442
        %715 = vmatprep.subr.mxu0 %v439
        %716 = vmatpush2.msra.mxu0 %v438
        %717 = vmatprep.subr.mxu0 %v435
        %718 = vmatpush2.msra.mxu0 %v434
        %719 = vmatprep.subr.mxu0 %v431
        %720 = vmatpush2.msra.mxu0 %v430
        %721 = vmatprep.subr.mxu0 %v427
        %722 = vmatpush2.msra.mxu0 %v426
        %723 = vmatprep.subr.mxu0 %v423
        %724 = vmatpush2.msra.mxu0 %v422
        %725 = vmatprep.subr.mxu0 %v419
        %726 = vmatpush2.msra.mxu0 %v418
        %727 = vmatprep.mubr.f32.mxu0 %v289
        %728 = vmatmul.mubr.f32.gmra.mxu0 %v288
        %v729 = vpop.f32.mrf.mxu0
        %v730 = vadd.f32 %v493, %v729
        %v731 = vpop.f32.mrf.mxu0
        %v732 = vadd.f32 %v497, %v731
        %733 = vmatprep.mubr.f32.mxu0 %v291
        %734 = vmatmul.mubr.f32.gmra.mxu0 %v290
        %v735 = vpop.f32.mrf.mxu0
        %v736 = vadd.f32 %v493, %v735
        %v737 = vpop.f32.mrf.mxu0
        %v738 = vadd.f32 %v497, %v737
        %739 = vmatprep.mubr.f32.mxu0 %v293
        %740 = vmatmul.mubr.f32.gmra.mxu0 %v292
        %v741 = vpop.f32.mrf.mxu0
        %v742 = vadd.f32 %v493, %v741
        %v743 = vpop.f32.mrf.mxu0
        %v744 = vadd.f32 %v497, %v743
        %745 = vmatprep.mubr.f32.mxu0 %v295
        %746 = vmatmul.mubr.f32.gmra.mxu0 %v294
        %v747 = vpop.f32.mrf.mxu0
        %v748 = vadd.f32 %v493, %v747
        %v749 = vpop.f32.mrf.mxu0
        %v750 = vadd.f32 %v497, %v749
        %751 = vmatprep.mubr.f32.mxu0 %v297
        %752 = vmatmul.mubr.f32.gmra.mxu0 %v296
        %v753 = vpop.f32.mrf.mxu0
        %v754 = vadd.f32 %v493, %v753
        %v755 = vpop.f32.mrf.mxu0
        %v756 = vadd.f32 %v497, %v755
        %757 = vmatprep.mubr.f32.mxu0 %v299
        %758 = vmatmul.mubr.f32.gmra.mxu0 %v298
        %v759 = vpop.f32.mrf.mxu0
        %v760 = vadd.f32 %v493, %v759
        %v761 = vpop.f32.mrf.mxu0
        %v762 = vadd.f32 %v497, %v761
        %763 = vmatprep.mubr.f32.mxu0 %v301
        %764 = vmatmul.mubr.f32.gmra.mxu0 %v300
        %v765 = vpop.f32.mrf.mxu0
        %v766 = vadd.f32 %v493, %v765
        %v767 = vpop.f32.mrf.mxu0
        %v768 = vadd.f32 %v497, %v767
        %769 = vmatprep.mubr.f32.mxu0 %v303
        %770 = vmatmul.mubr.f32.gmra.mxu0 %v302
        %v771 = vpop.f32.mrf.mxu0
        %v772 = vadd.f32 %v493, %v771
        %v773 = vpop.f32.mrf.mxu0
        %v774 = vadd.f32 %v497, %v773
        %775 = vmatprep.mubr.f32.mxu0 %v305
        %776 = vmatmul.mubr.f32.gmra.mxu0 %v304
        %v777 = vpop.f32.mrf.mxu0
        %v778 = vadd.f32 %v493, %v777
        %v779 = vpop.f32.mrf.mxu0
        %v780 = vadd.f32 %v497, %v779
        %781 = vmatprep.mubr.f32.mxu0 %v307
        %782 = vmatmul.mubr.f32.gmra.mxu0 %v306
        %v783 = vpop.f32.mrf.mxu0
        %v784 = vadd.f32 %v493, %v783
        %v785 = vpop.f32.mrf.mxu0
        %v786 = vadd.f32 %v497, %v785
        %787 = vmatprep.mubr.f32.mxu0 %v309
        %788 = vmatmul.mubr.f32.gmra.mxu0 %v308
        %v789 = vpop.f32.mrf.mxu0
        %v790 = vadd.f32 %v493, %v789
        %v791 = vpop.f32.mrf.mxu0
        %v792 = vadd.f32 %v497, %v791
        %793 = vmatprep.mubr.f32.mxu0 %v311
        %794 = vmatmul.mubr.f32.gmra.mxu0 %v310
        %v795 = vpop.f32.mrf.mxu0
        %v796 = vadd.f32 %v493, %v795
        %v797 = vpop.f32.mrf.mxu0
        %v798 = vadd.f32 %v497, %v797
        %799 = vmatprep.mubr.f32.mxu0 %v313
        %800 = vmatmul.mubr.f32.gmra.mxu0 %v312
        %v801 = vpop.f32.mrf.mxu0
        %v802 = vadd.f32 %v493, %v801
        %v803 = vpop.f32.mrf.mxu0
        %v804 = vadd.f32 %v497, %v803
        %805 = vmatprep.mubr.f32.mxu0 %v315
        %806 = vmatmul.mubr.f32.gmra.mxu0 %v314
        %v807 = vpop.f32.mrf.mxu0
        %v808 = vadd.f32 %v493, %v807
        %v809 = vpop.f32.mrf.mxu0
        %v810 = vadd.f32 %v497, %v809
        %811 = vmatprep.mubr.f32.mxu0 %v317
        %812 = vmatmul.mubr.f32.gmra.mxu0 %v316
        %v813 = vpop.f32.mrf.mxu0
        %v814 = vadd.f32 %v493, %v813
        %v815 = vpop.f32.mrf.mxu0
        %v816 = vadd.f32 %v497, %v815
        %817 = vmatprep.mubr.f32.mxu0 %v319
        %818 = vmatmul.mubr.f32.gmra.mxu0 %v318
        %v819 = vpop.f32.mrf.mxu0
        %v820 = vadd.f32 %v493, %v819
        %v821 = vpop.f32.mrf.mxu0
        %v822 = vadd.f32 %v497, %v821
        %823 = vdwg.mxu0
        %v824 = vmul.f32 %v569, 0.5
        %v825 = vmul.f32 %v571, 0.5
        %v826 = vmul.f32 %v730, 0.5
        %v827 = vmul.f32 %v732, 0.5
        %v828 = vmul.f32 %v575, 0.5
        %v829 = vmul.f32 %v577, 0.5
        %v830 = vmul.f32 %v736, 0.5
        %v831 = vmul.f32 %v738, 0.5
        %v832 = vmul.f32 %v581, 0.5
        %v833 = vmul.f32 %v583, 0.5
        %v834 = vmul.f32 %v742, 0.5
        %v835 = vmul.f32 %v744, 0.5
        %v836 = vmul.f32 %v587, 0.5
        %v837 = vmul.f32 %v589, 0.5
        %v838 = vmul.f32 %v748, 0.5
        %v839 = vmul.f32 %v750, 0.5
        %v840 = vmul.f32 %v593, 0.5
        %v841 = vmul.f32 %v595, 0.5
        %v842 = vmul.f32 %v754, 0.5
        %v843 = vmul.f32 %v756, 0.5
        %v844 = vmul.f32 %v599, 0.5
        %v845 = vmul.f32 %v601, 0.5
        %v846 = vmul.f32 %v760, 0.5
        %v847 = vmul.f32 %v762, 0.5
        %v848 = vmul.f32 %v605, 0.5
        %v849 = vmul.f32 %v607, 0.5
        %v850 = vmul.f32 %v766, 0.5
        %v851 = vmul.f32 %v768, 0.5
        %v852 = vmul.f32 %v611, 0.5
        %v853 = vmul.f32 %v613, 0.5
        %v854 = vmul.f32 %v772, 0.5
        %v855 = vmul.f32 %v774, 0.5
        %v856 = vmul.f32 %v617, 0.5
        %v857 = vmul.f32 %v619, 0.5
        %v858 = vmul.f32 %v778, 0.5
        %v859 = vmul.f32 %v780, 0.5
        %v860 = vmul.f32 %v623, 0.5
        %v861 = vmul.f32 %v625, 0.5
        %v862 = vmul.f32 %v784, 0.5
        %v863 = vmul.f32 %v786, 0.5
        %v864 = vmul.f32 %v629, 0.5
        %v865 = vmul.f32 %v631, 0.5
        %v866 = vmul.f32 %v790, 0.5
        %v867 = vmul.f32 %v792, 0.5
        %v868 = vmul.f32 %v635, 0.5
        %v869 = vmul.f32 %v637, 0.5
        %v870 = vmul.f32 %v796, 0.5
        %v871 = vmul.f32 %v798, 0.5
        %v872 = vmul.f32 %v641, 0.5
        %v873 = vmul.f32 %v643, 0.5
        %v874 = vmul.f32 %v802, 0.5
        %v875 = vmul.f32 %v804, 0.5
        %v876 = vmul.f32 %v647, 0.5
        %v877 = vmul.f32 %v649, 0.5
        %v878 = vmul.f32 %v808, 0.5
        %v879 = vmul.f32 %v810, 0.5
        %v880 = vmul.f32 %v653, 0.5
        %v881 = vmul.f32 %v655, 0.5
        %v882 = vmul.f32 %v814, 0.5
        %v883 = vmul.f32 %v816, 0.5
        %v884 = vmul.f32 %v659, 0.5
        %v885 = vmul.f32 %v661, 0.5
        %v886 = vmul.f32 %v820, 0.5
        %v887 = vmul.f32 %v822, 0.5
        %v888 = vmul.f32 %v569, 0.044715
        %v889 = vmul.f32 %v571, 0.044715
        %v890 = vmul.f32 %v730, 0.044715
        %v891 = vmul.f32 %v732, 0.044715
        %v892 = vmul.f32 %v575, 0.044715
        %v893 = vmul.f32 %v577, 0.044715
        %v894 = vmul.f32 %v736, 0.044715
        %v895 = vmul.f32 %v738, 0.044715
        %v896 = vmul.f32 %v581, 0.044715
        %v897 = vmul.f32 %v583, 0.044715
        %v898 = vmul.f32 %v742, 0.044715
        %v899 = vmul.f32 %v744, 0.044715
        %v900 = vmul.f32 %v587, 0.044715
        %v901 = vmul.f32 %v589, 0.044715
        %v902 = vmul.f32 %v748, 0.044715
        %v903 = vmul.f32 %v750, 0.044715
        %v904 = vmul.f32 %v593, 0.044715
        %v905 = vmul.f32 %v595, 0.044715
        %v906 = vmul.f32 %v754, 0.044715
        %v907 = vmul.f32 %v756, 0.044715
        %v908 = vmul.f32 %v599, 0.044715
        %v909 = vmul.f32 %v601, 0.044715
        %v910 = vmul.f32 %v760, 0.044715
        %v911 = vmul.f32 %v762, 0.044715
        %v912 = vmul.f32 %v605, 0.044715
        %v913 = vmul.f32 %v607, 0.044715
        %v914 = vmul.f32 %v766, 0.044715
        %v915 = vmul.f32 %v768, 0.044715
        %v916 = vmul.f32 %v611, 0.044715
        %v917 = vmul.f32 %v613, 0.044715
        %v918 = vmul.f32 %v772, 0.044715
        %v919 = vmul.f32 %v774, 0.044715
        %v920 = vmul.f32 %v617, 0.044715
        %v921 = vmul.f32 %v619, 0.044715
        %v922 = vmul.f32 %v778, 0.044715
        %v923 = vmul.f32 %v780, 0.044715
        %v924 = vmul.f32 %v623, 0.044715
        %v925 = vmul.f32 %v625, 0.044715
        %v926 = vmul.f32 %v784, 0.044715
        %v927 = vmul.f32 %v786, 0.044715
        %v928 = vmul.f32 %v629, 0.044715
        %v929 = vmul.f32 %v631, 0.044715
        %v930 = vmul.f32 %v790, 0.044715
        %v931 = vmul.f32 %v792, 0.044715
        %v932 = vmul.f32 %v635, 0.044715
        %v933 = vmul.f32 %v637, 0.044715
        %v934 = vmul.f32 %v796, 0.044715
        %v935 = vmul.f32 %v798, 0.044715
        %v936 = vmul.f32 %v641, 0.044715
        %v937 = vmul.f32 %v643, 0.044715
        %v938 = vmul.f32 %v802, 0.044715
        %v939 = vmul.f32 %v804, 0.044715
        %v940 = vmul.f32 %v647, 0.044715
        %v941 = vmul.f32 %v649, 0.044715
        %v942 = vmul.f32 %v808, 0.044715
        %v943 = vmul.f32 %v810, 0.044715
        %v944 = vmul.f32 %v653, 0.044715
        %v945 = vmul.f32 %v655, 0.044715
        %v946 = vmul.f32 %v814, 0.044715
        %v947 = vmul.f32 %v816, 0.044715
        %v948 = vmul.f32 %v659, 0.044715
        %v949 = vmul.f32 %v661, 0.044715
        %v950 = vmul.f32 %v820, 0.044715
        %v951 = vmul.f32 %v822, 0.044715
        %v952 = vmul.f32 %v888, %v569
        %v953 = vmul.f32 %v889, %v571
        %v954 = vmul.f32 %v890, %v730
        %v955 = vmul.f32 %v891, %v732
        %v956 = vmul.f32 %v892, %v575
        %v957 = vmul.f32 %v893, %v577
        %v958 = vmul.f32 %v894, %v736
        %v959 = vmul.f32 %v895, %v738
        %v960 = vmul.f32 %v896, %v581
        %v961 = vmul.f32 %v897, %v583
        %v962 = vmul.f32 %v898, %v742
        %v963 = vmul.f32 %v899, %v744
        %v964 = vmul.f32 %v900, %v587
        %v965 = vmul.f32 %v901, %v589
        %v966 = vmul.f32 %v902, %v748
        %v967 = vmul.f32 %v903, %v750
        %v968 = vmul.f32 %v904, %v593
        %v969 = vmul.f32 %v905, %v595
        %v970 = vmul.f32 %v906, %v754
        %v971 = vmul.f32 %v907, %v756
        %v972 = vmul.f32 %v908, %v599
        %v973 = vmul.f32 %v909, %v601
        %v974 = vmul.f32 %v910, %v760
        %v975 = vmul.f32 %v911, %v762
        %v976 = vmul.f32 %v912, %v605
        %v977 = vmul.f32 %v913, %v607
        %v978 = vmul.f32 %v914, %v766
        %v979 = vmul.f32 %v915, %v768
        %v980 = vmul.f32 %v916, %v611
        %v981 = vmul.f32 %v917, %v613
        %v982 = vmul.f32 %v918, %v772
        %v983 = vmul.f32 %v919, %v774
        %v984 = vmul.f32 %v920, %v617
        %v985 = vmul.f32 %v921, %v619
        %v986 = vmul.f32 %v922, %v778
        %v987 = vmul.f32 %v923, %v780
        %v988 = vmul.f32 %v924, %v623
        %v989 = vmul.f32 %v925, %v625
        %v990 = vmul.f32 %v926, %v784
        %v991 = vmul.f32 %v927, %v786
        %v992 = vmul.f32 %v928, %v629
        %v993 = vmul.f32 %v929, %v631
        %v994 = vmul.f32 %v930, %v790
        %v995 = vmul.f32 %v931, %v792
        %v996 = vmul.f32 %v932, %v635
        %v997 = vmul.f32 %v933, %v637
        %v998 = vmul.f32 %v934, %v796
        %v999 = vmul.f32 %v935, %v798
        %v1000 = vmul.f32 %v936, %v641
        %v1001 = vmul.f32 %v937, %v643
        %v1002 = vmul.f32 %v938, %v802
        %v1003 = vmul.f32 %v939, %v804
        %v1004 = vmul.f32 %v940, %v647
        %v1005 = vmul.f32 %v941, %v649
        %v1006 = vmul.f32 %v942, %v808
        %v1007 = vmul.f32 %v943, %v810
        %v1008 = vmul.f32 %v944, %v653
        %v1009 = vmul.f32 %v945, %v655
        %v1010 = vmul.f32 %v946, %v814
        %v1011 = vmul.f32 %v947, %v816
        %v1012 = vmul.f32 %v948, %v659
        %v1013 = vmul.f32 %v949, %v661
        %v1014 = vmul.f32 %v950, %v820
        %v1015 = vmul.f32 %v951, %v822
        %v1016 = vmul.f32 %v952, %v569
        %v1017 = vmul.f32 %v953, %v571
        %v1018 = vmul.f32 %v954, %v730
        %v1019 = vmul.f32 %v955, %v732
        %v1020 = vmul.f32 %v956, %v575
        %v1021 = vmul.f32 %v957, %v577
        %v1022 = vmul.f32 %v958, %v736
        %v1023 = vmul.f32 %v959, %v738
        %v1024 = vmul.f32 %v960, %v581
        %v1025 = vmul.f32 %v961, %v583
        %v1026 = vmul.f32 %v962, %v742
        %v1027 = vmul.f32 %v963, %v744
        %v1028 = vmul.f32 %v964, %v587
        %v1029 = vmul.f32 %v965, %v589
        %v1030 = vmul.f32 %v966, %v748
        %v1031 = vmul.f32 %v967, %v750
        %v1032 = vmul.f32 %v968, %v593
        %v1033 = vmul.f32 %v969, %v595
        %v1034 = vmul.f32 %v970, %v754
        %v1035 = vmul.f32 %v971, %v756
        %v1036 = vmul.f32 %v972, %v599
        %v1037 = vmul.f32 %v973, %v601
        %v1038 = vmul.f32 %v974, %v760
        %v1039 = vmul.f32 %v975, %v762
        %v1040 = vmul.f32 %v976, %v605
        %v1041 = vmul.f32 %v977, %v607
        %v1042 = vmul.f32 %v978, %v766
        %v1043 = vmul.f32 %v979, %v768
        %v1044 = vmul.f32 %v980, %v611
        %v1045 = vmul.f32 %v981, %v613
        %v1046 = vmul.f32 %v982, %v772
        %v1047 = vmul.f32 %v983, %v774
        %v1048 = vmul.f32 %v984, %v617
        %v1049 = vmul.f32 %v985, %v619
        %v1050 = vmul.f32 %v986, %v778
        %v1051 = vmul.f32 %v987, %v780
        %v1052 = vmul.f32 %v988, %v623
        %v1053 = vmul.f32 %v989, %v625
        %v1054 = vmul.f32 %v990, %v784
        %v1055 = vmul.f32 %v991, %v786
        %v1056 = vmul.f32 %v992, %v629
        %v1057 = vmul.f32 %v993, %v631
        %v1058 = vmul.f32 %v994, %v790
        %v1059 = vmul.f32 %v995, %v792
        %v1060 = vmul.f32 %v996, %v635
        %v1061 = vmul.f32 %v997, %v637
        %v1062 = vmul.f32 %v998, %v796
        %v1063 = vmul.f32 %v999, %v798
        %v1064 = vmul.f32 %v1000, %v641
        %v1065 = vmul.f32 %v1001, %v643
        %v1066 = vmul.f32 %v1002, %v802
        %v1067 = vmul.f32 %v1003, %v804
        %v1068 = vmul.f32 %v1004, %v647
        %v1069 = vmul.f32 %v1005, %v649
        %v1070 = vmul.f32 %v1006, %v808
        %v1071 = vmul.f32 %v1007, %v810
        %v1072 = vmul.f32 %v1008, %v653
        %v1073 = vmul.f32 %v1009, %v655
        %v1074 = vmul.f32 %v1010, %v814
        %v1075 = vmul.f32 %v1011, %v816
        %v1076 = vmul.f32 %v1012, %v659
        %v1077 = vmul.f32 %v1013, %v661
        %v1078 = vmul.f32 %v1014, %v820
        %v1079 = vmul.f32 %v1015, %v822
        %v1080 = vadd.f32 %v569, %v1016
        %v1081 = vadd.f32 %v571, %v1017
        %v1082 = vadd.f32 %v730, %v1018
        %v1083 = vadd.f32 %v732, %v1019
        %v1084 = vadd.f32 %v575, %v1020
        %v1085 = vadd.f32 %v577, %v1021
        %v1086 = vadd.f32 %v736, %v1022
        %v1087 = vadd.f32 %v738, %v1023
        %v1088 = vadd.f32 %v581, %v1024
        %v1089 = vadd.f32 %v583, %v1025
        %v1090 = vadd.f32 %v742, %v1026
        %v1091 = vadd.f32 %v744, %v1027
        %v1092 = vadd.f32 %v587, %v1028
        %v1093 = vadd.f32 %v589, %v1029
        %v1094 = vadd.f32 %v748, %v1030
        %v1095 = vadd.f32 %v750, %v1031
        %v1096 = vadd.f32 %v593, %v1032
        %v1097 = vadd.f32 %v595, %v1033
        %v1098 = vadd.f32 %v754, %v1034
        %v1099 = vadd.f32 %v756, %v1035
        %v1100 = vadd.f32 %v599, %v1036
        %v1101 = vadd.f32 %v601, %v1037
        %v1102 = vadd.f32 %v760, %v1038
        %v1103 = vadd.f32 %v762, %v1039
        %v1104 = vadd.f32 %v605, %v1040
        %v1105 = vadd.f32 %v607, %v1041
        %v1106 = vadd.f32 %v766, %v1042
        %v1107 = vadd.f32 %v768, %v1043
        %v1108 = vadd.f32 %v611, %v1044
        %v1109 = vadd.f32 %v613, %v1045
        %v1110 = vadd.f32 %v772, %v1046
        %v1111 = vadd.f32 %v774, %v1047
        %v1112 = vadd.f32 %v617, %v1048
        %v1113 = vadd.f32 %v619, %v1049
        %v1114 = vadd.f32 %v778, %v1050
        %v1115 = vadd.f32 %v780, %v1051
        %v1116 = vadd.f32 %v623, %v1052
        %v1117 = vadd.f32 %v625, %v1053
        %v1118 = vadd.f32 %v784, %v1054
        %v1119 = vadd.f32 %v786, %v1055
        %v1120 = vadd.f32 %v629, %v1056
        %v1121 = vadd.f32 %v631, %v1057
        %v1122 = vadd.f32 %v790, %v1058
        %v1123 = vadd.f32 %v792, %v1059
        %v1124 = vadd.f32 %v635, %v1060
        %v1125 = vadd.f32 %v637, %v1061
        %v1126 = vadd.f32 %v796, %v1062
        %v1127 = vadd.f32 %v798, %v1063
        %v1128 = vadd.f32 %v641, %v1064
        %v1129 = vadd.f32 %v643, %v1065
        %v1130 = vadd.f32 %v802, %v1066
        %v1131 = vadd.f32 %v804, %v1067
        %v1132 = vadd.f32 %v647, %v1068
        %v1133 = vadd.f32 %v649, %v1069
        %v1134 = vadd.f32 %v808, %v1070
        %v1135 = vadd.f32 %v810, %v1071
        %v1136 = vadd.f32 %v653, %v1072
        %v1137 = vadd.f32 %v655, %v1073
        %v1138 = vadd.f32 %v814, %v1074
        %v1139 = vadd.f32 %v816, %v1075
        %v1140 = vadd.f32 %v659, %v1076
        %v1141 = vadd.f32 %v661, %v1077
        %v1142 = vadd.f32 %v820, %v1078
        %v1143 = vadd.f32 %v822, %v1079
        %v1144 = vmul.f32 %v1080, 0.7978846
        %v1145 = vmul.f32 %v1081, 0.7978846
        %v1146 = vmul.f32 %v1082, 0.7978846
        %v1147 = vmul.f32 %v1083, 0.7978846
        %v1148 = vmul.f32 %v1084, 0.7978846
        %v1149 = vmul.f32 %v1085, 0.7978846
        %v1150 = vmul.f32 %v1086, 0.7978846
        %v1151 = vmul.f32 %v1087, 0.7978846
        %v1152 = vmul.f32 %v1088, 0.7978846
        %v1153 = vmul.f32 %v1089, 0.7978846
        %v1154 = vmul.f32 %v1090, 0.7978846
        %v1155 = vmul.f32 %v1091, 0.7978846
        %v1156 = vmul.f32 %v1092, 0.7978846
        %v1157 = vmul.f32 %v1093, 0.7978846
        %v1158 = vmul.f32 %v1094, 0.7978846
        %v1159 = vmul.f32 %v1095, 0.7978846
        %v1160 = vmul.f32 %v1096, 0.7978846
        %v1161 = vmul.f32 %v1097, 0.7978846
        %v1162 = vmul.f32 %v1098, 0.7978846
        %v1163 = vmul.f32 %v1099, 0.7978846
        %v1164 = vmul.f32 %v1100, 0.7978846
        %v1165 = vmul.f32 %v1101, 0.7978846
        %v1166 = vmul.f32 %v1102, 0.7978846
        %v1167 = vmul.f32 %v1103, 0.7978846
        %v1168 = vmul.f32 %v1104, 0.7978846
        %v1169 = vmul.f32 %v1105, 0.7978846
        %v1170 = vmul.f32 %v1106, 0.7978846
        %v1171 = vmul.f32 %v1107, 0.7978846
        %v1172 = vmul.f32 %v1108, 0.7978846
        %v1173 = vmul.f32 %v1109, 0.7978846
        %v1174 = vmul.f32 %v1110, 0.7978846
        %v1175 = vmul.f32 %v1111, 0.7978846
        %v1176 = vmul.f32 %v1112, 0.7978846
        %v1177 = vmul.f32 %v1113, 0.7978846
        %v1178 = vmul.f32 %v1114, 0.7978846
        %v1179 = vmul.f32 %v1115, 0.7978846
        %v1180 = vmul.f32 %v1116, 0.7978846
        %v1181 = vmul.f32 %v1117, 0.7978846
        %v1182 = vmul.f32 %v1118, 0.7978846
        %v1183 = vmul.f32 %v1119, 0.7978846
        %v1184 = vmul.f32 %v1120, 0.7978846
        %v1185 = vmul.f32 %v1121, 0.7978846
        %v1186 = vmul.f32 %v1122, 0.7978846
        %v1187 = vmul.f32 %v1123, 0.7978846
        %v1188 = vmul.f32 %v1124, 0.7978846
        %v1189 = vmul.f32 %v1125, 0.7978846
        %v1190 = vmul.f32 %v1126, 0.7978846
        %v1191 = vmul.f32 %v1127, 0.7978846
        %v1192 = vmul.f32 %v1128, 0.7978846
        %v1193 = vmul.f32 %v1129, 0.7978846
        %v1194 = vmul.f32 %v1130, 0.7978846
        %v1195 = vmul.f32 %v1131, 0.7978846
        %v1196 = vmul.f32 %v1132, 0.7978846
        %v1197 = vmul.f32 %v1133, 0.7978846
        %v1198 = vmul.f32 %v1134, 0.7978846
        %v1199 = vmul.f32 %v1135, 0.7978846
        %v1200 = vmul.f32 %v1136, 0.7978846
        %v1201 = vmul.f32 %v1137, 0.7978846
        %v1202 = vmul.f32 %v1138, 0.7978846
        %v1203 = vmul.f32 %v1139, 0.7978846
        %v1204 = vmul.f32 %v1140, 0.7978846
        %v1205 = vmul.f32 %v1141, 0.7978846
        %v1206 = vmul.f32 %v1142, 0.7978846
        %v1207 = vmul.f32 %v1143, 0.7978846
        %v1208 = vtanh.pop %v1144
        %v1209 = vtanh.pop %v1145
        %v1210 = vtanh.pop %v1146
        %v1211 = vtanh.pop %v1147
        %v1212 = vtanh.pop %v1148
        %v1213 = vtanh.pop %v1149
        %v1214 = vtanh.pop %v1150
        %v1215 = vtanh.pop %v1151
        %v1216 = vtanh.pop %v1152
        %v1217 = vtanh.pop %v1153
        %v1218 = vtanh.pop %v1154
        %v1219 = vtanh.pop %v1155
        %v1220 = vtanh.pop %v1156
        %v1221 = vtanh.pop %v1157
        %v1222 = vtanh.pop %v1158
        %v1223 = vtanh.pop %v1159
        %v1224 = vtanh.pop %v1160
        %v1225 = vtanh.pop %v1161
        %v1226 = vtanh.pop %v1162
        %v1227 = vtanh.pop %v1163
        %v1228 = vtanh.pop %v1164
        %v1229 = vtanh.pop %v1165
        %v1230 = vtanh.pop %v1166
        %v1231 = vtanh.pop %v1167
        %v1232 = vtanh.pop %v1168
        %v1233 = vtanh.pop %v1169
        %v1234 = vtanh.pop %v1170
        %v1235 = vtanh.pop %v1171
        %v1236 = vtanh.pop %v1172
        %v1237 = vtanh.pop %v1173
        %v1238 = vtanh.pop %v1174
        %v1239 = vtanh.pop %v1175
        %v1240 = vtanh.pop %v1176
        %v1241 = vtanh.pop %v1177
        %v1242 = vtanh.pop %v1178
        %v1243 = vtanh.pop %v1179
        %v1244 = vtanh.pop %v1180
        %v1245 = vtanh.pop %v1181
        %v1246 = vtanh.pop %v1182
        %v1247 = vtanh.pop %v1183
        %v1248 = vtanh.pop %v1184
        %v1249 = vtanh.pop %v1185
        %v1250 = vtanh.pop %v1186
        %v1251 = vtanh.pop %v1187
        %v1252 = vtanh.pop %v1188
        %v1253 = vtanh.pop %v1189
        %v1254 = vtanh.pop %v1190
        %v1255 = vtanh.pop %v1191
        %v1256 = vtanh.pop %v1192
        %v1257 = vtanh.pop %v1193
        %v1258 = vtanh.pop %v1194
        %v1259 = vtanh.pop %v1195
        %v1260 = vtanh.pop %v1196
        %v1261 = vtanh.pop %v1197
        %v1262 = vtanh.pop %v1198
        %v1263 = vtanh.pop %v1199
        %v1264 = vtanh.pop %v1200
        %v1265 = vtanh.pop %v1201
        %v1266 = vtanh.pop %v1202
        %v1267 = vtanh.pop %v1203
        %v1268 = vtanh.pop %v1204
        %v1269 = vtanh.pop %v1205
        %v1270 = vtanh.pop %v1206
        %v1271 = vtanh.pop %v1207
        %v1272 = vadd.f32 %v1208, 1.0
        %v1273 = vadd.f32 %v1209, 1.0
        %v1274 = vadd.f32 %v1210, 1.0
        %v1275 = vadd.f32 %v1211, 1.0
        %v1276 = vadd.f32 %v1212, 1.0
        %v1277 = vadd.f32 %v1213, 1.0
        %v1278 = vadd.f32 %v1214, 1.0
        %v1279 = vadd.f32 %v1215, 1.0
        %v1280 = vadd.f32 %v1216, 1.0
        %v1281 = vadd.f32 %v1217, 1.0
        %v1282 = vadd.f32 %v1218, 1.0
        %v1283 = vadd.f32 %v1219, 1.0
        %v1284 = vadd.f32 %v1220, 1.0
        %v1285 = vadd.f32 %v1221, 1.0
        %v1286 = vadd.f32 %v1222, 1.0
        %v1287 = vadd.f32 %v1223, 1.0
        %v1288 = vadd.f32 %v1224, 1.0
        %v1289 = vadd.f32 %v1225, 1.0
        %v1290 = vadd.f32 %v1226, 1.0
        %v1291 = vadd.f32 %v1227, 1.0
        %v1292 = vadd.f32 %v1228, 1.0
        %v1293 = vadd.f32 %v1229, 1.0
        %v1294 = vadd.f32 %v1230, 1.0
        %v1295 = vadd.f32 %v1231, 1.0
        %v1296 = vadd.f32 %v1232, 1.0
        %v1297 = vadd.f32 %v1233, 1.0
        %v1298 = vadd.f32 %v1234, 1.0
        %v1299 = vadd.f32 %v1235, 1.0
        %v1300 = vadd.f32 %v1236, 1.0
        %v1301 = vadd.f32 %v1237, 1.0
        %v1302 = vadd.f32 %v1238, 1.0
        %v1303 = vadd.f32 %v1239, 1.0
        %v1304 = vadd.f32 %v1240, 1.0
        %v1305 = vadd.f32 %v1241, 1.0
        %v1306 = vadd.f32 %v1242, 1.0
        %v1307 = vadd.f32 %v1243, 1.0
        %v1308 = vadd.f32 %v1244, 1.0
        %v1309 = vadd.f32 %v1245, 1.0
        %v1310 = vadd.f32 %v1246, 1.0
        %v1311 = vadd.f32 %v1247, 1.0
        %v1312 = vadd.f32 %v1248, 1.0
        %v1313 = vadd.f32 %v1249, 1.0
        %v1314 = vadd.f32 %v1250, 1.0
        %v1315 = vadd.f32 %v1251, 1.0
        %v1316 = vadd.f32 %v1252, 1.0
        %v1317 = vadd.f32 %v1253, 1.0
        %v1318 = vadd.f32 %v1254, 1.0
        %v1319 = vadd.f32 %v1255, 1.0
        %v1320 = vadd.f32 %v1256, 1.0
        %v1321 = vadd.f32 %v1257, 1.0
        %v1322 = vadd.f32 %v1258, 1.0
        %v1323 = vadd.f32 %v1259, 1.0
        %v1324 = vadd.f32 %v1260, 1.0
        %v1325 = vadd.f32 %v1261, 1.0
        %v1326 = vadd.f32 %v1262, 1.0
        %v1327 = vadd.f32 %v1263, 1.0
        %v1328 = vadd.f32 %v1264, 1.0
        %v1329 = vadd.f32 %v1265, 1.0
        %v1330 = vadd.f32 %v1266, 1.0
        %v1331 = vadd.f32 %v1267, 1.0
        %v1332 = vadd.f32 %v1268, 1.0
        %v1333 = vadd.f32 %v1269, 1.0
        %v1334 = vadd.f32 %v1270, 1.0
        %v1335 = vadd.f32 %v1271, 1.0
        %v1336 = vmul.f32 %v824, %v1272
        %v1337 = vmul.f32 %v825, %v1273
        %v1338 = vmul.f32 %v826, %v1274
        %v1339 = vmul.f32 %v827, %v1275
        %v1340 = vmul.f32 %v828, %v1276
        %v1341 = vmul.f32 %v829, %v1277
        %v1342 = vmul.f32 %v830, %v1278
        %v1343 = vmul.f32 %v831, %v1279
        %v1344 = vmul.f32 %v832, %v1280
        %v1345 = vmul.f32 %v833, %v1281
        %v1346 = vmul.f32 %v834, %v1282
        %v1347 = vmul.f32 %v835, %v1283
        %v1348 = vmul.f32 %v836, %v1284
        %v1349 = vmul.f32 %v837, %v1285
        %v1350 = vmul.f32 %v838, %v1286
        %v1351 = vmul.f32 %v839, %v1287
        %v1352 = vmul.f32 %v840, %v1288
        %v1353 = vmul.f32 %v841, %v1289
        %v1354 = vmul.f32 %v842, %v1290
        %v1355 = vmul.f32 %v843, %v1291
        %v1356 = vmul.f32 %v844, %v1292
        %v1357 = vmul.f32 %v845, %v1293
        %v1358 = vmul.f32 %v846, %v1294
        %v1359 = vmul.f32 %v847, %v1295
        %v1360 = vmul.f32 %v848, %v1296
        %v1361 = vmul.f32 %v849, %v1297
        %v1362 = vmul.f32 %v850, %v1298
        %v1363 = vmul.f32 %v851, %v1299
        %v1364 = vmul.f32 %v852, %v1300
        %v1365 = vmul.f32 %v853, %v1301
        %v1366 = vmul.f32 %v854, %v1302
        %v1367 = vmul.f32 %v855, %v1303
        %v1368 = vmul.f32 %v856, %v1304
        %v1369 = vmul.f32 %v857, %v1305
        %v1370 = vmul.f32 %v858, %v1306
        %v1371 = vmul.f32 %v859, %v1307
        %v1372 = vmul.f32 %v860, %v1308
        %v1373 = vmul.f32 %v861, %v1309
        %v1374 = vmul.f32 %v862, %v1310
        %v1375 = vmul.f32 %v863, %v1311
        %v1376 = vmul.f32 %v864, %v1312
        %v1377 = vmul.f32 %v865, %v1313
        %v1378 = vmul.f32 %v866, %v1314
        %v1379 = vmul.f32 %v867, %v1315
        %v1380 = vmul.f32 %v868, %v1316
        %v1381 = vmul.f32 %v869, %v1317
        %v1382 = vmul.f32 %v870, %v1318
        %v1383 = vmul.f32 %v871, %v1319
        %v1384 = vmul.f32 %v872, %v1320
        %v1385 = vmul.f32 %v873, %v1321
        %v1386 = vmul.f32 %v874, %v1322
        %v1387 = vmul.f32 %v875, %v1323
        %v1388 = vmul.f32 %v876, %v1324
        %v1389 = vmul.f32 %v877, %v1325
        %v1390 = vmul.f32 %v878, %v1326
        %v1391 = vmul.f32 %v879, %v1327
        %v1392 = vmul.f32 %v880, %v1328
        %v1393 = vmul.f32 %v881, %v1329
        %v1394 = vmul.f32 %v882, %v1330
        %v1395 = vmul.f32 %v883, %v1331
        %v1396 = vmul.f32 %v884, %v1332
        %v1397 = vmul.f32 %v885, %v1333
        %v1398 = vmul.f32 %v886, %v1334
        %v1399 = vmul.f32 %v887, %v1335
        %v1400 = vld [vmem:[#allocation2] sm:$0xff]
        %v1401 = vld [vmem:[#allocation2 + $0x8] sm:$0xff]
        %v1402 = vld [vmem:[#allocation2 + $0x10] sm:$0xff]
        %v1403 = vld [vmem:[#allocation2 + $0x18] sm:$0xff]
        %v1404 = vld [vmem:[#allocation2 + $0x20] sm:$0xff]
        %v1405 = vld [vmem:[#allocation2 + $0x28] sm:$0xff]
        %v1406 = vld [vmem:[#allocation2 + $0x30] sm:$0xff]
        %v1407 = vld [vmem:[#allocation2 + $0x38] sm:$0xff]
        %v1408 = vld [vmem:[#allocation2 + $0x40] sm:$0xff]
        %v1409 = vld [vmem:[#allocation2 + $0x48] sm:$0xff]
        %v1410 = vld [vmem:[#allocation2 + $0x50] sm:$0xff]
        %v1411 = vld [vmem:[#allocation2 + $0x58] sm:$0xff]
        %v1412 = vld [vmem:[#allocation2 + $0x60] sm:$0xff]
        %v1413 = vld [vmem:[#allocation2 + $0x68] sm:$0xff]
        %v1414 = vld [vmem:[#allocation2 + $0x70] sm:$0xff]
        %v1415 = vld [vmem:[#allocation2 + $0x78] sm:$0xff]
        %v1416 = vld [vmem:[#allocation2 + $0x80] sm:$0xff]
        %v1417 = vld [vmem:[#allocation2 + $0x88] sm:$0xff]
        %v1418 = vld [vmem:[#allocation2 + $0x90] sm:$0xff]
        %v1419 = vld [vmem:[#allocation2 + $0x98] sm:$0xff]
        %v1420 = vld [vmem:[#allocation2 + $0xa0] sm:$0xff]
        %v1421 = vld [vmem:[#allocation2 + $0xa8] sm:$0xff]
        %v1422 = vld [vmem:[#allocation2 + $0xb0] sm:$0xff]
        %v1423 = vld [vmem:[#allocation2 + $0xb8] sm:$0xff]
        %v1424 = vld [vmem:[#allocation2 + $0xc0] sm:$0xff]
        %v1425 = vld [vmem:[#allocation2 + $0xc8] sm:$0xff]
        %v1426 = vld [vmem:[#allocation2 + $0xd0] sm:$0xff]
        %v1427 = vld [vmem:[#allocation2 + $0xd8] sm:$0xff]
        %v1428 = vld [vmem:[#allocation2 + $0xe0] sm:$0xff]
        %v1429 = vld [vmem:[#allocation2 + $0xe8] sm:$0xff]
        %v1430 = vld [vmem:[#allocation2 + $0xf0] sm:$0xff]
        %v1431 = vld [vmem:[#allocation2 + $0xf8] sm:$0xff]
        %v1432 = vld [vmem:[#allocation9] sm:$0xff]
        %v1433 = vld [vmem:[#allocation9 + $0x8] sm:$0xff]
        %v1434 = vld [vmem:[#allocation9 + $0x10] sm:$0xff]
        %v1435 = vld [vmem:[#allocation9 + $0x18] sm:$0xff]
        %v1436 = vld [vmem:[#allocation9 + $0x20] sm:$0xff]
        %v1437 = vld [vmem:[#allocation9 + $0x28] sm:$0xff]
        %v1438 = vld [vmem:[#allocation9 + $0x30] sm:$0xff]
        %v1439 = vld [vmem:[#allocation9 + $0x38] sm:$0xff]
        %v1440 = vld [vmem:[#allocation9 + $0x40] sm:$0xff]
        %v1441 = vld [vmem:[#allocation9 + $0x48] sm:$0xff]
        %v1442 = vld [vmem:[#allocation9 + $0x50] sm:$0xff]
        %v1443 = vld [vmem:[#allocation9 + $0x58] sm:$0xff]
        %v1444 = vld [vmem:[#allocation9 + $0x60] sm:$0xff]
        %v1445 = vld [vmem:[#allocation9 + $0x68] sm:$0xff]
        %v1446 = vld [vmem:[#allocation9 + $0x70] sm:$0xff]
        %v1447 = vld [vmem:[#allocation9 + $0x78] sm:$0xff]
        %v1448 = vld [vmem:[#allocation9 + $0x80] sm:$0xff]
        %v1449 = vld [vmem:[#allocation9 + $0x88] sm:$0xff]
        %v1450 = vld [vmem:[#allocation9 + $0x90] sm:$0xff]
        %v1451 = vld [vmem:[#allocation9 + $0x98] sm:$0xff]
        %v1452 = vld [vmem:[#allocation9 + $0xa0] sm:$0xff]
        %v1453 = vld [vmem:[#allocation9 + $0xa8] sm:$0xff]
        %v1454 = vld [vmem:[#allocation9 + $0xb0] sm:$0xff]
        %v1455 = vld [vmem:[#allocation9 + $0xb8] sm:$0xff]
        %v1456 = vld [vmem:[#allocation9 + $0xc0] sm:$0xff]
        %v1457 = vld [vmem:[#allocation9 + $0xc8] sm:$0xff]
        %v1458 = vld [vmem:[#allocation9 + $0xd0] sm:$0xff]
        %v1459 = vld [vmem:[#allocation9 + $0xd8] sm:$0xff]
        %v1460 = vld [vmem:[#allocation9 + $0xe0] sm:$0xff]
        %v1461 = vld [vmem:[#allocation9 + $0xe8] sm:$0xff]
        %v1462 = vld [vmem:[#allocation9 + $0xf0] sm:$0xff]
        %v1463 = vld [vmem:[#allocation9 + $0xf8] sm:$0xff]
        %v1464 = vld [vmem:[#allocation9 + $0x100] sm:$0xff]
        %v1465 = vld [vmem:[#allocation9 + $0x108] sm:$0xff]
        %v1466 = vld [vmem:[#allocation9 + $0x110] sm:$0xff]
        %v1467 = vld [vmem:[#allocation9 + $0x118] sm:$0xff]
        %v1468 = vld [vmem:[#allocation9 + $0x120] sm:$0xff]
        %v1469 = vld [vmem:[#allocation9 + $0x128] sm:$0xff]
        %v1470 = vld [vmem:[#allocation9 + $0x130] sm:$0xff]
        %v1471 = vld [vmem:[#allocation9 + $0x138] sm:$0xff]
        %v1472 = vld [vmem:[#allocation9 + $0x140] sm:$0xff]
        %v1473 = vld [vmem:[#allocation9 + $0x148] sm:$0xff]
        %v1474 = vld [vmem:[#allocation9 + $0x150] sm:$0xff]
        %v1475 = vld [vmem:[#allocation9 + $0x158] sm:$0xff]
        %v1476 = vld [vmem:[#allocation9 + $0x160] sm:$0xff]
        %v1477 = vld [vmem:[#allocation9 + $0x168] sm:$0xff]
        %v1478 = vld [vmem:[#allocation9 + $0x170] sm:$0xff]
        %v1479 = vld [vmem:[#allocation9 + $0x178] sm:$0xff]
        %v1480 = vld [vmem:[#allocation9 + $0x180] sm:$0xff]
        %v1481 = vld [vmem:[#allocation9 + $0x188] sm:$0xff]
        %v1482 = vld [vmem:[#allocation9 + $0x190] sm:$0xff]
        %v1483 = vld [vmem:[#allocation9 + $0x198] sm:$0xff]
        %v1484 = vld [vmem:[#allocation9 + $0x1a0] sm:$0xff]
        %v1485 = vld [vmem:[#allocation9 + $0x1a8] sm:$0xff]
        %v1486 = vld [vmem:[#allocation9 + $0x1b0] sm:$0xff]
        %v1487 = vld [vmem:[#allocation9 + $0x1b8] sm:$0xff]
        %v1488 = vld [vmem:[#allocation9 + $0x1c0] sm:$0xff]
        %v1489 = vld [vmem:[#allocation9 + $0x1c8] sm:$0xff]
        %v1490 = vld [vmem:[#allocation9 + $0x1d0] sm:$0xff]
        %v1491 = vld [vmem:[#allocation9 + $0x1d8] sm:$0xff]
        %v1492 = vld [vmem:[#allocation9 + $0x1e0] sm:$0xff]
        %v1493 = vld [vmem:[#allocation9 + $0x1e8] sm:$0xff]
        %v1494 = vld [vmem:[#allocation9 + $0x1f0] sm:$0xff]
        %v1495 = vld [vmem:[#allocation9 + $0x1f8] sm:$0xff]
        %v1496 = vld [vmem:[#allocation9 + $0x200] sm:$0xff]
        %v1497 = vld [vmem:[#allocation9 + $0x208] sm:$0xff]
        %v1498 = vld [vmem:[#allocation9 + $0x210] sm:$0xff]
        %v1499 = vld [vmem:[#allocation9 + $0x218] sm:$0xff]
        %v1500 = vld [vmem:[#allocation9 + $0x220] sm:$0xff]
        %v1501 = vld [vmem:[#allocation9 + $0x228] sm:$0xff]
        %v1502 = vld [vmem:[#allocation9 + $0x230] sm:$0xff]
        %v1503 = vld [vmem:[#allocation9 + $0x238] sm:$0xff]
        %v1504 = vld [vmem:[#allocation9 + $0x240] sm:$0xff]
        %v1505 = vld [vmem:[#allocation9 + $0x248] sm:$0xff]
        %v1506 = vld [vmem:[#allocation9 + $0x250] sm:$0xff]
        %v1507 = vld [vmem:[#allocation9 + $0x258] sm:$0xff]
        %v1508 = vld [vmem:[#allocation9 + $0x260] sm:$0xff]
        %v1509 = vld [vmem:[#allocation9 + $0x268] sm:$0xff]
        %v1510 = vld [vmem:[#allocation9 + $0x270] sm:$0xff]
        %v1511 = vld [vmem:[#allocation9 + $0x278] sm:$0xff]
        %v1512 = vld [vmem:[#allocation9 + $0x280] sm:$0xff]
        %v1513 = vld [vmem:[#allocation9 + $0x288] sm:$0xff]
        %v1514 = vld [vmem:[#allocation9 + $0x290] sm:$0xff]
        %v1515 = vld [vmem:[#allocation9 + $0x298] sm:$0xff]
        %v1516 = vld [vmem:[#allocation9 + $0x2a0] sm:$0xff]
        %v1517 = vld [vmem:[#allocation9 + $0x2a8] sm:$0xff]
        %v1518 = vld [vmem:[#allocation9 + $0x2b0] sm:$0xff]
        %v1519 = vld [vmem:[#allocation9 + $0x2b8] sm:$0xff]
        %v1520 = vld [vmem:[#allocation9 + $0x2c0] sm:$0xff]
        %v1521 = vld [vmem:[#allocation9 + $0x2c8] sm:$0xff]
        %v1522 = vld [vmem:[#allocation9 + $0x2d0] sm:$0xff]
        %v1523 = vld [vmem:[#allocation9 + $0x2d8] sm:$0xff]
        %v1524 = vld [vmem:[#allocation9 + $0x2e0] sm:$0xff]
        %v1525 = vld [vmem:[#allocation9 + $0x2e8] sm:$0xff]
        %v1526 = vld [vmem:[#allocation9 + $0x2f0] sm:$0xff]
        %v1527 = vld [vmem:[#allocation9 + $0x2f8] sm:$0xff]
        %v1528 = vld [vmem:[#allocation9 + $0x300] sm:$0xff]
        %v1529 = vld [vmem:[#allocation9 + $0x308] sm:$0xff]
        %v1530 = vld [vmem:[#allocation9 + $0x310] sm:$0xff]
        %v1531 = vld [vmem:[#allocation9 + $0x318] sm:$0xff]
        %v1532 = vld [vmem:[#allocation9 + $0x320] sm:$0xff]
        %v1533 = vld [vmem:[#allocation9 + $0x328] sm:$0xff]
        %v1534 = vld [vmem:[#allocation9 + $0x330] sm:$0xff]
        %v1535 = vld [vmem:[#allocation9 + $0x338] sm:$0xff]
        %v1536 = vld [vmem:[#allocation9 + $0x340] sm:$0xff]
        %v1537 = vld [vmem:[#allocation9 + $0x348] sm:$0xff]
        %v1538 = vld [vmem:[#allocation9 + $0x350] sm:$0xff]
        %v1539 = vld [vmem:[#allocation9 + $0x358] sm:$0xff]
        %v1540 = vld [vmem:[#allocation9 + $0x360] sm:$0xff]
        %v1541 = vld [vmem:[#allocation9 + $0x368] sm:$0xff]
        %v1542 = vld [vmem:[#allocation9 + $0x370] sm:$0xff]
        %v1543 = vld [vmem:[#allocation9 + $0x378] sm:$0xff]
        %v1544 = vld [vmem:[#allocation9 + $0x380] sm:$0xff]
        %v1545 = vld [vmem:[#allocation9 + $0x388] sm:$0xff]
        %v1546 = vld [vmem:[#allocation9 + $0x390] sm:$0xff]
        %v1547 = vld [vmem:[#allocation9 + $0x398] sm:$0xff]
        %v1548 = vld [vmem:[#allocation9 + $0x3a0] sm:$0xff]
        %v1549 = vld [vmem:[#allocation9 + $0x3a8] sm:$0xff]
        %v1550 = vld [vmem:[#allocation9 + $0x3b0] sm:$0xff]
        %v1551 = vld [vmem:[#allocation9 + $0x3b8] sm:$0xff]
        %v1552 = vld [vmem:[#allocation9 + $0x3c0] sm:$0xff]
        %v1553 = vld [vmem:[#allocation9 + $0x3c8] sm:$0xff]
        %v1554 = vld [vmem:[#allocation9 + $0x3d0] sm:$0xff]
        %v1555 = vld [vmem:[#allocation9 + $0x3d8] sm:$0xff]
        %v1556 = vld [vmem:[#allocation9 + $0x3e0] sm:$0xff]
        %v1557 = vld [vmem:[#allocation9 + $0x3e8] sm:$0xff]
        %v1558 = vld [vmem:[#allocation9 + $0x3f0] sm:$0xff]
        %v1559 = vld [vmem:[#allocation9 + $0x3f8] sm:$0xff]
        %1560 = vmatprep.subr.mxu0 %v1463
        %1561 = vmatpush1.msra.mxu0 %v1462
        %1562 = vmatprep.subr.mxu0 %v1461
        %1563 = vmatpush1.msra.mxu0 %v1460
        %1564 = vmatprep.subr.mxu0 %v1459
        %1565 = vmatpush1.msra.mxu0 %v1458
        %1566 = vmatprep.subr.mxu0 %v1457
        %1567 = vmatpush1.msra.mxu0 %v1456
        %1568 = vmatprep.subr.mxu0 %v1455
        %1569 = vmatpush1.msra.mxu0 %v1454
        %1570 = vmatprep.subr.mxu0 %v1453
        %1571 = vmatpush1.msra.mxu0 %v1452
        %1572 = vmatprep.subr.mxu0 %v1451
        %1573 = vmatpush1.msra.mxu0 %v1450
        %1574 = vmatprep.subr.mxu0 %v1449
        %1575 = vmatpush1.msra.mxu0 %v1448
        %1576 = vmatprep.subr.mxu0 %v1447
        %1577 = vmatpush1.msra.mxu0 %v1446
        %1578 = vmatprep.subr.mxu0 %v1445
        %1579 = vmatpush1.msra.mxu0 %v1444
        %1580 = vmatprep.subr.mxu0 %v1443
        %1581 = vmatpush1.msra.mxu0 %v1442
        %1582 = vmatprep.subr.mxu0 %v1441
        %1583 = vmatpush1.msra.mxu0 %v1440
        %1584 = vmatprep.subr.mxu0 %v1439
        %1585 = vmatpush1.msra.mxu0 %v1438
        %1586 = vmatprep.subr.mxu0 %v1437
        %1587 = vmatpush1.msra.mxu0 %v1436
        %1588 = vmatprep.subr.mxu0 %v1435
        %1589 = vmatpush1.msra.mxu0 %v1434
        %1590 = vmatprep.subr.mxu0 %v1433
        %1591 = vmatpush1.msra.mxu0 %v1432
        %1592 = vmatprep.subr.mxu0 %v1495
        %1593 = vmatpush2.msra.mxu0 %v1494
        %1594 = vmatprep.subr.mxu0 %v1493
        %1595 = vmatpush2.msra.mxu0 %v1492
        %1596 = vmatprep.subr.mxu0 %v1491
        %1597 = vmatpush2.msra.mxu0 %v1490
        %1598 = vmatprep.subr.mxu0 %v1489
        %1599 = vmatpush2.msra.mxu0 %v1488
        %1600 = vmatprep.subr.mxu0 %v1487
        %1601 = vmatpush2.msra.mxu0 %v1486
        %1602 = vmatprep.subr.mxu0 %v1485
        %1603 = vmatpush2.msra.mxu0 %v1484
        %1604 = vmatprep.subr.mxu0 %v1483
        %1605 = vmatpush2.msra.mxu0 %v1482
        %1606 = vmatprep.subr.mxu0 %v1481
        %1607 = vmatpush2.msra.mxu0 %v1480
        %1608 = vmatprep.subr.mxu0 %v1479
        %1609 = vmatpush2.msra.mxu0 %v1478
        %1610 = vmatprep.subr.mxu0 %v1477
        %1611 = vmatpush2.msra.mxu0 %v1476
        %1612 = vmatprep.subr.mxu0 %v1475
        %1613 = vmatpush2.msra.mxu0 %v1474
        %1614 = vmatprep.subr.mxu0 %v1473
        %1615 = vmatpush2.msra.mxu0 %v1472
        %1616 = vmatprep.subr.mxu0 %v1471
        %1617 = vmatpush2.msra.mxu0 %v1470
        %1618 = vmatprep.subr.mxu0 %v1469
        %1619 = vmatpush2.msra.mxu0 %v1468
        %1620 = vmatprep.subr.mxu0 %v1467
        %1621 = vmatpush2.msra.mxu0 %v1466
        %1622 = vmatprep.subr.mxu0 %v1465
        %1623 = vmatpush2.msra.mxu0 %v1464
        %1624 = vmatprep.mubr.f32.mxu0 %v1337
        %1625 = vmatmul.mubr.f32.gmra.mxu0 %v1336
        %v1626 = vpop.f32.mrf.mxu0
        %v1627 = vadd.f32 0.0, %v1626
        %v1628 = vpop.f32.mrf.mxu0
        %v1629 = vadd.f32 0.0, %v1628
        %1630 = vmatprep.mubr.f32.mxu0 %v1341
        %1631 = vmatmul.mubr.f32.gmra.mxu0 %v1340
        %v1632 = vpop.f32.mrf.mxu0
        %v1633 = vadd.f32 0.0, %v1632
        %v1634 = vpop.f32.mrf.mxu0
        %v1635 = vadd.f32 0.0, %v1634
        %1636 = vmatprep.mubr.f32.mxu0 %v1345
        %1637 = vmatmul.mubr.f32.gmra.mxu0 %v1344
        %v1638 = vpop.f32.mrf.mxu0
        %v1639 = vadd.f32 0.0, %v1638
        %v1640 = vpop.f32.mrf.mxu0
        %v1641 = vadd.f32 0.0, %v1640
        %1642 = vmatprep.mubr.f32.mxu0 %v1349
        %1643 = vmatmul.mubr.f32.gmra.mxu0 %v1348
        %v1644 = vpop.f32.mrf.mxu0
        %v1645 = vadd.f32 0.0, %v1644
        %v1646 = vpop.f32.mrf.mxu0
        %v1647 = vadd.f32 0.0, %v1646
        %1648 = vmatprep.mubr.f32.mxu0 %v1353
        %1649 = vmatmul.mubr.f32.gmra.mxu0 %v1352
        %v1650 = vpop.f32.mrf.mxu0
        %v1651 = vadd.f32 0.0, %v1650
        %v1652 = vpop.f32.mrf.mxu0
        %v1653 = vadd.f32 0.0, %v1652
        %1654 = vmatprep.mubr.f32.mxu0 %v1357
        %1655 = vmatmul.mubr.f32.gmra.mxu0 %v1356
        %v1656 = vpop.f32.mrf.mxu0
        %v1657 = vadd.f32 0.0, %v1656
        %v1658 = vpop.f32.mrf.mxu0
        %v1659 = vadd.f32 0.0, %v1658
        %1660 = vmatprep.mubr.f32.mxu0 %v1361
        %1661 = vmatmul.mubr.f32.gmra.mxu0 %v1360
        %v1662 = vpop.f32.mrf.mxu0
        %v1663 = vadd.f32 0.0, %v1662
        %v1664 = vpop.f32.mrf.mxu0
        %v1665 = vadd.f32 0.0, %v1664
        %1666 = vmatprep.mubr.f32.mxu0 %v1365
        %1667 = vmatmul.mubr.f32.gmra.mxu0 %v1364
        %v1668 = vpop.f32.mrf.mxu0
        %v1669 = vadd.f32 0.0, %v1668
        %v1670 = vpop.f32.mrf.mxu0
        %v1671 = vadd.f32 0.0, %v1670
        %1672 = vmatprep.mubr.f32.mxu0 %v1369
        %1673 = vmatmul.mubr.f32.gmra.mxu0 %v1368
        %v1674 = vpop.f32.mrf.mxu0
        %v1675 = vadd.f32 0.0, %v1674
        %v1676 = vpop.f32.mrf.mxu0
        %v1677 = vadd.f32 0.0, %v1676
        %1678 = vmatprep.mubr.f32.mxu0 %v1373
        %1679 = vmatmul.mubr.f32.gmra.mxu0 %v1372
        %v1680 = vpop.f32.mrf.mxu0
        %v1681 = vadd.f32 0.0, %v1680
        %v1682 = vpop.f32.mrf.mxu0
        %v1683 = vadd.f32 0.0, %v1682
        %1684 = vmatprep.mubr.f32.mxu0 %v1377
        %1685 = vmatmul.mubr.f32.gmra.mxu0 %v1376
        %v1686 = vpop.f32.mrf.mxu0
        %v1687 = vadd.f32 0.0, %v1686
        %v1688 = vpop.f32.mrf.mxu0
        %v1689 = vadd.f32 0.0, %v1688
        %1690 = vmatprep.mubr.f32.mxu0 %v1381
        %1691 = vmatmul.mubr.f32.gmra.mxu0 %v1380
        %v1692 = vpop.f32.mrf.mxu0
        %v1693 = vadd.f32 0.0, %v1692
        %v1694 = vpop.f32.mrf.mxu0
        %v1695 = vadd.f32 0.0, %v1694
        %1696 = vmatprep.mubr.f32.mxu0 %v1385
        %1697 = vmatmul.mubr.f32.gmra.mxu0 %v1384
        %v1698 = vpop.f32.mrf.mxu0
        %v1699 = vadd.f32 0.0, %v1698
        %v1700 = vpop.f32.mrf.mxu0
        %v1701 = vadd.f32 0.0, %v1700
        %1702 = vmatprep.mubr.f32.mxu0 %v1389
        %1703 = vmatmul.mubr.f32.gmra.mxu0 %v1388
        %v1704 = vpop.f32.mrf.mxu0
        %v1705 = vadd.f32 0.0, %v1704
        %v1706 = vpop.f32.mrf.mxu0
        %v1707 = vadd.f32 0.0, %v1706
        %1708 = vmatprep.mubr.f32.mxu0 %v1393
        %1709 = vmatmul.mubr.f32.gmra.mxu0 %v1392
        %v1710 = vpop.f32.mrf.mxu0
        %v1711 = vadd.f32 0.0, %v1710
        %v1712 = vpop.f32.mrf.mxu0
        %v1713 = vadd.f32 0.0, %v1712
        %1714 = vmatprep.mubr.f32.mxu0 %v1397
        %1715 = vmatmul.mubr.f32.gmra.mxu0 %v1396
        %v1716 = vpop.f32.mrf.mxu0
        %v1717 = vadd.f32 0.0, %v1716
        %v1718 = vpop.f32.mrf.mxu0
        %v1719 = vadd.f32 0.0, %v1718
        %1720 = vdwg.mxu0
        %1721 = vmatprep.subr.mxu0 %v1527
        %1722 = vmatpush1.msra.mxu0 %v1526
        %1723 = vmatprep.subr.mxu0 %v1525
        %1724 = vmatpush1.msra.mxu0 %v1524
        %1725 = vmatprep.subr.mxu0 %v1523
        %1726 = vmatpush1.msra.mxu0 %v1522
        %1727 = vmatprep.subr.mxu0 %v1521
        %1728 = vmatpush1.msra.mxu0 %v1520
        %1729 = vmatprep.subr.mxu0 %v1519
        %1730 = vmatpush1.msra.mxu0 %v1518
        %1731 = vmatprep.subr.mxu0 %v1517
        %1732 = vmatpush1.msra.mxu0 %v1516
        %1733 = vmatprep.subr.mxu0 %v1515
        %1734 = vmatpush1.msra.mxu0 %v1514
        %1735 = vmatprep.subr.mxu0 %v1513
        %1736 = vmatpush1.msra.mxu0 %v1512
        %1737 = vmatprep.subr.mxu0 %v1511
        %1738 = vmatpush1.msra.mxu0 %v1510
        %1739 = vmatprep.subr.mxu0 %v1509
        %1740 = vmatpush1.msra.mxu0 %v1508
        %1741 = vmatprep.subr.mxu0 %v1507
        %1742 = vmatpush1.msra.mxu0 %v1506
        %1743 = vmatprep.subr.mxu0 %v1505
        %1744 = vmatpush1.msra.mxu0 %v1504
        %1745 = vmatprep.subr.mxu0 %v1503
        %1746 = vmatpush1.msra.mxu0 %v1502
        %1747 = vmatprep.subr.mxu0 %v1501
        %1748 = vmatpush1.msra.mxu0 %v1500
        %1749 = vmatprep.subr.mxu0 %v1499
        %1750 = vmatpush1.msra.mxu0 %v1498
        %1751 = vmatprep.subr.mxu0 %v1497
        %1752 = vmatpush1.msra.mxu0 %v1496
        %1753 = vmatprep.subr.mxu0 %v1559
        %1754 = vmatpush2.msra.mxu0 %v1558
        %1755 = vmatprep.subr.mxu0 %v1557
        %1756 = vmatpush2.msra.mxu0 %v1556
        %1757 = vmatprep.subr.mxu0 %v1555
        %1758 = vmatpush2.msra.mxu0 %v1554
        %1759 = vmatprep.subr.mxu0 %v1553
        %1760 = vmatpush2.msra.mxu0 %v1552
        %1761 = vmatprep.subr.mxu0 %v1551
        %1762 = vmatpush2.msra.mxu0 %v1550
        %1763 = vmatprep.subr.mxu0 %v1549
        %1764 = vmatpush2.msra.mxu0 %v1548
        %1765 = vmatprep.subr.mxu0 %v1547
        %1766 = vmatpush2.msra.mxu0 %v1546
        %1767 = vmatprep.subr.mxu0 %v1545
        %1768 = vmatpush2.msra.mxu0 %v1544
        %1769 = vmatprep.subr.mxu0 %v1543
        %1770 = vmatpush2.msra.mxu0 %v1542
        %1771 = vmatprep.subr.mxu0 %v1541
        %1772 = vmatpush2.msra.mxu0 %v1540
        %1773 = vmatprep.subr.mxu0 %v1539
        %1774 = vmatpush2.msra.mxu0 %v1538
        %1775 = vmatprep.subr.mxu0 %v1537
        %1776 = vmatpush2.msra.mxu0 %v1536
        %1777 = vmatprep.subr.mxu0 %v1535
        %1778 = vmatpush2.msra.mxu0 %v1534
        %1779 = vmatprep.subr.mxu0 %v1533
        %1780 = vmatpush2.msra.mxu0 %v1532
        %1781 = vmatprep.subr.mxu0 %v1531
        %1782 = vmatpush2.msra.mxu0 %v1530
        %1783 = vmatprep.subr.mxu0 %v1529
        %1784 = vmatpush2.msra.mxu0 %v1528
        %1785 = vmatprep.mubr.f32.mxu0 %v1339
        %1786 = vmatmul.mubr.f32.gmra.mxu0 %v1338
        %v1787 = vpop.f32.mrf.mxu0
        %v1788 = vadd.f32 %v1627, %v1787
        %v1789 = vpop.f32.mrf.mxu0
        %v1790 = vadd.f32 %v1629, %v1789
        %1791 = vmatprep.mubr.f32.mxu0 %v1343
        %1792 = vmatmul.mubr.f32.gmra.mxu0 %v1342
        %v1793 = vpop.f32.mrf.mxu0
        %v1794 = vadd.f32 %v1633, %v1793
        %v1795 = vpop.f32.mrf.mxu0
        %v1796 = vadd.f32 %v1635, %v1795
        %1797 = vmatprep.mubr.f32.mxu0 %v1347
        %1798 = vmatmul.mubr.f32.gmra.mxu0 %v1346
        %v1799 = vpop.f32.mrf.mxu0
        %v1800 = vadd.f32 %v1639, %v1799
        %v1801 = vpop.f32.mrf.mxu0
        %v1802 = vadd.f32 %v1641, %v1801
        %1803 = vmatprep.mubr.f32.mxu0 %v1351
        %1804 = vmatmul.mubr.f32.gmra.mxu0 %v1350
        %v1805 = vpop.f32.mrf.mxu0
        %v1806 = vadd.f32 %v1645, %v1805
        %v1807 = vpop.f32.mrf.mxu0
        %v1808 = vadd.f32 %v1647, %v1807
        %1809 = vmatprep.mubr.f32.mxu0 %v1355
        %1810 = vmatmul.mubr.f32.gmra.mxu0 %v1354
        %v1811 = vpop.f32.mrf.mxu0
        %v1812 = vadd.f32 %v1651, %v1811
        %v1813 = vpop.f32.mrf.mxu0
        %v1814 = vadd.f32 %v1653, %v1813
        %1815 = vmatprep.mubr.f32.mxu0 %v1359
        %1816 = vmatmul.mubr.f32.gmra.mxu0 %v1358
        %v1817 = vpop.f32.mrf.mxu0
        %v1818 = vadd.f32 %v1657, %v1817
        %v1819 = vpop.f32.mrf.mxu0
        %v1820 = vadd.f32 %v1659, %v1819
        %1821 = vmatprep.mubr.f32.mxu0 %v1363
        %1822 = vmatmul.mubr.f32.gmra.mxu0 %v1362
        %v1823 = vpop.f32.mrf.mxu0
        %v1824 = vadd.f32 %v1663, %v1823
        %v1825 = vpop.f32.mrf.mxu0
        %v1826 = vadd.f32 %v1665, %v1825
        %1827 = vmatprep.mubr.f32.mxu0 %v1367
        %1828 = vmatmul.mubr.f32.gmra.mxu0 %v1366
        %v1829 = vpop.f32.mrf.mxu0
        %v1830 = vadd.f32 %v1669, %v1829
        %v1831 = vpop.f32.mrf.mxu0
        %v1832 = vadd.f32 %v1671, %v1831
        %1833 = vmatprep.mubr.f32.mxu0 %v1371
        %1834 = vmatmul.mubr.f32.gmra.mxu0 %v1370
        %v1835 = vpop.f32.mrf.mxu0
        %v1836 = vadd.f32 %v1675, %v1835
        %v1837 = vpop.f32.mrf.mxu0
        %v1838 = vadd.f32 %v1677, %v1837
        %1839 = vmatprep.mubr.f32.mxu0 %v1375
        %1840 = vmatmul.mubr.f32.gmra.mxu0 %v1374
        %v1841 = vpop.f32.mrf.mxu0
        %v1842 = vadd.f32 %v1681, %v1841
        %v1843 = vpop.f32.mrf.mxu0
        %v1844 = vadd.f32 %v1683, %v1843
        %1845 = vmatprep.mubr.f32.mxu0 %v1379
        %1846 = vmatmul.mubr.f32.gmra.mxu0 %v1378
        %v1847 = vpop.f32.mrf.mxu0
        %v1848 = vadd.f32 %v1687, %v1847
        %v1849 = vpop.f32.mrf.mxu0
        %v1850 = vadd.f32 %v1689, %v1849
        %1851 = vmatprep.mubr.f32.mxu0 %v1383
        %1852 = vmatmul.mubr.f32.gmra.mxu0 %v1382
        %v1853 = vpop.f32.mrf.mxu0
        %v1854 = vadd.f32 %v1693, %v1853
        %v1855 = vpop.f32.mrf.mxu0
        %v1856 = vadd.f32 %v1695, %v1855
        %1857 = vmatprep.mubr.f32.mxu0 %v1387
        %1858 = vmatmul.mubr.f32.gmra.mxu0 %v1386
        %v1859 = vpop.f32.mrf.mxu0
        %v1860 = vadd.f32 %v1699, %v1859
        %v1861 = vpop.f32.mrf.mxu0
        %v1862 = vadd.f32 %v1701, %v1861
        %1863 = vmatprep.mubr.f32.mxu0 %v1391
        %1864 = vmatmul.mubr.f32.gmra.mxu0 %v1390
        %v1865 = vpop.f32.mrf.mxu0
        %v1866 = vadd.f32 %v1705, %v1865
        %v1867 = vpop.f32.mrf.mxu0
        %v1868 = vadd.f32 %v1707, %v1867
        %1869 = vmatprep.mubr.f32.mxu0 %v1395
        %1870 = vmatmul.mubr.f32.gmra.mxu0 %v1394
        %v1871 = vpop.f32.mrf.mxu0
        %v1872 = vadd.f32 %v1711, %v1871
        %v1873 = vpop.f32.mrf.mxu0
        %v1874 = vadd.f32 %v1713, %v1873
        %1875 = vmatprep.mubr.f32.mxu0 %v1399
        %1876 = vmatmul.mubr.f32.gmra.mxu0 %v1398
        %v1877 = vpop.f32.mrf.mxu0
        %v1878 = vadd.f32 %v1717, %v1877
        %v1879 = vpop.f32.mrf.mxu0
        %v1880 = vadd.f32 %v1719, %v1879
        %1881 = vdwg.mxu0
        %v1882 = vadd.f32 %v1400, %v1788
        %v1883 = vadd.f32 %v1401, %v1790
        %v1884 = vadd.f32 %v1402, %v1794
        %v1885 = vadd.f32 %v1403, %v1796
        %v1886 = vadd.f32 %v1404, %v1800
        %v1887 = vadd.f32 %v1405, %v1802
        %v1888 = vadd.f32 %v1406, %v1806
        %v1889 = vadd.f32 %v1407, %v1808
        %v1890 = vadd.f32 %v1408, %v1812
        %v1891 = vadd.f32 %v1409, %v1814
        %v1892 = vadd.f32 %v1410, %v1818
        %v1893 = vadd.f32 %v1411, %v1820
        %v1894 = vadd.f32 %v1412, %v1824
        %v1895 = vadd.f32 %v1413, %v1826
        %v1896 = vadd.f32 %v1414, %v1830
        %v1897 = vadd.f32 %v1415, %v1832
        %v1898 = vadd.f32 %v1416, %v1836
        %v1899 = vadd.f32 %v1417, %v1838
        %v1900 = vadd.f32 %v1418, %v1842
        %v1901 = vadd.f32 %v1419, %v1844
        %v1902 = vadd.f32 %v1420, %v1848
        %v1903 = vadd.f32 %v1421, %v1850
        %v1904 = vadd.f32 %v1422, %v1854
        %v1905 = vadd.f32 %v1423, %v1856
        %v1906 = vadd.f32 %v1424, %v1860
        %v1907 = vadd.f32 %v1425, %v1862
        %v1908 = vadd.f32 %v1426, %v1866
        %v1909 = vadd.f32 %v1427, %v1868
        %v1910 = vadd.f32 %v1428, %v1872
        %v1911 = vadd.f32 %v1429, %v1874
        %v1912 = vadd.f32 %v1430, %v1878
        %v1913 = vadd.f32 %v1431, %v1880
        %1914 = vst [vmem:[#allocation2] sm:$0xff] %v1882
        %1915 = vst [vmem:[#allocation2 + $0x8] sm:$0xff] %v1883
        %1916 = vst [vmem:[#allocation2 + $0x10] sm:$0xff] %v1884
        %1917 = vst [vmem:[#allocation2 + $0x18] sm:$0xff] %v1885
        %1918 = vst [vmem:[#allocation2 + $0x20] sm:$0xff] %v1886
        %1919 = vst [vmem:[#allocation2 + $0x28] sm:$0xff] %v1887
        %1920 = vst [vmem:[#allocation2 + $0x30] sm:$0xff] %v1888
        %1921 = vst [vmem:[#allocation2 + $0x38] sm:$0xff] %v1889
        %1922 = vst [vmem:[#allocation2 + $0x40] sm:$0xff] %v1890
        %1923 = vst [vmem:[#allocation2 + $0x48] sm:$0xff] %v1891
        %1924 = vst [vmem:[#allocation2 + $0x50] sm:$0xff] %v1892
        %1925 = vst [vmem:[#allocation2 + $0x58] sm:$0xff] %v1893
        %1926 = vst [vmem:[#allocation2 + $0x60] sm:$0xff] %v1894
        %1927 = vst [vmem:[#allocation2 + $0x68] sm:$0xff] %v1895
        %1928 = vst [vmem:[#allocation2 + $0x70] sm:$0xff] %v1896
        %1929 = vst [vmem:[#allocation2 + $0x78] sm:$0xff] %v1897
        %1930 = vst [vmem:[#allocation2 + $0x80] sm:$0xff] %v1898
        %1931 = vst [vmem:[#allocation2 + $0x88] sm:$0xff] %v1899
        %1932 = vst [vmem:[#allocation2 + $0x90] sm:$0xff] %v1900
        %1933 = vst [vmem:[#allocation2 + $0x98] sm:$0xff] %v1901
        %1934 = vst [vmem:[#allocation2 + $0xa0] sm:$0xff] %v1902
        %1935 = vst [vmem:[#allocation2 + $0xa8] sm:$0xff] %v1903
        %1936 = vst [vmem:[#allocation2 + $0xb0] sm:$0xff] %v1904
        %1937 = vst [vmem:[#allocation2 + $0xb8] sm:$0xff] %v1905
        %1938 = vst [vmem:[#allocation2 + $0xc0] sm:$0xff] %v1906
        %1939 = vst [vmem:[#allocation2 + $0xc8] sm:$0xff] %v1907
        %1940 = vst [vmem:[#allocation2 + $0xd0] sm:$0xff] %v1908
        %1941 = vst [vmem:[#allocation2 + $0xd8] sm:$0xff] %v1909
        %1942 = vst [vmem:[#allocation2 + $0xe0] sm:$0xff] %v1910
        %1943 = vst [vmem:[#allocation2 + $0xe8] sm:$0xff] %v1911
        %1944 = vst [vmem:[#allocation2 + $0xf0] sm:$0xff] %v1912
        %1945 = vst [vmem:[#allocation2 + $0xf8] sm:$0xff] %v1913
        %v1946 = vld [vmem:[#allocation6 + $0x20] sm:$0xff]
        %v1947 = vld [vmem:[#allocation6 + $0x28] sm:$0xff]
        %v1948 = vld [vmem:[#allocation6 + $0x30] sm:$0xff]
        %v1949 = vld [vmem:[#allocation6 + $0x38] sm:$0xff]
        %v1950 = vld [vmem:[#allocation6 + $0x60] sm:$0xff]
        %v1951 = vld [vmem:[#allocation6 + $0x68] sm:$0xff]
        %v1952 = vld [vmem:[#allocation6 + $0x70] sm:$0xff]
        %v1953 = vld [vmem:[#allocation6 + $0x78] sm:$0xff]
        %v1954 = vld [vmem:[#allocation6 + $0xa0] sm:$0xff]
        %v1955 = vld [vmem:[#allocation6 + $0xa8] sm:$0xff]
        %v1956 = vld [vmem:[#allocation6 + $0xb0] sm:$0xff]
        %v1957 = vld [vmem:[#allocation6 + $0xb8] sm:$0xff]
        %v1958 = vld [vmem:[#allocation6 + $0xe0] sm:$0xff]
        %v1959 = vld [vmem:[#allocation6 + $0xe8] sm:$0xff]
        %v1960 = vld [vmem:[#allocation6 + $0xf0] sm:$0xff]
        %v1961 = vld [vmem:[#allocation6 + $0xf8] sm:$0xff]
        %v1962 = vld [vmem:[#allocation6 + $0x120] sm:$0xff]
        %v1963 = vld [vmem:[#allocation6 + $0x128] sm:$0xff]
        %v1964 = vld [vmem:[#allocation6 + $0x130] sm:$0xff]
        %v1965 = vld [vmem:[#allocation6 + $0x138] sm:$0xff]
        %v1966 = vld [vmem:[#allocation6 + $0x160] sm:$0xff]
        %v1967 = vld [vmem:[#allocation6 + $0x168] sm:$0xff]
        %v1968 = vld [vmem:[#allocation6 + $0x170] sm:$0xff]
        %v1969 = vld [vmem:[#allocation6 + $0x178] sm:$0xff]
        %v1970 = vld [vmem:[#allocation6 + $0x1a0] sm:$0xff]
        %v1971 = vld [vmem:[#allocation6 + $0x1a8] sm:$0xff]
        %v1972 = vld [vmem:[#allocation6 + $0x1b0] sm:$0xff]
        %v1973 = vld [vmem:[#allocation6 + $0x1b8] sm:$0xff]
        %v1974 = vld [vmem:[#allocation6 + $0x1e0] sm:$0xff]
        %v1975 = vld [vmem:[#allocation6 + $0x1e8] sm:$0xff]
        %v1976 = vld [vmem:[#allocation6 + $0x1f0] sm:$0xff]
        %v1977 = vld [vmem:[#allocation6 + $0x1f8] sm:$0xff]
        %v1978 = vld [vmem:[#allocation6 + $0x220] sm:$0xff]
        %v1979 = vld [vmem:[#allocation6 + $0x228] sm:$0xff]
        %v1980 = vld [vmem:[#allocation6 + $0x230] sm:$0xff]
        %v1981 = vld [vmem:[#allocation6 + $0x238] sm:$0xff]
        %v1982 = vld [vmem:[#allocation6 + $0x260] sm:$0xff]
        %v1983 = vld [vmem:[#allocation6 + $0x268] sm:$0xff]
        %v1984 = vld [vmem:[#allocation6 + $0x270] sm:$0xff]
        %v1985 = vld [vmem:[#allocation6 + $0x278] sm:$0xff]
        %v1986 = vld [vmem:[#allocation6 + $0x2a0] sm:$0xff]
        %v1987 = vld [vmem:[#allocation6 + $0x2a8] sm:$0xff]
        %v1988 = vld [vmem:[#allocation6 + $0x2b0] sm:$0xff]
        %v1989 = vld [vmem:[#allocation6 + $0x2b8] sm:$0xff]
        %v1990 = vld [vmem:[#allocation6 + $0x2e0] sm:$0xff]
        %v1991 = vld [vmem:[#allocation6 + $0x2e8] sm:$0xff]
        %v1992 = vld [vmem:[#allocation6 + $0x2f0] sm:$0xff]
        %v1993 = vld [vmem:[#allocation6 + $0x2f8] sm:$0xff]
        %v1994 = vld [vmem:[#allocation6 + $0x320] sm:$0xff]
        %v1995 = vld [vmem:[#allocation6 + $0x328] sm:$0xff]
        %v1996 = vld [vmem:[#allocation6 + $0x330] sm:$0xff]
        %v1997 = vld [vmem:[#allocation6 + $0x338] sm:$0xff]
        %v1998 = vld [vmem:[#allocation6 + $0x360] sm:$0xff]
        %v1999 = vld [vmem:[#allocation6 + $0x368] sm:$0xff]
        %v2000 = vld [vmem:[#allocation6 + $0x370] sm:$0xff]
        %v2001 = vld [vmem:[#allocation6 + $0x378] sm:$0xff]
        %v2002 = vld [vmem:[#allocation6 + $0x3a0] sm:$0xff]
        %v2003 = vld [vmem:[#allocation6 + $0x3a8] sm:$0xff]
        %v2004 = vld [vmem:[#allocation6 + $0x3b0] sm:$0xff]
        %v2005 = vld [vmem:[#allocation6 + $0x3b8] sm:$0xff]
        %v2006 = vld [vmem:[#allocation6 + $0x3e0] sm:$0xff]
        %v2007 = vld [vmem:[#allocation6 + $0x3e8] sm:$0xff]
        %v2008 = vld [vmem:[#allocation6 + $0x3f0] sm:$0xff]
        %v2009 = vld [vmem:[#allocation6 + $0x3f8] sm:$0xff]
        %v2010 = vld [vmem:[#allocation6 + $0x420] sm:$0xff]
        %v2011 = vld [vmem:[#allocation6 + $0x428] sm:$0xff]
        %v2012 = vld [vmem:[#allocation6 + $0x430] sm:$0xff]
        %v2013 = vld [vmem:[#allocation6 + $0x438] sm:$0xff]
        %v2014 = vld [vmem:[#allocation6 + $0x460] sm:$0xff]
        %v2015 = vld [vmem:[#allocation6 + $0x468] sm:$0xff]
        %v2016 = vld [vmem:[#allocation6 + $0x470] sm:$0xff]
        %v2017 = vld [vmem:[#allocation6 + $0x478] sm:$0xff]
        %v2018 = vld [vmem:[#allocation6 + $0x4a0] sm:$0xff]
        %v2019 = vld [vmem:[#allocation6 + $0x4a8] sm:$0xff]
        %v2020 = vld [vmem:[#allocation6 + $0x4b0] sm:$0xff]
        %v2021 = vld [vmem:[#allocation6 + $0x4b8] sm:$0xff]
        %v2022 = vld [vmem:[#allocation6 + $0x4e0] sm:$0xff]
        %v2023 = vld [vmem:[#allocation6 + $0x4e8] sm:$0xff]
        %v2024 = vld [vmem:[#allocation6 + $0x4f0] sm:$0xff]
        %v2025 = vld [vmem:[#allocation6 + $0x4f8] sm:$0xff]
        %v2026 = vld [vmem:[#allocation6 + $0x520] sm:$0xff]
        %v2027 = vld [vmem:[#allocation6 + $0x528] sm:$0xff]
        %v2028 = vld [vmem:[#allocation6 + $0x530] sm:$0xff]
        %v2029 = vld [vmem:[#allocation6 + $0x538] sm:$0xff]
        %v2030 = vld [vmem:[#allocation6 + $0x560] sm:$0xff]
        %v2031 = vld [vmem:[#allocation6 + $0x568] sm:$0xff]
        %v2032 = vld [vmem:[#allocation6 + $0x570] sm:$0xff]
        %v2033 = vld [vmem:[#allocation6 + $0x578] sm:$0xff]
        %v2034 = vld [vmem:[#allocation6 + $0x5a0] sm:$0xff]
        %v2035 = vld [vmem:[#allocation6 + $0x5a8] sm:$0xff]
        %v2036 = vld [vmem:[#allocation6 + $0x5b0] sm:$0xff]
        %v2037 = vld [vmem:[#allocation6 + $0x5b8] sm:$0xff]
        %v2038 = vld [vmem:[#allocation6 + $0x5e0] sm:$0xff]
        %v2039 = vld [vmem:[#allocation6 + $0x5e8] sm:$0xff]
        %v2040 = vld [vmem:[#allocation6 + $0x5f0] sm:$0xff]
        %v2041 = vld [vmem:[#allocation6 + $0x5f8] sm:$0xff]
        %v2042 = vld [vmem:[#allocation6 + $0x620] sm:$0xff]
        %v2043 = vld [vmem:[#allocation6 + $0x628] sm:$0xff]
        %v2044 = vld [vmem:[#allocation6 + $0x630] sm:$0xff]
        %v2045 = vld [vmem:[#allocation6 + $0x638] sm:$0xff]
        %v2046 = vld [vmem:[#allocation6 + $0x660] sm:$0xff]
        %v2047 = vld [vmem:[#allocation6 + $0x668] sm:$0xff]
        %v2048 = vld [vmem:[#allocation6 + $0x670] sm:$0xff]
        %v2049 = vld [vmem:[#allocation6 + $0x678] sm:$0xff]
        %v2050 = vld [vmem:[#allocation6 + $0x6a0] sm:$0xff]
        %v2051 = vld [vmem:[#allocation6 + $0x6a8] sm:$0xff]
        %v2052 = vld [vmem:[#allocation6 + $0x6b0] sm:$0xff]
        %v2053 = vld [vmem:[#allocation6 + $0x6b8] sm:$0xff]
        %v2054 = vld [vmem:[#allocation6 + $0x6e0] sm:$0xff]
        %v2055 = vld [vmem:[#allocation6 + $0x6e8] sm:$0xff]
        %v2056 = vld [vmem:[#allocation6 + $0x6f0] sm:$0xff]
        %v2057 = vld [vmem:[#allocation6 + $0x6f8] sm:$0xff]
        %v2058 = vld [vmem:[#allocation6 + $0x720] sm:$0xff]
        %v2059 = vld [vmem:[#allocation6 + $0x728] sm:$0xff]
        %v2060 = vld [vmem:[#allocation6 + $0x730] sm:$0xff]
        %v2061 = vld [vmem:[#allocation6 + $0x738] sm:$0xff]
        %v2062 = vld [vmem:[#allocation6 + $0x760] sm:$0xff]
        %v2063 = vld [vmem:[#allocation6 + $0x768] sm:$0xff]
        %v2064 = vld [vmem:[#allocation6 + $0x770] sm:$0xff]
        %v2065 = vld [vmem:[#allocation6 + $0x778] sm:$0xff]
        %v2066 = vld [vmem:[#allocation6 + $0x7a0] sm:$0xff]
        %v2067 = vld [vmem:[#allocation6 + $0x7a8] sm:$0xff]
        %v2068 = vld [vmem:[#allocation6 + $0x7b0] sm:$0xff]
        %v2069 = vld [vmem:[#allocation6 + $0x7b8] sm:$0xff]
        %v2070 = vld [vmem:[#allocation6 + $0x7e0] sm:$0xff]
        %v2071 = vld [vmem:[#allocation6 + $0x7e8] sm:$0xff]
        %v2072 = vld [vmem:[#allocation6 + $0x7f0] sm:$0xff]
        %v2073 = vld [vmem:[#allocation6 + $0x7f8] sm:$0xff]
        %v2074 = vld [vmem:[#allocation8 + $0x4] sm:$0xf]
        %v2076 = vlaneseq
        %v2077 = vshrl.u32 %v2076, 7
        %v2078 = vsub.s32 0, %v2077
        %v2079 = vrot.slane %v2074, %v2078
        %v2080 = vlaneseq
        %v2081 = vshrl.u32 %v2080, 7
        %v2082 = vsub.s32 1, %v2081
        %v2083 = vrot.slane %v2074, %v2082
        %v2084 = vlaneseq
        %v2085 = vshrl.u32 %v2084, 7
        %v2086 = vsub.s32 2, %v2085
        %v2087 = vrot.slane %v2074, %v2086
        %v2088 = vlaneseq
        %v2089 = vshrl.u32 %v2088, 7
        %v2090 = vsub.s32 3, %v2089
        %v2091 = vrot.slane %v2074, %v2090
        %2096 = vmatprep.subr.mxu0 %v2007
        %2097 = vmatpush1.msra.mxu0 %v2006
        %2098 = vmatprep.subr.mxu0 %v2003
        %2099 = vmatpush1.msra.mxu0 %v2002
        %2100 = vmatprep.subr.mxu0 %v1999
        %2101 = vmatpush1.msra.mxu0 %v1998
        %2102 = vmatprep.subr.mxu0 %v1995
        %2103 = vmatpush1.msra.mxu0 %v1994
        %2104 = vmatprep.subr.mxu0 %v1991
        %2105 = vmatpush1.msra.mxu0 %v1990
        %2106 = vmatprep.subr.mxu0 %v1987
        %2107 = vmatpush1.msra.mxu0 %v1986
        %2108 = vmatprep.subr.mxu0 %v1983
        %2109 = vmatpush1.msra.mxu0 %v1982
        %2110 = vmatprep.subr.mxu0 %v1979
        %2111 = vmatpush1.msra.mxu0 %v1978
        %2112 = vmatprep.subr.mxu0 %v1975
        %2113 = vmatpush1.msra.mxu0 %v1974
        %2114 = vmatprep.subr.mxu0 %v1971
        %2115 = vmatpush1.msra.mxu0 %v1970
        %2116 = vmatprep.subr.mxu0 %v1967
        %2117 = vmatpush1.msra.mxu0 %v1966
        %2118 = vmatprep.subr.mxu0 %v1963
        %2119 = vmatpush1.msra.mxu0 %v1962
        %2120 = vmatprep.subr.mxu0 %v1959
        %2121 = vmatpush1.msra.mxu0 %v1958
        %2122 = vmatprep.subr.mxu0 %v1955
        %2123 = vmatpush1.msra.mxu0 %v1954
        %2124 = vmatprep.subr.mxu0 %v1951
        %2125 = vmatpush1.msra.mxu0 %v1950
        %2126 = vmatprep.subr.mxu0 %v1947
        %2127 = vmatpush1.msra.mxu0 %v1946
        %2128 = vmatprep.subr.mxu0 %v2071
        %2129 = vmatpush2.msra.mxu0 %v2070
        %2130 = vmatprep.subr.mxu0 %v2067
        %2131 = vmatpush2.msra.mxu0 %v2066
        %2132 = vmatprep.subr.mxu0 %v2063
        %2133 = vmatpush2.msra.mxu0 %v2062
        %2134 = vmatprep.subr.mxu0 %v2059
        %2135 = vmatpush2.msra.mxu0 %v2058
        %2136 = vmatprep.subr.mxu0 %v2055
        %2137 = vmatpush2.msra.mxu0 %v2054
        %2138 = vmatprep.subr.mxu0 %v2051
        %2139 = vmatpush2.msra.mxu0 %v2050
        %2140 = vmatprep.subr.mxu0 %v2047
        %2141 = vmatpush2.msra.mxu0 %v2046
        %2142 = vmatprep.subr.mxu0 %v2043
        %2143 = vmatpush2.msra.mxu0 %v2042
        %2144 = vmatprep.subr.mxu0 %v2039
        %2145 = vmatpush2.msra.mxu0 %v2038
        %2146 = vmatprep.subr.mxu0 %v2035
        %2147 = vmatpush2.msra.mxu0 %v2034
        %2148 = vmatprep.subr.mxu0 %v2031
        %2149 = vmatpush2.msra.mxu0 %v2030
        %2150 = vmatprep.subr.mxu0 %v2027
        %2151 = vmatpush2.msra.mxu0 %v2026
        %2152 = vmatprep.subr.mxu0 %v2023
        %2153 = vmatpush2.msra.mxu0 %v2022
        %2154 = vmatprep.subr.mxu0 %v2019
        %2155 = vmatpush2.msra.mxu0 %v2018
        %2156 = vmatprep.subr.mxu0 %v2015
        %2157 = vmatpush2.msra.mxu0 %v2014
        %2158 = vmatprep.subr.mxu0 %v2011
        %2159 = vmatpush2.msra.mxu0 %v2010
        %2160 = vmatprep.mubr.f32.mxu0 %v289
        %2161 = vmatmul.mubr.f32.gmra.mxu0 %v288
        %v2162 = vpop.f32.mrf.mxu0
        %v2163 = vadd.f32 %v2079, %v2162
        %v2164 = vpop.f32.mrf.mxu0
        %v2165 = vadd.f32 %v2083, %v2164
        %2166 = vmatprep.mubr.f32.mxu0 %v291
        %2167 = vmatmul.mubr.f32.gmra.mxu0 %v290
        %v2168 = vpop.f32.mrf.mxu0
        %v2169 = vadd.f32 %v2079, %v2168
        %v2170 = vpop.f32.mrf.mxu0
        %v2171 = vadd.f32 %v2083, %v2170
        %2172 = vmatprep.mubr.f32.mxu0 %v293
        %2173 = vmatmul.mubr.f32.gmra.mxu0 %v292
        %v2174 = vpop.f32.mrf.mxu0
        %v2175 = vadd.f32 %v2079, %v2174
        %v2176 = vpop.f32.mrf.mxu0
        %v2177 = vadd.f32 %v2083, %v2176
        %2178 = vmatprep.mubr.f32.mxu0 %v295
        %2179 = vmatmul.mubr.f32.gmra.mxu0 %v294
        %v2180 = vpop.f32.mrf.mxu0
        %v2181 = vadd.f32 %v2079, %v2180
        %v2182 = vpop.f32.mrf.mxu0
        %v2183 = vadd.f32 %v2083, %v2182
        %2184 = vmatprep.mubr.f32.mxu0 %v297
        %2185 = vmatmul.mubr.f32.gmra.mxu0 %v296
        %v2186 = vpop.f32.mrf.mxu0
        %v2187 = vadd.f32 %v2079, %v2186
        %v2188 = vpop.f32.mrf.mxu0
        %v2189 = vadd.f32 %v2083, %v2188
        %2190 = vmatprep.mubr.f32.mxu0 %v299
        %2191 = vmatmul.mubr.f32.gmra.mxu0 %v298
        %v2192 = vpop.f32.mrf.mxu0
        %v2193 = vadd.f32 %v2079, %v2192
        %v2194 = vpop.f32.mrf.mxu0
        %v2195 = vadd.f32 %v2083, %v2194
        %2196 = vmatprep.mubr.f32.mxu0 %v301
        %2197 = vmatmul.mubr.f32.gmra.mxu0 %v300
        %v2198 = vpop.f32.mrf.mxu0
        %v2199 = vadd.f32 %v2079, %v2198
        %v2200 = vpop.f32.mrf.mxu0
        %v2201 = vadd.f32 %v2083, %v2200
        %2202 = vmatprep.mubr.f32.mxu0 %v303
        %2203 = vmatmul.mubr.f32.gmra.mxu0 %v302
        %v2204 = vpop.f32.mrf.mxu0
        %v2205 = vadd.f32 %v2079, %v2204
        %v2206 = vpop.f32.mrf.mxu0
        %v2207 = vadd.f32 %v2083, %v2206
        %2208 = vmatprep.mubr.f32.mxu0 %v305
        %2209 = vmatmul.mubr.f32.gmra.mxu0 %v304
        %v2210 = vpop.f32.mrf.mxu0
        %v2211 = vadd.f32 %v2079, %v2210
        %v2212 = vpop.f32.mrf.mxu0
        %v2213 = vadd.f32 %v2083, %v2212
        %2214 = vmatprep.mubr.f32.mxu0 %v307
        %2215 = vmatmul.mubr.f32.gmra.mxu0 %v306
        %v2216 = vpop.f32.mrf.mxu0
        %v2217 = vadd.f32 %v2079, %v2216
        %v2218 = vpop.f32.mrf.mxu0
        %v2219 = vadd.f32 %v2083, %v2218
        %2220 = vmatprep.mubr.f32.mxu0 %v309
        %2221 = vmatmul.mubr.f32.gmra.mxu0 %v308
        %v2222 = vpop.f32.mrf.mxu0
        %v2223 = vadd.f32 %v2079, %v2222
        %v2224 = vpop.f32.mrf.mxu0
        %v2225 = vadd.f32 %v2083, %v2224
        %2226 = vmatprep.mubr.f32.mxu0 %v311
        %2227 = vmatmul.mubr.f32.gmra.mxu0 %v310
        %v2228 = vpop.f32.mrf.mxu0
        %v2229 = vadd.f32 %v2079, %v2228
        %v2230 = vpop.f32.mrf.mxu0
        %v2231 = vadd.f32 %v2083, %v2230
        %2232 = vmatprep.mubr.f32.mxu0 %v313
        %2233 = vmatmul.mubr.f32.gmra.mxu0 %v312
        %v2234 = vpop.f32.mrf.mxu0
        %v2235 = vadd.f32 %v2079, %v2234
        %v2236 = vpop.f32.mrf.mxu0
        %v2237 = vadd.f32 %v2083, %v2236
        %2238 = vmatprep.mubr.f32.mxu0 %v315
        %2239 = vmatmul.mubr.f32.gmra.mxu0 %v314
        %v2240 = vpop.f32.mrf.mxu0
        %v2241 = vadd.f32 %v2079, %v2240
        %v2242 = vpop.f32.mrf.mxu0
        %v2243 = vadd.f32 %v2083, %v2242
        %2244 = vmatprep.mubr.f32.mxu0 %v317
        %2245 = vmatmul.mubr.f32.gmra.mxu0 %v316
        %v2246 = vpop.f32.mrf.mxu0
        %v2247 = vadd.f32 %v2079, %v2246
        %v2248 = vpop.f32.mrf.mxu0
        %v2249 = vadd.f32 %v2083, %v2248
        %2250 = vmatprep.mubr.f32.mxu0 %v319
        %2251 = vmatmul.mubr.f32.gmra.mxu0 %v318
        %v2252 = vpop.f32.mrf.mxu0
        %v2253 = vadd.f32 %v2079, %v2252
        %v2254 = vpop.f32.mrf.mxu0
        %v2255 = vadd.f32 %v2083, %v2254
        %2256 = vdwg.mxu0
        %2257 = vmatprep.subr.mxu0 %v2009
        %2258 = vmatpush1.msra.mxu0 %v2008
        %2259 = vmatprep.subr.mxu0 %v2005
        %2260 = vmatpush1.msra.mxu0 %v2004
        %2261 = vmatprep.subr.mxu0 %v2001
        %2262 = vmatpush1.msra.mxu0 %v2000
        %2263 = vmatprep.subr.mxu0 %v1997
        %2264 = vmatpush1.msra.mxu0 %v1996
        %2265 = vmatprep.subr.mxu0 %v1993
        %2266 = vmatpush1.msra.mxu0 %v1992
        %2267 = vmatprep.subr.mxu0 %v1989
        %2268 = vmatpush1.msra.mxu0 %v1988
        %2269 = vmatprep.subr.mxu0 %v1985
        %2270 = vmatpush1.msra.mxu0 %v1984
        %2271 = vmatprep.subr.mxu0 %v1981
        %2272 = vmatpush1.msra.mxu0 %v1980
        %2273 = vmatprep.subr.mxu0 %v1977
        %2274 = vmatpush1.msra.mxu0 %v1976
        %2275 = vmatprep.subr.mxu0 %v1973
        %2276 = vmatpush1.msra.mxu0 %v1972
        %2277 = vmatprep.subr.mxu0 %v1969
        %2278 = vmatpush1.msra.mxu0 %v1968
        %2279 = vmatprep.subr.mxu0 %v1965
        %2280 = vmatpush1.msra.mxu0 %v1964
        %2281 = vmatprep.subr.mxu0 %v1961
        %2282 = vmatpush1.msra.mxu0 %v1960
        %2283 = vmatprep.subr.mxu0 %v1957
        %2284 = vmatpush1.msra.mxu0 %v1956
        %2285 = vmatprep.subr.mxu0 %v1953
        %2286 = vmatpush1.msra.mxu0 %v1952
        %2287 = vmatprep.subr.mxu0 %v1949
        %2288 = vmatpush1.msra.mxu0 %v1948
        %2289 = vmatprep.subr.mxu0 %v2073
        %2290 = vmatpush2.msra.mxu0 %v2072
        %2291 = vmatprep.subr.mxu0 %v2069
        %2292 = vmatpush2.msra.mxu0 %v2068
        %2293 = vmatprep.subr.mxu0 %v2065
        %2294 = vmatpush2.msra.mxu0 %v2064
        %2295 = vmatprep.subr.mxu0 %v2061
        %2296 = vmatpush2.msra.mxu0 %v2060
        %2297 = vmatprep.subr.mxu0 %v2057
        %2298 = vmatpush2.msra.mxu0 %v2056
        %2299 = vmatprep.subr.mxu0 %v2053
        %2300 = vmatpush2.msra.mxu0 %v2052
        %2301 = vmatprep.subr.mxu0 %v2049
        %2302 = vmatpush2.msra.mxu0 %v2048
        %2303 = vmatprep.subr.mxu0 %v2045
        %2304 = vmatpush2.msra.mxu0 %v2044
        %2305 = vmatprep.subr.mxu0 %v2041
        %2306 = vmatpush2.msra.mxu0 %v2040
        %2307 = vmatprep.subr.mxu0 %v2037
        %2308 = vmatpush2.msra.mxu0 %v2036
        %2309 = vmatprep.subr.mxu0 %v2033
        %2310 = vmatpush2.msra.mxu0 %v2032
        %2311 = vmatprep.subr.mxu0 %v2029
        %2312 = vmatpush2.msra.mxu0 %v2028
        %2313 = vmatprep.subr.mxu0 %v2025
        %2314 = vmatpush2.msra.mxu0 %v2024
        %2315 = vmatprep.subr.mxu0 %v2021
        %2316 = vmatpush2.msra.mxu0 %v2020
        %2317 = vmatprep.subr.mxu0 %v2017
        %2318 = vmatpush2.msra.mxu0 %v2016
        %2319 = vmatprep.subr.mxu0 %v2013
        %2320 = vmatpush2.msra.mxu0 %v2012
        %2321 = vmatprep.mubr.f32.mxu0 %v289
        %2322 = vmatmul.mubr.f32.gmra.mxu0 %v288
        %v2323 = vpop.f32.mrf.mxu0
        %v2324 = vadd.f32 %v2087, %v2323
        %v2325 = vpop.f32.mrf.mxu0
        %v2326 = vadd.f32 %v2091, %v2325
        %2327 = vmatprep.mubr.f32.mxu0 %v291
        %2328 = vmatmul.mubr.f32.gmra.mxu0 %v290
        %v2329 = vpop.f32.mrf.mxu0
        %v2330 = vadd.f32 %v2087, %v2329
        %v2331 = vpop.f32.mrf.mxu0
        %v2332 = vadd.f32 %v2091, %v2331
        %2333 = vmatprep.mubr.f32.mxu0 %v293
        %2334 = vmatmul.mubr.f32.gmra.mxu0 %v292
        %v2335 = vpop.f32.mrf.mxu0
        %v2336 = vadd.f32 %v2087, %v2335
        %v2337 = vpop.f32.mrf.mxu0
        %v2338 = vadd.f32 %v2091, %v2337
        %2339 = vmatprep.mubr.f32.mxu0 %v295
        %2340 = vmatmul.mubr.f32.gmra.mxu0 %v294
        %v2341 = vpop.f32.mrf.mxu0
        %v2342 = vadd.f32 %v2087, %v2341
        %v2343 = vpop.f32.mrf.mxu0
        %v2344 = vadd.f32 %v2091, %v2343
        %2345 = vmatprep.mubr.f32.mxu0 %v297
        %2346 = vmatmul.mubr.f32.gmra.mxu0 %v296
        %v2347 = vpop.f32.mrf.mxu0
        %v2348 = vadd.f32 %v2087, %v2347
        %v2349 = vpop.f32.mrf.mxu0
        %v2350 = vadd.f32 %v2091, %v2349
        %2351 = vmatprep.mubr.f32.mxu0 %v299
        %2352 = vmatmul.mubr.f32.gmra.mxu0 %v298
        %v2353 = vpop.f32.mrf.mxu0
        %v2354 = vadd.f32 %v2087, %v2353
        %v2355 = vpop.f32.mrf.mxu0
        %v2356 = vadd.f32 %v2091, %v2355
        %2357 = vmatprep.mubr.f32.mxu0 %v301
        %2358 = vmatmul.mubr.f32.gmra.mxu0 %v300
        %v2359 = vpop.f32.mrf.mxu0
        %v2360 = vadd.f32 %v2087, %v2359
        %v2361 = vpop.f32.mrf.mxu0
        %v2362 = vadd.f32 %v2091, %v2361
        %2363 = vmatprep.mubr.f32.mxu0 %v303
        %2364 = vmatmul.mubr.f32.gmra.mxu0 %v302
        %v2365 = vpop.f32.mrf.mxu0
        %v2366 = vadd.f32 %v2087, %v2365
        %v2367 = vpop.f32.mrf.mxu0
        %v2368 = vadd.f32 %v2091, %v2367
        %2369 = vmatprep.mubr.f32.mxu0 %v305
        %2370 = vmatmul.mubr.f32.gmra.mxu0 %v304
        %v2371 = vpop.f32.mrf.mxu0
        %v2372 = vadd.f32 %v2087, %v2371
        %v2373 = vpop.f32.mrf.mxu0
        %v2374 = vadd.f32 %v2091, %v2373
        %2375 = vmatprep.mubr.f32.mxu0 %v307
        %2376 = vmatmul.mubr.f32.gmra.mxu0 %v306
        %v2377 = vpop.f32.mrf.mxu0
        %v2378 = vadd.f32 %v2087, %v2377
        %v2379 = vpop.f32.mrf.mxu0
        %v2380 = vadd.f32 %v2091, %v2379
        %2381 = vmatprep.mubr.f32.mxu0 %v309
        %2382 = vmatmul.mubr.f32.gmra.mxu0 %v308
        %v2383 = vpop.f32.mrf.mxu0
        %v2384 = vadd.f32 %v2087, %v2383
        %v2385 = vpop.f32.mrf.mxu0
        %v2386 = vadd.f32 %v2091, %v2385
        %2387 = vmatprep.mubr.f32.mxu0 %v311
        %2388 = vmatmul.mubr.f32.gmra.mxu0 %v310
        %v2389 = vpop.f32.mrf.mxu0
        %v2390 = vadd.f32 %v2087, %v2389
        %v2391 = vpop.f32.mrf.mxu0
        %v2392 = vadd.f32 %v2091, %v2391
        %2393 = vmatprep.mubr.f32.mxu0 %v313
        %2394 = vmatmul.mubr.f32.gmra.mxu0 %v312
        %v2395 = vpop.f32.mrf.mxu0
        %v2396 = vadd.f32 %v2087, %v2395
        %v2397 = vpop.f32.mrf.mxu0
        %v2398 = vadd.f32 %v2091, %v2397
        %2399 = vmatprep.mubr.f32.mxu0 %v315
        %2400 = vmatmul.mubr.f32.gmra.mxu0 %v314
        %v2401 = vpop.f32.mrf.mxu0
        %v2402 = vadd.f32 %v2087, %v2401
        %v2403 = vpop.f32.mrf.mxu0
        %v2404 = vadd.f32 %v2091, %v2403
        %2405 = vmatprep.mubr.f32.mxu0 %v317
        %2406 = vmatmul.mubr.f32.gmra.mxu0 %v316
        %v2407 = vpop.f32.mrf.mxu0
        %v2408 = vadd.f32 %v2087, %v2407
        %v2409 = vpop.f32.mrf.mxu0
        %v2410 = vadd.f32 %v2091, %v2409
        %2411 = vmatprep.mubr.f32.mxu0 %v319
        %2412 = vmatmul.mubr.f32.gmra.mxu0 %v318
        %v2413 = vpop.f32.mrf.mxu0
        %v2414 = vadd.f32 %v2087, %v2413
        %v2415 = vpop.f32.mrf.mxu0
        %v2416 = vadd.f32 %v2091, %v2415
        %2417 = vdwg.mxu0
        %v2418 = vmul.f32 %v2163, 0.5
        %v2419 = vmul.f32 %v2165, 0.5
        %v2420 = vmul.f32 %v2324, 0.5
        %v2421 = vmul.f32 %v2326, 0.5
        %v2422 = vmul.f32 %v2169, 0.5
        %v2423 = vmul.f32 %v2171, 0.5
        %v2424 = vmul.f32 %v2330, 0.5
        %v2425 = vmul.f32 %v2332, 0.5
        %v2426 = vmul.f32 %v2175, 0.5
        %v2427 = vmul.f32 %v2177, 0.5
        %v2428 = vmul.f32 %v2336, 0.5
        %v2429 = vmul.f32 %v2338, 0.5
        %v2430 = vmul.f32 %v2181, 0.5
        %v2431 = vmul.f32 %v2183, 0.5
        %v2432 = vmul.f32 %v2342, 0.5
        %v2433 = vmul.f32 %v2344, 0.5
        %v2434 = vmul.f32 %v2187, 0.5
        %v2435 = vmul.f32 %v2189, 0.5
        %v2436 = vmul.f32 %v2348, 0.5
        %v2437 = vmul.f32 %v2350, 0.5
        %v2438 = vmul.f32 %v2193, 0.5
        %v2439 = vmul.f32 %v2195, 0.5
        %v2440 = vmul.f32 %v2354, 0.5
        %v2441 = vmul.f32 %v2356, 0.5
        %v2442 = vmul.f32 %v2199, 0.5
        %v2443 = vmul.f32 %v2201, 0.5
        %v2444 = vmul.f32 %v2360, 0.5
        %v2445 = vmul.f32 %v2362, 0.5
        %v2446 = vmul.f32 %v2205, 0.5
        %v2447 = vmul.f32 %v2207, 0.5
        %v2448 = vmul.f32 %v2366, 0.5
        %v2449 = vmul.f32 %v2368, 0.5
        %v2450 = vmul.f32 %v2211, 0.5
        %v2451 = vmul.f32 %v2213, 0.5
        %v2452 = vmul.f32 %v2372, 0.5
        %v2453 = vmul.f32 %v2374, 0.5
        %v2454 = vmul.f32 %v2217, 0.5
        %v2455 = vmul.f32 %v2219, 0.5
        %v2456 = vmul.f32 %v2378, 0.5
        %v2457 = vmul.f32 %v2380, 0.5
        %v2458 = vmul.f32 %v2223, 0.5
        %v2459 = vmul.f32 %v2225, 0.5
        %v2460 = vmul.f32 %v2384, 0.5
        %v2461 = vmul.f32 %v2386, 0.5
        %v2462 = vmul.f32 %v2229, 0.5
        %v2463 = vmul.f32 %v2231, 0.5
        %v2464 = vmul.f32 %v2390, 0.5
        %v2465 = vmul.f32 %v2392, 0.5
        %v2466 = vmul.f32 %v2235, 0.5
        %v2467 = vmul.f32 %v2237, 0.5
        %v2468 = vmul.f32 %v2396, 0.5
        %v2469 = vmul.f32 %v2398, 0.5
        %v2470 = vmul.f32 %v2241, 0.5
        %v2471 = vmul.f32 %v2243, 0.5
        %v2472 = vmul.f32 %v2402, 0.5
        %v2473 = vmul.f32 %v2404, 0.5
        %v2474 = vmul.f32 %v2247, 0.5
        %v2475 = vmul.f32 %v2249, 0.5
        %v2476 = vmul.f32 %v2408, 0.5
        %v2477 = vmul.f32 %v2410, 0.5
        %v2478 = vmul.f32 %v2253, 0.5
        %v2479 = vmul.f32 %v2255, 0.5
        %v2480 = vmul.f32 %v2414, 0.5
        %v2481 = vmul.f32 %v2416, 0.5
        %v2482 = vmul.f32 %v2163, 0.044715
        %v2483 = vmul.f32 %v2165, 0.044715
        %v2484 = vmul.f32 %v2324, 0.044715
        %v2485 = vmul.f32 %v2326, 0.044715
        %v2486 = vmul.f32 %v2169, 0.044715
        %v2487 = vmul.f32 %v2171, 0.044715
        %v2488 = vmul.f32 %v2330, 0.044715
        %v2489 = vmul.f32 %v2332, 0.044715
        %v2490 = vmul.f32 %v2175, 0.044715
        %v2491 = vmul.f32 %v2177, 0.044715
        %v2492 = vmul.f32 %v2336, 0.044715
        %v2493 = vmul.f32 %v2338, 0.044715
        %v2494 = vmul.f32 %v2181, 0.044715
        %v2495 = vmul.f32 %v2183, 0.044715
        %v2496 = vmul.f32 %v2342, 0.044715
        %v2497 = vmul.f32 %v2344, 0.044715
        %v2498 = vmul.f32 %v2187, 0.044715
        %v2499 = vmul.f32 %v2189, 0.044715
        %v2500 = vmul.f32 %v2348, 0.044715
        %v2501 = vmul.f32 %v2350, 0.044715
        %v2502 = vmul.f32 %v2193, 0.044715
        %v2503 = vmul.f32 %v2195, 0.044715
        %v2504 = vmul.f32 %v2354, 0.044715
        %v2505 = vmul.f32 %v2356, 0.044715
        %v2506 = vmul.f32 %v2199, 0.044715
        %v2507 = vmul.f32 %v2201, 0.044715
        %v2508 = vmul.f32 %v2360, 0.044715
        %v2509 = vmul.f32 %v2362, 0.044715
        %v2510 = vmul.f32 %v2205, 0.044715
        %v2511 = vmul.f32 %v2207, 0.044715
        %v2512 = vmul.f32 %v2366, 0.044715
        %v2513 = vmul.f32 %v2368, 0.044715
        %v2514 = vmul.f32 %v2211, 0.044715
        %v2515 = vmul.f32 %v2213, 0.044715
        %v2516 = vmul.f32 %v2372, 0.044715
        %v2517 = vmul.f32 %v2374, 0.044715
        %v2518 = vmul.f32 %v2217, 0.044715
        %v2519 = vmul.f32 %v2219, 0.044715
        %v2520 = vmul.f32 %v2378, 0.044715
        %v2521 = vmul.f32 %v2380, 0.044715
        %v2522 = vmul.f32 %v2223, 0.044715
        %v2523 = vmul.f32 %v2225, 0.044715
        %v2524 = vmul.f32 %v2384, 0.044715
        %v2525 = vmul.f32 %v2386, 0.044715
        %v2526 = vmul.f32 %v2229, 0.044715
        %v2527 = vmul.f32 %v2231, 0.044715
        %v2528 = vmul.f32 %v2390, 0.044715
        %v2529 = vmul.f32 %v2392, 0.044715
        %v2530 = vmul.f32 %v2235, 0.044715
        %v2531 = vmul.f32 %v2237, 0.044715
        %v2532 = vmul.f32 %v2396, 0.044715
        %v2533 = vmul.f32 %v2398, 0.044715
        %v2534 = vmul.f32 %v2241, 0.044715
        %v2535 = vmul.f32 %v2243, 0.044715
        %v2536 = vmul.f32 %v2402, 0.044715
        %v2537 = vmul.f32 %v2404, 0.044715
        %v2538 = vmul.f32 %v2247, 0.044715
        %v2539 = vmul.f32 %v2249, 0.044715
        %v2540 = vmul.f32 %v2408, 0.044715
        %v2541 = vmul.f32 %v2410, 0.044715
        %v2542 = vmul.f32 %v2253, 0.044715
        %v2543 = vmul.f32 %v2255, 0.044715
        %v2544 = vmul.f32 %v2414, 0.044715
        %v2545 = vmul.f32 %v2416, 0.044715
        %v2546 = vmul.f32 %v2482, %v2163
        %v2547 = vmul.f32 %v2483, %v2165
        %v2548 = vmul.f32 %v2484, %v2324
        %v2549 = vmul.f32 %v2485, %v2326
        %v2550 = vmul.f32 %v2486, %v2169
        %v2551 = vmul.f32 %v2487, %v2171
        %v2552 = vmul.f32 %v2488, %v2330
        %v2553 = vmul.f32 %v2489, %v2332
        %v2554 = vmul.f32 %v2490, %v2175
        %v2555 = vmul.f32 %v2491, %v2177
        %v2556 = vmul.f32 %v2492, %v2336
        %v2557 = vmul.f32 %v2493, %v2338
        %v2558 = vmul.f32 %v2494, %v2181
        %v2559 = vmul.f32 %v2495, %v2183
        %v2560 = vmul.f32 %v2496, %v2342
        %v2561 = vmul.f32 %v2497, %v2344
        %v2562 = vmul.f32 %v2498, %v2187
        %v2563 = vmul.f32 %v2499, %v2189
        %v2564 = vmul.f32 %v2500, %v2348
        %v2565 = vmul.f32 %v2501, %v2350
        %v2566 = vmul.f32 %v2502, %v2193
        %v2567 = vmul.f32 %v2503, %v2195
        %v2568 = vmul.f32 %v2504, %v2354
        %v2569 = vmul.f32 %v2505, %v2356
        %v2570 = vmul.f32 %v2506, %v2199
        %v2571 = vmul.f32 %v2507, %v2201
        %v2572 = vmul.f32 %v2508, %v2360
        %v2573 = vmul.f32 %v2509, %v2362
        %v2574 = vmul.f32 %v2510, %v2205
        %v2575 = vmul.f32 %v2511, %v2207
        %v2576 = vmul.f32 %v2512, %v2366
        %v2577 = vmul.f32 %v2513, %v2368
        %v2578 = vmul.f32 %v2514, %v2211
        %v2579 = vmul.f32 %v2515, %v2213
        %v2580 = vmul.f32 %v2516, %v2372
        %v2581 = vmul.f32 %v2517, %v2374
        %v2582 = vmul.f32 %v2518, %v2217
        %v2583 = vmul.f32 %v2519, %v2219
        %v2584 = vmul.f32 %v2520, %v2378
        %v2585 = vmul.f32 %v2521, %v2380
        %v2586 = vmul.f32 %v2522, %v2223
        %v2587 = vmul.f32 %v2523, %v2225
        %v2588 = vmul.f32 %v2524, %v2384
        %v2589 = vmul.f32 %v2525, %v2386
        %v2590 = vmul.f32 %v2526, %v2229
        %v2591 = vmul.f32 %v2527, %v2231
        %v2592 = vmul.f32 %v2528, %v2390
        %v2593 = vmul.f32 %v2529, %v2392
        %v2594 = vmul.f32 %v2530, %v2235
        %v2595 = vmul.f32 %v2531, %v2237
        %v2596 = vmul.f32 %v2532, %v2396
        %v2597 = vmul.f32 %v2533, %v2398
        %v2598 = vmul.f32 %v2534, %v2241
        %v2599 = vmul.f32 %v2535, %v2243
        %v2600 = vmul.f32 %v2536, %v2402
        %v2601 = vmul.f32 %v2537, %v2404
        %v2602 = vmul.f32 %v2538, %v2247
        %v2603 = vmul.f32 %v2539, %v2249
        %v2604 = vmul.f32 %v2540, %v2408
        %v2605 = vmul.f32 %v2541, %v2410
        %v2606 = vmul.f32 %v2542, %v2253
        %v2607 = vmul.f32 %v2543, %v2255
        %v2608 = vmul.f32 %v2544, %v2414
        %v2609 = vmul.f32 %v2545, %v2416
        %v2610 = vmul.f32 %v2546, %v2163
        %v2611 = vmul.f32 %v2547, %v2165
        %v2612 = vmul.f32 %v2548, %v2324
        %v2613 = vmul.f32 %v2549, %v2326
        %v2614 = vmul.f32 %v2550, %v2169
        %v2615 = vmul.f32 %v2551, %v2171
        %v2616 = vmul.f32 %v2552, %v2330
        %v2617 = vmul.f32 %v2553, %v2332
        %v2618 = vmul.f32 %v2554, %v2175
        %v2619 = vmul.f32 %v2555, %v2177
        %v2620 = vmul.f32 %v2556, %v2336
        %v2621 = vmul.f32 %v2557, %v2338
        %v2622 = vmul.f32 %v2558, %v2181
        %v2623 = vmul.f32 %v2559, %v2183
        %v2624 = vmul.f32 %v2560, %v2342
        %v2625 = vmul.f32 %v2561, %v2344
        %v2626 = vmul.f32 %v2562, %v2187
        %v2627 = vmul.f32 %v2563, %v2189
        %v2628 = vmul.f32 %v2564, %v2348
        %v2629 = vmul.f32 %v2565, %v2350
        %v2630 = vmul.f32 %v2566, %v2193
        %v2631 = vmul.f32 %v2567, %v2195
        %v2632 = vmul.f32 %v2568, %v2354
        %v2633 = vmul.f32 %v2569, %v2356
        %v2634 = vmul.f32 %v2570, %v2199
        %v2635 = vmul.f32 %v2571, %v2201
        %v2636 = vmul.f32 %v2572, %v2360
        %v2637 = vmul.f32 %v2573, %v2362
        %v2638 = vmul.f32 %v2574, %v2205
        %v2639 = vmul.f32 %v2575, %v2207
        %v2640 = vmul.f32 %v2576, %v2366
        %v2641 = vmul.f32 %v2577, %v2368
        %v2642 = vmul.f32 %v2578, %v2211
        %v2643 = vmul.f32 %v2579, %v2213
        %v2644 = vmul.f32 %v2580, %v2372
        %v2645 = vmul.f32 %v2581, %v2374
        %v2646 = vmul.f32 %v2582, %v2217
        %v2647 = vmul.f32 %v2583, %v2219
        %v2648 = vmul.f32 %v2584, %v2378
        %v2649 = vmul.f32 %v2585, %v2380
        %v2650 = vmul.f32 %v2586, %v2223
        %v2651 = vmul.f32 %v2587, %v2225
        %v2652 = vmul.f32 %v2588, %v2384
        %v2653 = vmul.f32 %v2589, %v2386
        %v2654 = vmul.f32 %v2590, %v2229
        %v2655 = vmul.f32 %v2591, %v2231
        %v2656 = vmul.f32 %v2592, %v2390
        %v2657 = vmul.f32 %v2593, %v2392
        %v2658 = vmul.f32 %v2594, %v2235
        %v2659 = vmul.f32 %v2595, %v2237
        %v2660 = vmul.f32 %v2596, %v2396
        %v2661 = vmul.f32 %v2597, %v2398
        %v2662 = vmul.f32 %v2598, %v2241
        %v2663 = vmul.f32 %v2599, %v2243
        %v2664 = vmul.f32 %v2600, %v2402
        %v2665 = vmul.f32 %v2601, %v2404
        %v2666 = vmul.f32 %v2602, %v2247
        %v2667 = vmul.f32 %v2603, %v2249
        %v2668 = vmul.f32 %v2604, %v2408
        %v2669 = vmul.f32 %v2605, %v2410
        %v2670 = vmul.f32 %v2606, %v2253
        %v2671 = vmul.f32 %v2607, %v2255
        %v2672 = vmul.f32 %v2608, %v2414
        %v2673 = vmul.f32 %v2609, %v2416
        %v2674 = vadd.f32 %v2163, %v2610
        %v2675 = vadd.f32 %v2165, %v2611
        %v2676 = vadd.f32 %v2324, %v2612
        %v2677 = vadd.f32 %v2326, %v2613
        %v2678 = vadd.f32 %v2169, %v2614
        %v2679 = vadd.f32 %v2171, %v2615
        %v2680 = vadd.f32 %v2330, %v2616
        %v2681 = vadd.f32 %v2332, %v2617
        %v2682 = vadd.f32 %v2175, %v2618
        %v2683 = vadd.f32 %v2177, %v2619
        %v2684 = vadd.f32 %v2336, %v2620
        %v2685 = vadd.f32 %v2338, %v2621
        %v2686 = vadd.f32 %v2181, %v2622
        %v2687 = vadd.f32 %v2183, %v2623
        %v2688 = vadd.f32 %v2342, %v2624
        %v2689 = vadd.f32 %v2344, %v2625
        %v2690 = vadd.f32 %v2187, %v2626
        %v2691 = vadd.f32 %v2189, %v2627
        %v2692 = vadd.f32 %v2348, %v2628
        %v2693 = vadd.f32 %v2350, %v2629
        %v2694 = vadd.f32 %v2193, %v2630
        %v2695 = vadd.f32 %v2195, %v2631
        %v2696 = vadd.f32 %v2354, %v2632
        %v2697 = vadd.f32 %v2356, %v2633
        %v2698 = vadd.f32 %v2199, %v2634
        %v2699 = vadd.f32 %v2201, %v2635
        %v2700 = vadd.f32 %v2360, %v2636
        %v2701 = vadd.f32 %v2362, %v2637
        %v2702 = vadd.f32 %v2205, %v2638
        %v2703 = vadd.f32 %v2207, %v2639
        %v2704 = vadd.f32 %v2366, %v2640
        %v2705 = vadd.f32 %v2368, %v2641
        %v2706 = vadd.f32 %v2211, %v2642
        %v2707 = vadd.f32 %v2213, %v2643
        %v2708 = vadd.f32 %v2372, %v2644
        %v2709 = vadd.f32 %v2374, %v2645
        %v2710 = vadd.f32 %v2217, %v2646
        %v2711 = vadd.f32 %v2219, %v2647
        %v2712 = vadd.f32 %v2378, %v2648
        %v2713 = vadd.f32 %v2380, %v2649
        %v2714 = vadd.f32 %v2223, %v2650
        %v2715 = vadd.f32 %v2225, %v2651
        %v2716 = vadd.f32 %v2384, %v2652
        %v2717 = vadd.f32 %v2386, %v2653
        %v2718 = vadd.f32 %v2229, %v2654
        %v2719 = vadd.f32 %v2231, %v2655
        %v2720 = vadd.f32 %v2390, %v2656
        %v2721 = vadd.f32 %v2392, %v2657
        %v2722 = vadd.f32 %v2235, %v2658
        %v2723 = vadd.f32 %v2237, %v2659
        %v2724 = vadd.f32 %v2396, %v2660
        %v2725 = vadd.f32 %v2398, %v2661
        %v2726 = vadd.f32 %v2241, %v2662
        %v2727 = vadd.f32 %v2243, %v2663
        %v2728 = vadd.f32 %v2402, %v2664
        %v2729 = vadd.f32 %v2404, %v2665
        %v2730 = vadd.f32 %v2247, %v2666
        %v2731 = vadd.f32 %v2249, %v2667
        %v2732 = vadd.f32 %v2408, %v2668
        %v2733 = vadd.f32 %v2410, %v2669
        %v2734 = vadd.f32 %v2253, %v2670
        %v2735 = vadd.f32 %v2255, %v2671
        %v2736 = vadd.f32 %v2414, %v2672
        %v2737 = vadd.f32 %v2416, %v2673
        %v2738 = vmul.f32 %v2674, 0.7978846
        %v2739 = vmul.f32 %v2675, 0.7978846
        %v2740 = vmul.f32 %v2676, 0.7978846
        %v2741 = vmul.f32 %v2677, 0.7978846
        %v2742 = vmul.f32 %v2678, 0.7978846
        %v2743 = vmul.f32 %v2679, 0.7978846
        %v2744 = vmul.f32 %v2680, 0.7978846
        %v2745 = vmul.f32 %v2681, 0.7978846
        %v2746 = vmul.f32 %v2682, 0.7978846
        %v2747 = vmul.f32 %v2683, 0.7978846
        %v2748 = vmul.f32 %v2684, 0.7978846
        %v2749 = vmul.f32 %v2685, 0.7978846
        %v2750 = vmul.f32 %v2686, 0.7978846
        %v2751 = vmul.f32 %v2687, 0.7978846
        %v2752 = vmul.f32 %v2688, 0.7978846
        %v2753 = vmul.f32 %v2689, 0.7978846
        %v2754 = vmul.f32 %v2690, 0.7978846
        %v2755 = vmul.f32 %v2691, 0.7978846
        %v2756 = vmul.f32 %v2692, 0.7978846
        %v2757 = vmul.f32 %v2693, 0.7978846
        %v2758 = vmul.f32 %v2694, 0.7978846
        %v2759 = vmul.f32 %v2695, 0.7978846
        %v2760 = vmul.f32 %v2696, 0.7978846
        %v2761 = vmul.f32 %v2697, 0.7978846
        %v2762 = vmul.f32 %v2698, 0.7978846
        %v2763 = vmul.f32 %v2699, 0.7978846
        %v2764 = vmul.f32 %v2700, 0.7978846
        %v2765 = vmul.f32 %v2701, 0.7978846
        %v2766 = vmul.f32 %v2702, 0.7978846
        %v2767 = vmul.f32 %v2703, 0.7978846
        %v2768 = vmul.f32 %v2704, 0.7978846
        %v2769 = vmul.f32 %v2705, 0.7978846
        %v2770 = vmul.f32 %v2706, 0.7978846
        %v2771 = vmul.f32 %v2707, 0.7978846
        %v2772 = vmul.f32 %v2708, 0.7978846
        %v2773 = vmul.f32 %v2709, 0.7978846
        %v2774 = vmul.f32 %v2710, 0.7978846
        %v2775 = vmul.f32 %v2711, 0.7978846
        %v2776 = vmul.f32 %v2712, 0.7978846
        %v2777 = vmul.f32 %v2713, 0.7978846
        %v2778 = vmul.f32 %v2714, 0.7978846
        %v2779 = vmul.f32 %v2715, 0.7978846
        %v2780 = vmul.f32 %v2716, 0.7978846
        %v2781 = vmul.f32 %v2717, 0.7978846
        %v2782 = vmul.f32 %v2718, 0.7978846
        %v2783 = vmul.f32 %v2719, 0.7978846
        %v2784 = vmul.f32 %v2720, 0.7978846
        %v2785 = vmul.f32 %v2721, 0.7978846
        %v2786 = vmul.f32 %v2722, 0.7978846
        %v2787 = vmul.f32 %v2723, 0.7978846
        %v2788 = vmul.f32 %v2724, 0.7978846
        %v2789 = vmul.f32 %v2725, 0.7978846
        %v2790 = vmul.f32 %v2726, 0.7978846
        %v2791 = vmul.f32 %v2727, 0.7978846
        %v2792 = vmul.f32 %v2728, 0.7978846
        %v2793 = vmul.f32 %v2729, 0.7978846
        %v2794 = vmul.f32 %v2730, 0.7978846
        %v2795 = vmul.f32 %v2731, 0.7978846
        %v2796 = vmul.f32 %v2732, 0.7978846
        %v2797 = vmul.f32 %v2733, 0.7978846
        %v2798 = vmul.f32 %v2734, 0.7978846
        %v2799 = vmul.f32 %v2735, 0.7978846
        %v2800 = vmul.f32 %v2736, 0.7978846
        %v2801 = vmul.f32 %v2737, 0.7978846
        %v2802 = vtanh.pop %v2738
        %v2803 = vtanh.pop %v2739
        %v2804 = vtanh.pop %v2740
        %v2805 = vtanh.pop %v2741
        %v2806 = vtanh.pop %v2742
        %v2807 = vtanh.pop %v2743
        %v2808 = vtanh.pop %v2744
        %v2809 = vtanh.pop %v2745
        %v2810 = vtanh.pop %v2746
        %v2811 = vtanh.pop %v2747
        %v2812 = vtanh.pop %v2748
        %v2813 = vtanh.pop %v2749
        %v2814 = vtanh.pop %v2750
        %v2815 = vtanh.pop %v2751
        %v2816 = vtanh.pop %v2752
        %v2817 = vtanh.pop %v2753
        %v2818 = vtanh.pop %v2754
        %v2819 = vtanh.pop %v2755
        %v2820 = vtanh.pop %v2756
        %v2821 = vtanh.pop %v2757
        %v2822 = vtanh.pop %v2758
        %v2823 = vtanh.pop %v2759
        %v2824 = vtanh.pop %v2760
        %v2825 = vtanh.pop %v2761
        %v2826 = vtanh.pop %v2762
        %v2827 = vtanh.pop %v2763
        %v2828 = vtanh.pop %v2764
        %v2829 = vtanh.pop %v2765
        %v2830 = vtanh.pop %v2766
        %v2831 = vtanh.pop %v2767
        %v2832 = vtanh.pop %v2768
        %v2833 = vtanh.pop %v2769
        %v2834 = vtanh.pop %v2770
        %v2835 = vtanh.pop %v2771
        %v2836 = vtanh.pop %v2772
        %v2837 = vtanh.pop %v2773
        %v2838 = vtanh.pop %v2774
        %v2839 = vtanh.pop %v2775
        %v2840 = vtanh.pop %v2776
        %v2841 = vtanh.pop %v2777
        %v2842 = vtanh.pop %v2778
        %v2843 = vtanh.pop %v2779
        %v2844 = vtanh.pop %v2780
        %v2845 = vtanh.pop %v2781
        %v2846 = vtanh.pop %v2782
        %v2847 = vtanh.pop %v2783
        %v2848 = vtanh.pop %v2784
        %v2849 = vtanh.pop %v2785
        %v2850 = vtanh.pop %v2786
        %v2851 = vtanh.pop %v2787
        %v2852 = vtanh.pop %v2788
        %v2853 = vtanh.pop %v2789
        %v2854 = vtanh.pop %v2790
        %v2855 = vtanh.pop %v2791
        %v2856 = vtanh.pop %v2792
        %v2857 = vtanh.pop %v2793
        %v2858 = vtanh.pop %v2794
        %v2859 = vtanh.pop %v2795
        %v2860 = vtanh.pop %v2796
        %v2861 = vtanh.pop %v2797
        %v2862 = vtanh.pop %v2798
        %v2863 = vtanh.pop %v2799
        %v2864 = vtanh.pop %v2800
        %v2865 = vtanh.pop %v2801
        %v2866 = vadd.f32 %v2802, 1.0
        %v2867 = vadd.f32 %v2803, 1.0
        %v2868 = vadd.f32 %v2804, 1.0
        %v2869 = vadd.f32 %v2805, 1.0
        %v2870 = vadd.f32 %v2806, 1.0
        %v2871 = vadd.f32 %v2807, 1.0
        %v2872 = vadd.f32 %v2808, 1.0
        %v2873 = vadd.f32 %v2809, 1.0
        %v2874 = vadd.f32 %v2810, 1.0
        %v2875 = vadd.f32 %v2811, 1.0
        %v2876 = vadd.f32 %v2812, 1.0
        %v2877 = vadd.f32 %v2813, 1.0
        %v2878 = vadd.f32 %v2814, 1.0
        %v2879 = vadd.f32 %v2815, 1.0
        %v2880 = vadd.f32 %v2816, 1.0
        %v2881 = vadd.f32 %v2817, 1.0
        %v2882 = vadd.f32 %v2818, 1.0
        %v2883 = vadd.f32 %v2819, 1.0
        %v2884 = vadd.f32 %v2820, 1.0
        %v2885 = vadd.f32 %v2821, 1.0
        %v2886 = vadd.f32 %v2822, 1.0
        %v2887 = vadd.f32 %v2823, 1.0
        %v2888 = vadd.f32 %v2824, 1.0
        %v2889 = vadd.f32 %v2825, 1.0
        %v2890 = vadd.f32 %v2826, 1.0
        %v2891 = vadd.f32 %v2827, 1.0
        %v2892 = vadd.f32 %v2828, 1.0
        %v2893 = vadd.f32 %v2829, 1.0
        %v2894 = vadd.f32 %v2830, 1.0
        %v2895 = vadd.f32 %v2831, 1.0
        %v2896 = vadd.f32 %v2832, 1.0
        %v2897 = vadd.f32 %v2833, 1.0
        %v2898 = vadd.f32 %v2834, 1.0
        %v2899 = vadd.f32 %v2835, 1.0
        %v2900 = vadd.f32 %v2836, 1.0
        %v2901 = vadd.f32 %v2837, 1.0
        %v2902 = vadd.f32 %v2838, 1.0
        %v2903 = vadd.f32 %v2839, 1.0
        %v2904 = vadd.f32 %v2840, 1.0
        %v2905 = vadd.f32 %v2841, 1.0
        %v2906 = vadd.f32 %v2842, 1.0
        %v2907 = vadd.f32 %v2843, 1.0
        %v2908 = vadd.f32 %v2844, 1.0
        %v2909 = vadd.f32 %v2845, 1.0
        %v2910 = vadd.f32 %v2846, 1.0
        %v2911 = vadd.f32 %v2847, 1.0
        %v2912 = vadd.f32 %v2848, 1.0
        %v2913 = vadd.f32 %v2849, 1.0
        %v2914 = vadd.f32 %v2850, 1.0
        %v2915 = vadd.f32 %v2851, 1.0
        %v2916 = vadd.f32 %v2852, 1.0
        %v2917 = vadd.f32 %v2853, 1.0
        %v2918 = vadd.f32 %v2854, 1.0
        %v2919 = vadd.f32 %v2855, 1.0
        %v2920 = vadd.f32 %v2856, 1.0
        %v2921 = vadd.f32 %v2857, 1.0
        %v2922 = vadd.f32 %v2858, 1.0
        %v2923 = vadd.f32 %v2859, 1.0
        %v2924 = vadd.f32 %v2860, 1.0
        %v2925 = vadd.f32 %v2861, 1.0
        %v2926 = vadd.f32 %v2862, 1.0
        %v2927 = vadd.f32 %v2863, 1.0
        %v2928 = vadd.f32 %v2864, 1.0
        %v2929 = vadd.f32 %v2865, 1.0
        %v2930 = vmul.f32 %v2418, %v2866
        %v2931 = vmul.f32 %v2419, %v2867
        %v2932 = vmul.f32 %v2420, %v2868
        %v2933 = vmul.f32 %v2421, %v2869
        %v2934 = vmul.f32 %v2422, %v2870
        %v2935 = vmul.f32 %v2423, %v2871
        %v2936 = vmul.f32 %v2424, %v2872
        %v2937 = vmul.f32 %v2425, %v2873
        %v2938 = vmul.f32 %v2426, %v2874
        %v2939 = vmul.f32 %v2427, %v2875
        %v2940 = vmul.f32 %v2428, %v2876
        %v2941 = vmul.f32 %v2429, %v2877
        %v2942 = vmul.f32 %v2430, %v2878
        %v2943 = vmul.f32 %v2431, %v2879
        %v2944 = vmul.f32 %v2432, %v2880
        %v2945 = vmul.f32 %v2433, %v2881
        %v2946 = vmul.f32 %v2434, %v2882
        %v2947 = vmul.f32 %v2435, %v2883
        %v2948 = vmul.f32 %v2436, %v2884
        %v2949 = vmul.f32 %v2437, %v2885
        %v2950 = vmul.f32 %v2438, %v2886
        %v2951 = vmul.f32 %v2439, %v2887
        %v2952 = vmul.f32 %v2440, %v2888
        %v2953 = vmul.f32 %v2441, %v2889
        %v2954 = vmul.f32 %v2442, %v2890
        %v2955 = vmul.f32 %v2443, %v2891
        %v2956 = vmul.f32 %v2444, %v2892
        %v2957 = vmul.f32 %v2445, %v2893
        %v2958 = vmul.f32 %v2446, %v2894
        %v2959 = vmul.f32 %v2447, %v2895
        %v2960 = vmul.f32 %v2448, %v2896
        %v2961 = vmul.f32 %v2449, %v2897
        %v2962 = vmul.f32 %v2450, %v2898
        %v2963 = vmul.f32 %v2451, %v2899
        %v2964 = vmul.f32 %v2452, %v2900
        %v2965 = vmul.f32 %v2453, %v2901
        %v2966 = vmul.f32 %v2454, %v2902
        %v2967 = vmul.f32 %v2455, %v2903
        %v2968 = vmul.f32 %v2456, %v2904
        %v2969 = vmul.f32 %v2457, %v2905
        %v2970 = vmul.f32 %v2458, %v2906
        %v2971 = vmul.f32 %v2459, %v2907
        %v2972 = vmul.f32 %v2460, %v2908
        %v2973 = vmul.f32 %v2461, %v2909
        %v2974 = vmul.f32 %v2462, %v2910
        %v2975 = vmul.f32 %v2463, %v2911
        %v2976 = vmul.f32 %v2464, %v2912
        %v2977 = vmul.f32 %v2465, %v2913
        %v2978 = vmul.f32 %v2466, %v2914
        %v2979 = vmul.f32 %v2467, %v2915
        %v2980 = vmul.f32 %v2468, %v2916
        %v2981 = vmul.f32 %v2469, %v2917
        %v2982 = vmul.f32 %v2470, %v2918
        %v2983 = vmul.f32 %v2471, %v2919
        %v2984 = vmul.f32 %v2472, %v2920
        %v2985 = vmul.f32 %v2473, %v2921
        %v2986 = vmul.f32 %v2474, %v2922
        %v2987 = vmul.f32 %v2475, %v2923
        %v2988 = vmul.f32 %v2476, %v2924
        %v2989 = vmul.f32 %v2477, %v2925
        %v2990 = vmul.f32 %v2478, %v2926
        %v2991 = vmul.f32 %v2479, %v2927
        %v2992 = vmul.f32 %v2480, %v2928
        %v2993 = vmul.f32 %v2481, %v2929
        %v2994 = vld [vmem:[#allocation2] sm:$0xff]
        %v2995 = vld [vmem:[#allocation2 + $0x8] sm:$0xff]
        %v2996 = vld [vmem:[#allocation2 + $0x10] sm:$0xff]
        %v2997 = vld [vmem:[#allocation2 + $0x18] sm:$0xff]
        %v2998 = vld [vmem:[#allocation2 + $0x20] sm:$0xff]
        %v2999 = vld [vmem:[#allocation2 + $0x28] sm:$0xff]
        %v3000 = vld [vmem:[#allocation2 + $0x30] sm:$0xff]
        %v3001 = vld [vmem:[#allocation2 + $0x38] sm:$0xff]
        %v3002 = vld [vmem:[#allocation2 + $0x40] sm:$0xff]
        %v3003 = vld [vmem:[#allocation2 + $0x48] sm:$0xff]
        %v3004 = vld [vmem:[#allocation2 + $0x50] sm:$0xff]
        %v3005 = vld [vmem:[#allocation2 + $0x58] sm:$0xff]
        %v3006 = vld [vmem:[#allocation2 + $0x60] sm:$0xff]
        %v3007 = vld [vmem:[#allocation2 + $0x68] sm:$0xff]
        %v3008 = vld [vmem:[#allocation2 + $0x70] sm:$0xff]
        %v3009 = vld [vmem:[#allocation2 + $0x78] sm:$0xff]
        %v3010 = vld [vmem:[#allocation2 + $0x80] sm:$0xff]
        %v3011 = vld [vmem:[#allocation2 + $0x88] sm:$0xff]
        %v3012 = vld [vmem:[#allocation2 + $0x90] sm:$0xff]
        %v3013 = vld [vmem:[#allocation2 + $0x98] sm:$0xff]
        %v3014 = vld [vmem:[#allocation2 + $0xa0] sm:$0xff]
        %v3015 = vld [vmem:[#allocation2 + $0xa8] sm:$0xff]
        %v3016 = vld [vmem:[#allocation2 + $0xb0] sm:$0xff]
        %v3017 = vld [vmem:[#allocation2 + $0xb8] sm:$0xff]
        %v3018 = vld [vmem:[#allocation2 + $0xc0] sm:$0xff]
        %v3019 = vld [vmem:[#allocation2 + $0xc8] sm:$0xff]
        %v3020 = vld [vmem:[#allocation2 + $0xd0] sm:$0xff]
        %v3021 = vld [vmem:[#allocation2 + $0xd8] sm:$0xff]
        %v3022 = vld [vmem:[#allocation2 + $0xe0] sm:$0xff]
        %v3023 = vld [vmem:[#allocation2 + $0xe8] sm:$0xff]
        %v3024 = vld [vmem:[#allocation2 + $0xf0] sm:$0xff]
        %v3025 = vld [vmem:[#allocation2 + $0xf8] sm:$0xff]
        %v3026 = vld [vmem:[#allocation9 + $0x400] sm:$0xff]
        %v3027 = vld [vmem:[#allocation9 + $0x408] sm:$0xff]
        %v3028 = vld [vmem:[#allocation9 + $0x410] sm:$0xff]
        %v3029 = vld [vmem:[#allocation9 + $0x418] sm:$0xff]
        %v3030 = vld [vmem:[#allocation9 + $0x420] sm:$0xff]
        %v3031 = vld [vmem:[#allocation9 + $0x428] sm:$0xff]
        %v3032 = vld [vmem:[#allocation9 + $0x430] sm:$0xff]
        %v3033 = vld [vmem:[#allocation9 + $0x438] sm:$0xff]
        %v3034 = vld [vmem:[#allocation9 + $0x440] sm:$0xff]
        %v3035 = vld [vmem:[#allocation9 + $0x448] sm:$0xff]
        %v3036 = vld [vmem:[#allocation9 + $0x450] sm:$0xff]
        %v3037 = vld [vmem:[#allocation9 + $0x458] sm:$0xff]
        %v3038 = vld [vmem:[#allocation9 + $0x460] sm:$0xff]
        %v3039 = vld [vmem:[#allocation9 + $0x468] sm:$0xff]
        %v3040 = vld [vmem:[#allocation9 + $0x470] sm:$0xff]
        %v3041 = vld [vmem:[#allocation9 + $0x478] sm:$0xff]
        %v3042 = vld [vmem:[#allocation9 + $0x480] sm:$0xff]
        %v3043 = vld [vmem:[#allocation9 + $0x488] sm:$0xff]
        %v3044 = vld [vmem:[#allocation9 + $0x490] sm:$0xff]
        %v3045 = vld [vmem:[#allocation9 + $0x498] sm:$0xff]
        %v3046 = vld [vmem:[#allocation9 + $0x4a0] sm:$0xff]
        %v3047 = vld [vmem:[#allocation9 + $0x4a8] sm:$0xff]
        %v3048 = vld [vmem:[#allocation9 + $0x4b0] sm:$0xff]
        %v3049 = vld [vmem:[#allocation9 + $0x4b8] sm:$0xff]
        %v3050 = vld [vmem:[#allocation9 + $0x4c0] sm:$0xff]
        %v3051 = vld [vmem:[#allocation9 + $0x4c8] sm:$0xff]
        %v3052 = vld [vmem:[#allocation9 + $0x4d0] sm:$0xff]
        %v3053 = vld [vmem:[#allocation9 + $0x4d8] sm:$0xff]
        %v3054 = vld [vmem:[#allocation9 + $0x4e0] sm:$0xff]
        %v3055 = vld [vmem:[#allocation9 + $0x4e8] sm:$0xff]
        %v3056 = vld [vmem:[#allocation9 + $0x4f0] sm:$0xff]
        %v3057 = vld [vmem:[#allocation9 + $0x4f8] sm:$0xff]
        %v3058 = vld [vmem:[#allocation9 + $0x500] sm:$0xff]
        %v3059 = vld [vmem:[#allocation9 + $0x508] sm:$0xff]
        %v3060 = vld [vmem:[#allocation9 + $0x510] sm:$0xff]
        %v3061 = vld [vmem:[#allocation9 + $0x518] sm:$0xff]
        %v3062 = vld [vmem:[#allocation9 + $0x520] sm:$0xff]
        %v3063 = vld [vmem:[#allocation9 + $0x528] sm:$0xff]
        %v3064 = vld [vmem:[#allocation9 + $0x530] sm:$0xff]
        %v3065 = vld [vmem:[#allocation9 + $0x538] sm:$0xff]
        %v3066 = vld [vmem:[#allocation9 + $0x540] sm:$0xff]
        %v3067 = vld [vmem:[#allocation9 + $0x548] sm:$0xff]
        %v3068 = vld [vmem:[#allocation9 + $0x550] sm:$0xff]
        %v3069 = vld [vmem:[#allocation9 + $0x558] sm:$0xff]
        %v3070 = vld [vmem:[#allocation9 + $0x560] sm:$0xff]
        %v3071 = vld [vmem:[#allocation9 + $0x568] sm:$0xff]
        %v3072 = vld [vmem:[#allocation9 + $0x570] sm:$0xff]
        %v3073 = vld [vmem:[#allocation9 + $0x578] sm:$0xff]
        %v3074 = vld [vmem:[#allocation9 + $0x580] sm:$0xff]
        %v3075 = vld [vmem:[#allocation9 + $0x588] sm:$0xff]
        %v3076 = vld [vmem:[#allocation9 + $0x590] sm:$0xff]
        %v3077 = vld [vmem:[#allocation9 + $0x598] sm:$0xff]
        %v3078 = vld [vmem:[#allocation9 + $0x5a0] sm:$0xff]
        %v3079 = vld [vmem:[#allocation9 + $0x5a8] sm:$0xff]
        %v3080 = vld [vmem:[#allocation9 + $0x5b0] sm:$0xff]
        %v3081 = vld [vmem:[#allocation9 + $0x5b8] sm:$0xff]
        %v3082 = vld [vmem:[#allocation9 + $0x5c0] sm:$0xff]
        %v3083 = vld [vmem:[#allocation9 + $0x5c8] sm:$0xff]
        %v3084 = vld [vmem:[#allocation9 + $0x5d0] sm:$0xff]
        %v3085 = vld [vmem:[#allocation9 + $0x5d8] sm:$0xff]
        %v3086 = vld [vmem:[#allocation9 + $0x5e0] sm:$0xff]
        %v3087 = vld [vmem:[#allocation9 + $0x5e8] sm:$0xff]
        %v3088 = vld [vmem:[#allocation9 + $0x5f0] sm:$0xff]
        %v3089 = vld [vmem:[#allocation9 + $0x5f8] sm:$0xff]
        %v3090 = vld [vmem:[#allocation9 + $0x600] sm:$0xff]
        %v3091 = vld [vmem:[#allocation9 + $0x608] sm:$0xff]
        %v3092 = vld [vmem:[#allocation9 + $0x610] sm:$0xff]
        %v3093 = vld [vmem:[#allocation9 + $0x618] sm:$0xff]
        %v3094 = vld [vmem:[#allocation9 + $0x620] sm:$0xff]
        %v3095 = vld [vmem:[#allocation9 + $0x628] sm:$0xff]
        %v3096 = vld [vmem:[#allocation9 + $0x630] sm:$0xff]
        %v3097 = vld [vmem:[#allocation9 + $0x638] sm:$0xff]
        %v3098 = vld [vmem:[#allocation9 + $0x640] sm:$0xff]
        %v3099 = vld [vmem:[#allocation9 + $0x648] sm:$0xff]
        %v3100 = vld [vmem:[#allocation9 + $0x650] sm:$0xff]
        %v3101 = vld [vmem:[#allocation9 + $0x658] sm:$0xff]
        %v3102 = vld [vmem:[#allocation9 + $0x660] sm:$0xff]
        %v3103 = vld [vmem:[#allocation9 + $0x668] sm:$0xff]
        %v3104 = vld [vmem:[#allocation9 + $0x670] sm:$0xff]
        %v3105 = vld [vmem:[#allocation9 + $0x678] sm:$0xff]
        %v3106 = vld [vmem:[#allocation9 + $0x680] sm:$0xff]
        %v3107 = vld [vmem:[#allocation9 + $0x688] sm:$0xff]
        %v3108 = vld [vmem:[#allocation9 + $0x690] sm:$0xff]
        %v3109 = vld [vmem:[#allocation9 + $0x698] sm:$0xff]
        %v3110 = vld [vmem:[#allocation9 + $0x6a0] sm:$0xff]
        %v3111 = vld [vmem:[#allocation9 + $0x6a8] sm:$0xff]
        %v3112 = vld [vmem:[#allocation9 + $0x6b0] sm:$0xff]
        %v3113 = vld [vmem:[#allocation9 + $0x6b8] sm:$0xff]
        %v3114 = vld [vmem:[#allocation9 + $0x6c0] sm:$0xff]
        %v3115 = vld [vmem:[#allocation9 + $0x6c8] sm:$0xff]
        %v3116 = vld [vmem:[#allocation9 + $0x6d0] sm:$0xff]
        %v3117 = vld [vmem:[#allocation9 + $0x6d8] sm:$0xff]
        %v3118 = vld [vmem:[#allocation9 + $0x6e0] sm:$0xff]
        %v3119 = vld [vmem:[#allocation9 + $0x6e8] sm:$0xff]
        %v3120 = vld [vmem:[#allocation9 + $0x6f0] sm:$0xff]
        %v3121 = vld [vmem:[#allocation9 + $0x6f8] sm:$0xff]
        %v3122 = vld [vmem:[#allocation9 + $0x700] sm:$0xff]
        %v3123 = vld [vmem:[#allocation9 + $0x708] sm:$0xff]
        %v3124 = vld [vmem:[#allocation9 + $0x710] sm:$0xff]
        %v3125 = vld [vmem:[#allocation9 + $0x718] sm:$0xff]
        %v3126 = vld [vmem:[#allocation9 + $0x720] sm:$0xff]
        %v3127 = vld [vmem:[#allocation9 + $0x728] sm:$0xff]
        %v3128 = vld [vmem:[#allocation9 + $0x730] sm:$0xff]
        %v3129 = vld [vmem:[#allocation9 + $0x738] sm:$0xff]
        %v3130 = vld [vmem:[#allocation9 + $0x740] sm:$0xff]
        %v3131 = vld [vmem:[#allocation9 + $0x748] sm:$0xff]
        %v3132 = vld [vmem:[#allocation9 + $0x750] sm:$0xff]
        %v3133 = vld [vmem:[#allocation9 + $0x758] sm:$0xff]
        %v3134 = vld [vmem:[#allocation9 + $0x760] sm:$0xff]
        %v3135 = vld [vmem:[#allocation9 + $0x768] sm:$0xff]
        %v3136 = vld [vmem:[#allocation9 + $0x770] sm:$0xff]
        %v3137 = vld [vmem:[#allocation9 + $0x778] sm:$0xff]
        %v3138 = vld [vmem:[#allocation9 + $0x780] sm:$0xff]
        %v3139 = vld [vmem:[#allocation9 + $0x788] sm:$0xff]
        %v3140 = vld [vmem:[#allocation9 + $0x790] sm:$0xff]
        %v3141 = vld [vmem:[#allocation9 + $0x798] sm:$0xff]
        %v3142 = vld [vmem:[#allocation9 + $0x7a0] sm:$0xff]
        %v3143 = vld [vmem:[#allocation9 + $0x7a8] sm:$0xff]
        %v3144 = vld [vmem:[#allocation9 + $0x7b0] sm:$0xff]
        %v3145 = vld [vmem:[#allocation9 + $0x7b8] sm:$0xff]
        %v3146 = vld [vmem:[#allocation9 + $0x7c0] sm:$0xff]
        %v3147 = vld [vmem:[#allocation9 + $0x7c8] sm:$0xff]
        %v3148 = vld [vmem:[#allocation9 + $0x7d0] sm:$0xff]
        %v3149 = vld [vmem:[#allocation9 + $0x7d8] sm:$0xff]
        %v3150 = vld [vmem:[#allocation9 + $0x7e0] sm:$0xff]
        %v3151 = vld [vmem:[#allocation9 + $0x7e8] sm:$0xff]
        %v3152 = vld [vmem:[#allocation9 + $0x7f0] sm:$0xff]
        %v3153 = vld [vmem:[#allocation9 + $0x7f8] sm:$0xff]
        %3154 = vmatprep.subr.mxu0 %v3057
        %3155 = vmatpush1.msra.mxu0 %v3056
        %3156 = vmatprep.subr.mxu0 %v3055
        %3157 = vmatpush1.msra.mxu0 %v3054
        %3158 = vmatprep.subr.mxu0 %v3053
        %3159 = vmatpush1.msra.mxu0 %v3052
        %3160 = vmatprep.subr.mxu0 %v3051
        %3161 = vmatpush1.msra.mxu0 %v3050
        %3162 = vmatprep.subr.mxu0 %v3049
        %3163 = vmatpush1.msra.mxu0 %v3048
        %3164 = vmatprep.subr.mxu0 %v3047
        %3165 = vmatpush1.msra.mxu0 %v3046
        %3166 = vmatprep.subr.mxu0 %v3045
        %3167 = vmatpush1.msra.mxu0 %v3044
        %3168 = vmatprep.subr.mxu0 %v3043
        %3169 = vmatpush1.msra.mxu0 %v3042
        %3170 = vmatprep.subr.mxu0 %v3041
        %3171 = vmatpush1.msra.mxu0 %v3040
        %3172 = vmatprep.subr.mxu0 %v3039
        %3173 = vmatpush1.msra.mxu0 %v3038
        %3174 = vmatprep.subr.mxu0 %v3037
        %3175 = vmatpush1.msra.mxu0 %v3036
        %3176 = vmatprep.subr.mxu0 %v3035
        %3177 = vmatpush1.msra.mxu0 %v3034
        %3178 = vmatprep.subr.mxu0 %v3033
        %3179 = vmatpush1.msra.mxu0 %v3032
        %3180 = vmatprep.subr.mxu0 %v3031
        %3181 = vmatpush1.msra.mxu0 %v3030
        %3182 = vmatprep.subr.mxu0 %v3029
        %3183 = vmatpush1.msra.mxu0 %v3028
        %3184 = vmatprep.subr.mxu0 %v3027
        %3185 = vmatpush1.msra.mxu0 %v3026
        %3186 = vmatprep.subr.mxu0 %v3089
        %3187 = vmatpush2.msra.mxu0 %v3088
        %3188 = vmatprep.subr.mxu0 %v3087
        %3189 = vmatpush2.msra.mxu0 %v3086
        %3190 = vmatprep.subr.mxu0 %v3085
        %3191 = vmatpush2.msra.mxu0 %v3084
        %3192 = vmatprep.subr.mxu0 %v3083
        %3193 = vmatpush2.msra.mxu0 %v3082
        %3194 = vmatprep.subr.mxu0 %v3081
        %3195 = vmatpush2.msra.mxu0 %v3080
        %3196 = vmatprep.subr.mxu0 %v3079
        %3197 = vmatpush2.msra.mxu0 %v3078
        %3198 = vmatprep.subr.mxu0 %v3077
        %3199 = vmatpush2.msra.mxu0 %v3076
        %3200 = vmatprep.subr.mxu0 %v3075
        %3201 = vmatpush2.msra.mxu0 %v3074
        %3202 = vmatprep.subr.mxu0 %v3073
        %3203 = vmatpush2.msra.mxu0 %v3072
        %3204 = vmatprep.subr.mxu0 %v3071
        %3205 = vmatpush2.msra.mxu0 %v3070
        %3206 = vmatprep.subr.mxu0 %v3069
        %3207 = vmatpush2.msra.mxu0 %v3068
        %3208 = vmatprep.subr.mxu0 %v3067
        %3209 = vmatpush2.msra.mxu0 %v3066
        %3210 = vmatprep.subr.mxu0 %v3065
        %3211 = vmatpush2.msra.mxu0 %v3064
        %3212 = vmatprep.subr.mxu0 %v3063
        %3213 = vmatpush2.msra.mxu0 %v3062
        %3214 = vmatprep.subr.mxu0 %v3061
        %3215 = vmatpush2.msra.mxu0 %v3060
        %3216 = vmatprep.subr.mxu0 %v3059
        %3217 = vmatpush2.msra.mxu0 %v3058
        %3218 = vmatprep.mubr.f32.mxu0 %v2931
        %3219 = vmatmul.mubr.f32.gmra.mxu0 %v2930
        %v3220 = vpop.f32.mrf.mxu0
        %v3221 = vadd.f32 0.0, %v3220
        %v3222 = vpop.f32.mrf.mxu0
        %v3223 = vadd.f32 0.0, %v3222
        %3224 = vmatprep.mubr.f32.mxu0 %v2935
        %3225 = vmatmul.mubr.f32.gmra.mxu0 %v2934
        %v3226 = vpop.f32.mrf.mxu0
        %v3227 = vadd.f32 0.0, %v3226
        %v3228 = vpop.f32.mrf.mxu0
        %v3229 = vadd.f32 0.0, %v3228
        %3230 = vmatprep.mubr.f32.mxu0 %v2939
        %3231 = vmatmul.mubr.f32.gmra.mxu0 %v2938
        %v3232 = vpop.f32.mrf.mxu0
        %v3233 = vadd.f32 0.0, %v3232
        %v3234 = vpop.f32.mrf.mxu0
        %v3235 = vadd.f32 0.0, %v3234
        %3236 = vmatprep.mubr.f32.mxu0 %v2943
        %3237 = vmatmul.mubr.f32.gmra.mxu0 %v2942
        %v3238 = vpop.f32.mrf.mxu0
        %v3239 = vadd.f32 0.0, %v3238
        %v3240 = vpop.f32.mrf.mxu0
        %v3241 = vadd.f32 0.0, %v3240
        %3242 = vmatprep.mubr.f32.mxu0 %v2947
        %3243 = vmatmul.mubr.f32.gmra.mxu0 %v2946
        %v3244 = vpop.f32.mrf.mxu0
        %v3245 = vadd.f32 0.0, %v3244
        %v3246 = vpop.f32.mrf.mxu0
        %v3247 = vadd.f32 0.0, %v3246
        %3248 = vmatprep.mubr.f32.mxu0 %v2951
        %3249 = vmatmul.mubr.f32.gmra.mxu0 %v2950
        %v3250 = vpop.f32.mrf.mxu0
        %v3251 = vadd.f32 0.0, %v3250
        %v3252 = vpop.f32.mrf.mxu0
        %v3253 = vadd.f32 0.0, %v3252
        %3254 = vmatprep.mubr.f32.mxu0 %v2955
        %3255 = vmatmul.mubr.f32.gmra.mxu0 %v2954
        %v3256 = vpop.f32.mrf.mxu0
        %v3257 = vadd.f32 0.0, %v3256
        %v3258 = vpop.f32.mrf.mxu0
        %v3259 = vadd.f32 0.0, %v3258
        %3260 = vmatprep.mubr.f32.mxu0 %v2959
        %3261 = vmatmul.mubr.f32.gmra.mxu0 %v2958
        %v3262 = vpop.f32.mrf.mxu0
        %v3263 = vadd.f32 0.0, %v3262
        %v3264 = vpop.f32.mrf.mxu0
        %v3265 = vadd.f32 0.0, %v3264
        %3266 = vmatprep.mubr.f32.mxu0 %v2963
        %3267 = vmatmul.mubr.f32.gmra.mxu0 %v2962
        %v3268 = vpop.f32.mrf.mxu0
        %v3269 = vadd.f32 0.0, %v3268
        %v3270 = vpop.f32.mrf.mxu0
        %v3271 = vadd.f32 0.0, %v3270
        %3272 = vmatprep.mubr.f32.mxu0 %v2967
        %3273 = vmatmul.mubr.f32.gmra.mxu0 %v2966
        %v3274 = vpop.f32.mrf.mxu0
        %v3275 = vadd.f32 0.0, %v3274
        %v3276 = vpop.f32.mrf.mxu0
        %v3277 = vadd.f32 0.0, %v3276
        %3278 = vmatprep.mubr.f32.mxu0 %v2971
        %3279 = vmatmul.mubr.f32.gmra.mxu0 %v2970
        %v3280 = vpop.f32.mrf.mxu0
        %v3281 = vadd.f32 0.0, %v3280
        %v3282 = vpop.f32.mrf.mxu0
        %v3283 = vadd.f32 0.0, %v3282
        %3284 = vmatprep.mubr.f32.mxu0 %v2975
        %3285 = vmatmul.mubr.f32.gmra.mxu0 %v2974
        %v3286 = vpop.f32.mrf.mxu0
        %v3287 = vadd.f32 0.0, %v3286
        %v3288 = vpop.f32.mrf.mxu0
        %v3289 = vadd.f32 0.0, %v3288
        %3290 = vmatprep.mubr.f32.mxu0 %v2979
        %3291 = vmatmul.mubr.f32.gmra.mxu0 %v2978
        %v3292 = vpop.f32.mrf.mxu0
        %v3293 = vadd.f32 0.0, %v3292
        %v3294 = vpop.f32.mrf.mxu0
        %v3295 = vadd.f32 0.0, %v3294
        %3296 = vmatprep.mubr.f32.mxu0 %v2983
        %3297 = vmatmul.mubr.f32.gmra.mxu0 %v2982
        %v3298 = vpop.f32.mrf.mxu0
        %v3299 = vadd.f32 0.0, %v3298
        %v3300 = vpop.f32.mrf.mxu0
        %v3301 = vadd.f32 0.0, %v3300
        %3302 = vmatprep.mubr.f32.mxu0 %v2987
        %3303 = vmatmul.mubr.f32.gmra.mxu0 %v2986
        %v3304 = vpop.f32.mrf.mxu0
        %v3305 = vadd.f32 0.0, %v3304
        %v3306 = vpop.f32.mrf.mxu0
        %v3307 = vadd.f32 0.0, %v3306
        %3308 = vmatprep.mubr.f32.mxu0 %v2991
        %3309 = vmatmul.mubr.f32.gmra.mxu0 %v2990
        %v3310 = vpop.f32.mrf.mxu0
        %v3311 = vadd.f32 0.0, %v3310
        %v3312 = vpop.f32.mrf.mxu0
        %v3313 = vadd.f32 0.0, %v3312
        %3314 = vdwg.mxu0
        %3315 = vmatprep.subr.mxu0 %v3121
        %3316 = vmatpush1.msra.mxu0 %v3120
        %3317 = vmatprep.subr.mxu0 %v3119
        %3318 = vmatpush1.msra.mxu0 %v3118
        %3319 = vmatprep.subr.mxu0 %v3117
        %3320 = vmatpush1.msra.mxu0 %v3116
        %3321 = vmatprep.subr.mxu0 %v3115
        %3322 = vmatpush1.msra.mxu0 %v3114
        %3323 = vmatprep.subr.mxu0 %v3113
        %3324 = vmatpush1.msra.mxu0 %v3112
        %3325 = vmatprep.subr.mxu0 %v3111
        %3326 = vmatpush1.msra.mxu0 %v3110
        %3327 = vmatprep.subr.mxu0 %v3109
        %3328 = vmatpush1.msra.mxu0 %v3108
        %3329 = vmatprep.subr.mxu0 %v3107
        %3330 = vmatpush1.msra.mxu0 %v3106
        %3331 = vmatprep.subr.mxu0 %v3105
        %3332 = vmatpush1.msra.mxu0 %v3104
        %3333 = vmatprep.subr.mxu0 %v3103
        %3334 = vmatpush1.msra.mxu0 %v3102
        %3335 = vmatprep.subr.mxu0 %v3101
        %3336 = vmatpush1.msra.mxu0 %v3100
        %3337 = vmatprep.subr.mxu0 %v3099
        %3338 = vmatpush1.msra.mxu0 %v3098
        %3339 = vmatprep.subr.mxu0 %v3097
        %3340 = vmatpush1.msra.mxu0 %v3096
        %3341 = vmatprep.subr.mxu0 %v3095
        %3342 = vmatpush1.msra.mxu0 %v3094
        %3343 = vmatprep.subr.mxu0 %v3093
        %3344 = vmatpush1.msra.mxu0 %v3092
        %3345 = vmatprep.subr.mxu0 %v3091
        %3346 = vmatpush1.msra.mxu0 %v3090
        %3347 = vmatprep.subr.mxu0 %v3153
        %3348 = vmatpush2.msra.mxu0 %v3152
        %3349 = vmatprep.subr.mxu0 %v3151
        %3350 = vmatpush2.msra.mxu0 %v3150
        %3351 = vmatprep.subr.mxu0 %v3149
        %3352 = vmatpush2.msra.mxu0 %v3148
        %3353 = vmatprep.subr.mxu0 %v3147
        %3354 = vmatpush2.msra.mxu0 %v3146
        %3355 = vmatprep.subr.mxu0 %v3145
        %3356 = vmatpush2.msra.mxu0 %v3144
        %3357 = vmatprep.subr.mxu0 %v3143
        %3358 = vmatpush2.msra.mxu0 %v3142
        %3359 = vmatprep.subr.mxu0 %v3141
        %3360 = vmatpush2.msra.mxu0 %v3140
        %3361 = vmatprep.subr.mxu0 %v3139
        %3362 = vmatpush2.msra.mxu0 %v3138
        %3363 = vmatprep.subr.mxu0 %v3137
        %3364 = vmatpush2.msra.mxu0 %v3136
        %3365 = vmatprep.subr.mxu0 %v3135
        %3366 = vmatpush2.msra.mxu0 %v3134
        %3367 = vmatprep.subr.mxu0 %v3133
        %3368 = vmatpush2.msra.mxu0 %v3132
        %3369 = vmatprep.subr.mxu0 %v3131
        %3370 = vmatpush2.msra.mxu0 %v3130
        %3371 = vmatprep.subr.mxu0 %v3129
        %3372 = vmatpush2.msra.mxu0 %v3128
        %3373 = vmatprep.subr.mxu0 %v3127
        %3374 = vmatpush2.msra.mxu0 %v3126
        %3375 = vmatprep.subr.mxu0 %v3125
        %3376 = vmatpush2.msra.mxu0 %v3124
        %3377 = vmatprep.subr.mxu0 %v3123
        %3378 = vmatpush2.msra.mxu0 %v3122
        %3379 = vmatprep.mubr.f32.mxu0 %v2933
        %3380 = vmatmul.mubr.f32.gmra.mxu0 %v2932
        %v3381 = vpop.f32.mrf.mxu0
        %v3382 = vadd.f32 %v3221, %v3381
        %v3383 = vpop.f32.mrf.mxu0
        %v3384 = vadd.f32 %v3223, %v3383
        %3385 = vmatprep.mubr.f32.mxu0 %v2937
        %3386 = vmatmul.mubr.f32.gmra.mxu0 %v2936
        %v3387 = vpop.f32.mrf.mxu0
        %v3388 = vadd.f32 %v3227, %v3387
        %v3389 = vpop.f32.mrf.mxu0
        %v3390 = vadd.f32 %v3229, %v3389
        %3391 = vmatprep.mubr.f32.mxu0 %v2941
        %3392 = vmatmul.mubr.f32.gmra.mxu0 %v2940
        %v3393 = vpop.f32.mrf.mxu0
        %v3394 = vadd.f32 %v3233, %v3393
        %v3395 = vpop.f32.mrf.mxu0
        %v3396 = vadd.f32 %v3235, %v3395
        %3397 = vmatprep.mubr.f32.mxu0 %v2945
        %3398 = vmatmul.mubr.f32.gmra.mxu0 %v2944
        %v3399 = vpop.f32.mrf.mxu0
        %v3400 = vadd.f32 %v3239, %v3399
        %v3401 = vpop.f32.mrf.mxu0
        %v3402 = vadd.f32 %v3241, %v3401
        %3403 = vmatprep.mubr.f32.mxu0 %v2949
        %3404 = vmatmul.mubr.f32.gmra.mxu0 %v2948
        %v3405 = vpop.f32.mrf.mxu0
        %v3406 = vadd.f32 %v3245, %v3405
        %v3407 = vpop.f32.mrf.mxu0
        %v3408 = vadd.f32 %v3247, %v3407
        %3409 = vmatprep.mubr.f32.mxu0 %v2953
        %3410 = vmatmul.mubr.f32.gmra.mxu0 %v2952
        %v3411 = vpop.f32.mrf.mxu0
        %v3412 = vadd.f32 %v3251, %v3411
        %v3413 = vpop.f32.mrf.mxu0
        %v3414 = vadd.f32 %v3253, %v3413
        %3415 = vmatprep.mubr.f32.mxu0 %v2957
        %3416 = vmatmul.mubr.f32.gmra.mxu0 %v2956
        %v3417 = vpop.f32.mrf.mxu0
        %v3418 = vadd.f32 %v3257, %v3417
        %v3419 = vpop.f32.mrf.mxu0
        %v3420 = vadd.f32 %v3259, %v3419
        %3421 = vmatprep.mubr.f32.mxu0 %v2961
        %3422 = vmatmul.mubr.f32.gmra.mxu0 %v2960
        %v3423 = vpop.f32.mrf.mxu0
        %v3424 = vadd.f32 %v3263, %v3423
        %v3425 = vpop.f32.mrf.mxu0
        %v3426 = vadd.f32 %v3265, %v3425
        %3427 = vmatprep.mubr.f32.mxu0 %v2965
        %3428 = vmatmul.mubr.f32.gmra.mxu0 %v2964
        %v3429 = vpop.f32.mrf.mxu0
        %v3430 = vadd.f32 %v3269, %v3429
        %v3431 = vpop.f32.mrf.mxu0
        %v3432 = vadd.f32 %v3271, %v3431
        %3433 = vmatprep.mubr.f32.mxu0 %v2969
        %3434 = vmatmul.mubr.f32.gmra.mxu0 %v2968
        %v3435 = vpop.f32.mrf.mxu0
        %v3436 = vadd.f32 %v3275, %v3435
        %v3437 = vpop.f32.mrf.mxu0
        %v3438 = vadd.f32 %v3277, %v3437
        %3439 = vmatprep.mubr.f32.mxu0 %v2973
        %3440 = vmatmul.mubr.f32.gmra.mxu0 %v2972
        %v3441 = vpop.f32.mrf.mxu0
        %v3442 = vadd.f32 %v3281, %v3441
        %v3443 = vpop.f32.mrf.mxu0
        %v3444 = vadd.f32 %v3283, %v3443
        %3445 = vmatprep.mubr.f32.mxu0 %v2977
        %3446 = vmatmul.mubr.f32.gmra.mxu0 %v2976
        %v3447 = vpop.f32.mrf.mxu0
        %v3448 = vadd.f32 %v3287, %v3447
        %v3449 = vpop.f32.mrf.mxu0
        %v3450 = vadd.f32 %v3289, %v3449
        %3451 = vmatprep.mubr.f32.mxu0 %v2981
        %3452 = vmatmul.mubr.f32.gmra.mxu0 %v2980
        %v3453 = vpop.f32.mrf.mxu0
        %v3454 = vadd.f32 %v3293, %v3453
        %v3455 = vpop.f32.mrf.mxu0
        %v3456 = vadd.f32 %v3295, %v3455
        %3457 = vmatprep.mubr.f32.mxu0 %v2985
        %3458 = vmatmul.mubr.f32.gmra.mxu0 %v2984
        %v3459 = vpop.f32.mrf.mxu0
        %v3460 = vadd.f32 %v3299, %v3459
        %v3461 = vpop.f32.mrf.mxu0
        %v3462 = vadd.f32 %v3301, %v3461
        %3463 = vmatprep.mubr.f32.mxu0 %v2989
        %3464 = vmatmul.mubr.f32.gmra.mxu0 %v2988
        %v3465 = vpop.f32.mrf.mxu0
        %v3466 = vadd.f32 %v3305, %v3465
        %v3467 = vpop.f32.mrf.mxu0
        %v3468 = vadd.f32 %v3307, %v3467
        %3469 = vmatprep.mubr.f32.mxu0 %v2993
        %3470 = vmatmul.mubr.f32.gmra.mxu0 %v2992
        %v3471 = vpop.f32.mrf.mxu0
        %v3472 = vadd.f32 %v3311, %v3471
        %v3473 = vpop.f32.mrf.mxu0
        %v3474 = vadd.f32 %v3313, %v3473
        %3475 = vdwg.mxu0
        %v3476 = vadd.f32 %v2994, %v3382
        %v3477 = vadd.f32 %v2995, %v3384
        %v3478 = vadd.f32 %v2996, %v3388
        %v3479 = vadd.f32 %v2997, %v3390
        %v3480 = vadd.f32 %v2998, %v3394
        %v3481 = vadd.f32 %v2999, %v3396
        %v3482 = vadd.f32 %v3000, %v3400
        %v3483 = vadd.f32 %v3001, %v3402
        %v3484 = vadd.f32 %v3002, %v3406
        %v3485 = vadd.f32 %v3003, %v3408
        %v3486 = vadd.f32 %v3004, %v3412
        %v3487 = vadd.f32 %v3005, %v3414
        %v3488 = vadd.f32 %v3006, %v3418
        %v3489 = vadd.f32 %v3007, %v3420
        %v3490 = vadd.f32 %v3008, %v3424
        %v3491 = vadd.f32 %v3009, %v3426
        %v3492 = vadd.f32 %v3010, %v3430
        %v3493 = vadd.f32 %v3011, %v3432
        %v3494 = vadd.f32 %v3012, %v3436
        %v3495 = vadd.f32 %v3013, %v3438
        %v3496 = vadd.f32 %v3014, %v3442
        %v3497 = vadd.f32 %v3015, %v3444
        %v3498 = vadd.f32 %v3016, %v3448
        %v3499 = vadd.f32 %v3017, %v3450
        %v3500 = vadd.f32 %v3018, %v3454
        %v3501 = vadd.f32 %v3019, %v3456
        %v3502 = vadd.f32 %v3020, %v3460
        %v3503 = vadd.f32 %v3021, %v3462
        %v3504 = vadd.f32 %v3022, %v3466
        %v3505 = vadd.f32 %v3023, %v3468
        %v3506 = vadd.f32 %v3024, %v3472
        %v3507 = vadd.f32 %v3025, %v3474
        %3508 = vst [vmem:[#allocation2] sm:$0xff] %v3476
        %3509 = vst [vmem:[#allocation2 + $0x8] sm:$0xff] %v3477
        %3510 = vst [vmem:[#allocation2 + $0x10] sm:$0xff] %v3478
        %3511 = vst [vmem:[#allocation2 + $0x18] sm:$0xff] %v3479
        %3512 = vst [vmem:[#allocation2 + $0x20] sm:$0xff] %v3480
        %3513 = vst [vmem:[#allocation2 + $0x28] sm:$0xff] %v3481
        %3514 = vst [vmem:[#allocation2 + $0x30] sm:$0xff] %v3482
        %3515 = vst [vmem:[#allocation2 + $0x38] sm:$0xff] %v3483
        %3516 = vst [vmem:[#allocation2 + $0x40] sm:$0xff] %v3484
        %3517 = vst [vmem:[#allocation2 + $0x48] sm:$0xff] %v3485
        %3518 = vst [vmem:[#allocation2 + $0x50] sm:$0xff] %v3486
        %3519 = vst [vmem:[#allocation2 + $0x58] sm:$0xff] %v3487
        %3520 = vst [vmem:[#allocation2 + $0x60] sm:$0xff] %v3488
        %3521 = vst [vmem:[#allocation2 + $0x68] sm:$0xff] %v3489
        %3522 = vst [vmem:[#allocation2 + $0x70] sm:$0xff] %v3490
        %3523 = vst [vmem:[#allocation2 + $0x78] sm:$0xff] %v3491
        %3524 = vst [vmem:[#allocation2 + $0x80] sm:$0xff] %v3492
        %3525 = vst [vmem:[#allocation2 + $0x88] sm:$0xff] %v3493
        %3526 = vst [vmem:[#allocation2 + $0x90] sm:$0xff] %v3494
        %3527 = vst [vmem:[#allocation2 + $0x98] sm:$0xff] %v3495
        %3528 = vst [vmem:[#allocation2 + $0xa0] sm:$0xff] %v3496
        %3529 = vst [vmem:[#allocation2 + $0xa8] sm:$0xff] %v3497
        %3530 = vst [vmem:[#allocation2 + $0xb0] sm:$0xff] %v3498
        %3531 = vst [vmem:[#allocation2 + $0xb8] sm:$0xff] %v3499
        %3532 = vst [vmem:[#allocation2 + $0xc0] sm:$0xff] %v3500
        %3533 = vst [vmem:[#allocation2 + $0xc8] sm:$0xff] %v3501
        %3534 = vst [vmem:[#allocation2 + $0xd0] sm:$0xff] %v3502
        %3535 = vst [vmem:[#allocation2 + $0xd8] sm:$0xff] %v3503
        %3536 = vst [vmem:[#allocation2 + $0xe0] sm:$0xff] %v3504
        %3537 = vst [vmem:[#allocation2 + $0xe8] sm:$0xff] %v3505
        %3538 = vst [vmem:[#allocation2 + $0xf0] sm:$0xff] %v3506
        %3539 = vst [vmem:[#allocation2 + $0xf8] sm:$0xff] %v3507
        %v3540 = vld [vmem:[#allocation2] sm:$0xff]
        %v3541 = vld [vmem:[#allocation2 + $0x8] sm:$0xff]
        %v3542 = vld [vmem:[#allocation2 + $0x10] sm:$0xff]
        %v3543 = vld [vmem:[#allocation2 + $0x18] sm:$0xff]
        %v3544 = vld [vmem:[#allocation2 + $0x20] sm:$0xff]
        %v3545 = vld [vmem:[#allocation2 + $0x28] sm:$0xff]
        %v3546 = vld [vmem:[#allocation2 + $0x30] sm:$0xff]
        %v3547 = vld [vmem:[#allocation2 + $0x38] sm:$0xff]
        %v3548 = vld [vmem:[#allocation2 + $0x40] sm:$0xff]
        %v3549 = vld [vmem:[#allocation2 + $0x48] sm:$0xff]
        %v3550 = vld [vmem:[#allocation2 + $0x50] sm:$0xff]
        %v3551 = vld [vmem:[#allocation2 + $0x58] sm:$0xff]
        %v3552 = vld [vmem:[#allocation2 + $0x60] sm:$0xff]
        %v3553 = vld [vmem:[#allocation2 + $0x68] sm:$0xff]
        %v3554 = vld [vmem:[#allocation2 + $0x70] sm:$0xff]
        %v3555 = vld [vmem:[#allocation2 + $0x78] sm:$0xff]
        %v3556 = vld [vmem:[#allocation2 + $0x80] sm:$0xff]
        %v3557 = vld [vmem:[#allocation2 + $0x88] sm:$0xff]
        %v3558 = vld [vmem:[#allocation2 + $0x90] sm:$0xff]
        %v3559 = vld [vmem:[#allocation2 + $0x98] sm:$0xff]
        %v3560 = vld [vmem:[#allocation2 + $0xa0] sm:$0xff]
        %v3561 = vld [vmem:[#allocation2 + $0xa8] sm:$0xff]
        %v3562 = vld [vmem:[#allocation2 + $0xb0] sm:$0xff]
        %v3563 = vld [vmem:[#allocation2 + $0xb8] sm:$0xff]
        %v3564 = vld [vmem:[#allocation2 + $0xc0] sm:$0xff]
        %v3565 = vld [vmem:[#allocation2 + $0xc8] sm:$0xff]
        %v3566 = vld [vmem:[#allocation2 + $0xd0] sm:$0xff]
        %v3567 = vld [vmem:[#allocation2 + $0xd8] sm:$0xff]
        %v3568 = vld [vmem:[#allocation2 + $0xe0] sm:$0xff]
        %v3569 = vld [vmem:[#allocation2 + $0xe8] sm:$0xff]
        %v3570 = vld [vmem:[#allocation2 + $0xf0] sm:$0xff]
        %v3571 = vld [vmem:[#allocation2 + $0xf8] sm:$0xff]
        %v3572 = vld [vmem:[%s4] sm:$0x3]
        %v3574 = vlaneseq
        %v3575 = vshrl.u32 %v3574, 7
        %v3576 = vsub.s32 0, %v3575
        %v3577 = vrot.slane %v3572, %v3576
        %v3578 = vlaneseq
        %v3579 = vshrl.u32 %v3578, 7
        %v3580 = vsub.s32 1, %v3579
        %v3581 = vrot.slane %v3572, %v3580
        %v3584 = vadd.f32 %v3540, %v3577
        %v3585 = vadd.f32 %v3541, %v3581
        %v3586 = vadd.f32 %v3542, %v3577
        %v3587 = vadd.f32 %v3543, %v3581
        %v3588 = vadd.f32 %v3544, %v3577
        %v3589 = vadd.f32 %v3545, %v3581
        %v3590 = vadd.f32 %v3546, %v3577
        %v3591 = vadd.f32 %v3547, %v3581
        %v3592 = vadd.f32 %v3548, %v3577
        %v3593 = vadd.f32 %v3549, %v3581
        %v3594 = vadd.f32 %v3550, %v3577
        %v3595 = vadd.f32 %v3551, %v3581
        %v3596 = vadd.f32 %v3552, %v3577
        %v3597 = vadd.f32 %v3553, %v3581
        %v3598 = vadd.f32 %v3554, %v3577
        %v3599 = vadd.f32 %v3555, %v3581
        %v3600 = vadd.f32 %v3556, %v3577
        %v3601 = vadd.f32 %v3557, %v3581
        %v3602 = vadd.f32 %v3558, %v3577
        %v3603 = vadd.f32 %v3559, %v3581
        %v3604 = vadd.f32 %v3560, %v3577
        %v3605 = vadd.f32 %v3561, %v3581
        %v3606 = vadd.f32 %v3562, %v3577
        %v3607 = vadd.f32 %v3563, %v3581
        %v3608 = vadd.f32 %v3564, %v3577
        %v3609 = vadd.f32 %v3565, %v3581
        %v3610 = vadd.f32 %v3566, %v3577
        %v3611 = vadd.f32 %v3567, %v3581
        %v3612 = vadd.f32 %v3568, %v3577
        %v3613 = vadd.f32 %v3569, %v3581
        %v3614 = vadd.f32 %v3570, %v3577
        %v3615 = vadd.f32 %v3571, %v3581
        %3616 = vst [vmem:[%s285] sm:$0xff] %v3584
        %3617 = vst [vmem:[%s285 + $0x8] sm:$0xff] %v3585
        %3618 = vst [vmem:[%s285 + $0x10] sm:$0xff] %v3586
        %3619 = vst [vmem:[%s285 + $0x18] sm:$0xff] %v3587
        %3620 = vst [vmem:[%s285 + $0x20] sm:$0xff] %v3588
        %3621 = vst [vmem:[%s285 + $0x28] sm:$0xff] %v3589
        %3622 = vst [vmem:[%s285 + $0x30] sm:$0xff] %v3590
        %3623 = vst [vmem:[%s285 + $0x38] sm:$0xff] %v3591
        %3624 = vst [vmem:[%s285 + $0x40] sm:$0xff] %v3592
        %3625 = vst [vmem:[%s285 + $0x48] sm:$0xff] %v3593
        %3626 = vst [vmem:[%s285 + $0x50] sm:$0xff] %v3594
        %3627 = vst [vmem:[%s285 + $0x58] sm:$0xff] %v3595
        %3628 = vst [vmem:[%s285 + $0x60] sm:$0xff] %v3596
        %3629 = vst [vmem:[%s285 + $0x68] sm:$0xff] %v3597
        %3630 = vst [vmem:[%s285 + $0x70] sm:$0xff] %v3598
        %3631 = vst [vmem:[%s285 + $0x78] sm:$0xff] %v3599
        %3632 = vst [vmem:[%s285 + $0x80] sm:$0xff] %v3600
        %3633 = vst [vmem:[%s285 + $0x88] sm:$0xff] %v3601
        %3634 = vst [vmem:[%s285 + $0x90] sm:$0xff] %v3602
        %3635 = vst [vmem:[%s285 + $0x98] sm:$0xff] %v3603
        %3636 = vst [vmem:[%s285 + $0xa0] sm:$0xff] %v3604
        %3637 = vst [vmem:[%s285 + $0xa8] sm:$0xff] %v3605
        %3638 = vst [vmem:[%s285 + $0xb0] sm:$0xff] %v3606
        %3639 = vst [vmem:[%s285 + $0xb8] sm:$0xff] %v3607
        %3640 = vst [vmem:[%s285 + $0xc0] sm:$0xff] %v3608
        %3641 = vst [vmem:[%s285 + $0xc8] sm:$0xff] %v3609
        %3642 = vst [vmem:[%s285 + $0xd0] sm:$0xff] %v3610
        %3643 = vst [vmem:[%s285 + $0xd8] sm:$0xff] %v3611
        %3644 = vst [vmem:[%s285 + $0xe0] sm:$0xff] %v3612
        %3645 = vst [vmem:[%s285 + $0xe8] sm:$0xff] %v3613
        %3646 = vst [vmem:[%s285 + $0xf0] sm:$0xff] %v3614
        %3647 = vst [vmem:[%s285 + $0xf8] sm:$0xff] %v3615
        %s3648 = sand.u32 %s142, 1
        %s3649 = scalar_lea.sflag [#allocation5], %s3648
        %s3650 = sand.u32 %s142, 1
        %s3651 = smul.addr %s3650, 256
        %s3652 = scalar_lea.vmem [#allocation11], %s3651
        // Predicated region
        $region57: #{tpu_custom_call.1} parent=39 // pred_check
          %p3653 = pneg %p152
        $region58: #{tpu_custom_call.1} parent=39 // pred_check_branch
          %3655 = sbr.rel (%p3653) target = $region60
        $region59: #{tpu_custom_call.1} parent=39 // pred_region
          %s3656 = smul.u32 16, %s24
          %s3658 = ssub.s32 4096, 4096
          %3659 = vsyncadd %s3649, %s3658
          %s3660 = smul.addr %s3656, 2
          %s3661 = smul.addr %s3660, 128
          %s3662 = scalar_lea.hbm %s5, %s3661
          %s3663 = sshll.u32 %s3652, 4
          %s3664 = int_to_ptr.vmem [resolvable:$true] %s3663
          %3669 = dma.vmem_to_hbm [thread:$0]  %s3664, 4096, %s3662, %s3649, 256, 256, 16
        $region60: #{tpu_custom_call.1} parent=39 // pred_fallthru
          _
      $region40: #{tpu_custom_call.1} parent=5 // pred_fallthru
        _
      %p3670 = scmp.le.s32.totalorder 2, %s19
      // Predicated region
      $region61: #{tpu_custom_call.1} parent=5 // pred_check
        %p3671 = pneg %p3670
      $region62: #{tpu_custom_call.1} parent=5 // pred_check_branch
        %3673 = sbr.rel (%p3671) target = $region64
      $region63: #{tpu_custom_call.1} parent=5 // pred_region
        %s3674 = ssub.s32 %s19, 2
        // Predicated region
        $region65: #{tpu_custom_call.1} parent=63 // pred_check
          %p3675 = pneg %p158
        $region66: #{tpu_custom_call.1} parent=63 // pred_check_branch
          %3677 = sbr.rel (%p3675) target = $region68
        $region67: #{tpu_custom_call.1} parent=63 // pred_region
          %s3678 = sand.u32 %s143, 1
          %s3679 = scalar_lea.sflag [#allocation5], %s3678
          %s3680 = sand.u32 %s143, 1
          %s3681 = smul.addr %s3680, 256
          %s3682 = scalar_lea.vmem [#allocation11], %s3681
          %3683 = dma.done %s3679, 4096
        $region68: #{tpu_custom_call.1} parent=63 // pred_fallthru
          _
      $region64: #{tpu_custom_call.1} parent=5 // pred_fallthru
        _
    $region6: #{tpu_custom_call.1} parent=1 // loop_footer
      %s23 = sadd.s32 1, %s19
    $region7: #{tpu_custom_call.1} parent=1 // loop_footer_branch
      %18 = sbr.rel target = $region3
    $region8: #{tpu_custom_call.1} parent=1 // loop_exit
      _
    %3684 = vsyncpa [#allocation4], 1
    %s3685 = scalar_lea.sflag [#allocation4], 1
    %3686 = vsyncpa %s3685, 1
    %3687 = vsyncpa [#allocation7], 1
    %3688 = vsyncpa [#allocation10], 1
    %3689 = vsyncpa [#allocation5], 1
    %s3690 = scalar_lea.sflag [#allocation5], 1
    %3691 = vsyncpa %s3690, 1

</llo_original>
